<compile_context>
chip_gen: v5e
topology: v5e:2x2
jax: 0.10.0
libtpu: 0.0.40
codegen_flags: <defaults>
</compile_context>

<pallas_src>
import functools

import jax
import jax.numpy as jnp
from jax import lax
from jax.experimental import pallas as pl
from jax.experimental.pallas import tpu as pltpu


# --------------------------------- kernel ------------------------------------

def _lbrom_kernel(patch_ref, bmap_ref, effw_ref, gamma_ref, beta_ref,
                  w2_ref, b2_ref, o_ref, *, eps, slope, center):
    """One grid step = one pwconv group g (4 depthwise channels -> 1 output
    channel) over the FULL batch + spatial extent S, so the BatchNorm batch
    statistics are exact.

    patch_ref : (1, K, S)  im2col of the zero-padded x_left for group g
    bmap_ref  : (1, 4, S)  folded pwconv1-bias / dwconv-bias additive map
    effw_ref  : (1, 4, K)  depthwise weights with the pwconv1 scale folded in
    gamma/beta: (1, 4, 1)  BatchNorm affine params of the 4 channels
    w2_ref    : (1, 4, 1)  grouped pwconv2 weights (4 in -> 1 out)
    b2_ref    : SMEM (nc,) pwconv2 bias
    o_ref     : (1, 1, S)  output channel g (wrapper un-flattens afterwards)
    """
    g = pl.program_id(0)

    # Folded pwconv1 + depthwise 7x7x7 conv: one MXU matmul for all 4 channels.
    dw = jnp.dot(effw_ref[0], patch_ref[0],
                 preferred_element_type=jnp.float32,
                 precision=lax.Precision.HIGHEST)               # (4, S)
    dw = dw + bmap_ref[0]

    # BatchNorm3d with batch statistics (training-mode forward), two-pass
    # (mean-subtracted) variance to avoid cancellation.
    inv_cnt = 1.0 / dw.shape[1]
    mean = jnp.sum(dw, axis=1, keepdims=True) * inv_cnt          # (4, 1)
    ctr = dw - mean
    var = jnp.sum(ctr * ctr, axis=1, keepdims=True) * inv_cnt    # biased var
    y = ctr * (lax.rsqrt(var + eps) * gamma_ref[0]) + beta_ref[0]
    y = jnp.where(y > 0, y, slope * y)                           # LeakyReLU(0.01)

    # Grouped pwconv2 (4 -> 1): register-resident weighted sublane reduction.
    xr = jnp.sum(y * w2_ref[0], axis=0)                          # (S,)

    # Residual: x_left of this group == centre tap (kd=kh=kw=3) of the patch.
    o_ref[0, 0] = xr + b2_ref[g] + patch_ref[0, center, :]


# --------------------------------- wrapper -----------------------------------

def lbrom_forward(x, params):
    N, Cin, D, H, W = x.shape
    nc = params["tconv_b"].shape[0]
    C4 = 4 * nc
    S = N * D * H * W
    # The flip/transpose equivalence below only holds for k=3, stride=1, pad=1.
    assert params["tconv_w"].shape[2:] == (3, 3, 3)
    hi = lax.Precision.HIGHEST
    bc = lambda v: v[:, None, None, None]

    # ---- stage 1: ConvTranspose3d(k=3,s=1,p=1) == conv with flipped weights ---
    w_eq = jnp.transpose(jnp.flip(params["tconv_w"], (2, 3, 4)), (1, 0, 2, 3, 4))
    x_left = lax.conv_general_dilated(
        x, w_eq, (1, 1, 1), [(1, 1)] * 3,
        dimension_numbers=("NCDHW", "OIDHW", "NCDHW"),
        precision=hi) + params["tconv_b"][None, :, None, None, None]   # (N,nc,D,H,W)

    # ---- fold pwconv1 into the depthwise conv ---------------------------------
    # x_right[c] = pw1_w[c]*x_left[c//4] + pw1_b[c]; the multiplicative part
    # scales the taps, the additive part becomes a precomputed per-position map
    # (the dw conv zero-pads, so the bias only reaches in-volume taps).
    eff_w = (params["dw_w"] * params["pw1_w"][:, None, None, None]).reshape(C4, 343)
    ones = jnp.ones((1, C4, D, H, W), jnp.float32)
    ones_conv = lax.conv_general_dilated(
        ones, params["dw_w"][:, None], (1, 1, 1), [(3, 3)] * 3,
        dimension_numbers=("NCDHW", "OIDHW", "NCDHW"),
        feature_group_count=C4, precision=hi)[0]                        # (C4,D,H,W)
    bias_map = bc(params["pw1_b"]) * ones_conv + bc(params["dw_b"])     # (C4,D,H,W)
    bias_map = jnp.broadcast_to(bias_map[:, None], (C4, N, D, H, W))
    bias_map = bias_map.reshape(nc, 4, S)

    # ---- lane-dense im2col of the zero-padded x_left (XLA layout plumbing) ----
    xlp = jnp.pad(x_left, ((0, 0), (0, 0), (3, 3), (3, 3), (3, 3)))
    a = jnp.stack([xlp[:, :, kd:kd + D] for kd in range(7)], axis=2)
    b = jnp.stack([a[..., kh:kh + H, :] for kh in range(7)], axis=3)
    c = jnp.stack([b[..., kw:kw + W] for kw in range(7)], axis=4)       # (N,nc,7,7,7,D,H,W)
    patch = jnp.transpose(c, (1, 2, 3, 4, 0, 5, 6, 7)).reshape(nc, 343, S)

    # Pad K 343 -> 344 (multiple of 8) with a zero row / zero weight column.
    patch = jnp.pad(patch, ((0, 0), (0, 1), (0, 0)))                    # (nc,344,S)
    eff_w = jnp.pad(eff_w.reshape(nc, 4, 343), ((0, 0), (0, 0), (0, 1)))  # (nc,4,344)
    Kp = 344
    center = 3 * 49 + 3 * 7 + 3                                          # = 171

    gamma = params["bn_gamma"].reshape(nc, 4, 1)
    beta = params["bn_beta"].reshape(nc, 4, 1)
    w2 = params["pw2_w"].reshape(nc, 4, 1)
    b2 = params["pw2_b"]

    kernel = functools.partial(_lbrom_kernel, eps=1e-5, slope=0.01, center=center)
    smem = pl.BlockSpec(memory_space=pltpu.MemorySpace.SMEM)

    out = pl.pallas_call(
        kernel,
        out_shape=jax.ShapeDtypeStruct((nc, 1, S), jnp.float32),
        grid=(nc,),
        in_specs=[
            pl.BlockSpec((1, Kp, S), lambda g: (g, 0, 0)),   # im2col patch
            pl.BlockSpec((1, 4, S), lambda g: (g, 0, 0)),    # additive bias map
            pl.BlockSpec((1, 4, Kp), lambda g: (g, 0, 0)),   # effective dw weights
            pl.BlockSpec((1, 4, 1), lambda g: (g, 0, 0)),    # bn gamma
            pl.BlockSpec((1, 4, 1), lambda g: (g, 0, 0)),    # bn beta
            pl.BlockSpec((1, 4, 1), lambda g: (g, 0, 0)),    # pw2 weights
            smem,                                            # pw2 bias (nc,)
        ],
        out_specs=pl.BlockSpec((1, 1, S), lambda g: (g, 0, 0)),
        compiler_params=pltpu.CompilerParams(
            dimension_semantics=("parallel",),               # v7x: 2 TCs split groups
        ),
    )(patch, bias_map, eff_w, gamma, beta, w2, b2)

    # Un-flatten the lane-dense output slab back to (N, nc, D, H, W).
    return out.reshape(nc, N, D, H, W).transpose(1, 0, 2, 3, 4)


# --------------------------- deterministic params ----------------------------

def init_params(key, out_c, n_class):
    ks = jax.random.split(key, 8)
    return {
        # ConvTranspose3d weight layout: (in_c, out_c, 3, 3, 3)
        "tconv_w": jax.random.normal(ks[0], (out_c, n_class, 3, 3, 3), jnp.float32) * 0.1,
        "tconv_b": jax.random.normal(ks[1], (n_class,), jnp.float32) * 0.1,
        # Conv3d(nc, 4nc, 1, groups=nc) weight (4nc,1,1,1,1) -> squeezed (4nc,)
        "pw1_w": jax.random.normal(ks[2], (4 * n_class,), jnp.float32) * 0.1,
        "pw1_b": jax.random.normal(ks[3], (4 * n_class,), jnp.float32) * 0.1,
        # depthwise Conv3d weight (4nc,1,7,7,7) -> (4nc,7,7,7)
        "dw_w": jax.random.normal(ks[4], (4 * n_class, 7, 7, 7), jnp.float32) * 0.05,
        "dw_b": jax.random.normal(ks[5], (4 * n_class,), jnp.float32) * 0.1,
        # BatchNorm3d defaults
        "bn_gamma": jnp.ones((4 * n_class,), jnp.float32),
        "bn_beta": jnp.zeros((4 * n_class,), jnp.float32),
        # Conv3d(4nc, nc, 1, groups=nc) weight (nc,4,1,1,1) -> (nc,4)
        "pw2_w": jax.random.normal(ks[6], (n_class, 4), jnp.float32) * 0.1,
        "pw2_b": jax.random.normal(ks[7], (n_class,), jnp.float32) * 0.1,
    }


# ----------------------------- pure-JAX reference ----------------------------

def lbrom_reference(x, params):
    nc = params["tconv_b"].shape[0]
    bc = lambda v: v[None, :, None, None, None]
    w_eq = jnp.transpose(jnp.flip(params["tconv_w"], axis=(2, 3, 4)),
                         (1, 0, 2, 3, 4))
    x_left = lax.conv_general_dilated(
        x, w_eq, (1, 1, 1), [(1, 1)] * 3,
        dimension_numbers=("NCDHW", "OIDHW", "NCDHW"),
        precision=lax.Precision.HIGHEST) + bc(params["tconv_b"])
    xr = jnp.repeat(x_left, 4, axis=1) * bc(params["pw1_w"]) + bc(params["pw1_b"])
    xr = lax.conv_general_dilated(
        xr, params["dw_w"][:, None], (1, 1, 1), [(3, 3)] * 3,
        dimension_numbers=("NCDHW", "OIDHW", "NCDHW"),
        feature_group_count=4 * nc,
        precision=lax.Precision.HIGHEST) + bc(params["dw_b"])
    mean = jnp.mean(xr, axis=(0, 2, 3, 4), keepdims=True)
    var = jnp.mean((xr - mean) ** 2, axis=(0, 2, 3, 4), keepdims=True)
    xr = (xr - mean) * lax.rsqrt(var + 1e-5)
    xr = xr * bc(params["bn_gamma"]) + bc(params["bn_beta"])
    xr = jnp.where(xr > 0, xr, 0.01 * xr)
    n, _, d, h, w = xr.shape
    xr = jnp.einsum("ngjdhw,gj->ngdhw",
                    xr.reshape(n, nc, 4, d, h, w), params["pw2_w"]) + bc(params["pw2_b"])
    return x_left + xr
    # TODO(synk): BatchNorm3d running_mean/running_var buffer updates (training
    # side effect) are not modeled; forward uses batch statistics as PyTorch does.


# ----------------------------------- main -------------------------------------

if __name__ == "__main__":
    key = jax.random.PRNGKey(0)
    kx, kp = jax.random.split(key)
    N, out_c, n_class, D, H, W = 2, 4, 4, 8, 8, 8
    x = jax.random.normal(kx, (N, out_c, D, H, W), jnp.float32)
    params = init_params(kp, out_c, n_class)

    y = jax.block_until_ready(jax.jit(lbrom_forward)(x, params))
    assert y.shape == (N, n_class, D, H, W), y.shape

    y_ref = lbrom_reference(x, params)
    err = float(jnp.max(jnp.abs(y - y_ref)))
    assert err < 2e-3, f"max abs error {err}"
    print("KERNEL_OK")
</pallas_src>

<mosaic_0001>
module attributes {stable_mosaic.version = 11 : i64} {
  func.func @_lbrom_kernel(%arg0: i32, %arg1: memref<1x344x1024xf32, #tpu.memory_space<vmem>>, %arg2: memref<1x4x1024xf32, #tpu.memory_space<vmem>>, %arg3: memref<1x4x344xf32, #tpu.memory_space<vmem>>, %arg4: memref<1x4x1xf32, #tpu.memory_space<vmem>>, %arg5: memref<1x4x1xf32, #tpu.memory_space<vmem>>, %arg6: memref<1x4x1xf32, #tpu.memory_space<vmem>>, %arg7: memref<4xf32, #tpu.memory_space<smem>>, %arg8: memref<1x1x1024xf32, #tpu.memory_space<vmem>>) attributes {dimension_semantics = [#tpu.dimension_semantics<parallel>], iteration_bounds = array<i64: 4>, scalar_prefetch = 0 : i64, scratch_operands = 0 : i64, tpu.core_type = #tpu.core_type<tc>, window_params = [{transform_indices = @transform_0, window_bounds = array<i64: 1, 344, 1024>}, {transform_indices = @transform_1, window_bounds = array<i64: 1, 4, 1024>}, {transform_indices = @transform_2, window_bounds = array<i64: 1, 4, 344>}, {transform_indices = @transform_3, window_bounds = array<i64: 1, 4, 1>}, {transform_indices = @transform_4, window_bounds = array<i64: 1, 4, 1>}, {transform_indices = @transform_5, window_bounds = array<i64: 1, 4, 1>}, {transform_indices = @transform_6, window_bounds = array<i64: 4>}, {transform_indices = @transform_7, window_bounds = array<i64: 1, 1, 1024>}]} {
    %c0 = arith.constant 0 : index
    %c0_0 = arith.constant 0 : index
    %c0_1 = arith.constant 0 : index
    %0 = vector.load %arg3[%c0, %c0_0, %c0_1] : memref<1x4x344xf32, #tpu.memory_space<vmem>>, vector<1x4x344xf32>
    %1 = vector.shape_cast %0 : vector<1x4x344xf32> to vector<4x344xf32>
    %c0_2 = arith.constant 0 : index
    %c0_3 = arith.constant 0 : index
    %c0_4 = arith.constant 0 : index
    %2 = vector.load %arg1[%c0_2, %c0_3, %c0_4] : memref<1x344x1024xf32, #tpu.memory_space<vmem>>, vector<1x344x1024xf32>
    %3 = vector.shape_cast %2 : vector<1x344x1024xf32> to vector<344x1024xf32>
    %cst = arith.constant dense<0.000000e+00> : vector<4x1024xf32>
    %4 = tpu.matmul %1, %3, %cst {dimension_numbers = #tpu.dot_dimension_numbers<[1], [0], [0], [1], [0, 0, 1, 1], [], []>, precision = #tpu.contract_precision<fp32>} : vector<4x344xf32>, vector<344x1024xf32>, vector<4x1024xf32> -> vector<4x1024xf32>
    %c0_5 = arith.constant 0 : index
    %c0_6 = arith.constant 0 : index
    %c0_7 = arith.constant 0 : index
    %5 = vector.load %arg2[%c0_5, %c0_6, %c0_7] : memref<1x4x1024xf32, #tpu.memory_space<vmem>>, vector<1x4x1024xf32>
    %6 = vector.shape_cast %5 : vector<1x4x1024xf32> to vector<4x1024xf32>
    %7 = arith.addf %4, %6 : vector<4x1024xf32>
    %cst_8 = arith.constant dense<0.000000e+00> : vector<4xf32>
    %8 = vector.multi_reduction <add>, %7, %cst_8 [1] : vector<4x1024xf32> to vector<4xf32>
    %9 = vector.shape_cast %8 : vector<4xf32> to vector<4x1xf32>
    %cst_9 = arith.constant 9.765625E-4 : f32
    %10 = vector.broadcast %cst_9 : f32 to vector<4x1xf32>
    %11 = arith.mulf %9, %10 : vector<4x1xf32>
    %12 = vector.broadcast %11 : vector<4x1xf32> to vector<4x1024xf32>
    %13 = arith.subf %7, %12 : vector<4x1024xf32>
    %14 = arith.mulf %13, %13 : vector<4x1024xf32>
    %cst_10 = arith.constant dense<0.000000e+00> : vector<4xf32>
    %15 = vector.multi_reduction <add>, %14, %cst_10 [1] : vector<4x1024xf32> to vector<4xf32>
    %16 = vector.shape_cast %15 : vector<4xf32> to vector<4x1xf32>
    %cst_11 = arith.constant 9.765625E-4 : f32
    %17 = vector.broadcast %cst_11 : f32 to vector<4x1xf32>
    %18 = arith.mulf %16, %17 : vector<4x1xf32>
    %cst_12 = arith.constant 9.99999974E-6 : f32
    %19 = vector.broadcast %cst_12 : f32 to vector<4x1xf32>
    %20 = arith.addf %18, %19 : vector<4x1xf32>
    %21 = math.rsqrt %20 : vector<4x1xf32>
    %c0_13 = arith.constant 0 : index
    %c0_14 = arith.constant 0 : index
    %c0_15 = arith.constant 0 : index
    %22 = vector.load %arg4[%c0_13, %c0_14, %c0_15] : memref<1x4x1xf32, #tpu.memory_space<vmem>>, vector<1x4x1xf32>
    %23 = vector.shape_cast %22 : vector<1x4x1xf32> to vector<4x1xf32>
    %24 = arith.mulf %21, %23 : vector<4x1xf32>
    %25 = vector.broadcast %24 : vector<4x1xf32> to vector<4x1024xf32>
    %26 = arith.mulf %13, %25 : vector<4x1024xf32>
    %c0_16 = arith.constant 0 : index
    %c0_17 = arith.constant 0 : index
    %c0_18 = arith.constant 0 : index
    %27 = vector.load %arg5[%c0_16, %c0_17, %c0_18] : memref<1x4x1xf32, #tpu.memory_space<vmem>>, vector<1x4x1xf32>
    %28 = vector.shape_cast %27 : vector<1x4x1xf32> to vector<4x1xf32>
    %29 = vector.broadcast %28 : vector<4x1xf32> to vector<4x1024xf32>
    %30 = arith.addf %26, %29 : vector<4x1024xf32>
    %cst_19 = arith.constant 0.000000e+00 : f32
    %31 = vector.broadcast %cst_19 : f32 to vector<4x1024xf32>
    %32 = arith.cmpf ogt, %30, %31 : vector<4x1024xf32>
    %cst_20 = arith.constant 0.00999999977 : f32
    %33 = vector.broadcast %cst_20 : f32 to vector<4x1024xf32>
    %34 = arith.mulf %33, %30 : vector<4x1024xf32>
    %35 = arith.select %32, %30, %34 : vector<4x1024xi1>, vector<4x1024xf32>
    %c0_21 = arith.constant 0 : index
    %c0_22 = arith.constant 0 : index
    %c0_23 = arith.constant 0 : index
    %36 = vector.load %arg6[%c0_21, %c0_22, %c0_23] : memref<1x4x1xf32, #tpu.memory_space<vmem>>, vector<1x4x1xf32>
    %37 = vector.shape_cast %36 : vector<1x4x1xf32> to vector<4x1xf32>
    %38 = vector.broadcast %37 : vector<4x1xf32> to vector<4x1024xf32>
    %39 = arith.mulf %35, %38 : vector<4x1024xf32>
    %cst_24 = arith.constant dense<0.000000e+00> : vector<1024xf32>
    %40 = vector.multi_reduction <add>, %39, %cst_24 [0] : vector<4x1024xf32> to vector<1024xf32>
    %41 = arith.index_cast %arg0 : i32 to index
    %42 = memref.load %arg7[%41] : memref<4xf32, #tpu.memory_space<smem>>
    %43 = vector.broadcast %42 : f32 to vector<1024xf32>
    %44 = arith.addf %40, %43 : vector<1024xf32>
    %c0_25 = arith.constant 0 : index
    %c171 = arith.constant 171 : index
    %c0_26 = arith.constant 0 : index
    %45 = vector.load %arg1[%c0_25, %c171, %c0_26] : memref<1x344x1024xf32, #tpu.memory_space<vmem>>, vector<1x1x1024xf32>
    %46 = vector.shape_cast %45 : vector<1x1x1024xf32> to vector<1024xf32>
    %47 = arith.addf %44, %46 : vector<1024xf32>
    %c0_27 = arith.constant 0 : index
    %c0_28 = arith.constant 0 : index
    %c0_29 = arith.constant 0 : index
    %48 = vector.load %arg8[%c0_27, %c0_28, %c0_29] : memref<1x1x1024xf32, #tpu.memory_space<vmem>>, vector<1x1x1024xf32>
    %49 = vector.shape_cast %48 : vector<1x1x1024xf32> to vector<1024xf32>
    %50 = vector.shape_cast %47 : vector<1024xf32> to vector<1x1x1024xf32>
    tpu.vector_store %arg8[%c0_27, %c0_28, %c0_29], %50 {strides = array<i32>} : memref<1x1x1024xf32, #tpu.memory_space<vmem>>, vector<1x1x1024xf32>,
    return
  }
  func.func @transform_0(%arg0: i32) -> (i32, i32, i32) {
    %c0_i32 = arith.constant 0 : i32
    %c0_i32_0 = arith.constant 0 : i32
    %c0_i32_1 = arith.constant 0 : i32
    return %arg0, %c0_i32, %c0_i32_0 : i32, i32, i32
  }
  func.func @transform_1(%arg0: i32) -> (i32, i32, i32) {
    %c0_i32 = arith.constant 0 : i32
    %c0_i32_0 = arith.constant 0 : i32
    %c0_i32_1 = arith.constant 0 : i32
    return %arg0, %c0_i32, %c0_i32_0 : i32, i32, i32
  }
  func.func @transform_2(%arg0: i32) -> (i32, i32, i32) {
    %c0_i32 = arith.constant 0 : i32
    %c0_i32_0 = arith.constant 0 : i32
    %c0_i32_1 = arith.constant 0 : i32
    return %arg0, %c0_i32, %c0_i32_0 : i32, i32, i32
  }
  func.func @transform_3(%arg0: i32) -> (i32, i32, i32) {
    %c0_i32 = arith.constant 0 : i32
    %c0_i32_0 = arith.constant 0 : i32
    %c0_i32_1 = arith.constant 0 : i32
    return %arg0, %c0_i32, %c0_i32_0 : i32, i32, i32
  }
  func.func @transform_4(%arg0: i32) -> (i32, i32, i32) {
    %c0_i32 = arith.constant 0 : i32
    %c0_i32_0 = arith.constant 0 : i32
    %c0_i32_1 = arith.constant 0 : i32
    return %arg0, %c0_i32, %c0_i32_0 : i32, i32, i32
  }
  func.func @transform_5(%arg0: i32) -> (i32, i32, i32) {
    %c0_i32 = arith.constant 0 : i32
    %c0_i32_0 = arith.constant 0 : i32
    %c0_i32_1 = arith.constant 0 : i32
    return %arg0, %c0_i32, %c0_i32_0 : i32, i32, i32
  }
  func.func @transform_6(%arg0: i32) -> i32 {
    %c0_i32 = arith.constant 0 : i32
    %c0_i32_0 = arith.constant 0 : i32
    return %c0_i32 : i32
  }
  func.func @transform_7(%arg0: i32) -> (i32, i32, i32) {
    %c0_i32 = arith.constant 0 : i32
    %c0_i32_0 = arith.constant 0 : i32
    %c0_i32_1 = arith.constant 0 : i32
    return %arg0, %c0_i32, %c0_i32_0 : i32, i32, i32
  }
}

</mosaic_0001>

<llo_original>
// kernel: lbrom_forward.1
$region0: #{lbrom_forward.1}
  #allocation0 [shape = 'u32[]', space=smem, size = 0x4, offset = 0x4, fixed_abs, tag = 'smem constant byte address 0x4 - core index']
  #allocation1 [shape = 'u32[72,128]{1,0:T(1,128)}', space=vmem, size = 0x9000, scoped, tag = 'internal scratch']
  %s0 = inlined_call_operand.vmem [shape: f32[4,344,1024], index: 0, kind: input, shape index: {}]
  %s1 = inlined_call_operand.vmem [shape: f32[4,4,1024], index: 1, kind: input, shape index: {}]
  %s2 = inlined_call_operand.vmem [shape: f32[4,4,344], index: 2, kind: input, shape index: {}]
  %s3 = inlined_call_operand.vmem [shape: f32[4,4,1], index: 3, kind: input, shape index: {}]
  %s4 = inlined_call_operand.vmem [shape: f32[4,4,1], index: 4, kind: input, shape index: {}]
  %s5 = inlined_call_operand.vmem [shape: f32[4,4,1], index: 5, kind: input, shape index: {}]
  %s6 = inlined_call_operand.vmem [shape: f32[4], index: 6, kind: input, shape index: {}]
  %s7 = inlined_call_operand.vmem [shape: f32[4,1,1024], index: 7, kind: output, shape index: {}]
  %s8 = sld [smem:[#allocation0]]
  $region65: #{lbrom_forward.1} parent=0
    _
  %s10 = ssub.s32 1, %s8
  %s11 = scalar_select 0, %s10, %s8
  $region1: #{lbrom_forward.1} parent=0
    #allocation2 [shape = 'u8[512]{0}', space=smem, size = 0x200, scoped, tag = 'input window, operand 6, single buffered']
    #allocation3 [shape = 's32[2]{0}', space=sflag, size = 0x8, scoped, tag = 'scoped memory for lbrom_forward.1']
    %12 = vsyncpa [#allocation3], 0
    loop: start=0, step=1, limit=6
    $region2: #{lbrom_forward.1} parent=1 // loop_pre_header
      _
    $region3: #{lbrom_forward.1} parent=1 // loop_header
      %s14 = sphi 0, %s18
      %p15 = scmp.ge.s32.totalorder %s14, 6
      %s24 = sphi 0, %s26
      %s27 = sphi 0, %s24
      %s28 = sphi 0, %s27
      %s44 = sphi 0, %s28
      %s50 = sphi 0, %s52
      %s53 = sphi 0, %s50
      %s54 = sphi 0, %s53
      %s70 = sphi 0, %s54
      %s76 = sphi 0, %s78
      %s79 = sphi 0, %s76
      %s80 = sphi 0, %s79
      %s96 = sphi 0, %s80
      %s102 = sphi 0, %s104
      %s105 = sphi 0, %s102
      %s106 = sphi 0, %s105
      %s122 = sphi 0, %s106
      %s128 = sphi 0, %s130
      %s131 = sphi 0, %s128
      %s132 = sphi 0, %s131
      %s148 = sphi 0, %s132
      %s154 = sphi 0, %s156
      %s157 = sphi 0, %s154
      %s158 = sphi 0, %s157
      %s174 = sphi 0, %s158
      %s178 = sphi 0, %s178
      %s180 = sphi 0, %s178
      %s181 = sphi 0, %s180
      %s195 = sphi 0, %s181
      %s201 = sphi 0, %s203
      %s204 = sphi 0, %s201
      %s205 = sphi 0, %s204
      %s221 = sphi 0, %s205
    $region4: #{lbrom_forward.1} parent=1 // loop_header_branch
      %17 = sbr.rel (%p15) target = $region8
    $region5: #{lbrom_forward.1} parent=1 // loop_body
      %s19 = ssub.s32 %s14, 1
      %s20 = ssub.s32 %s14, 2
      %s21 = sadd.s32 %s14, 1
      %s22 = ssub.s32 %s14, %s21
      %p23 = scmp.eq.s32.totalorder %s22, 0
      %s25 = sadd.s32 %s24, 1
      %s26 = scalar_select %p23, %s24, %s25
      %p29 = pneg %p23
      %p30 = scmp.eq.s32.totalorder %s14, 3
      %p31 = por %p29, %p30
      %p32 = scmp.ne.s32.totalorder %s24, %s27
      %p33 = scmp.eq.s32.totalorder %s14, 0
      %p34 = por %p32, %p33
      %p35 = scmp.ne.s32.totalorder %s24, %s27
      %p36 = scmp.eq.s32.totalorder %s19, 3
      %p37 = por %p35, %p36
      %p38 = scmp.ne.s32.totalorder %s27, %s28
      %p39 = scmp.eq.s32.totalorder %s19, 0
      %p40 = por %p38, %p39
      %p41 = scmp.ne.s32.totalorder %s27, %s28
      %p42 = scmp.eq.s32.totalorder %s20, 3
      %p43 = por %p41, %p42
      %p45 = scmp.ne.s32.totalorder %s28, %s44
      %p46 = scmp.eq.s32.totalorder %s20, 0
      %p47 = por %p45, %p46
      %s48 = ssub.s32 %s14, %s21
      %p49 = scmp.eq.s32.totalorder %s48, 0
      %s51 = sadd.s32 %s50, 1
      %s52 = scalar_select %p49, %s50, %s51
      %p55 = pneg %p49
      %p56 = scmp.eq.s32.totalorder %s14, 3
      %p57 = por %p55, %p56
      %p58 = scmp.ne.s32.totalorder %s50, %s53
      %p59 = scmp.eq.s32.totalorder %s14, 0
      %p60 = por %p58, %p59
      %p61 = scmp.ne.s32.totalorder %s50, %s53
      %p62 = scmp.eq.s32.totalorder %s19, 3
      %p63 = por %p61, %p62
      %p64 = scmp.ne.s32.totalorder %s53, %s54
      %p65 = scmp.eq.s32.totalorder %s19, 0
      %p66 = por %p64, %p65
      %p67 = scmp.ne.s32.totalorder %s53, %s54
      %p68 = scmp.eq.s32.totalorder %s20, 3
      %p69 = por %p67, %p68
      %p71 = scmp.ne.s32.totalorder %s54, %s70
      %p72 = scmp.eq.s32.totalorder %s20, 0
      %p73 = por %p71, %p72
      %s74 = ssub.s32 %s14, %s21
      %p75 = scmp.eq.s32.totalorder %s74, 0
      %s77 = sadd.s32 %s76, 1
      %s78 = scalar_select %p75, %s76, %s77
      %p81 = pneg %p75
      %p82 = scmp.eq.s32.totalorder %s14, 3
      %p83 = por %p81, %p82
      %p84 = scmp.ne.s32.totalorder %s76, %s79
      %p85 = scmp.eq.s32.totalorder %s14, 0
      %p86 = por %p84, %p85
      %p87 = scmp.ne.s32.totalorder %s76, %s79
      %p88 = scmp.eq.s32.totalorder %s19, 3
      %p89 = por %p87, %p88
      %p90 = scmp.ne.s32.totalorder %s79, %s80
      %p91 = scmp.eq.s32.totalorder %s19, 0
      %p92 = por %p90, %p91
      %p93 = scmp.ne.s32.totalorder %s79, %s80
      %p94 = scmp.eq.s32.totalorder %s20, 3
      %p95 = por %p93, %p94
      %p97 = scmp.ne.s32.totalorder %s80, %s96
      %p98 = scmp.eq.s32.totalorder %s20, 0
      %p99 = por %p97, %p98
      %s100 = ssub.s32 %s14, %s21
      %p101 = scmp.eq.s32.totalorder %s100, 0
      %s103 = sadd.s32 %s102, 1
      %s104 = scalar_select %p101, %s102, %s103
      %p107 = pneg %p101
      %p108 = scmp.eq.s32.totalorder %s14, 3
      %p109 = por %p107, %p108
      %p110 = scmp.ne.s32.totalorder %s102, %s105
      %p111 = scmp.eq.s32.totalorder %s14, 0
      %p112 = por %p110, %p111
      %p113 = scmp.ne.s32.totalorder %s102, %s105
      %p114 = scmp.eq.s32.totalorder %s19, 3
      %p115 = por %p113, %p114
      %p116 = scmp.ne.s32.totalorder %s105, %s106
      %p117 = scmp.eq.s32.totalorder %s19, 0
      %p118 = por %p116, %p117
      %p119 = scmp.ne.s32.totalorder %s105, %s106
      %p120 = scmp.eq.s32.totalorder %s20, 3
      %p121 = por %p119, %p120
      %p123 = scmp.ne.s32.totalorder %s106, %s122
      %p124 = scmp.eq.s32.totalorder %s20, 0
      %p125 = por %p123, %p124
      %s126 = ssub.s32 %s14, %s21
      %p127 = scmp.eq.s32.totalorder %s126, 0
      %s129 = sadd.s32 %s128, 1
      %s130 = scalar_select %p127, %s128, %s129
      %p133 = pneg %p127
      %p134 = scmp.eq.s32.totalorder %s14, 3
      %p135 = por %p133, %p134
      %p136 = scmp.ne.s32.totalorder %s128, %s131
      %p137 = scmp.eq.s32.totalorder %s14, 0
      %p138 = por %p136, %p137
      %p139 = scmp.ne.s32.totalorder %s128, %s131
      %p140 = scmp.eq.s32.totalorder %s19, 3
      %p141 = por %p139, %p140
      %p142 = scmp.ne.s32.totalorder %s131, %s132
      %p143 = scmp.eq.s32.totalorder %s19, 0
      %p144 = por %p142, %p143
      %p145 = scmp.ne.s32.totalorder %s131, %s132
      %p146 = scmp.eq.s32.totalorder %s20, 3
      %p147 = por %p145, %p146
      %p149 = scmp.ne.s32.totalorder %s132, %s148
      %p150 = scmp.eq.s32.totalorder %s20, 0
      %p151 = por %p149, %p150
      %s152 = ssub.s32 %s14, %s21
      %p153 = scmp.eq.s32.totalorder %s152, 0
      %s155 = sadd.s32 %s154, 1
      %s156 = scalar_select %p153, %s154, %s155
      %p159 = pneg %p153
      %p160 = scmp.eq.s32.totalorder %s14, 3
      %p161 = por %p159, %p160
      %p162 = scmp.ne.s32.totalorder %s154, %s157
      %p163 = scmp.eq.s32.totalorder %s14, 0
      %p164 = por %p162, %p163
      %p165 = scmp.ne.s32.totalorder %s154, %s157
      %p166 = scmp.eq.s32.totalorder %s19, 3
      %p167 = por %p165, %p166
      %p168 = scmp.ne.s32.totalorder %s157, %s158
      %p169 = scmp.eq.s32.totalorder %s19, 0
      %p170 = por %p168, %p169
      %p171 = scmp.ne.s32.totalorder %s157, %s158
      %p172 = scmp.eq.s32.totalorder %s20, 3
      %p173 = por %p171, %p172
      %p175 = scmp.ne.s32.totalorder %s158, %s174
      %p176 = scmp.eq.s32.totalorder %s20, 0
      %p177 = por %p175, %p176
      %s179 = sadd.s32 %s178, 1
      %p182 = scmp.eq.s32.totalorder %s14, 3
      %p183 = scmp.ne.s32.totalorder %s178, %s180
      %p184 = scmp.eq.s32.totalorder %s14, 0
      %p185 = por %p183, %p184
      %p186 = scmp.ne.s32.totalorder %s178, %s180
      %p187 = scmp.eq.s32.totalorder %s19, 3
      %p188 = por %p186, %p187
      %p189 = scmp.ne.s32.totalorder %s180, %s181
      %p190 = scmp.eq.s32.totalorder %s19, 0
      %p191 = por %p189, %p190
      %p192 = scmp.ne.s32.totalorder %s180, %s181
      %p193 = scmp.eq.s32.totalorder %s20, 3
      %p194 = por %p192, %p193
      %p196 = scmp.ne.s32.totalorder %s181, %s195
      %p197 = scmp.eq.s32.totalorder %s20, 0
      %p198 = por %p196, %p197
      %s199 = ssub.s32 %s14, %s21
      %p200 = scmp.eq.s32.totalorder %s199, 0
      %s202 = sadd.s32 %s201, 1
      %s203 = scalar_select %p200, %s201, %s202
      %p206 = pneg %p200
      %p207 = scmp.eq.s32.totalorder %s14, 3
      %p208 = por %p206, %p207
      %p209 = scmp.ne.s32.totalorder %s201, %s204
      %p210 = scmp.eq.s32.totalorder %s14, 0
      %p211 = por %p209, %p210
      %p212 = scmp.ne.s32.totalorder %s201, %s204
      %p213 = scmp.eq.s32.totalorder %s19, 3
      %p214 = por %p212, %p213
      %p215 = scmp.ne.s32.totalorder %s204, %s205
      %p216 = scmp.eq.s32.totalorder %s19, 0
      %p217 = por %p215, %p216
      %p218 = scmp.ne.s32.totalorder %s204, %s205
      %p219 = scmp.eq.s32.totalorder %s20, 3
      %p220 = por %p218, %p219
      %p222 = scmp.ne.s32.totalorder %s205, %s221
      %p223 = scmp.eq.s32.totalorder %s20, 0
      %p224 = por %p222, %p223
      %p225 = scmp.le.s32.totalorder 1, %s14
      %p226 = scmp.lt.s32.totalorder %s14, 5
      %p227 = pnand %p225, %p226
      %p228 = pneg %p227
      // Predicated region
      $region9: #{lbrom_forward.1} parent=5 // pred_check
        _
      $region10: #{lbrom_forward.1} parent=5 // pred_check_branch
        %230 = sbr.rel (%p227) target = $region12
      $region11: #{lbrom_forward.1} parent=5 // pred_region
        %s231 = ssub.s32 %s14, 1
        // Predicated region
        $region13: #{lbrom_forward.1} parent=11 // pred_check
          %p232 = pneg %p191
        $region14: #{lbrom_forward.1} parent=11 // pred_check_branch
          %234 = sbr.rel (%p232) target = $region16
        $region15: #{lbrom_forward.1} parent=11 // pred_region
          %236 = vsyncadd [#allocation3], 0
          %s238 = sshll.u32 %s6, 4
          %s239 = int_to_ptr.vmem [resolvable:$true] %s238
          %241 = dma.vmem_to_smem %s239, 16, [#allocation2], [#allocation3]
        $region16: #{lbrom_forward.1} parent=11 // pred_fallthru
          _
      $region12: #{lbrom_forward.1} parent=5 // pred_fallthru
        _
      %p242 = scmp.lt.s32.totalorder %s14, 4
      // Predicated region
      $region17: #{lbrom_forward.1} parent=5 // pred_check
        %p243 = pneg %p242
      $region18: #{lbrom_forward.1} parent=5 // pred_check_branch
        %245 = sbr.rel (%p243) target = $region20
      $region19: #{lbrom_forward.1} parent=5 // pred_region
        // Predicated region
        $region21: #{lbrom_forward.1} parent=19 // pred_check
          %p246 = pneg %p34
        $region22: #{lbrom_forward.1} parent=19 // pred_check_branch
          %248 = sbr.rel (%p246) target = $region24
        $region23: #{lbrom_forward.1} parent=19 // pred_region
          %p249 = scmp.lt.s32.totalorder %s14, 3
          %s250 = scalar_select %p249, %s14, 3
          %s251 = smul.addr %s250, 344
          %s252 = smul.addr %s251, 8
          %s253 = scalar_lea.vmem %s0, %s252
        $region24: #{lbrom_forward.1} parent=19 // pred_fallthru
          _
        // Predicated region
        $region25: #{lbrom_forward.1} parent=19 // pred_check
          %p254 = pneg %p60
        $region26: #{lbrom_forward.1} parent=19 // pred_check_branch
          %256 = sbr.rel (%p254) target = $region28
        $region27: #{lbrom_forward.1} parent=19 // pred_region
          %p257 = scmp.lt.s32.totalorder %s14, 3
          %s258 = scalar_select %p257, %s14, 3
          %s259 = smul.addr %s258, 8
          %s260 = smul.addr %s259, 4
          %s261 = scalar_lea.vmem %s1, %s260
        $region28: #{lbrom_forward.1} parent=19 // pred_fallthru
          _
        // Predicated region
        $region29: #{lbrom_forward.1} parent=19 // pred_check
          %p262 = pneg %p86
        $region30: #{lbrom_forward.1} parent=19 // pred_check_branch
          %264 = sbr.rel (%p262) target = $region32
        $region31: #{lbrom_forward.1} parent=19 // pred_region
          %p265 = scmp.lt.s32.totalorder %s14, 3
          %s266 = scalar_select %p265, %s14, 3
          %s267 = smul.addr %s266, 3
          %s268 = smul.addr %s267, 4
          %s269 = scalar_lea.vmem %s2, %s268
        $region32: #{lbrom_forward.1} parent=19 // pred_fallthru
          _
        // Predicated region
        $region33: #{lbrom_forward.1} parent=19 // pred_check
          %p270 = pneg %p112
        $region34: #{lbrom_forward.1} parent=19 // pred_check_branch
          %272 = sbr.rel (%p270) target = $region36
        $region35: #{lbrom_forward.1} parent=19 // pred_region
          %p273 = scmp.lt.s32.totalorder %s14, 3
          %s274 = scalar_select %p273, %s14, 3
          %s275 = smul.addr %s274, 4
          %s276 = scalar_lea.vmem %s3, %s275
        $region36: #{lbrom_forward.1} parent=19 // pred_fallthru
          _
        // Predicated region
        $region37: #{lbrom_forward.1} parent=19 // pred_check
          %p277 = pneg %p138
        $region38: #{lbrom_forward.1} parent=19 // pred_check_branch
          %279 = sbr.rel (%p277) target = $region40
        $region39: #{lbrom_forward.1} parent=19 // pred_region
          %p280 = scmp.lt.s32.totalorder %s14, 3
          %s281 = scalar_select %p280, %s14, 3
          %s282 = smul.addr %s281, 4
          %s283 = scalar_lea.vmem %s4, %s282
        $region40: #{lbrom_forward.1} parent=19 // pred_fallthru
          _
        // Predicated region
        $region41: #{lbrom_forward.1} parent=19 // pred_check
          %p284 = pneg %p164
        $region42: #{lbrom_forward.1} parent=19 // pred_check_branch
          %286 = sbr.rel (%p284) target = $region44
        $region43: #{lbrom_forward.1} parent=19 // pred_region
          %p287 = scmp.lt.s32.totalorder %s14, 3
          %s288 = scalar_select %p287, %s14, 3
          %s289 = smul.addr %s288, 4
          %s290 = scalar_lea.vmem %s5, %s289
        $region44: #{lbrom_forward.1} parent=19 // pred_fallthru
          _
      $region20: #{lbrom_forward.1} parent=5 // pred_fallthru
        _
      %p291 = scmp.le.s32.totalorder 1, %s14
      %p292 = scmp.lt.s32.totalorder %s14, 5
      %p293 = pnand %p291, %p292
      %p294 = pneg %p293
      // Predicated region
      $region45: #{lbrom_forward.1} parent=5 // pred_check
        _
      $region46: #{lbrom_forward.1} parent=5 // pred_check_branch
        %296 = sbr.rel (%p293) target = $region48
      $region47: #{lbrom_forward.1} parent=5 // pred_region
        %s297 = ssub.s32 %s14, 1
        // Predicated region
        $region49: #{lbrom_forward.1} parent=47 // pred_check
          %p298 = pneg %p191
        $region50: #{lbrom_forward.1} parent=47 // pred_check_branch
          %300 = sbr.rel (%p298) target = $region52
        $region51: #{lbrom_forward.1} parent=47 // pred_region
          %302 = dma.done [#allocation3], 16
        $region52: #{lbrom_forward.1} parent=47 // pred_fallthru
          _
        %303 = sfence
        %p304 = scmp.lt.s32.totalorder %s19, 3
        %s305 = scalar_select %p304, %s19, 3
        %s306 = smul.addr %s305, 344
        %s307 = smul.addr %s306, 8
        %s308 = scalar_lea.vmem %s0, %s307
        %p309 = pneg %p40
        %p310 = pneg %p37
        %p311 = scmp.lt.s32.totalorder %s19, 3
        %s312 = scalar_select %p311, %s19, 3
        %s313 = smul.addr %s312, 8
        %s314 = smul.addr %s313, 4
        %s315 = scalar_lea.vmem %s1, %s314
        %p316 = pneg %p66
        %p317 = pneg %p63
        %p318 = scmp.lt.s32.totalorder %s19, 3
        %s319 = scalar_select %p318, %s19, 3
        %s320 = smul.addr %s319, 3
        %s321 = smul.addr %s320, 4
        %s322 = scalar_lea.vmem %s2, %s321
        %p323 = pneg %p92
        %p324 = pneg %p89
        %p325 = scmp.lt.s32.totalorder %s19, 3
        %s326 = scalar_select %p325, %s19, 3
        %s327 = smul.addr %s326, 4
        %s328 = scalar_lea.vmem %s3, %s327
        %p329 = pneg %p118
        %p330 = pneg %p115
        %p331 = scmp.lt.s32.totalorder %s19, 3
        %s332 = scalar_select %p331, %s19, 3
        %s333 = smul.addr %s332, 4
        %s334 = scalar_lea.vmem %s4, %s333
        %p335 = pneg %p144
        %p336 = pneg %p141
        %p337 = scmp.lt.s32.totalorder %s19, 3
        %s338 = scalar_select %p337, %s19, 3
        %s339 = smul.addr %s338, 4
        %s340 = scalar_lea.vmem %s5, %s339
        %p341 = pneg %p170
        %p342 = pneg %p167
        %p343 = pneg %p191
        %p344 = pneg %p188
        %p345 = pneg %p217
        %p346 = pneg %p214
        %p347 = scmp.lt.s32.totalorder %s19, 3
        %s348 = scalar_select %p347, %s19, 3
        %s349 = smul.addr %s348, 8
        %s350 = scalar_lea.vmem %s7, %s349
        %p351 = scmp.lt.s32.totalorder %s19, 3
        %s352 = scalar_select %p351, %s19, 3
        %s353 = smul.addr %s352, 344
        %s354 = smul.addr %s353, 8
        %s355 = scalar_lea.vmem %s0, %s354
        %p356 = scmp.lt.s32.totalorder %s19, 3
        %s357 = scalar_select %p356, %s19, 3
        %s358 = smul.addr %s357, 8
        %s359 = smul.addr %s358, 4
        %s360 = scalar_lea.vmem %s1, %s359
        %p361 = scmp.lt.s32.totalorder %s19, 3
        %s362 = scalar_select %p361, %s19, 3
        %s363 = smul.addr %s362, 3
        %s364 = smul.addr %s363, 4
        %s365 = scalar_lea.vmem %s2, %s364
        %p366 = scmp.lt.s32.totalorder %s19, 3
        %s367 = scalar_select %p366, %s19, 3
        %s368 = smul.addr %s367, 4
        %s369 = scalar_lea.vmem %s3, %s368
        %p370 = scmp.lt.s32.totalorder %s19, 3
        %s371 = scalar_select %p370, %s19, 3
        %s372 = smul.addr %s371, 4
        %s373 = scalar_lea.vmem %s4, %s372
        %p374 = scmp.lt.s32.totalorder %s19, 3
        %s375 = scalar_select %p374, %s19, 3
        %s376 = smul.addr %s375, 4
        %s377 = scalar_lea.vmem %s5, %s376
        %p378 = scmp.lt.s32.totalorder %s19, 3
        %s379 = scalar_select %p378, %s19, 3
        %s380 = smul.addr %s379, 8
        %s381 = scalar_lea.vmem %s7, %s380
        %v382 = vld [vmem:[%s365] sm:$0xff]
        %v383 = vld [vmem:[%s365 + $0x8] sm:$0xf]
        %v384 = vld [vmem:[%s355] sm:$0xff]
        %v385 = vld [vmem:[%s355 + $0x8] sm:$0xff]
        %v386 = vld [vmem:[%s355 + $0x10] sm:$0xff]
        %v387 = vld [vmem:[%s355 + $0x18] sm:$0xff]
        %v388 = vld [vmem:[%s355 + $0x20] sm:$0xff]
        %v389 = vld [vmem:[%s355 + $0x28] sm:$0xff]
        %v390 = vld [vmem:[%s355 + $0x30] sm:$0xff]
        %v391 = vld [vmem:[%s355 + $0x38] sm:$0xff]
        %v392 = vld [vmem:[%s355 + $0x40] sm:$0xff]
        %v393 = vld [vmem:[%s355 + $0x48] sm:$0xff]
        %v394 = vld [vmem:[%s355 + $0x50] sm:$0xff]
        %v395 = vld [vmem:[%s355 + $0x58] sm:$0xff]
        %v396 = vld [vmem:[%s355 + $0x60] sm:$0xff]
        %v397 = vld [vmem:[%s355 + $0x68] sm:$0xff]
        %v398 = vld [vmem:[%s355 + $0x70] sm:$0xff]
        %v399 = vld [vmem:[%s355 + $0x78] sm:$0xff]
        %v400 = vld [vmem:[%s355 + $0x80] sm:$0xff]
        %v401 = vld [vmem:[%s355 + $0x88] sm:$0xff]
        %v402 = vld [vmem:[%s355 + $0x90] sm:$0xff]
        %v403 = vld [vmem:[%s355 + $0x98] sm:$0xff]
        %v404 = vld [vmem:[%s355 + $0xa0] sm:$0xff]
        %v405 = vld [vmem:[%s355 + $0xa8] sm:$0xff]
        %v406 = vld [vmem:[%s355 + $0xb0] sm:$0xff]
        %v407 = vld [vmem:[%s355 + $0xb8] sm:$0xff]
        %v408 = vld [vmem:[%s355 + $0xc0] sm:$0xff]
        %v409 = vld [vmem:[%s355 + $0xc8] sm:$0xff]
        %v410 = vld [vmem:[%s355 + $0xd0] sm:$0xff]
        %v411 = vld [vmem:[%s355 + $0xd8] sm:$0xff]
        %v412 = vld [vmem:[%s355 + $0xe0] sm:$0xff]
        %v413 = vld [vmem:[%s355 + $0xe8] sm:$0xff]
        %v414 = vld [vmem:[%s355 + $0xf0] sm:$0xff]
        %v415 = vld [vmem:[%s355 + $0xf8] sm:$0xff]
        %v416 = vld [vmem:[%s355 + $0x100] sm:$0xff]
        %v417 = vld [vmem:[%s355 + $0x108] sm:$0xff]
        %v418 = vld [vmem:[%s355 + $0x110] sm:$0xff]
        %v419 = vld [vmem:[%s355 + $0x118] sm:$0xff]
        %v420 = vld [vmem:[%s355 + $0x120] sm:$0xff]
        %v421 = vld [vmem:[%s355 + $0x128] sm:$0xff]
        %v422 = vld [vmem:[%s355 + $0x130] sm:$0xff]
        %v423 = vld [vmem:[%s355 + $0x138] sm:$0xff]
        %v424 = vld [vmem:[%s355 + $0x140] sm:$0xff]
        %v425 = vld [vmem:[%s355 + $0x148] sm:$0xff]
        %v426 = vld [vmem:[%s355 + $0x150] sm:$0xff]
        %v427 = vld [vmem:[%s355 + $0x158] sm:$0xff]
        %v428 = vld [vmem:[%s355 + $0x160] sm:$0xff]
        %v429 = vld [vmem:[%s355 + $0x168] sm:$0xff]
        %v430 = vld [vmem:[%s355 + $0x170] sm:$0xff]
        %v431 = vld [vmem:[%s355 + $0x178] sm:$0xff]
        %v432 = vld [vmem:[%s355 + $0x180] sm:$0xff]
        %v433 = vld [vmem:[%s355 + $0x188] sm:$0xff]
        %v434 = vld [vmem:[%s355 + $0x190] sm:$0xff]
        %v435 = vld [vmem:[%s355 + $0x198] sm:$0xff]
        %v436 = vld [vmem:[%s355 + $0x1a0] sm:$0xff]
        %v437 = vld [vmem:[%s355 + $0x1a8] sm:$0xff]
        %v438 = vld [vmem:[%s355 + $0x1b0] sm:$0xff]
        %v439 = vld [vmem:[%s355 + $0x1b8] sm:$0xff]
        %v440 = vld [vmem:[%s355 + $0x1c0] sm:$0xff]
        %v441 = vld [vmem:[%s355 + $0x1c8] sm:$0xff]
        %v442 = vld [vmem:[%s355 + $0x1d0] sm:$0xff]
        %v443 = vld [vmem:[%s355 + $0x1d8] sm:$0xff]
        %v444 = vld [vmem:[%s355 + $0x1e0] sm:$0xff]
        %v445 = vld [vmem:[%s355 + $0x1e8] sm:$0xff]
        %v446 = vld [vmem:[%s355 + $0x1f0] sm:$0xff]
        %v447 = vld [vmem:[%s355 + $0x1f8] sm:$0xff]
        %v448 = vld [vmem:[%s355 + $0x200] sm:$0xff]
        %v449 = vld [vmem:[%s355 + $0x208] sm:$0xff]
        %v450 = vld [vmem:[%s355 + $0x210] sm:$0xff]
        %v451 = vld [vmem:[%s355 + $0x218] sm:$0xff]
        %v452 = vld [vmem:[%s355 + $0x220] sm:$0xff]
        %v453 = vld [vmem:[%s355 + $0x228] sm:$0xff]
        %v454 = vld [vmem:[%s355 + $0x230] sm:$0xff]
        %v455 = vld [vmem:[%s355 + $0x238] sm:$0xff]
        %v456 = vld [vmem:[%s355 + $0x240] sm:$0xff]
        %v457 = vld [vmem:[%s355 + $0x248] sm:$0xff]
        %v458 = vld [vmem:[%s355 + $0x250] sm:$0xff]
        %v459 = vld [vmem:[%s355 + $0x258] sm:$0xff]
        %v460 = vld [vmem:[%s355 + $0x260] sm:$0xff]
        %v461 = vld [vmem:[%s355 + $0x268] sm:$0xff]
        %v462 = vld [vmem:[%s355 + $0x270] sm:$0xff]
        %v463 = vld [vmem:[%s355 + $0x278] sm:$0xff]
        %v464 = vld [vmem:[%s355 + $0x280] sm:$0xff]
        %v465 = vld [vmem:[%s355 + $0x288] sm:$0xff]
        %v466 = vld [vmem:[%s355 + $0x290] sm:$0xff]
        %v467 = vld [vmem:[%s355 + $0x298] sm:$0xff]
        %v468 = vld [vmem:[%s355 + $0x2a0] sm:$0xff]
        %v469 = vld [vmem:[%s355 + $0x2a8] sm:$0xff]
        %v470 = vld [vmem:[%s355 + $0x2b0] sm:$0xff]
        %v471 = vld [vmem:[%s355 + $0x2b8] sm:$0xff]
        %v472 = vld [vmem:[%s355 + $0x2c0] sm:$0xff]
        %v473 = vld [vmem:[%s355 + $0x2c8] sm:$0xff]
        %v474 = vld [vmem:[%s355 + $0x2d0] sm:$0xff]
        %v475 = vld [vmem:[%s355 + $0x2d8] sm:$0xff]
        %v476 = vld [vmem:[%s355 + $0x2e0] sm:$0xff]
        %v477 = vld [vmem:[%s355 + $0x2e8] sm:$0xff]
        %v478 = vld [vmem:[%s355 + $0x2f0] sm:$0xff]
        %v479 = vld [vmem:[%s355 + $0x2f8] sm:$0xff]
        %v480 = vld [vmem:[%s355 + $0x300] sm:$0xff]
        %v481 = vld [vmem:[%s355 + $0x308] sm:$0xff]
        %v482 = vld [vmem:[%s355 + $0x310] sm:$0xff]
        %v483 = vld [vmem:[%s355 + $0x318] sm:$0xff]
        %v484 = vld [vmem:[%s355 + $0x320] sm:$0xff]
        %v485 = vld [vmem:[%s355 + $0x328] sm:$0xff]
        %v486 = vld [vmem:[%s355 + $0x330] sm:$0xff]
        %v487 = vld [vmem:[%s355 + $0x338] sm:$0xff]
        %v488 = vld [vmem:[%s355 + $0x340] sm:$0xff]
        %v489 = vld [vmem:[%s355 + $0x348] sm:$0xff]
        %v490 = vld [vmem:[%s355 + $0x350] sm:$0xff]
        %v491 = vld [vmem:[%s355 + $0x358] sm:$0xff]
        %v492 = vld [vmem:[%s355 + $0x360] sm:$0xff]
        %v493 = vld [vmem:[%s355 + $0x368] sm:$0xff]
        %v494 = vld [vmem:[%s355 + $0x370] sm:$0xff]
        %v495 = vld [vmem:[%s355 + $0x378] sm:$0xff]
        %v496 = vld [vmem:[%s355 + $0x380] sm:$0xff]
        %v497 = vld [vmem:[%s355 + $0x388] sm:$0xff]
        %v498 = vld [vmem:[%s355 + $0x390] sm:$0xff]
        %v499 = vld [vmem:[%s355 + $0x398] sm:$0xff]
        %v500 = vld [vmem:[%s355 + $0x3a0] sm:$0xff]
        %v501 = vld [vmem:[%s355 + $0x3a8] sm:$0xff]
        %v502 = vld [vmem:[%s355 + $0x3b0] sm:$0xff]
        %v503 = vld [vmem:[%s355 + $0x3b8] sm:$0xff]
        %v504 = vld [vmem:[%s355 + $0x3c0] sm:$0xff]
        %v505 = vld [vmem:[%s355 + $0x3c8] sm:$0xff]
        %v506 = vld [vmem:[%s355 + $0x3d0] sm:$0xff]
        %v507 = vld [vmem:[%s355 + $0x3d8] sm:$0xff]
        %v508 = vld [vmem:[%s355 + $0x3e0] sm:$0xff]
        %v509 = vld [vmem:[%s355 + $0x3e8] sm:$0xff]
        %v510 = vld [vmem:[%s355 + $0x3f0] sm:$0xff]
        %v511 = vld [vmem:[%s355 + $0x3f8] sm:$0xff]
        %v512 = vld [vmem:[%s355 + $0x400] sm:$0xff]
        %v513 = vld [vmem:[%s355 + $0x408] sm:$0xff]
        %v514 = vld [vmem:[%s355 + $0x410] sm:$0xff]
        %v515 = vld [vmem:[%s355 + $0x418] sm:$0xff]
        %v516 = vld [vmem:[%s355 + $0x420] sm:$0xff]
        %v517 = vld [vmem:[%s355 + $0x428] sm:$0xff]
        %v518 = vld [vmem:[%s355 + $0x430] sm:$0xff]
        %v519 = vld [vmem:[%s355 + $0x438] sm:$0xff]
        %v520 = vld [vmem:[%s355 + $0x440] sm:$0xff]
        %v521 = vld [vmem:[%s355 + $0x448] sm:$0xff]
        %v522 = vld [vmem:[%s355 + $0x450] sm:$0xff]
        %v523 = vld [vmem:[%s355 + $0x458] sm:$0xff]
        %v524 = vld [vmem:[%s355 + $0x460] sm:$0xff]
        %v525 = vld [vmem:[%s355 + $0x468] sm:$0xff]
        %v526 = vld [vmem:[%s355 + $0x470] sm:$0xff]
        %v527 = vld [vmem:[%s355 + $0x478] sm:$0xff]
        %v528 = vld [vmem:[%s355 + $0x480] sm:$0xff]
        %v529 = vld [vmem:[%s355 + $0x488] sm:$0xff]
        %v530 = vld [vmem:[%s355 + $0x490] sm:$0xff]
        %v531 = vld [vmem:[%s355 + $0x498] sm:$0xff]
        %v532 = vld [vmem:[%s355 + $0x4a0] sm:$0xff]
        %v533 = vld [vmem:[%s355 + $0x4a8] sm:$0xff]
        %v534 = vld [vmem:[%s355 + $0x4b0] sm:$0xff]
        %v535 = vld [vmem:[%s355 + $0x4b8] sm:$0xff]
        %v536 = vld [vmem:[%s355 + $0x4c0] sm:$0xff]
        %v537 = vld [vmem:[%s355 + $0x4c8] sm:$0xff]
        %v538 = vld [vmem:[%s355 + $0x4d0] sm:$0xff]
        %v539 = vld [vmem:[%s355 + $0x4d8] sm:$0xff]
        %v540 = vld [vmem:[%s355 + $0x4e0] sm:$0xff]
        %v541 = vld [vmem:[%s355 + $0x4e8] sm:$0xff]
        %v542 = vld [vmem:[%s355 + $0x4f0] sm:$0xff]
        %v543 = vld [vmem:[%s355 + $0x4f8] sm:$0xff]
        %v544 = vld [vmem:[%s355 + $0x500] sm:$0xff]
        %v545 = vld [vmem:[%s355 + $0x508] sm:$0xff]
        %v546 = vld [vmem:[%s355 + $0x510] sm:$0xff]
        %v547 = vld [vmem:[%s355 + $0x518] sm:$0xff]
        %v548 = vld [vmem:[%s355 + $0x520] sm:$0xff]
        %v549 = vld [vmem:[%s355 + $0x528] sm:$0xff]
        %v550 = vld [vmem:[%s355 + $0x530] sm:$0xff]
        %v551 = vld [vmem:[%s355 + $0x538] sm:$0xff]
        %v552 = vld [vmem:[%s355 + $0x540] sm:$0xff]
        %v553 = vld [vmem:[%s355 + $0x548] sm:$0xff]
        %v554 = vld [vmem:[%s355 + $0x550] sm:$0xff]
        %v555 = vld [vmem:[%s355 + $0x558] sm:$0xff]
        %v556 = vld [vmem:[%s355 + $0x560] sm:$0xff]
        %v557 = vld [vmem:[%s355 + $0x568] sm:$0xff]
        %v558 = vld [vmem:[%s355 + $0x570] sm:$0xff]
        %v559 = vld [vmem:[%s355 + $0x578] sm:$0xff]
        %v560 = vld [vmem:[%s355 + $0x580] sm:$0xff]
        %v561 = vld [vmem:[%s355 + $0x588] sm:$0xff]
        %v562 = vld [vmem:[%s355 + $0x590] sm:$0xff]
        %v563 = vld [vmem:[%s355 + $0x598] sm:$0xff]
        %v564 = vld [vmem:[%s355 + $0x5a0] sm:$0xff]
        %v565 = vld [vmem:[%s355 + $0x5a8] sm:$0xff]
        %v566 = vld [vmem:[%s355 + $0x5b0] sm:$0xff]
        %v567 = vld [vmem:[%s355 + $0x5b8] sm:$0xff]
        %v568 = vld [vmem:[%s355 + $0x5c0] sm:$0xff]
        %v569 = vld [vmem:[%s355 + $0x5c8] sm:$0xff]
        %v570 = vld [vmem:[%s355 + $0x5d0] sm:$0xff]
        %v571 = vld [vmem:[%s355 + $0x5d8] sm:$0xff]
        %v572 = vld [vmem:[%s355 + $0x5e0] sm:$0xff]
        %v573 = vld [vmem:[%s355 + $0x5e8] sm:$0xff]
        %v574 = vld [vmem:[%s355 + $0x5f0] sm:$0xff]
        %v575 = vld [vmem:[%s355 + $0x5f8] sm:$0xff]
        %v576 = vld [vmem:[%s355 + $0x600] sm:$0xff]
        %v577 = vld [vmem:[%s355 + $0x608] sm:$0xff]
        %v578 = vld [vmem:[%s355 + $0x610] sm:$0xff]
        %v579 = vld [vmem:[%s355 + $0x618] sm:$0xff]
        %v580 = vld [vmem:[%s355 + $0x620] sm:$0xff]
        %v581 = vld [vmem:[%s355 + $0x628] sm:$0xff]
        %v582 = vld [vmem:[%s355 + $0x630] sm:$0xff]
        %v583 = vld [vmem:[%s355 + $0x638] sm:$0xff]
        %v584 = vld [vmem:[%s355 + $0x640] sm:$0xff]
        %v585 = vld [vmem:[%s355 + $0x648] sm:$0xff]
        %v586 = vld [vmem:[%s355 + $0x650] sm:$0xff]
        %v587 = vld [vmem:[%s355 + $0x658] sm:$0xff]
        %v588 = vld [vmem:[%s355 + $0x660] sm:$0xff]
        %v589 = vld [vmem:[%s355 + $0x668] sm:$0xff]
        %v590 = vld [vmem:[%s355 + $0x670] sm:$0xff]
        %v591 = vld [vmem:[%s355 + $0x678] sm:$0xff]
        %v592 = vld [vmem:[%s355 + $0x680] sm:$0xff]
        %v593 = vld [vmem:[%s355 + $0x688] sm:$0xff]
        %v594 = vld [vmem:[%s355 + $0x690] sm:$0xff]
        %v595 = vld [vmem:[%s355 + $0x698] sm:$0xff]
        %v596 = vld [vmem:[%s355 + $0x6a0] sm:$0xff]
        %v597 = vld [vmem:[%s355 + $0x6a8] sm:$0xff]
        %v598 = vld [vmem:[%s355 + $0x6b0] sm:$0xff]
        %v599 = vld [vmem:[%s355 + $0x6b8] sm:$0xff]
        %v600 = vld [vmem:[%s355 + $0x6c0] sm:$0xff]
        %v601 = vld [vmem:[%s355 + $0x6c8] sm:$0xff]
        %v602 = vld [vmem:[%s355 + $0x6d0] sm:$0xff]
        %v603 = vld [vmem:[%s355 + $0x6d8] sm:$0xff]
        %v604 = vld [vmem:[%s355 + $0x6e0] sm:$0xff]
        %v605 = vld [vmem:[%s355 + $0x6e8] sm:$0xff]
        %v606 = vld [vmem:[%s355 + $0x6f0] sm:$0xff]
        %v607 = vld [vmem:[%s355 + $0x6f8] sm:$0xff]
        %v608 = vld [vmem:[%s355 + $0x700] sm:$0xff]
        %v609 = vld [vmem:[%s355 + $0x708] sm:$0xff]
        %v610 = vld [vmem:[%s355 + $0x710] sm:$0xff]
        %v611 = vld [vmem:[%s355 + $0x718] sm:$0xff]
        %v612 = vld [vmem:[%s355 + $0x720] sm:$0xff]
        %v613 = vld [vmem:[%s355 + $0x728] sm:$0xff]
        %v614 = vld [vmem:[%s355 + $0x730] sm:$0xff]
        %v615 = vld [vmem:[%s355 + $0x738] sm:$0xff]
        %v616 = vld [vmem:[%s355 + $0x740] sm:$0xff]
        %v617 = vld [vmem:[%s355 + $0x748] sm:$0xff]
        %v618 = vld [vmem:[%s355 + $0x750] sm:$0xff]
        %v619 = vld [vmem:[%s355 + $0x758] sm:$0xff]
        %v620 = vld [vmem:[%s355 + $0x760] sm:$0xff]
        %v621 = vld [vmem:[%s355 + $0x768] sm:$0xff]
        %v622 = vld [vmem:[%s355 + $0x770] sm:$0xff]
        %v623 = vld [vmem:[%s355 + $0x778] sm:$0xff]
        %v624 = vld [vmem:[%s355 + $0x780] sm:$0xff]
        %v625 = vld [vmem:[%s355 + $0x788] sm:$0xff]
        %v626 = vld [vmem:[%s355 + $0x790] sm:$0xff]
        %v627 = vld [vmem:[%s355 + $0x798] sm:$0xff]
        %v628 = vld [vmem:[%s355 + $0x7a0] sm:$0xff]
        %v629 = vld [vmem:[%s355 + $0x7a8] sm:$0xff]
        %v630 = vld [vmem:[%s355 + $0x7b0] sm:$0xff]
        %v631 = vld [vmem:[%s355 + $0x7b8] sm:$0xff]
        %v632 = vld [vmem:[%s355 + $0x7c0] sm:$0xff]
        %v633 = vld [vmem:[%s355 + $0x7c8] sm:$0xff]
        %v634 = vld [vmem:[%s355 + $0x7d0] sm:$0xff]
        %v635 = vld [vmem:[%s355 + $0x7d8] sm:$0xff]
        %v636 = vld [vmem:[%s355 + $0x7e0] sm:$0xff]
        %v637 = vld [vmem:[%s355 + $0x7e8] sm:$0xff]
        %v638 = vld [vmem:[%s355 + $0x7f0] sm:$0xff]
        %v639 = vld [vmem:[%s355 + $0x7f8] sm:$0xff]
        %v640 = vld [vmem:[%s355 + $0x800] sm:$0xff]
        %v641 = vld [vmem:[%s355 + $0x808] sm:$0xff]
        %v642 = vld [vmem:[%s355 + $0x810] sm:$0xff]
        %v643 = vld [vmem:[%s355 + $0x818] sm:$0xff]
        %v644 = vld [vmem:[%s355 + $0x820] sm:$0xff]
        %v645 = vld [vmem:[%s355 + $0x828] sm:$0xff]
        %v646 = vld [vmem:[%s355 + $0x830] sm:$0xff]
        %v647 = vld [vmem:[%s355 + $0x838] sm:$0xff]
        %v648 = vld [vmem:[%s355 + $0x840] sm:$0xff]
        %v649 = vld [vmem:[%s355 + $0x848] sm:$0xff]
        %v650 = vld [vmem:[%s355 + $0x850] sm:$0xff]
        %v651 = vld [vmem:[%s355 + $0x858] sm:$0xff]
        %v652 = vld [vmem:[%s355 + $0x860] sm:$0xff]
        %v653 = vld [vmem:[%s355 + $0x868] sm:$0xff]
        %v654 = vld [vmem:[%s355 + $0x870] sm:$0xff]
        %v655 = vld [vmem:[%s355 + $0x878] sm:$0xff]
        %v656 = vld [vmem:[%s355 + $0x880] sm:$0xff]
        %v657 = vld [vmem:[%s355 + $0x888] sm:$0xff]
        %v658 = vld [vmem:[%s355 + $0x890] sm:$0xff]
        %v659 = vld [vmem:[%s355 + $0x898] sm:$0xff]
        %v660 = vld [vmem:[%s355 + $0x8a0] sm:$0xff]
        %v661 = vld [vmem:[%s355 + $0x8a8] sm:$0xff]
        %v662 = vld [vmem:[%s355 + $0x8b0] sm:$0xff]
        %v663 = vld [vmem:[%s355 + $0x8b8] sm:$0xff]
        %v664 = vld [vmem:[%s355 + $0x8c0] sm:$0xff]
        %v665 = vld [vmem:[%s355 + $0x8c8] sm:$0xff]
        %v666 = vld [vmem:[%s355 + $0x8d0] sm:$0xff]
        %v667 = vld [vmem:[%s355 + $0x8d8] sm:$0xff]
        %v668 = vld [vmem:[%s355 + $0x8e0] sm:$0xff]
        %v669 = vld [vmem:[%s355 + $0x8e8] sm:$0xff]
        %v670 = vld [vmem:[%s355 + $0x8f0] sm:$0xff]
        %v671 = vld [vmem:[%s355 + $0x8f8] sm:$0xff]
        %v672 = vld [vmem:[%s355 + $0x900] sm:$0xff]
        %v673 = vld [vmem:[%s355 + $0x908] sm:$0xff]
        %v674 = vld [vmem:[%s355 + $0x910] sm:$0xff]
        %v675 = vld [vmem:[%s355 + $0x918] sm:$0xff]
        %v676 = vld [vmem:[%s355 + $0x920] sm:$0xff]
        %v677 = vld [vmem:[%s355 + $0x928] sm:$0xff]
        %v678 = vld [vmem:[%s355 + $0x930] sm:$0xff]
        %v679 = vld [vmem:[%s355 + $0x938] sm:$0xff]
        %v680 = vld [vmem:[%s355 + $0x940] sm:$0xff]
        %v681 = vld [vmem:[%s355 + $0x948] sm:$0xff]
        %v682 = vld [vmem:[%s355 + $0x950] sm:$0xff]
        %v683 = vld [vmem:[%s355 + $0x958] sm:$0xff]
        %v684 = vld [vmem:[%s355 + $0x960] sm:$0xff]
        %v685 = vld [vmem:[%s355 + $0x968] sm:$0xff]
        %v686 = vld [vmem:[%s355 + $0x970] sm:$0xff]
        %v687 = vld [vmem:[%s355 + $0x978] sm:$0xff]
        %v688 = vld [vmem:[%s355 + $0x980] sm:$0xff]
        %v689 = vld [vmem:[%s355 + $0x988] sm:$0xff]
        %v690 = vld [vmem:[%s355 + $0x990] sm:$0xff]
        %v691 = vld [vmem:[%s355 + $0x998] sm:$0xff]
        %v692 = vld [vmem:[%s355 + $0x9a0] sm:$0xff]
        %v693 = vld [vmem:[%s355 + $0x9a8] sm:$0xff]
        %v694 = vld [vmem:[%s355 + $0x9b0] sm:$0xff]
        %v695 = vld [vmem:[%s355 + $0x9b8] sm:$0xff]
        %v696 = vld [vmem:[%s355 + $0x9c0] sm:$0xff]
        %v697 = vld [vmem:[%s355 + $0x9c8] sm:$0xff]
        %v698 = vld [vmem:[%s355 + $0x9d0] sm:$0xff]
        %v699 = vld [vmem:[%s355 + $0x9d8] sm:$0xff]
        %v700 = vld [vmem:[%s355 + $0x9e0] sm:$0xff]
        %v701 = vld [vmem:[%s355 + $0x9e8] sm:$0xff]
        %v702 = vld [vmem:[%s355 + $0x9f0] sm:$0xff]
        %v703 = vld [vmem:[%s355 + $0x9f8] sm:$0xff]
        %v704 = vld [vmem:[%s355 + $0xa00] sm:$0xff]
        %v705 = vld [vmem:[%s355 + $0xa08] sm:$0xff]
        %v706 = vld [vmem:[%s355 + $0xa10] sm:$0xff]
        %v707 = vld [vmem:[%s355 + $0xa18] sm:$0xff]
        %v708 = vld [vmem:[%s355 + $0xa20] sm:$0xff]
        %v709 = vld [vmem:[%s355 + $0xa28] sm:$0xff]
        %v710 = vld [vmem:[%s355 + $0xa30] sm:$0xff]
        %v711 = vld [vmem:[%s355 + $0xa38] sm:$0xff]
        %v712 = vld [vmem:[%s355 + $0xa40] sm:$0xff]
        %v713 = vld [vmem:[%s355 + $0xa48] sm:$0xff]
        %v714 = vld [vmem:[%s355 + $0xa50] sm:$0xff]
        %v715 = vld [vmem:[%s355 + $0xa58] sm:$0xff]
        %v716 = vld [vmem:[%s355 + $0xa60] sm:$0xff]
        %v717 = vld [vmem:[%s355 + $0xa68] sm:$0xff]
        %v718 = vld [vmem:[%s355 + $0xa70] sm:$0xff]
        %v719 = vld [vmem:[%s355 + $0xa78] sm:$0xff]
        %v720 = vld [vmem:[%s355 + $0xa80] sm:$0xff]
        %v721 = vld [vmem:[%s355 + $0xa88] sm:$0xff]
        %v722 = vld [vmem:[%s355 + $0xa90] sm:$0xff]
        %v723 = vld [vmem:[%s355 + $0xa98] sm:$0xff]
        %v724 = vld [vmem:[%s355 + $0xaa0] sm:$0xff]
        %v725 = vld [vmem:[%s355 + $0xaa8] sm:$0xff]
        %v726 = vld [vmem:[%s355 + $0xab0] sm:$0xff]
        %v727 = vld [vmem:[%s355 + $0xab8] sm:$0xff]
        %v728 = vld [vmem:[%s360] sm:$0xff]
        %v729 = vld [vmem:[%s360 + $0x8] sm:$0xff]
        %v730 = vld [vmem:[%s360 + $0x10] sm:$0xff]
        %v731 = vld [vmem:[%s360 + $0x18] sm:$0xff]
        %734 = vst [vmem:[#allocation1] ss:$2 sm:$0xff] %v382
        %s735 = scalar_lea.vmem [#allocation1], 16
        %736 = vst [vmem:[%s735] ss:$2 sm:$0xff] %v383
        %v737 = vld.sshfl [vmem:[#allocation1] sm:$0xff pattern:$0x75316420]
        %v738 = vld.sshfl [vmem:[#allocation1 + $0x8] sm:$0xff pattern:$0x75316420]
        %v739 = vld.sshfl [vmem:[#allocation1 + $0x10] sm:$0xff pattern:$0x75316420]
        %746 = vst [vmem:[#allocation1] ss:$2 sm:$0xff] %v728
        %s747 = scalar_lea.vmem [#allocation1], 16
        %748 = vst [vmem:[%s747] ss:$2 sm:$0xff] %v729
        %s749 = scalar_lea.vmem [#allocation1], 32
        %750 = vst [vmem:[%s749] ss:$2 sm:$0xff] %v730
        %s751 = scalar_lea.vmem [#allocation1], 48
        %752 = vst [vmem:[%s751] ss:$2 sm:$0xff] %v731
        %v753 = vld.sshfl [vmem:[#allocation1] sm:$0xff pattern:$0x75316420]
        %v754 = vld.sshfl [vmem:[#allocation1 + $0x8] sm:$0xff pattern:$0x75316420]
        %v755 = vld.sshfl [vmem:[#allocation1 + $0x10] sm:$0xff pattern:$0x75316420]
        %v756 = vld.sshfl [vmem:[#allocation1 + $0x18] sm:$0xff pattern:$0x75316420]
        %v757 = vld.sshfl [vmem:[#allocation1 + $0x20] sm:$0xff pattern:$0x75316420]
        %v758 = vld.sshfl [vmem:[#allocation1 + $0x28] sm:$0xff pattern:$0x75316420]
        %v759 = vld.sshfl [vmem:[#allocation1 + $0x30] sm:$0xff pattern:$0x75316420]
        %v760 = vld.sshfl [vmem:[#allocation1 + $0x38] sm:$0xff pattern:$0x75316420]
        %vm769 = vcmask 719872
        %v770 = vsel %vm769, %v739, 0
        %v772 = vand.u32 %v504, 4294901760
        %773 = vmatpush.msra.mxu0 %v772
        %v774 = vand.u32 %v496, 4294901760
        %775 = vmatpush.msra.mxu0 %v774
        %v776 = vand.u32 %v488, 4294901760
        %777 = vmatpush.msra.mxu0 %v776
        %v778 = vand.u32 %v480, 4294901760
        %779 = vmatpush.msra.mxu0 %v778
        %v780 = vand.u32 %v472, 4294901760
        %781 = vmatpush.msra.mxu0 %v780
        %v782 = vand.u32 %v464, 4294901760
        %783 = vmatpush.msra.mxu0 %v782
        %v784 = vand.u32 %v456, 4294901760
        %785 = vmatpush.msra.mxu0 %v784
        %v786 = vand.u32 %v448, 4294901760
        %787 = vmatpush.msra.mxu0 %v786
        %v788 = vand.u32 %v440, 4294901760
        %789 = vmatpush.msra.mxu0 %v788
        %v790 = vand.u32 %v432, 4294901760
        %791 = vmatpush.msra.mxu0 %v790
        %v792 = vand.u32 %v424, 4294901760
        %793 = vmatpush.msra.mxu0 %v792
        %v794 = vand.u32 %v416, 4294901760
        %795 = vmatpush.msra.mxu0 %v794
        %v796 = vand.u32 %v408, 4294901760
        %797 = vmatpush.msra.mxu0 %v796
        %v798 = vand.u32 %v400, 4294901760
        %799 = vmatpush.msra.mxu0 %v798
        %v800 = vand.u32 %v392, 4294901760
        %801 = vmatpush.msra.mxu0 %v800
        %v802 = vand.u32 %v384, 4294901760
        %803 = vmatpush.msra.mxu0 %v802
        %v804 = vand.u32 %v737, 4294901760
        %v805 = vsub.f32 %v737, %v804
        %v806 = vand.u32 %v805, 4294901760
        %v807 = vsub.f32 %v805, %v806
        %v808 = vand.u32 %v807, 4294901760
        %809 = vmatmul.f32.gmra.mxu0 %v808
        %v810 = vpop.f32.mrf.mxu0
        %v811 = vadd.f32 %v753, %v810
        %812 = vdwg.mxu0
        %v813 = vand.u32 %v504, 4294901760
        %v814 = vsub.f32 %v504, %v813
        %v815 = vand.u32 %v814, 4294901760
        %v816 = vsub.f32 %v814, %v815
        %v817 = vand.u32 %v816, 4294901760
        %818 = vmatpush.msra.mxu0 %v817
        %v819 = vand.u32 %v496, 4294901760
        %v820 = vsub.f32 %v496, %v819
        %v821 = vand.u32 %v820, 4294901760
        %v822 = vsub.f32 %v820, %v821
        %v823 = vand.u32 %v822, 4294901760
        %824 = vmatpush.msra.mxu0 %v823
        %v825 = vand.u32 %v488, 4294901760
        %v826 = vsub.f32 %v488, %v825
        %v827 = vand.u32 %v826, 4294901760
        %v828 = vsub.f32 %v826, %v827
        %v829 = vand.u32 %v828, 4294901760
        %830 = vmatpush.msra.mxu0 %v829
        %v831 = vand.u32 %v480, 4294901760
        %v832 = vsub.f32 %v480, %v831
        %v833 = vand.u32 %v832, 4294901760
        %v834 = vsub.f32 %v832, %v833
        %v835 = vand.u32 %v834, 4294901760
        %836 = vmatpush.msra.mxu0 %v835
        %v837 = vand.u32 %v472, 4294901760
        %v838 = vsub.f32 %v472, %v837
        %v839 = vand.u32 %v838, 4294901760
        %v840 = vsub.f32 %v838, %v839
        %v841 = vand.u32 %v840, 4294901760
        %842 = vmatpush.msra.mxu0 %v841
        %v843 = vand.u32 %v464, 4294901760
        %v844 = vsub.f32 %v464, %v843
        %v845 = vand.u32 %v844, 4294901760
        %v846 = vsub.f32 %v844, %v845
        %v847 = vand.u32 %v846, 4294901760
        %848 = vmatpush.msra.mxu0 %v847
        %v849 = vand.u32 %v456, 4294901760
        %v850 = vsub.f32 %v456, %v849
        %v851 = vand.u32 %v850, 4294901760
        %v852 = vsub.f32 %v850, %v851
        %v853 = vand.u32 %v852, 4294901760
        %854 = vmatpush.msra.mxu0 %v853
        %v855 = vand.u32 %v448, 4294901760
        %v856 = vsub.f32 %v448, %v855
        %v857 = vand.u32 %v856, 4294901760
        %v858 = vsub.f32 %v856, %v857
        %v859 = vand.u32 %v858, 4294901760
        %860 = vmatpush.msra.mxu0 %v859
        %v861 = vand.u32 %v440, 4294901760
        %v862 = vsub.f32 %v440, %v861
        %v863 = vand.u32 %v862, 4294901760
        %v864 = vsub.f32 %v862, %v863
        %v865 = vand.u32 %v864, 4294901760
        %866 = vmatpush.msra.mxu0 %v865
        %v867 = vand.u32 %v432, 4294901760
        %v868 = vsub.f32 %v432, %v867
        %v869 = vand.u32 %v868, 4294901760
        %v870 = vsub.f32 %v868, %v869
        %v871 = vand.u32 %v870, 4294901760
        %872 = vmatpush.msra.mxu0 %v871
        %v873 = vand.u32 %v424, 4294901760
        %v874 = vsub.f32 %v424, %v873
        %v875 = vand.u32 %v874, 4294901760
        %v876 = vsub.f32 %v874, %v875
        %v877 = vand.u32 %v876, 4294901760
        %878 = vmatpush.msra.mxu0 %v877
        %v879 = vand.u32 %v416, 4294901760
        %v880 = vsub.f32 %v416, %v879
        %v881 = vand.u32 %v880, 4294901760
        %v882 = vsub.f32 %v880, %v881
        %v883 = vand.u32 %v882, 4294901760
        %884 = vmatpush.msra.mxu0 %v883
        %v885 = vand.u32 %v408, 4294901760
        %v886 = vsub.f32 %v408, %v885
        %v887 = vand.u32 %v886, 4294901760
        %v888 = vsub.f32 %v886, %v887
        %v889 = vand.u32 %v888, 4294901760
        %890 = vmatpush.msra.mxu0 %v889
        %v891 = vand.u32 %v400, 4294901760
        %v892 = vsub.f32 %v400, %v891
        %v893 = vand.u32 %v892, 4294901760
        %v894 = vsub.f32 %v892, %v893
        %v895 = vand.u32 %v894, 4294901760
        %896 = vmatpush.msra.mxu0 %v895
        %v897 = vand.u32 %v392, 4294901760
        %v898 = vsub.f32 %v392, %v897
        %v899 = vand.u32 %v898, 4294901760
        %v900 = vsub.f32 %v898, %v899
        %v901 = vand.u32 %v900, 4294901760
        %902 = vmatpush.msra.mxu0 %v901
        %v903 = vand.u32 %v384, 4294901760
        %v904 = vsub.f32 %v384, %v903
        %v905 = vand.u32 %v904, 4294901760
        %v906 = vsub.f32 %v904, %v905
        %v907 = vand.u32 %v906, 4294901760
        %908 = vmatpush.msra.mxu0 %v907
        %v909 = vand.u32 %v737, 4294901760
        %910 = vmatmul.f32.gmra.mxu0 %v909
        %v911 = vpop.f32.mrf.mxu0
        %v912 = vadd.f32 %v811, %v911
        %913 = vdwg.mxu0
        %v914 = vand.u32 %v504, 4294901760
        %v915 = vsub.f32 %v504, %v914
        %916 = vmatpush.msra.mxu0 %v915
        %v917 = vand.u32 %v496, 4294901760
        %v918 = vsub.f32 %v496, %v917
        %919 = vmatpush.msra.mxu0 %v918
        %v920 = vand.u32 %v488, 4294901760
        %v921 = vsub.f32 %v488, %v920
        %922 = vmatpush.msra.mxu0 %v921
        %v923 = vand.u32 %v480, 4294901760
        %v924 = vsub.f32 %v480, %v923
        %925 = vmatpush.msra.mxu0 %v924
        %v926 = vand.u32 %v472, 4294901760
        %v927 = vsub.f32 %v472, %v926
        %928 = vmatpush.msra.mxu0 %v927
        %v929 = vand.u32 %v464, 4294901760
        %v930 = vsub.f32 %v464, %v929
        %931 = vmatpush.msra.mxu0 %v930
        %v932 = vand.u32 %v456, 4294901760
        %v933 = vsub.f32 %v456, %v932
        %934 = vmatpush.msra.mxu0 %v933
        %v935 = vand.u32 %v448, 4294901760
        %v936 = vsub.f32 %v448, %v935
        %937 = vmatpush.msra.mxu0 %v936
        %v938 = vand.u32 %v440, 4294901760
        %v939 = vsub.f32 %v440, %v938
        %940 = vmatpush.msra.mxu0 %v939
        %v941 = vand.u32 %v432, 4294901760
        %v942 = vsub.f32 %v432, %v941
        %943 = vmatpush.msra.mxu0 %v942
        %v944 = vand.u32 %v424, 4294901760
        %v945 = vsub.f32 %v424, %v944
        %946 = vmatpush.msra.mxu0 %v945
        %v947 = vand.u32 %v416, 4294901760
        %v948 = vsub.f32 %v416, %v947
        %949 = vmatpush.msra.mxu0 %v948
        %v950 = vand.u32 %v408, 4294901760
        %v951 = vsub.f32 %v408, %v950
        %952 = vmatpush.msra.mxu0 %v951
        %v953 = vand.u32 %v400, 4294901760
        %v954 = vsub.f32 %v400, %v953
        %955 = vmatpush.msra.mxu0 %v954
        %v956 = vand.u32 %v392, 4294901760
        %v957 = vsub.f32 %v392, %v956
        %958 = vmatpush.msra.mxu0 %v957
        %v959 = vand.u32 %v384, 4294901760
        %v960 = vsub.f32 %v384, %v959
        %961 = vmatpush.msra.mxu0 %v960
        %v962 = vand.u32 %v737, 4294901760
        %v963 = vsub.f32 %v737, %v962
        %964 = vmatmul.f32.gmra.mxu0 %v963
        %v965 = vpop.f32.mrf.mxu0
        %v966 = vadd.f32 %v912, %v965
        %967 = vdwg.mxu0
        %v968 = vand.u32 %v504, 4294901760
        %969 = vmatpush.msra.mxu0 %v968
        %v970 = vand.u32 %v496, 4294901760
        %971 = vmatpush.msra.mxu0 %v970
        %v972 = vand.u32 %v488, 4294901760
        %973 = vmatpush.msra.mxu0 %v972
        %v974 = vand.u32 %v480, 4294901760
        %975 = vmatpush.msra.mxu0 %v974
        %v976 = vand.u32 %v472, 4294901760
        %977 = vmatpush.msra.mxu0 %v976
        %v978 = vand.u32 %v464, 4294901760
        %979 = vmatpush.msra.mxu0 %v978
        %v980 = vand.u32 %v456, 4294901760
        %981 = vmatpush.msra.mxu0 %v980
        %v982 = vand.u32 %v448, 4294901760
        %983 = vmatpush.msra.mxu0 %v982
        %v984 = vand.u32 %v440, 4294901760
        %985 = vmatpush.msra.mxu0 %v984
        %v986 = vand.u32 %v432, 4294901760
        %987 = vmatpush.msra.mxu0 %v986
        %v988 = vand.u32 %v424, 4294901760
        %989 = vmatpush.msra.mxu0 %v988
        %v990 = vand.u32 %v416, 4294901760
        %991 = vmatpush.msra.mxu0 %v990
        %v992 = vand.u32 %v408, 4294901760
        %993 = vmatpush.msra.mxu0 %v992
        %v994 = vand.u32 %v400, 4294901760
        %995 = vmatpush.msra.mxu0 %v994
        %v996 = vand.u32 %v392, 4294901760
        %997 = vmatpush.msra.mxu0 %v996
        %v998 = vand.u32 %v384, 4294901760
        %999 = vmatpush.msra.mxu0 %v998
        %v1000 = vand.u32 %v737, 4294901760
        %v1001 = vsub.f32 %v737, %v1000
        %v1002 = vand.u32 %v1001, 4294901760
        %1003 = vmatmul.f32.gmra.mxu0 %v1002
        %v1004 = vpop.f32.mrf.mxu0
        %v1005 = vadd.f32 %v966, %v1004
        %1006 = vdwg.mxu0
        %v1007 = vand.u32 %v504, 4294901760
        %v1008 = vsub.f32 %v504, %v1007
        %v1009 = vand.u32 %v1008, 4294901760
        %1010 = vmatpush.msra.mxu0 %v1009
        %v1011 = vand.u32 %v496, 4294901760
        %v1012 = vsub.f32 %v496, %v1011
        %v1013 = vand.u32 %v1012, 4294901760
        %1014 = vmatpush.msra.mxu0 %v1013
        %v1015 = vand.u32 %v488, 4294901760
        %v1016 = vsub.f32 %v488, %v1015
        %v1017 = vand.u32 %v1016, 4294901760
        %1018 = vmatpush.msra.mxu0 %v1017
        %v1019 = vand.u32 %v480, 4294901760
        %v1020 = vsub.f32 %v480, %v1019
        %v1021 = vand.u32 %v1020, 4294901760
        %1022 = vmatpush.msra.mxu0 %v1021
        %v1023 = vand.u32 %v472, 4294901760
        %v1024 = vsub.f32 %v472, %v1023
        %v1025 = vand.u32 %v1024, 4294901760
        %1026 = vmatpush.msra.mxu0 %v1025
        %v1027 = vand.u32 %v464, 4294901760
        %v1028 = vsub.f32 %v464, %v1027
        %v1029 = vand.u32 %v1028, 4294901760
        %1030 = vmatpush.msra.mxu0 %v1029
        %v1031 = vand.u32 %v456, 4294901760
        %v1032 = vsub.f32 %v456, %v1031
        %v1033 = vand.u32 %v1032, 4294901760
        %1034 = vmatpush.msra.mxu0 %v1033
        %v1035 = vand.u32 %v448, 4294901760
        %v1036 = vsub.f32 %v448, %v1035
        %v1037 = vand.u32 %v1036, 4294901760
        %1038 = vmatpush.msra.mxu0 %v1037
        %v1039 = vand.u32 %v440, 4294901760
        %v1040 = vsub.f32 %v440, %v1039
        %v1041 = vand.u32 %v1040, 4294901760
        %1042 = vmatpush.msra.mxu0 %v1041
        %v1043 = vand.u32 %v432, 4294901760
        %v1044 = vsub.f32 %v432, %v1043
        %v1045 = vand.u32 %v1044, 4294901760
        %1046 = vmatpush.msra.mxu0 %v1045
        %v1047 = vand.u32 %v424, 4294901760
        %v1048 = vsub.f32 %v424, %v1047
        %v1049 = vand.u32 %v1048, 4294901760
        %1050 = vmatpush.msra.mxu0 %v1049
        %v1051 = vand.u32 %v416, 4294901760
        %v1052 = vsub.f32 %v416, %v1051
        %v1053 = vand.u32 %v1052, 4294901760
        %1054 = vmatpush.msra.mxu0 %v1053
        %v1055 = vand.u32 %v408, 4294901760
        %v1056 = vsub.f32 %v408, %v1055
        %v1057 = vand.u32 %v1056, 4294901760
        %1058 = vmatpush.msra.mxu0 %v1057
        %v1059 = vand.u32 %v400, 4294901760
        %v1060 = vsub.f32 %v400, %v1059
        %v1061 = vand.u32 %v1060, 4294901760
        %1062 = vmatpush.msra.mxu0 %v1061
        %v1063 = vand.u32 %v392, 4294901760
        %v1064 = vsub.f32 %v392, %v1063
        %v1065 = vand.u32 %v1064, 4294901760
        %1066 = vmatpush.msra.mxu0 %v1065
        %v1067 = vand.u32 %v384, 4294901760
        %v1068 = vsub.f32 %v384, %v1067
        %v1069 = vand.u32 %v1068, 4294901760
        %1070 = vmatpush.msra.mxu0 %v1069
        %v1071 = vand.u32 %v737, 4294901760
        %1072 = vmatmul.f32.gmra.mxu0 %v1071
        %v1073 = vpop.f32.mrf.mxu0
        %v1074 = vadd.f32 %v1005, %v1073
        %1075 = vdwg.mxu0
        %v1076 = vand.u32 %v504, 4294901760
        %1077 = vmatpush.msra.mxu0 %v1076
        %v1078 = vand.u32 %v496, 4294901760
        %1079 = vmatpush.msra.mxu0 %v1078
        %v1080 = vand.u32 %v488, 4294901760
        %1081 = vmatpush.msra.mxu0 %v1080
        %v1082 = vand.u32 %v480, 4294901760
        %1083 = vmatpush.msra.mxu0 %v1082
        %v1084 = vand.u32 %v472, 4294901760
        %1085 = vmatpush.msra.mxu0 %v1084
        %v1086 = vand.u32 %v464, 4294901760
        %1087 = vmatpush.msra.mxu0 %v1086
        %v1088 = vand.u32 %v456, 4294901760
        %1089 = vmatpush.msra.mxu0 %v1088
        %v1090 = vand.u32 %v448, 4294901760
        %1091 = vmatpush.msra.mxu0 %v1090
        %v1092 = vand.u32 %v440, 4294901760
        %1093 = vmatpush.msra.mxu0 %v1092
        %v1094 = vand.u32 %v432, 4294901760
        %1095 = vmatpush.msra.mxu0 %v1094
        %v1096 = vand.u32 %v424, 4294901760
        %1097 = vmatpush.msra.mxu0 %v1096
        %v1098 = vand.u32 %v416, 4294901760
        %1099 = vmatpush.msra.mxu0 %v1098
        %v1100 = vand.u32 %v408, 4294901760
        %1101 = vmatpush.msra.mxu0 %v1100
        %v1102 = vand.u32 %v400, 4294901760
        %1103 = vmatpush.msra.mxu0 %v1102
        %v1104 = vand.u32 %v392, 4294901760
        %1105 = vmatpush.msra.mxu0 %v1104
        %v1106 = vand.u32 %v384, 4294901760
        %1107 = vmatpush.msra.mxu0 %v1106
        %v1108 = vand.u32 %v737, 4294901760
        %1109 = vmatmul.f32.gmra.mxu0 %v1108
        %v1110 = vpop.f32.mrf.mxu0
        %v1111 = vadd.f32 %v1074, %v1110
        %1112 = vdwg.mxu0
        %v1113 = vand.u32 %v632, 4294901760
        %1114 = vmatpush.msra.mxu0 %v1113
        %v1115 = vand.u32 %v624, 4294901760
        %1116 = vmatpush.msra.mxu0 %v1115
        %v1117 = vand.u32 %v616, 4294901760
        %1118 = vmatpush.msra.mxu0 %v1117
        %v1119 = vand.u32 %v608, 4294901760
        %1120 = vmatpush.msra.mxu0 %v1119
        %v1121 = vand.u32 %v600, 4294901760
        %1122 = vmatpush.msra.mxu0 %v1121
        %v1123 = vand.u32 %v592, 4294901760
        %1124 = vmatpush.msra.mxu0 %v1123
        %v1125 = vand.u32 %v584, 4294901760
        %1126 = vmatpush.msra.mxu0 %v1125
        %v1127 = vand.u32 %v576, 4294901760
        %1128 = vmatpush.msra.mxu0 %v1127
        %v1129 = vand.u32 %v568, 4294901760
        %1130 = vmatpush.msra.mxu0 %v1129
        %v1131 = vand.u32 %v560, 4294901760
        %1132 = vmatpush.msra.mxu0 %v1131
        %v1133 = vand.u32 %v552, 4294901760
        %1134 = vmatpush.msra.mxu0 %v1133
        %v1135 = vand.u32 %v544, 4294901760
        %1136 = vmatpush.msra.mxu0 %v1135
        %v1137 = vand.u32 %v536, 4294901760
        %1138 = vmatpush.msra.mxu0 %v1137
        %v1139 = vand.u32 %v528, 4294901760
        %1140 = vmatpush.msra.mxu0 %v1139
        %v1141 = vand.u32 %v520, 4294901760
        %1142 = vmatpush.msra.mxu0 %v1141
        %v1143 = vand.u32 %v512, 4294901760
        %1144 = vmatpush.msra.mxu0 %v1143
        %v1145 = vand.u32 %v738, 4294901760
        %v1146 = vsub.f32 %v738, %v1145
        %v1147 = vand.u32 %v1146, 4294901760
        %v1148 = vsub.f32 %v1146, %v1147
        %v1149 = vand.u32 %v1148, 4294901760
        %1150 = vmatmul.f32.gmra.mxu0 %v1149
        %v1151 = vpop.f32.mrf.mxu0
        %v1152 = vadd.f32 %v1111, %v1151
        %1153 = vdwg.mxu0
        %v1154 = vand.u32 %v632, 4294901760
        %v1155 = vsub.f32 %v632, %v1154
        %v1156 = vand.u32 %v1155, 4294901760
        %v1157 = vsub.f32 %v1155, %v1156
        %v1158 = vand.u32 %v1157, 4294901760
        %1159 = vmatpush.msra.mxu0 %v1158
        %v1160 = vand.u32 %v624, 4294901760
        %v1161 = vsub.f32 %v624, %v1160
        %v1162 = vand.u32 %v1161, 4294901760
        %v1163 = vsub.f32 %v1161, %v1162
        %v1164 = vand.u32 %v1163, 4294901760
        %1165 = vmatpush.msra.mxu0 %v1164
        %v1166 = vand.u32 %v616, 4294901760
        %v1167 = vsub.f32 %v616, %v1166
        %v1168 = vand.u32 %v1167, 4294901760
        %v1169 = vsub.f32 %v1167, %v1168
        %v1170 = vand.u32 %v1169, 4294901760
        %1171 = vmatpush.msra.mxu0 %v1170
        %v1172 = vand.u32 %v608, 4294901760
        %v1173 = vsub.f32 %v608, %v1172
        %v1174 = vand.u32 %v1173, 4294901760
        %v1175 = vsub.f32 %v1173, %v1174
        %v1176 = vand.u32 %v1175, 4294901760
        %1177 = vmatpush.msra.mxu0 %v1176
        %v1178 = vand.u32 %v600, 4294901760
        %v1179 = vsub.f32 %v600, %v1178
        %v1180 = vand.u32 %v1179, 4294901760
        %v1181 = vsub.f32 %v1179, %v1180
        %v1182 = vand.u32 %v1181, 4294901760
        %1183 = vmatpush.msra.mxu0 %v1182
        %v1184 = vand.u32 %v592, 4294901760
        %v1185 = vsub.f32 %v592, %v1184
        %v1186 = vand.u32 %v1185, 4294901760
        %v1187 = vsub.f32 %v1185, %v1186
        %v1188 = vand.u32 %v1187, 4294901760
        %1189 = vmatpush.msra.mxu0 %v1188
        %v1190 = vand.u32 %v584, 4294901760
        %v1191 = vsub.f32 %v584, %v1190
        %v1192 = vand.u32 %v1191, 4294901760
        %v1193 = vsub.f32 %v1191, %v1192
        %v1194 = vand.u32 %v1193, 4294901760
        %1195 = vmatpush.msra.mxu0 %v1194
        %v1196 = vand.u32 %v576, 4294901760
        %v1197 = vsub.f32 %v576, %v1196
        %v1198 = vand.u32 %v1197, 4294901760
        %v1199 = vsub.f32 %v1197, %v1198
        %v1200 = vand.u32 %v1199, 4294901760
        %1201 = vmatpush.msra.mxu0 %v1200
        %v1202 = vand.u32 %v568, 4294901760
        %v1203 = vsub.f32 %v568, %v1202
        %v1204 = vand.u32 %v1203, 4294901760
        %v1205 = vsub.f32 %v1203, %v1204
        %v1206 = vand.u32 %v1205, 4294901760
        %1207 = vmatpush.msra.mxu0 %v1206
        %v1208 = vand.u32 %v560, 4294901760
        %v1209 = vsub.f32 %v560, %v1208
        %v1210 = vand.u32 %v1209, 4294901760
        %v1211 = vsub.f32 %v1209, %v1210
        %v1212 = vand.u32 %v1211, 4294901760
        %1213 = vmatpush.msra.mxu0 %v1212
        %v1214 = vand.u32 %v552, 4294901760
        %v1215 = vsub.f32 %v552, %v1214
        %v1216 = vand.u32 %v1215, 4294901760
        %v1217 = vsub.f32 %v1215, %v1216
        %v1218 = vand.u32 %v1217, 4294901760
        %1219 = vmatpush.msra.mxu0 %v1218
        %v1220 = vand.u32 %v544, 4294901760
        %v1221 = vsub.f32 %v544, %v1220
        %v1222 = vand.u32 %v1221, 4294901760
        %v1223 = vsub.f32 %v1221, %v1222
        %v1224 = vand.u32 %v1223, 4294901760
        %1225 = vmatpush.msra.mxu0 %v1224
        %v1226 = vand.u32 %v536, 4294901760
        %v1227 = vsub.f32 %v536, %v1226
        %v1228 = vand.u32 %v1227, 4294901760
        %v1229 = vsub.f32 %v1227, %v1228
        %v1230 = vand.u32 %v1229, 4294901760
        %1231 = vmatpush.msra.mxu0 %v1230
        %v1232 = vand.u32 %v528, 4294901760
        %v1233 = vsub.f32 %v528, %v1232
        %v1234 = vand.u32 %v1233, 4294901760
        %v1235 = vsub.f32 %v1233, %v1234
        %v1236 = vand.u32 %v1235, 4294901760
        %1237 = vmatpush.msra.mxu0 %v1236
        %v1238 = vand.u32 %v520, 4294901760
        %v1239 = vsub.f32 %v520, %v1238
        %v1240 = vand.u32 %v1239, 4294901760
        %v1241 = vsub.f32 %v1239, %v1240
        %v1242 = vand.u32 %v1241, 4294901760
        %1243 = vmatpush.msra.mxu0 %v1242
        %v1244 = vand.u32 %v512, 4294901760
        %v1245 = vsub.f32 %v512, %v1244
        %v1246 = vand.u32 %v1245, 4294901760
        %v1247 = vsub.f32 %v1245, %v1246
        %v1248 = vand.u32 %v1247, 4294901760
        %1249 = vmatpush.msra.mxu0 %v1248
        %v1250 = vand.u32 %v738, 4294901760
        %1251 = vmatmul.f32.gmra.mxu0 %v1250
        %v1252 = vpop.f32.mrf.mxu0
        %v1253 = vadd.f32 %v1152, %v1252
        %1254 = vdwg.mxu0
        %v1255 = vand.u32 %v632, 4294901760
        %v1256 = vsub.f32 %v632, %v1255
        %1257 = vmatpush.msra.mxu0 %v1256
        %v1258 = vand.u32 %v624, 4294901760
        %v1259 = vsub.f32 %v624, %v1258
        %1260 = vmatpush.msra.mxu0 %v1259
        %v1261 = vand.u32 %v616, 4294901760
        %v1262 = vsub.f32 %v616, %v1261
        %1263 = vmatpush.msra.mxu0 %v1262
        %v1264 = vand.u32 %v608, 4294901760
        %v1265 = vsub.f32 %v608, %v1264
        %1266 = vmatpush.msra.mxu0 %v1265
        %v1267 = vand.u32 %v600, 4294901760
        %v1268 = vsub.f32 %v600, %v1267
        %1269 = vmatpush.msra.mxu0 %v1268
        %v1270 = vand.u32 %v592, 4294901760
        %v1271 = vsub.f32 %v592, %v1270
        %1272 = vmatpush.msra.mxu0 %v1271
        %v1273 = vand.u32 %v584, 4294901760
        %v1274 = vsub.f32 %v584, %v1273
        %1275 = vmatpush.msra.mxu0 %v1274
        %v1276 = vand.u32 %v576, 4294901760
        %v1277 = vsub.f32 %v576, %v1276
        %1278 = vmatpush.msra.mxu0 %v1277
        %v1279 = vand.u32 %v568, 4294901760
        %v1280 = vsub.f32 %v568, %v1279
        %1281 = vmatpush.msra.mxu0 %v1280
        %v1282 = vand.u32 %v560, 4294901760
        %v1283 = vsub.f32 %v560, %v1282
        %1284 = vmatpush.msra.mxu0 %v1283
        %v1285 = vand.u32 %v552, 4294901760
        %v1286 = vsub.f32 %v552, %v1285
        %1287 = vmatpush.msra.mxu0 %v1286
        %v1288 = vand.u32 %v544, 4294901760
        %v1289 = vsub.f32 %v544, %v1288
        %1290 = vmatpush.msra.mxu0 %v1289
        %v1291 = vand.u32 %v536, 4294901760
        %v1292 = vsub.f32 %v536, %v1291
        %1293 = vmatpush.msra.mxu0 %v1292
        %v1294 = vand.u32 %v528, 4294901760
        %v1295 = vsub.f32 %v528, %v1294
        %1296 = vmatpush.msra.mxu0 %v1295
        %v1297 = vand.u32 %v520, 4294901760
        %v1298 = vsub.f32 %v520, %v1297
        %1299 = vmatpush.msra.mxu0 %v1298
        %v1300 = vand.u32 %v512, 4294901760
        %v1301 = vsub.f32 %v512, %v1300
        %1302 = vmatpush.msra.mxu0 %v1301
        %v1303 = vand.u32 %v738, 4294901760
        %v1304 = vsub.f32 %v738, %v1303
        %1305 = vmatmul.f32.gmra.mxu0 %v1304
        %v1306 = vpop.f32.mrf.mxu0
        %v1307 = vadd.f32 %v1253, %v1306
        %1308 = vdwg.mxu0
        %v1309 = vand.u32 %v632, 4294901760
        %1310 = vmatpush.msra.mxu0 %v1309
        %v1311 = vand.u32 %v624, 4294901760
        %1312 = vmatpush.msra.mxu0 %v1311
        %v1313 = vand.u32 %v616, 4294901760
        %1314 = vmatpush.msra.mxu0 %v1313
        %v1315 = vand.u32 %v608, 4294901760
        %1316 = vmatpush.msra.mxu0 %v1315
        %v1317 = vand.u32 %v600, 4294901760
        %1318 = vmatpush.msra.mxu0 %v1317
        %v1319 = vand.u32 %v592, 4294901760
        %1320 = vmatpush.msra.mxu0 %v1319
        %v1321 = vand.u32 %v584, 4294901760
        %1322 = vmatpush.msra.mxu0 %v1321
        %v1323 = vand.u32 %v576, 4294901760
        %1324 = vmatpush.msra.mxu0 %v1323
        %v1325 = vand.u32 %v568, 4294901760
        %1326 = vmatpush.msra.mxu0 %v1325
        %v1327 = vand.u32 %v560, 4294901760
        %1328 = vmatpush.msra.mxu0 %v1327
        %v1329 = vand.u32 %v552, 4294901760
        %1330 = vmatpush.msra.mxu0 %v1329
        %v1331 = vand.u32 %v544, 4294901760
        %1332 = vmatpush.msra.mxu0 %v1331
        %v1333 = vand.u32 %v536, 4294901760
        %1334 = vmatpush.msra.mxu0 %v1333
        %v1335 = vand.u32 %v528, 4294901760
        %1336 = vmatpush.msra.mxu0 %v1335
        %v1337 = vand.u32 %v520, 4294901760
        %1338 = vmatpush.msra.mxu0 %v1337
        %v1339 = vand.u32 %v512, 4294901760
        %1340 = vmatpush.msra.mxu0 %v1339
        %v1341 = vand.u32 %v738, 4294901760
        %v1342 = vsub.f32 %v738, %v1341
        %v1343 = vand.u32 %v1342, 4294901760
        %1344 = vmatmul.f32.gmra.mxu0 %v1343
        %v1345 = vpop.f32.mrf.mxu0
        %v1346 = vadd.f32 %v1307, %v1345
        %1347 = vdwg.mxu0
        %v1348 = vand.u32 %v632, 4294901760
        %v1349 = vsub.f32 %v632, %v1348
        %v1350 = vand.u32 %v1349, 4294901760
        %1351 = vmatpush.msra.mxu0 %v1350
        %v1352 = vand.u32 %v624, 4294901760
        %v1353 = vsub.f32 %v624, %v1352
        %v1354 = vand.u32 %v1353, 4294901760
        %1355 = vmatpush.msra.mxu0 %v1354
        %v1356 = vand.u32 %v616, 4294901760
        %v1357 = vsub.f32 %v616, %v1356
        %v1358 = vand.u32 %v1357, 4294901760
        %1359 = vmatpush.msra.mxu0 %v1358
        %v1360 = vand.u32 %v608, 4294901760
        %v1361 = vsub.f32 %v608, %v1360
        %v1362 = vand.u32 %v1361, 4294901760
        %1363 = vmatpush.msra.mxu0 %v1362
        %v1364 = vand.u32 %v600, 4294901760
        %v1365 = vsub.f32 %v600, %v1364
        %v1366 = vand.u32 %v1365, 4294901760
        %1367 = vmatpush.msra.mxu0 %v1366
        %v1368 = vand.u32 %v592, 4294901760
        %v1369 = vsub.f32 %v592, %v1368
        %v1370 = vand.u32 %v1369, 4294901760
        %1371 = vmatpush.msra.mxu0 %v1370
        %v1372 = vand.u32 %v584, 4294901760
        %v1373 = vsub.f32 %v584, %v1372
        %v1374 = vand.u32 %v1373, 4294901760
        %1375 = vmatpush.msra.mxu0 %v1374
        %v1376 = vand.u32 %v576, 4294901760
        %v1377 = vsub.f32 %v576, %v1376
        %v1378 = vand.u32 %v1377, 4294901760
        %1379 = vmatpush.msra.mxu0 %v1378
        %v1380 = vand.u32 %v568, 4294901760
        %v1381 = vsub.f32 %v568, %v1380
        %v1382 = vand.u32 %v1381, 4294901760
        %1383 = vmatpush.msra.mxu0 %v1382
        %v1384 = vand.u32 %v560, 4294901760
        %v1385 = vsub.f32 %v560, %v1384
        %v1386 = vand.u32 %v1385, 4294901760
        %1387 = vmatpush.msra.mxu0 %v1386
        %v1388 = vand.u32 %v552, 4294901760
        %v1389 = vsub.f32 %v552, %v1388
        %v1390 = vand.u32 %v1389, 4294901760
        %1391 = vmatpush.msra.mxu0 %v1390
        %v1392 = vand.u32 %v544, 4294901760
        %v1393 = vsub.f32 %v544, %v1392
        %v1394 = vand.u32 %v1393, 4294901760
        %1395 = vmatpush.msra.mxu0 %v1394
        %v1396 = vand.u32 %v536, 4294901760
        %v1397 = vsub.f32 %v536, %v1396
        %v1398 = vand.u32 %v1397, 4294901760
        %1399 = vmatpush.msra.mxu0 %v1398
        %v1400 = vand.u32 %v528, 4294901760
        %v1401 = vsub.f32 %v528, %v1400
        %v1402 = vand.u32 %v1401, 4294901760
        %1403 = vmatpush.msra.mxu0 %v1402
        %v1404 = vand.u32 %v520, 4294901760
        %v1405 = vsub.f32 %v520, %v1404
        %v1406 = vand.u32 %v1405, 4294901760
        %1407 = vmatpush.msra.mxu0 %v1406
        %v1408 = vand.u32 %v512, 4294901760
        %v1409 = vsub.f32 %v512, %v1408
        %v1410 = vand.u32 %v1409, 4294901760
        %1411 = vmatpush.msra.mxu0 %v1410
        %v1412 = vand.u32 %v738, 4294901760
        %1413 = vmatmul.f32.gmra.mxu0 %v1412
        %v1414 = vpop.f32.mrf.mxu0
        %v1415 = vadd.f32 %v1346, %v1414
        %1416 = vdwg.mxu0
        %v1417 = vand.u32 %v632, 4294901760
        %1418 = vmatpush.msra.mxu0 %v1417
        %v1419 = vand.u32 %v624, 4294901760
        %1420 = vmatpush.msra.mxu0 %v1419
        %v1421 = vand.u32 %v616, 4294901760
        %1422 = vmatpush.msra.mxu0 %v1421
        %v1423 = vand.u32 %v608, 4294901760
        %1424 = vmatpush.msra.mxu0 %v1423
        %v1425 = vand.u32 %v600, 4294901760
        %1426 = vmatpush.msra.mxu0 %v1425
        %v1427 = vand.u32 %v592, 4294901760
        %1428 = vmatpush.msra.mxu0 %v1427
        %v1429 = vand.u32 %v584, 4294901760
        %1430 = vmatpush.msra.mxu0 %v1429
        %v1431 = vand.u32 %v576, 4294901760
        %1432 = vmatpush.msra.mxu0 %v1431
        %v1433 = vand.u32 %v568, 4294901760
        %1434 = vmatpush.msra.mxu0 %v1433
        %v1435 = vand.u32 %v560, 4294901760
        %1436 = vmatpush.msra.mxu0 %v1435
        %v1437 = vand.u32 %v552, 4294901760
        %1438 = vmatpush.msra.mxu0 %v1437
        %v1439 = vand.u32 %v544, 4294901760
        %1440 = vmatpush.msra.mxu0 %v1439
        %v1441 = vand.u32 %v536, 4294901760
        %1442 = vmatpush.msra.mxu0 %v1441
        %v1443 = vand.u32 %v528, 4294901760
        %1444 = vmatpush.msra.mxu0 %v1443
        %v1445 = vand.u32 %v520, 4294901760
        %1446 = vmatpush.msra.mxu0 %v1445
        %v1447 = vand.u32 %v512, 4294901760
        %1448 = vmatpush.msra.mxu0 %v1447
        %v1449 = vand.u32 %v738, 4294901760
        %1450 = vmatmul.f32.gmra.mxu0 %v1449
        %v1451 = vpop.f32.mrf.mxu0
        %v1452 = vadd.f32 %v1415, %v1451
        %1453 = vdwg.mxu0
        %1454 = vmatpush.msra.mxu0 0.0
        %1455 = vmatpush.msra.mxu0 0.0
        %1456 = vmatpush.msra.mxu0 0.0
        %1457 = vmatpush.msra.mxu0 0.0
        %1458 = vmatpush.msra.mxu0 0.0
        %v1459 = vand.u32 %v720, 4294901760
        %1460 = vmatpush.msra.mxu0 %v1459
        %v1461 = vand.u32 %v712, 4294901760
        %1462 = vmatpush.msra.mxu0 %v1461
        %v1463 = vand.u32 %v704, 4294901760
        %1464 = vmatpush.msra.mxu0 %v1463
        %v1465 = vand.u32 %v696, 4294901760
        %1466 = vmatpush.msra.mxu0 %v1465
        %v1467 = vand.u32 %v688, 4294901760
        %1468 = vmatpush.msra.mxu0 %v1467
        %v1469 = vand.u32 %v680, 4294901760
        %1470 = vmatpush.msra.mxu0 %v1469
        %v1471 = vand.u32 %v672, 4294901760
        %1472 = vmatpush.msra.mxu0 %v1471
        %v1473 = vand.u32 %v664, 4294901760
        %1474 = vmatpush.msra.mxu0 %v1473
        %v1475 = vand.u32 %v656, 4294901760
        %1476 = vmatpush.msra.mxu0 %v1475
        %v1477 = vand.u32 %v648, 4294901760
        %1478 = vmatpush.msra.mxu0 %v1477
        %v1479 = vand.u32 %v640, 4294901760
        %1480 = vmatpush.msra.mxu0 %v1479
        %v1481 = vand.u32 %v770, 4294901760
        %v1482 = vsub.f32 %v770, %v1481
        %v1483 = vand.u32 %v1482, 4294901760
        %v1484 = vsub.f32 %v1482, %v1483
        %v1485 = vand.u32 %v1484, 4294901760
        %1486 = vmatmul.f32.gmra.mxu0 %v1485
        %v1487 = vpop.f32.mrf.mxu0
        %v1488 = vadd.f32 %v1452, %v1487
        %1489 = vdwg.mxu0
        %1490 = vmatpush.msra.mxu0 0.0
        %1491 = vmatpush.msra.mxu0 0.0
        %1492 = vmatpush.msra.mxu0 0.0
        %1493 = vmatpush.msra.mxu0 0.0
        %1494 = vmatpush.msra.mxu0 0.0
        %v1495 = vand.u32 %v720, 4294901760
        %v1496 = vsub.f32 %v720, %v1495
        %v1497 = vand.u32 %v1496, 4294901760
        %v1498 = vsub.f32 %v1496, %v1497
        %v1499 = vand.u32 %v1498, 4294901760
        %1500 = vmatpush.msra.mxu0 %v1499
        %v1501 = vand.u32 %v712, 4294901760
        %v1502 = vsub.f32 %v712, %v1501
        %v1503 = vand.u32 %v1502, 4294901760
        %v1504 = vsub.f32 %v1502, %v1503
        %v1505 = vand.u32 %v1504, 4294901760
        %1506 = vmatpush.msra.mxu0 %v1505
        %v1507 = vand.u32 %v704, 4294901760
        %v1508 = vsub.f32 %v704, %v1507
        %v1509 = vand.u32 %v1508, 4294901760
        %v1510 = vsub.f32 %v1508, %v1509
        %v1511 = vand.u32 %v1510, 4294901760
        %1512 = vmatpush.msra.mxu0 %v1511
        %v1513 = vand.u32 %v696, 4294901760
        %v1514 = vsub.f32 %v696, %v1513
        %v1515 = vand.u32 %v1514, 4294901760
        %v1516 = vsub.f32 %v1514, %v1515
        %v1517 = vand.u32 %v1516, 4294901760
        %1518 = vmatpush.msra.mxu0 %v1517
        %v1519 = vand.u32 %v688, 4294901760
        %v1520 = vsub.f32 %v688, %v1519
        %v1521 = vand.u32 %v1520, 4294901760
        %v1522 = vsub.f32 %v1520, %v1521
        %v1523 = vand.u32 %v1522, 4294901760
        %1524 = vmatpush.msra.mxu0 %v1523
        %v1525 = vand.u32 %v680, 4294901760
        %v1526 = vsub.f32 %v680, %v1525
        %v1527 = vand.u32 %v1526, 4294901760
        %v1528 = vsub.f32 %v1526, %v1527
        %v1529 = vand.u32 %v1528, 4294901760
        %1530 = vmatpush.msra.mxu0 %v1529
        %v1531 = vand.u32 %v672, 4294901760
        %v1532 = vsub.f32 %v672, %v1531
        %v1533 = vand.u32 %v1532, 4294901760
        %v1534 = vsub.f32 %v1532, %v1533
        %v1535 = vand.u32 %v1534, 4294901760
        %1536 = vmatpush.msra.mxu0 %v1535
        %v1537 = vand.u32 %v664, 4294901760
        %v1538 = vsub.f32 %v664, %v1537
        %v1539 = vand.u32 %v1538, 4294901760
        %v1540 = vsub.f32 %v1538, %v1539
        %v1541 = vand.u32 %v1540, 4294901760
        %1542 = vmatpush.msra.mxu0 %v1541
        %v1543 = vand.u32 %v656, 4294901760
        %v1544 = vsub.f32 %v656, %v1543
        %v1545 = vand.u32 %v1544, 4294901760
        %v1546 = vsub.f32 %v1544, %v1545
        %v1547 = vand.u32 %v1546, 4294901760
        %1548 = vmatpush.msra.mxu0 %v1547
        %v1549 = vand.u32 %v648, 4294901760
        %v1550 = vsub.f32 %v648, %v1549
        %v1551 = vand.u32 %v1550, 4294901760
        %v1552 = vsub.f32 %v1550, %v1551
        %v1553 = vand.u32 %v1552, 4294901760
        %1554 = vmatpush.msra.mxu0 %v1553
        %v1555 = vand.u32 %v640, 4294901760
        %v1556 = vsub.f32 %v640, %v1555
        %v1557 = vand.u32 %v1556, 4294901760
        %v1558 = vsub.f32 %v1556, %v1557
        %v1559 = vand.u32 %v1558, 4294901760
        %1560 = vmatpush.msra.mxu0 %v1559
        %v1561 = vand.u32 %v770, 4294901760
        %1562 = vmatmul.f32.gmra.mxu0 %v1561
        %v1563 = vpop.f32.mrf.mxu0
        %v1564 = vadd.f32 %v1488, %v1563
        %1565 = vdwg.mxu0
        %1566 = vmatpush.msra.mxu0 0.0
        %1567 = vmatpush.msra.mxu0 0.0
        %1568 = vmatpush.msra.mxu0 0.0
        %1569 = vmatpush.msra.mxu0 0.0
        %1570 = vmatpush.msra.mxu0 0.0
        %v1571 = vand.u32 %v720, 4294901760
        %v1572 = vsub.f32 %v720, %v1571
        %1573 = vmatpush.msra.mxu0 %v1572
        %v1574 = vand.u32 %v712, 4294901760
        %v1575 = vsub.f32 %v712, %v1574
        %1576 = vmatpush.msra.mxu0 %v1575
        %v1577 = vand.u32 %v704, 4294901760
        %v1578 = vsub.f32 %v704, %v1577
        %1579 = vmatpush.msra.mxu0 %v1578
        %v1580 = vand.u32 %v696, 4294901760
        %v1581 = vsub.f32 %v696, %v1580
        %1582 = vmatpush.msra.mxu0 %v1581
        %v1583 = vand.u32 %v688, 4294901760
        %v1584 = vsub.f32 %v688, %v1583
        %1585 = vmatpush.msra.mxu0 %v1584
        %v1586 = vand.u32 %v680, 4294901760
        %v1587 = vsub.f32 %v680, %v1586
        %1588 = vmatpush.msra.mxu0 %v1587
        %v1589 = vand.u32 %v672, 4294901760
        %v1590 = vsub.f32 %v672, %v1589
        %1591 = vmatpush.msra.mxu0 %v1590
        %v1592 = vand.u32 %v664, 4294901760
        %v1593 = vsub.f32 %v664, %v1592
        %1594 = vmatpush.msra.mxu0 %v1593
        %v1595 = vand.u32 %v656, 4294901760
        %v1596 = vsub.f32 %v656, %v1595
        %1597 = vmatpush.msra.mxu0 %v1596
        %v1598 = vand.u32 %v648, 4294901760
        %v1599 = vsub.f32 %v648, %v1598
        %1600 = vmatpush.msra.mxu0 %v1599
        %v1601 = vand.u32 %v640, 4294901760
        %v1602 = vsub.f32 %v640, %v1601
        %1603 = vmatpush.msra.mxu0 %v1602
        %v1604 = vand.u32 %v770, 4294901760
        %v1605 = vsub.f32 %v770, %v1604
        %1606 = vmatmul.f32.gmra.mxu0 %v1605
        %v1607 = vpop.f32.mrf.mxu0
        %v1608 = vadd.f32 %v1564, %v1607
        %1609 = vdwg.mxu0
        %1610 = vmatpush.msra.mxu0 0.0
        %1611 = vmatpush.msra.mxu0 0.0
        %1612 = vmatpush.msra.mxu0 0.0
        %1613 = vmatpush.msra.mxu0 0.0
        %1614 = vmatpush.msra.mxu0 0.0
        %v1615 = vand.u32 %v720, 4294901760
        %1616 = vmatpush.msra.mxu0 %v1615
        %v1617 = vand.u32 %v712, 4294901760
        %1618 = vmatpush.msra.mxu0 %v1617
        %v1619 = vand.u32 %v704, 4294901760
        %1620 = vmatpush.msra.mxu0 %v1619
        %v1621 = vand.u32 %v696, 4294901760
        %1622 = vmatpush.msra.mxu0 %v1621
        %v1623 = vand.u32 %v688, 4294901760
        %1624 = vmatpush.msra.mxu0 %v1623
        %v1625 = vand.u32 %v680, 4294901760
        %1626 = vmatpush.msra.mxu0 %v1625
        %v1627 = vand.u32 %v672, 4294901760
        %1628 = vmatpush.msra.mxu0 %v1627
        %v1629 = vand.u32 %v664, 4294901760
        %1630 = vmatpush.msra.mxu0 %v1629
        %v1631 = vand.u32 %v656, 4294901760
        %1632 = vmatpush.msra.mxu0 %v1631
        %v1633 = vand.u32 %v648, 4294901760
        %1634 = vmatpush.msra.mxu0 %v1633
        %v1635 = vand.u32 %v640, 4294901760
        %1636 = vmatpush.msra.mxu0 %v1635
        %v1637 = vand.u32 %v770, 4294901760
        %v1638 = vsub.f32 %v770, %v1637
        %v1639 = vand.u32 %v1638, 4294901760
        %1640 = vmatmul.f32.gmra.mxu0 %v1639
        %v1641 = vpop.f32.mrf.mxu0
        %v1642 = vadd.f32 %v1608, %v1641
        %1643 = vdwg.mxu0
        %1644 = vmatpush.msra.mxu0 0.0
        %1645 = vmatpush.msra.mxu0 0.0
        %1646 = vmatpush.msra.mxu0 0.0
        %1647 = vmatpush.msra.mxu0 0.0
        %1648 = vmatpush.msra.mxu0 0.0
        %v1649 = vand.u32 %v720, 4294901760
        %v1650 = vsub.f32 %v720, %v1649
        %v1651 = vand.u32 %v1650, 4294901760
        %1652 = vmatpush.msra.mxu0 %v1651
        %v1653 = vand.u32 %v712, 4294901760
        %v1654 = vsub.f32 %v712, %v1653
        %v1655 = vand.u32 %v1654, 4294901760
        %1656 = vmatpush.msra.mxu0 %v1655
        %v1657 = vand.u32 %v704, 4294901760
        %v1658 = vsub.f32 %v704, %v1657
        %v1659 = vand.u32 %v1658, 4294901760
        %1660 = vmatpush.msra.mxu0 %v1659
        %v1661 = vand.u32 %v696, 4294901760
        %v1662 = vsub.f32 %v696, %v1661
        %v1663 = vand.u32 %v1662, 4294901760
        %1664 = vmatpush.msra.mxu0 %v1663
        %v1665 = vand.u32 %v688, 4294901760
        %v1666 = vsub.f32 %v688, %v1665
        %v1667 = vand.u32 %v1666, 4294901760
        %1668 = vmatpush.msra.mxu0 %v1667
        %v1669 = vand.u32 %v680, 4294901760
        %v1670 = vsub.f32 %v680, %v1669
        %v1671 = vand.u32 %v1670, 4294901760
        %1672 = vmatpush.msra.mxu0 %v1671
        %v1673 = vand.u32 %v672, 4294901760
        %v1674 = vsub.f32 %v672, %v1673
        %v1675 = vand.u32 %v1674, 4294901760
        %1676 = vmatpush.msra.mxu0 %v1675
        %v1677 = vand.u32 %v664, 4294901760
        %v1678 = vsub.f32 %v664, %v1677
        %v1679 = vand.u32 %v1678, 4294901760
        %1680 = vmatpush.msra.mxu0 %v1679
        %v1681 = vand.u32 %v656, 4294901760
        %v1682 = vsub.f32 %v656, %v1681
        %v1683 = vand.u32 %v1682, 4294901760
        %1684 = vmatpush.msra.mxu0 %v1683
        %v1685 = vand.u32 %v648, 4294901760
        %v1686 = vsub.f32 %v648, %v1685
        %v1687 = vand.u32 %v1686, 4294901760
        %1688 = vmatpush.msra.mxu0 %v1687
        %v1689 = vand.u32 %v640, 4294901760
        %v1690 = vsub.f32 %v640, %v1689
        %v1691 = vand.u32 %v1690, 4294901760
        %1692 = vmatpush.msra.mxu0 %v1691
        %v1693 = vand.u32 %v770, 4294901760
        %1694 = vmatmul.f32.gmra.mxu0 %v1693
        %v1695 = vpop.f32.mrf.mxu0
        %v1696 = vadd.f32 %v1642, %v1695
        %1697 = vdwg.mxu0
        %1698 = vmatpush.msra.mxu0 0.0
        %1699 = vmatpush.msra.mxu0 0.0
        %1700 = vmatpush.msra.mxu0 0.0
        %1701 = vmatpush.msra.mxu0 0.0
        %1702 = vmatpush.msra.mxu0 0.0
        %v1703 = vand.u32 %v720, 4294901760
        %1704 = vmatpush.msra.mxu0 %v1703
        %v1705 = vand.u32 %v712, 4294901760
        %1706 = vmatpush.msra.mxu0 %v1705
        %v1707 = vand.u32 %v704, 4294901760
        %1708 = vmatpush.msra.mxu0 %v1707
        %v1709 = vand.u32 %v696, 4294901760
        %1710 = vmatpush.msra.mxu0 %v1709
        %v1711 = vand.u32 %v688, 4294901760
        %1712 = vmatpush.msra.mxu0 %v1711
        %v1713 = vand.u32 %v680, 4294901760
        %1714 = vmatpush.msra.mxu0 %v1713
        %v1715 = vand.u32 %v672, 4294901760
        %1716 = vmatpush.msra.mxu0 %v1715
        %v1717 = vand.u32 %v664, 4294901760
        %1718 = vmatpush.msra.mxu0 %v1717
        %v1719 = vand.u32 %v656, 4294901760
        %1720 = vmatpush.msra.mxu0 %v1719
        %v1721 = vand.u32 %v648, 4294901760
        %1722 = vmatpush.msra.mxu0 %v1721
        %v1723 = vand.u32 %v640, 4294901760
        %1724 = vmatpush.msra.mxu0 %v1723
        %v1725 = vand.u32 %v770, 4294901760
        %1726 = vmatmul.f32.gmra.mxu0 %v1725
        %v1727 = vpop.f32.mrf.mxu0
        %v1728 = vadd.f32 %v1696, %v1727
        %1729 = vdwg.mxu0
        %v1730 = vand.u32 %v505, 4294901760
        %1731 = vmatpush.msra.mxu0 %v1730
        %v1732 = vand.u32 %v497, 4294901760
        %1733 = vmatpush.msra.mxu0 %v1732
        %v1734 = vand.u32 %v489, 4294901760
        %1735 = vmatpush.msra.mxu0 %v1734
        %v1736 = vand.u32 %v481, 4294901760
        %1737 = vmatpush.msra.mxu0 %v1736
        %v1738 = vand.u32 %v473, 4294901760
        %1739 = vmatpush.msra.mxu0 %v1738
        %v1740 = vand.u32 %v465, 4294901760
        %1741 = vmatpush.msra.mxu0 %v1740
        %v1742 = vand.u32 %v457, 4294901760
        %1743 = vmatpush.msra.mxu0 %v1742
        %v1744 = vand.u32 %v449, 4294901760
        %1745 = vmatpush.msra.mxu0 %v1744
        %v1746 = vand.u32 %v441, 4294901760
        %1747 = vmatpush.msra.mxu0 %v1746
        %v1748 = vand.u32 %v433, 4294901760
        %1749 = vmatpush.msra.mxu0 %v1748
        %v1750 = vand.u32 %v425, 4294901760
        %1751 = vmatpush.msra.mxu0 %v1750
        %v1752 = vand.u32 %v417, 4294901760
        %1753 = vmatpush.msra.mxu0 %v1752
        %v1754 = vand.u32 %v409, 4294901760
        %1755 = vmatpush.msra.mxu0 %v1754
        %v1756 = vand.u32 %v401, 4294901760
        %1757 = vmatpush.msra.mxu0 %v1756
        %v1758 = vand.u32 %v393, 4294901760
        %1759 = vmatpush.msra.mxu0 %v1758
        %v1760 = vand.u32 %v385, 4294901760
        %1761 = vmatpush.msra.mxu0 %v1760
        %v1762 = vand.u32 %v737, 4294901760
        %v1763 = vsub.f32 %v737, %v1762
        %v1764 = vand.u32 %v1763, 4294901760
        %v1765 = vsub.f32 %v1763, %v1764
        %v1766 = vand.u32 %v1765, 4294901760
        %1767 = vmatmul.f32.gmra.mxu0 %v1766
        %v1768 = vpop.f32.mrf.mxu0
        %v1769 = vadd.f32 %v754, %v1768
        %1770 = vdwg.mxu0
        %v1771 = vand.u32 %v505, 4294901760
        %v1772 = vsub.f32 %v505, %v1771
        %v1773 = vand.u32 %v1772, 4294901760
        %v1774 = vsub.f32 %v1772, %v1773
        %v1775 = vand.u32 %v1774, 4294901760
        %1776 = vmatpush.msra.mxu0 %v1775
        %v1777 = vand.u32 %v497, 4294901760
        %v1778 = vsub.f32 %v497, %v1777
        %v1779 = vand.u32 %v1778, 4294901760
        %v1780 = vsub.f32 %v1778, %v1779
        %v1781 = vand.u32 %v1780, 4294901760
        %1782 = vmatpush.msra.mxu0 %v1781
        %v1783 = vand.u32 %v489, 4294901760
        %v1784 = vsub.f32 %v489, %v1783
        %v1785 = vand.u32 %v1784, 4294901760
        %v1786 = vsub.f32 %v1784, %v1785
        %v1787 = vand.u32 %v1786, 4294901760
        %1788 = vmatpush.msra.mxu0 %v1787
        %v1789 = vand.u32 %v481, 4294901760
        %v1790 = vsub.f32 %v481, %v1789
        %v1791 = vand.u32 %v1790, 4294901760
        %v1792 = vsub.f32 %v1790, %v1791
        %v1793 = vand.u32 %v1792, 4294901760
        %1794 = vmatpush.msra.mxu0 %v1793
        %v1795 = vand.u32 %v473, 4294901760
        %v1796 = vsub.f32 %v473, %v1795
        %v1797 = vand.u32 %v1796, 4294901760
        %v1798 = vsub.f32 %v1796, %v1797
        %v1799 = vand.u32 %v1798, 4294901760
        %1800 = vmatpush.msra.mxu0 %v1799
        %v1801 = vand.u32 %v465, 4294901760
        %v1802 = vsub.f32 %v465, %v1801
        %v1803 = vand.u32 %v1802, 4294901760
        %v1804 = vsub.f32 %v1802, %v1803
        %v1805 = vand.u32 %v1804, 4294901760
        %1806 = vmatpush.msra.mxu0 %v1805
        %v1807 = vand.u32 %v457, 4294901760
        %v1808 = vsub.f32 %v457, %v1807
        %v1809 = vand.u32 %v1808, 4294901760
        %v1810 = vsub.f32 %v1808, %v1809
        %v1811 = vand.u32 %v1810, 4294901760
        %1812 = vmatpush.msra.mxu0 %v1811
        %v1813 = vand.u32 %v449, 4294901760
        %v1814 = vsub.f32 %v449, %v1813
        %v1815 = vand.u32 %v1814, 4294901760
        %v1816 = vsub.f32 %v1814, %v1815
        %v1817 = vand.u32 %v1816, 4294901760
        %1818 = vmatpush.msra.mxu0 %v1817
        %v1819 = vand.u32 %v441, 4294901760
        %v1820 = vsub.f32 %v441, %v1819
        %v1821 = vand.u32 %v1820, 4294901760
        %v1822 = vsub.f32 %v1820, %v1821
        %v1823 = vand.u32 %v1822, 4294901760
        %1824 = vmatpush.msra.mxu0 %v1823
        %v1825 = vand.u32 %v433, 4294901760
        %v1826 = vsub.f32 %v433, %v1825
        %v1827 = vand.u32 %v1826, 4294901760
        %v1828 = vsub.f32 %v1826, %v1827
        %v1829 = vand.u32 %v1828, 4294901760
        %1830 = vmatpush.msra.mxu0 %v1829
        %v1831 = vand.u32 %v425, 4294901760
        %v1832 = vsub.f32 %v425, %v1831
        %v1833 = vand.u32 %v1832, 4294901760
        %v1834 = vsub.f32 %v1832, %v1833
        %v1835 = vand.u32 %v1834, 4294901760
        %1836 = vmatpush.msra.mxu0 %v1835
        %v1837 = vand.u32 %v417, 4294901760
        %v1838 = vsub.f32 %v417, %v1837
        %v1839 = vand.u32 %v1838, 4294901760
        %v1840 = vsub.f32 %v1838, %v1839
        %v1841 = vand.u32 %v1840, 4294901760
        %1842 = vmatpush.msra.mxu0 %v1841
        %v1843 = vand.u32 %v409, 4294901760
        %v1844 = vsub.f32 %v409, %v1843
        %v1845 = vand.u32 %v1844, 4294901760
        %v1846 = vsub.f32 %v1844, %v1845
        %v1847 = vand.u32 %v1846, 4294901760
        %1848 = vmatpush.msra.mxu0 %v1847
        %v1849 = vand.u32 %v401, 4294901760
        %v1850 = vsub.f32 %v401, %v1849
        %v1851 = vand.u32 %v1850, 4294901760
        %v1852 = vsub.f32 %v1850, %v1851
        %v1853 = vand.u32 %v1852, 4294901760
        %1854 = vmatpush.msra.mxu0 %v1853
        %v1855 = vand.u32 %v393, 4294901760
        %v1856 = vsub.f32 %v393, %v1855
        %v1857 = vand.u32 %v1856, 4294901760
        %v1858 = vsub.f32 %v1856, %v1857
        %v1859 = vand.u32 %v1858, 4294901760
        %1860 = vmatpush.msra.mxu0 %v1859
        %v1861 = vand.u32 %v385, 4294901760
        %v1862 = vsub.f32 %v385, %v1861
        %v1863 = vand.u32 %v1862, 4294901760
        %v1864 = vsub.f32 %v1862, %v1863
        %v1865 = vand.u32 %v1864, 4294901760
        %1866 = vmatpush.msra.mxu0 %v1865
        %v1867 = vand.u32 %v737, 4294901760
        %1868 = vmatmul.f32.gmra.mxu0 %v1867
        %v1869 = vpop.f32.mrf.mxu0
        %v1870 = vadd.f32 %v1769, %v1869
        %1871 = vdwg.mxu0
        %v1872 = vand.u32 %v505, 4294901760
        %v1873 = vsub.f32 %v505, %v1872
        %1874 = vmatpush.msra.mxu0 %v1873
        %v1875 = vand.u32 %v497, 4294901760
        %v1876 = vsub.f32 %v497, %v1875
        %1877 = vmatpush.msra.mxu0 %v1876
        %v1878 = vand.u32 %v489, 4294901760
        %v1879 = vsub.f32 %v489, %v1878
        %1880 = vmatpush.msra.mxu0 %v1879
        %v1881 = vand.u32 %v481, 4294901760
        %v1882 = vsub.f32 %v481, %v1881
        %1883 = vmatpush.msra.mxu0 %v1882
        %v1884 = vand.u32 %v473, 4294901760
        %v1885 = vsub.f32 %v473, %v1884
        %1886 = vmatpush.msra.mxu0 %v1885
        %v1887 = vand.u32 %v465, 4294901760
        %v1888 = vsub.f32 %v465, %v1887
        %1889 = vmatpush.msra.mxu0 %v1888
        %v1890 = vand.u32 %v457, 4294901760
        %v1891 = vsub.f32 %v457, %v1890
        %1892 = vmatpush.msra.mxu0 %v1891
        %v1893 = vand.u32 %v449, 4294901760
        %v1894 = vsub.f32 %v449, %v1893
        %1895 = vmatpush.msra.mxu0 %v1894
        %v1896 = vand.u32 %v441, 4294901760
        %v1897 = vsub.f32 %v441, %v1896
        %1898 = vmatpush.msra.mxu0 %v1897
        %v1899 = vand.u32 %v433, 4294901760
        %v1900 = vsub.f32 %v433, %v1899
        %1901 = vmatpush.msra.mxu0 %v1900
        %v1902 = vand.u32 %v425, 4294901760
        %v1903 = vsub.f32 %v425, %v1902
        %1904 = vmatpush.msra.mxu0 %v1903
        %v1905 = vand.u32 %v417, 4294901760
        %v1906 = vsub.f32 %v417, %v1905
        %1907 = vmatpush.msra.mxu0 %v1906
        %v1908 = vand.u32 %v409, 4294901760
        %v1909 = vsub.f32 %v409, %v1908
        %1910 = vmatpush.msra.mxu0 %v1909
        %v1911 = vand.u32 %v401, 4294901760
        %v1912 = vsub.f32 %v401, %v1911
        %1913 = vmatpush.msra.mxu0 %v1912
        %v1914 = vand.u32 %v393, 4294901760
        %v1915 = vsub.f32 %v393, %v1914
        %1916 = vmatpush.msra.mxu0 %v1915
        %v1917 = vand.u32 %v385, 4294901760
        %v1918 = vsub.f32 %v385, %v1917
        %1919 = vmatpush.msra.mxu0 %v1918
        %v1920 = vand.u32 %v737, 4294901760
        %v1921 = vsub.f32 %v737, %v1920
        %1922 = vmatmul.f32.gmra.mxu0 %v1921
        %v1923 = vpop.f32.mrf.mxu0
        %v1924 = vadd.f32 %v1870, %v1923
        %1925 = vdwg.mxu0
        %v1926 = vand.u32 %v505, 4294901760
        %1927 = vmatpush.msra.mxu0 %v1926
        %v1928 = vand.u32 %v497, 4294901760
        %1929 = vmatpush.msra.mxu0 %v1928
        %v1930 = vand.u32 %v489, 4294901760
        %1931 = vmatpush.msra.mxu0 %v1930
        %v1932 = vand.u32 %v481, 4294901760
        %1933 = vmatpush.msra.mxu0 %v1932
        %v1934 = vand.u32 %v473, 4294901760
        %1935 = vmatpush.msra.mxu0 %v1934
        %v1936 = vand.u32 %v465, 4294901760
        %1937 = vmatpush.msra.mxu0 %v1936
        %v1938 = vand.u32 %v457, 4294901760
        %1939 = vmatpush.msra.mxu0 %v1938
        %v1940 = vand.u32 %v449, 4294901760
        %1941 = vmatpush.msra.mxu0 %v1940
        %v1942 = vand.u32 %v441, 4294901760
        %1943 = vmatpush.msra.mxu0 %v1942
        %v1944 = vand.u32 %v433, 4294901760
        %1945 = vmatpush.msra.mxu0 %v1944
        %v1946 = vand.u32 %v425, 4294901760
        %1947 = vmatpush.msra.mxu0 %v1946
        %v1948 = vand.u32 %v417, 4294901760
        %1949 = vmatpush.msra.mxu0 %v1948
        %v1950 = vand.u32 %v409, 4294901760
        %1951 = vmatpush.msra.mxu0 %v1950
        %v1952 = vand.u32 %v401, 4294901760
        %1953 = vmatpush.msra.mxu0 %v1952
        %v1954 = vand.u32 %v393, 4294901760
        %1955 = vmatpush.msra.mxu0 %v1954
        %v1956 = vand.u32 %v385, 4294901760
        %1957 = vmatpush.msra.mxu0 %v1956
        %v1958 = vand.u32 %v737, 4294901760
        %v1959 = vsub.f32 %v737, %v1958
        %v1960 = vand.u32 %v1959, 4294901760
        %1961 = vmatmul.f32.gmra.mxu0 %v1960
        %v1962 = vpop.f32.mrf.mxu0
        %v1963 = vadd.f32 %v1924, %v1962
        %1964 = vdwg.mxu0
        %v1965 = vand.u32 %v505, 4294901760
        %v1966 = vsub.f32 %v505, %v1965
        %v1967 = vand.u32 %v1966, 4294901760
        %1968 = vmatpush.msra.mxu0 %v1967
        %v1969 = vand.u32 %v497, 4294901760
        %v1970 = vsub.f32 %v497, %v1969
        %v1971 = vand.u32 %v1970, 4294901760
        %1972 = vmatpush.msra.mxu0 %v1971
        %v1973 = vand.u32 %v489, 4294901760
        %v1974 = vsub.f32 %v489, %v1973
        %v1975 = vand.u32 %v1974, 4294901760
        %1976 = vmatpush.msra.mxu0 %v1975
        %v1977 = vand.u32 %v481, 4294901760
        %v1978 = vsub.f32 %v481, %v1977
        %v1979 = vand.u32 %v1978, 4294901760
        %1980 = vmatpush.msra.mxu0 %v1979
        %v1981 = vand.u32 %v473, 4294901760
        %v1982 = vsub.f32 %v473, %v1981
        %v1983 = vand.u32 %v1982, 4294901760
        %1984 = vmatpush.msra.mxu0 %v1983
        %v1985 = vand.u32 %v465, 4294901760
        %v1986 = vsub.f32 %v465, %v1985
        %v1987 = vand.u32 %v1986, 4294901760
        %1988 = vmatpush.msra.mxu0 %v1987
        %v1989 = vand.u32 %v457, 4294901760
        %v1990 = vsub.f32 %v457, %v1989
        %v1991 = vand.u32 %v1990, 4294901760
        %1992 = vmatpush.msra.mxu0 %v1991
        %v1993 = vand.u32 %v449, 4294901760
        %v1994 = vsub.f32 %v449, %v1993
        %v1995 = vand.u32 %v1994, 4294901760
        %1996 = vmatpush.msra.mxu0 %v1995
        %v1997 = vand.u32 %v441, 4294901760
        %v1998 = vsub.f32 %v441, %v1997
        %v1999 = vand.u32 %v1998, 4294901760
        %2000 = vmatpush.msra.mxu0 %v1999
        %v2001 = vand.u32 %v433, 4294901760
        %v2002 = vsub.f32 %v433, %v2001
        %v2003 = vand.u32 %v2002, 4294901760
        %2004 = vmatpush.msra.mxu0 %v2003
        %v2005 = vand.u32 %v425, 4294901760
        %v2006 = vsub.f32 %v425, %v2005
        %v2007 = vand.u32 %v2006, 4294901760
        %2008 = vmatpush.msra.mxu0 %v2007
        %v2009 = vand.u32 %v417, 4294901760
        %v2010 = vsub.f32 %v417, %v2009
        %v2011 = vand.u32 %v2010, 4294901760
        %2012 = vmatpush.msra.mxu0 %v2011
        %v2013 = vand.u32 %v409, 4294901760
        %v2014 = vsub.f32 %v409, %v2013
        %v2015 = vand.u32 %v2014, 4294901760
        %2016 = vmatpush.msra.mxu0 %v2015
        %v2017 = vand.u32 %v401, 4294901760
        %v2018 = vsub.f32 %v401, %v2017
        %v2019 = vand.u32 %v2018, 4294901760
        %2020 = vmatpush.msra.mxu0 %v2019
        %v2021 = vand.u32 %v393, 4294901760
        %v2022 = vsub.f32 %v393, %v2021
        %v2023 = vand.u32 %v2022, 4294901760
        %2024 = vmatpush.msra.mxu0 %v2023
        %v2025 = vand.u32 %v385, 4294901760
        %v2026 = vsub.f32 %v385, %v2025
        %v2027 = vand.u32 %v2026, 4294901760
        %2028 = vmatpush.msra.mxu0 %v2027
        %v2029 = vand.u32 %v737, 4294901760
        %2030 = vmatmul.f32.gmra.mxu0 %v2029
        %v2031 = vpop.f32.mrf.mxu0
        %v2032 = vadd.f32 %v1963, %v2031
        %2033 = vdwg.mxu0
        %v2034 = vand.u32 %v505, 4294901760
        %2035 = vmatpush.msra.mxu0 %v2034
        %v2036 = vand.u32 %v497, 4294901760
        %2037 = vmatpush.msra.mxu0 %v2036
        %v2038 = vand.u32 %v489, 4294901760
        %2039 = vmatpush.msra.mxu0 %v2038
        %v2040 = vand.u32 %v481, 4294901760
        %2041 = vmatpush.msra.mxu0 %v2040
        %v2042 = vand.u32 %v473, 4294901760
        %2043 = vmatpush.msra.mxu0 %v2042
        %v2044 = vand.u32 %v465, 4294901760
        %2045 = vmatpush.msra.mxu0 %v2044
        %v2046 = vand.u32 %v457, 4294901760
        %2047 = vmatpush.msra.mxu0 %v2046
        %v2048 = vand.u32 %v449, 4294901760
        %2049 = vmatpush.msra.mxu0 %v2048
        %v2050 = vand.u32 %v441, 4294901760
        %2051 = vmatpush.msra.mxu0 %v2050
        %v2052 = vand.u32 %v433, 4294901760
        %2053 = vmatpush.msra.mxu0 %v2052
        %v2054 = vand.u32 %v425, 4294901760
        %2055 = vmatpush.msra.mxu0 %v2054
        %v2056 = vand.u32 %v417, 4294901760
        %2057 = vmatpush.msra.mxu0 %v2056
        %v2058 = vand.u32 %v409, 4294901760
        %2059 = vmatpush.msra.mxu0 %v2058
        %v2060 = vand.u32 %v401, 4294901760
        %2061 = vmatpush.msra.mxu0 %v2060
        %v2062 = vand.u32 %v393, 4294901760
        %2063 = vmatpush.msra.mxu0 %v2062
        %v2064 = vand.u32 %v385, 4294901760
        %2065 = vmatpush.msra.mxu0 %v2064
        %v2066 = vand.u32 %v737, 4294901760
        %2067 = vmatmul.f32.gmra.mxu0 %v2066
        %v2068 = vpop.f32.mrf.mxu0
        %v2069 = vadd.f32 %v2032, %v2068
        %2070 = vdwg.mxu0
        %v2071 = vand.u32 %v633, 4294901760
        %2072 = vmatpush.msra.mxu0 %v2071
        %v2073 = vand.u32 %v625, 4294901760
        %2074 = vmatpush.msra.mxu0 %v2073
        %v2075 = vand.u32 %v617, 4294901760
        %2076 = vmatpush.msra.mxu0 %v2075
        %v2077 = vand.u32 %v609, 4294901760
        %2078 = vmatpush.msra.mxu0 %v2077
        %v2079 = vand.u32 %v601, 4294901760
        %2080 = vmatpush.msra.mxu0 %v2079
        %v2081 = vand.u32 %v593, 4294901760
        %2082 = vmatpush.msra.mxu0 %v2081
        %v2083 = vand.u32 %v585, 4294901760
        %2084 = vmatpush.msra.mxu0 %v2083
        %v2085 = vand.u32 %v577, 4294901760
        %2086 = vmatpush.msra.mxu0 %v2085
        %v2087 = vand.u32 %v569, 4294901760
        %2088 = vmatpush.msra.mxu0 %v2087
        %v2089 = vand.u32 %v561, 4294901760
        %2090 = vmatpush.msra.mxu0 %v2089
        %v2091 = vand.u32 %v553, 4294901760
        %2092 = vmatpush.msra.mxu0 %v2091
        %v2093 = vand.u32 %v545, 4294901760
        %2094 = vmatpush.msra.mxu0 %v2093
        %v2095 = vand.u32 %v537, 4294901760
        %2096 = vmatpush.msra.mxu0 %v2095
        %v2097 = vand.u32 %v529, 4294901760
        %2098 = vmatpush.msra.mxu0 %v2097
        %v2099 = vand.u32 %v521, 4294901760
        %2100 = vmatpush.msra.mxu0 %v2099
        %v2101 = vand.u32 %v513, 4294901760
        %2102 = vmatpush.msra.mxu0 %v2101
        %v2103 = vand.u32 %v738, 4294901760
        %v2104 = vsub.f32 %v738, %v2103
        %v2105 = vand.u32 %v2104, 4294901760
        %v2106 = vsub.f32 %v2104, %v2105
        %v2107 = vand.u32 %v2106, 4294901760
        %2108 = vmatmul.f32.gmra.mxu0 %v2107
        %v2109 = vpop.f32.mrf.mxu0
        %v2110 = vadd.f32 %v2069, %v2109
        %2111 = vdwg.mxu0
        %v2112 = vand.u32 %v633, 4294901760
        %v2113 = vsub.f32 %v633, %v2112
        %v2114 = vand.u32 %v2113, 4294901760
        %v2115 = vsub.f32 %v2113, %v2114
        %v2116 = vand.u32 %v2115, 4294901760
        %2117 = vmatpush.msra.mxu0 %v2116
        %v2118 = vand.u32 %v625, 4294901760
        %v2119 = vsub.f32 %v625, %v2118
        %v2120 = vand.u32 %v2119, 4294901760
        %v2121 = vsub.f32 %v2119, %v2120
        %v2122 = vand.u32 %v2121, 4294901760
        %2123 = vmatpush.msra.mxu0 %v2122
        %v2124 = vand.u32 %v617, 4294901760
        %v2125 = vsub.f32 %v617, %v2124
        %v2126 = vand.u32 %v2125, 4294901760
        %v2127 = vsub.f32 %v2125, %v2126
        %v2128 = vand.u32 %v2127, 4294901760
        %2129 = vmatpush.msra.mxu0 %v2128
        %v2130 = vand.u32 %v609, 4294901760
        %v2131 = vsub.f32 %v609, %v2130
        %v2132 = vand.u32 %v2131, 4294901760
        %v2133 = vsub.f32 %v2131, %v2132
        %v2134 = vand.u32 %v2133, 4294901760
        %2135 = vmatpush.msra.mxu0 %v2134
        %v2136 = vand.u32 %v601, 4294901760
        %v2137 = vsub.f32 %v601, %v2136
        %v2138 = vand.u32 %v2137, 4294901760
        %v2139 = vsub.f32 %v2137, %v2138
        %v2140 = vand.u32 %v2139, 4294901760
        %2141 = vmatpush.msra.mxu0 %v2140
        %v2142 = vand.u32 %v593, 4294901760
        %v2143 = vsub.f32 %v593, %v2142
        %v2144 = vand.u32 %v2143, 4294901760
        %v2145 = vsub.f32 %v2143, %v2144
        %v2146 = vand.u32 %v2145, 4294901760
        %2147 = vmatpush.msra.mxu0 %v2146
        %v2148 = vand.u32 %v585, 4294901760
        %v2149 = vsub.f32 %v585, %v2148
        %v2150 = vand.u32 %v2149, 4294901760
        %v2151 = vsub.f32 %v2149, %v2150
        %v2152 = vand.u32 %v2151, 4294901760
        %2153 = vmatpush.msra.mxu0 %v2152
        %v2154 = vand.u32 %v577, 4294901760
        %v2155 = vsub.f32 %v577, %v2154
        %v2156 = vand.u32 %v2155, 4294901760
        %v2157 = vsub.f32 %v2155, %v2156
        %v2158 = vand.u32 %v2157, 4294901760
        %2159 = vmatpush.msra.mxu0 %v2158
        %v2160 = vand.u32 %v569, 4294901760
        %v2161 = vsub.f32 %v569, %v2160
        %v2162 = vand.u32 %v2161, 4294901760
        %v2163 = vsub.f32 %v2161, %v2162
        %v2164 = vand.u32 %v2163, 4294901760
        %2165 = vmatpush.msra.mxu0 %v2164
        %v2166 = vand.u32 %v561, 4294901760
        %v2167 = vsub.f32 %v561, %v2166
        %v2168 = vand.u32 %v2167, 4294901760
        %v2169 = vsub.f32 %v2167, %v2168
        %v2170 = vand.u32 %v2169, 4294901760
        %2171 = vmatpush.msra.mxu0 %v2170
        %v2172 = vand.u32 %v553, 4294901760
        %v2173 = vsub.f32 %v553, %v2172
        %v2174 = vand.u32 %v2173, 4294901760
        %v2175 = vsub.f32 %v2173, %v2174
        %v2176 = vand.u32 %v2175, 4294901760
        %2177 = vmatpush.msra.mxu0 %v2176
        %v2178 = vand.u32 %v545, 4294901760
        %v2179 = vsub.f32 %v545, %v2178
        %v2180 = vand.u32 %v2179, 4294901760
        %v2181 = vsub.f32 %v2179, %v2180
        %v2182 = vand.u32 %v2181, 4294901760
        %2183 = vmatpush.msra.mxu0 %v2182
        %v2184 = vand.u32 %v537, 4294901760
        %v2185 = vsub.f32 %v537, %v2184
        %v2186 = vand.u32 %v2185, 4294901760
        %v2187 = vsub.f32 %v2185, %v2186
        %v2188 = vand.u32 %v2187, 4294901760
        %2189 = vmatpush.msra.mxu0 %v2188
        %v2190 = vand.u32 %v529, 4294901760
        %v2191 = vsub.f32 %v529, %v2190
        %v2192 = vand.u32 %v2191, 4294901760
        %v2193 = vsub.f32 %v2191, %v2192
        %v2194 = vand.u32 %v2193, 4294901760
        %2195 = vmatpush.msra.mxu0 %v2194
        %v2196 = vand.u32 %v521, 4294901760
        %v2197 = vsub.f32 %v521, %v2196
        %v2198 = vand.u32 %v2197, 4294901760
        %v2199 = vsub.f32 %v2197, %v2198
        %v2200 = vand.u32 %v2199, 4294901760
        %2201 = vmatpush.msra.mxu0 %v2200
        %v2202 = vand.u32 %v513, 4294901760
        %v2203 = vsub.f32 %v513, %v2202
        %v2204 = vand.u32 %v2203, 4294901760
        %v2205 = vsub.f32 %v2203, %v2204
        %v2206 = vand.u32 %v2205, 4294901760
        %2207 = vmatpush.msra.mxu0 %v2206
        %v2208 = vand.u32 %v738, 4294901760
        %2209 = vmatmul.f32.gmra.mxu0 %v2208
        %v2210 = vpop.f32.mrf.mxu0
        %v2211 = vadd.f32 %v2110, %v2210
        %2212 = vdwg.mxu0
        %v2213 = vand.u32 %v633, 4294901760
        %v2214 = vsub.f32 %v633, %v2213
        %2215 = vmatpush.msra.mxu0 %v2214
        %v2216 = vand.u32 %v625, 4294901760
        %v2217 = vsub.f32 %v625, %v2216
        %2218 = vmatpush.msra.mxu0 %v2217
        %v2219 = vand.u32 %v617, 4294901760
        %v2220 = vsub.f32 %v617, %v2219
        %2221 = vmatpush.msra.mxu0 %v2220
        %v2222 = vand.u32 %v609, 4294901760
        %v2223 = vsub.f32 %v609, %v2222
        %2224 = vmatpush.msra.mxu0 %v2223
        %v2225 = vand.u32 %v601, 4294901760
        %v2226 = vsub.f32 %v601, %v2225
        %2227 = vmatpush.msra.mxu0 %v2226
        %v2228 = vand.u32 %v593, 4294901760
        %v2229 = vsub.f32 %v593, %v2228
        %2230 = vmatpush.msra.mxu0 %v2229
        %v2231 = vand.u32 %v585, 4294901760
        %v2232 = vsub.f32 %v585, %v2231
        %2233 = vmatpush.msra.mxu0 %v2232
        %v2234 = vand.u32 %v577, 4294901760
        %v2235 = vsub.f32 %v577, %v2234
        %2236 = vmatpush.msra.mxu0 %v2235
        %v2237 = vand.u32 %v569, 4294901760
        %v2238 = vsub.f32 %v569, %v2237
        %2239 = vmatpush.msra.mxu0 %v2238
        %v2240 = vand.u32 %v561, 4294901760
        %v2241 = vsub.f32 %v561, %v2240
        %2242 = vmatpush.msra.mxu0 %v2241
        %v2243 = vand.u32 %v553, 4294901760
        %v2244 = vsub.f32 %v553, %v2243
        %2245 = vmatpush.msra.mxu0 %v2244
        %v2246 = vand.u32 %v545, 4294901760
        %v2247 = vsub.f32 %v545, %v2246
        %2248 = vmatpush.msra.mxu0 %v2247
        %v2249 = vand.u32 %v537, 4294901760
        %v2250 = vsub.f32 %v537, %v2249
        %2251 = vmatpush.msra.mxu0 %v2250
        %v2252 = vand.u32 %v529, 4294901760
        %v2253 = vsub.f32 %v529, %v2252
        %2254 = vmatpush.msra.mxu0 %v2253
        %v2255 = vand.u32 %v521, 4294901760
        %v2256 = vsub.f32 %v521, %v2255
        %2257 = vmatpush.msra.mxu0 %v2256
        %v2258 = vand.u32 %v513, 4294901760
        %v2259 = vsub.f32 %v513, %v2258
        %2260 = vmatpush.msra.mxu0 %v2259
        %v2261 = vand.u32 %v738, 4294901760
        %v2262 = vsub.f32 %v738, %v2261
        %2263 = vmatmul.f32.gmra.mxu0 %v2262
        %v2264 = vpop.f32.mrf.mxu0
        %v2265 = vadd.f32 %v2211, %v2264
        %2266 = vdwg.mxu0
        %v2267 = vand.u32 %v633, 4294901760
        %2268 = vmatpush.msra.mxu0 %v2267
        %v2269 = vand.u32 %v625, 4294901760
        %2270 = vmatpush.msra.mxu0 %v2269
        %v2271 = vand.u32 %v617, 4294901760
        %2272 = vmatpush.msra.mxu0 %v2271
        %v2273 = vand.u32 %v609, 4294901760
        %2274 = vmatpush.msra.mxu0 %v2273
        %v2275 = vand.u32 %v601, 4294901760
        %2276 = vmatpush.msra.mxu0 %v2275
        %v2277 = vand.u32 %v593, 4294901760
        %2278 = vmatpush.msra.mxu0 %v2277
        %v2279 = vand.u32 %v585, 4294901760
        %2280 = vmatpush.msra.mxu0 %v2279
        %v2281 = vand.u32 %v577, 4294901760
        %2282 = vmatpush.msra.mxu0 %v2281
        %v2283 = vand.u32 %v569, 4294901760
        %2284 = vmatpush.msra.mxu0 %v2283
        %v2285 = vand.u32 %v561, 4294901760
        %2286 = vmatpush.msra.mxu0 %v2285
        %v2287 = vand.u32 %v553, 4294901760
        %2288 = vmatpush.msra.mxu0 %v2287
        %v2289 = vand.u32 %v545, 4294901760
        %2290 = vmatpush.msra.mxu0 %v2289
        %v2291 = vand.u32 %v537, 4294901760
        %2292 = vmatpush.msra.mxu0 %v2291
        %v2293 = vand.u32 %v529, 4294901760
        %2294 = vmatpush.msra.mxu0 %v2293
        %v2295 = vand.u32 %v521, 4294901760
        %2296 = vmatpush.msra.mxu0 %v2295
        %v2297 = vand.u32 %v513, 4294901760
        %2298 = vmatpush.msra.mxu0 %v2297
        %v2299 = vand.u32 %v738, 4294901760
        %v2300 = vsub.f32 %v738, %v2299
        %v2301 = vand.u32 %v2300, 4294901760
        %2302 = vmatmul.f32.gmra.mxu0 %v2301
        %v2303 = vpop.f32.mrf.mxu0
        %v2304 = vadd.f32 %v2265, %v2303
        %2305 = vdwg.mxu0
        %v2306 = vand.u32 %v633, 4294901760
        %v2307 = vsub.f32 %v633, %v2306
        %v2308 = vand.u32 %v2307, 4294901760
        %2309 = vmatpush.msra.mxu0 %v2308
        %v2310 = vand.u32 %v625, 4294901760
        %v2311 = vsub.f32 %v625, %v2310
        %v2312 = vand.u32 %v2311, 4294901760
        %2313 = vmatpush.msra.mxu0 %v2312
        %v2314 = vand.u32 %v617, 4294901760
        %v2315 = vsub.f32 %v617, %v2314
        %v2316 = vand.u32 %v2315, 4294901760
        %2317 = vmatpush.msra.mxu0 %v2316
        %v2318 = vand.u32 %v609, 4294901760
        %v2319 = vsub.f32 %v609, %v2318
        %v2320 = vand.u32 %v2319, 4294901760
        %2321 = vmatpush.msra.mxu0 %v2320
        %v2322 = vand.u32 %v601, 4294901760
        %v2323 = vsub.f32 %v601, %v2322
        %v2324 = vand.u32 %v2323, 4294901760
        %2325 = vmatpush.msra.mxu0 %v2324
        %v2326 = vand.u32 %v593, 4294901760
        %v2327 = vsub.f32 %v593, %v2326
        %v2328 = vand.u32 %v2327, 4294901760
        %2329 = vmatpush.msra.mxu0 %v2328
        %v2330 = vand.u32 %v585, 4294901760
        %v2331 = vsub.f32 %v585, %v2330
        %v2332 = vand.u32 %v2331, 4294901760
        %2333 = vmatpush.msra.mxu0 %v2332
        %v2334 = vand.u32 %v577, 4294901760
        %v2335 = vsub.f32 %v577, %v2334
        %v2336 = vand.u32 %v2335, 4294901760
        %2337 = vmatpush.msra.mxu0 %v2336
        %v2338 = vand.u32 %v569, 4294901760
        %v2339 = vsub.f32 %v569, %v2338
        %v2340 = vand.u32 %v2339, 4294901760
        %2341 = vmatpush.msra.mxu0 %v2340
        %v2342 = vand.u32 %v561, 4294901760
        %v2343 = vsub.f32 %v561, %v2342
        %v2344 = vand.u32 %v2343, 4294901760
        %2345 = vmatpush.msra.mxu0 %v2344
        %v2346 = vand.u32 %v553, 4294901760
        %v2347 = vsub.f32 %v553, %v2346
        %v2348 = vand.u32 %v2347, 4294901760
        %2349 = vmatpush.msra.mxu0 %v2348
        %v2350 = vand.u32 %v545, 4294901760
        %v2351 = vsub.f32 %v545, %v2350
        %v2352 = vand.u32 %v2351, 4294901760
        %2353 = vmatpush.msra.mxu0 %v2352
        %v2354 = vand.u32 %v537, 4294901760
        %v2355 = vsub.f32 %v537, %v2354
        %v2356 = vand.u32 %v2355, 4294901760
        %2357 = vmatpush.msra.mxu0 %v2356
        %v2358 = vand.u32 %v529, 4294901760
        %v2359 = vsub.f32 %v529, %v2358
        %v2360 = vand.u32 %v2359, 4294901760
        %2361 = vmatpush.msra.mxu0 %v2360
        %v2362 = vand.u32 %v521, 4294901760
        %v2363 = vsub.f32 %v521, %v2362
        %v2364 = vand.u32 %v2363, 4294901760
        %2365 = vmatpush.msra.mxu0 %v2364
        %v2366 = vand.u32 %v513, 4294901760
        %v2367 = vsub.f32 %v513, %v2366
        %v2368 = vand.u32 %v2367, 4294901760
        %2369 = vmatpush.msra.mxu0 %v2368
        %v2370 = vand.u32 %v738, 4294901760
        %2371 = vmatmul.f32.gmra.mxu0 %v2370
        %v2372 = vpop.f32.mrf.mxu0
        %v2373 = vadd.f32 %v2304, %v2372
        %2374 = vdwg.mxu0
        %v2375 = vand.u32 %v633, 4294901760
        %2376 = vmatpush.msra.mxu0 %v2375
        %v2377 = vand.u32 %v625, 4294901760
        %2378 = vmatpush.msra.mxu0 %v2377
        %v2379 = vand.u32 %v617, 4294901760
        %2380 = vmatpush.msra.mxu0 %v2379
        %v2381 = vand.u32 %v609, 4294901760
        %2382 = vmatpush.msra.mxu0 %v2381
        %v2383 = vand.u32 %v601, 4294901760
        %2384 = vmatpush.msra.mxu0 %v2383
        %v2385 = vand.u32 %v593, 4294901760
        %2386 = vmatpush.msra.mxu0 %v2385
        %v2387 = vand.u32 %v585, 4294901760
        %2388 = vmatpush.msra.mxu0 %v2387
        %v2389 = vand.u32 %v577, 4294901760
        %2390 = vmatpush.msra.mxu0 %v2389
        %v2391 = vand.u32 %v569, 4294901760
        %2392 = vmatpush.msra.mxu0 %v2391
        %v2393 = vand.u32 %v561, 4294901760
        %2394 = vmatpush.msra.mxu0 %v2393
        %v2395 = vand.u32 %v553, 4294901760
        %2396 = vmatpush.msra.mxu0 %v2395
        %v2397 = vand.u32 %v545, 4294901760
        %2398 = vmatpush.msra.mxu0 %v2397
        %v2399 = vand.u32 %v537, 4294901760
        %2400 = vmatpush.msra.mxu0 %v2399
        %v2401 = vand.u32 %v529, 4294901760
        %2402 = vmatpush.msra.mxu0 %v2401
        %v2403 = vand.u32 %v521, 4294901760
        %2404 = vmatpush.msra.mxu0 %v2403
        %v2405 = vand.u32 %v513, 4294901760
        %2406 = vmatpush.msra.mxu0 %v2405
        %v2407 = vand.u32 %v738, 4294901760
        %2408 = vmatmul.f32.gmra.mxu0 %v2407
        %v2409 = vpop.f32.mrf.mxu0
        %v2410 = vadd.f32 %v2373, %v2409
        %2411 = vdwg.mxu0
        %2412 = vmatpush.msra.mxu0 0.0
        %2413 = vmatpush.msra.mxu0 0.0
        %2414 = vmatpush.msra.mxu0 0.0
        %2415 = vmatpush.msra.mxu0 0.0
        %2416 = vmatpush.msra.mxu0 0.0
        %v2417 = vand.u32 %v721, 4294901760
        %2418 = vmatpush.msra.mxu0 %v2417
        %v2419 = vand.u32 %v713, 4294901760
        %2420 = vmatpush.msra.mxu0 %v2419
        %v2421 = vand.u32 %v705, 4294901760
        %2422 = vmatpush.msra.mxu0 %v2421
        %v2423 = vand.u32 %v697, 4294901760
        %2424 = vmatpush.msra.mxu0 %v2423
        %v2425 = vand.u32 %v689, 4294901760
        %2426 = vmatpush.msra.mxu0 %v2425
        %v2427 = vand.u32 %v681, 4294901760
        %2428 = vmatpush.msra.mxu0 %v2427
        %v2429 = vand.u32 %v673, 4294901760
        %2430 = vmatpush.msra.mxu0 %v2429
        %v2431 = vand.u32 %v665, 4294901760
        %2432 = vmatpush.msra.mxu0 %v2431
        %v2433 = vand.u32 %v657, 4294901760
        %2434 = vmatpush.msra.mxu0 %v2433
        %v2435 = vand.u32 %v649, 4294901760
        %2436 = vmatpush.msra.mxu0 %v2435
        %v2437 = vand.u32 %v641, 4294901760
        %2438 = vmatpush.msra.mxu0 %v2437
        %v2439 = vand.u32 %v770, 4294901760
        %v2440 = vsub.f32 %v770, %v2439
        %v2441 = vand.u32 %v2440, 4294901760
        %v2442 = vsub.f32 %v2440, %v2441
        %v2443 = vand.u32 %v2442, 4294901760
        %2444 = vmatmul.f32.gmra.mxu0 %v2443
        %v2445 = vpop.f32.mrf.mxu0
        %v2446 = vadd.f32 %v2410, %v2445
        %2447 = vdwg.mxu0
        %2448 = vmatpush.msra.mxu0 0.0
        %2449 = vmatpush.msra.mxu0 0.0
        %2450 = vmatpush.msra.mxu0 0.0
        %2451 = vmatpush.msra.mxu0 0.0
        %2452 = vmatpush.msra.mxu0 0.0
        %v2453 = vand.u32 %v721, 4294901760
        %v2454 = vsub.f32 %v721, %v2453
        %v2455 = vand.u32 %v2454, 4294901760
        %v2456 = vsub.f32 %v2454, %v2455
        %v2457 = vand.u32 %v2456, 4294901760
        %2458 = vmatpush.msra.mxu0 %v2457
        %v2459 = vand.u32 %v713, 4294901760
        %v2460 = vsub.f32 %v713, %v2459
        %v2461 = vand.u32 %v2460, 4294901760
        %v2462 = vsub.f32 %v2460, %v2461
        %v2463 = vand.u32 %v2462, 4294901760
        %2464 = vmatpush.msra.mxu0 %v2463
        %v2465 = vand.u32 %v705, 4294901760
        %v2466 = vsub.f32 %v705, %v2465
        %v2467 = vand.u32 %v2466, 4294901760
        %v2468 = vsub.f32 %v2466, %v2467
        %v2469 = vand.u32 %v2468, 4294901760
        %2470 = vmatpush.msra.mxu0 %v2469
        %v2471 = vand.u32 %v697, 4294901760
        %v2472 = vsub.f32 %v697, %v2471
        %v2473 = vand.u32 %v2472, 4294901760
        %v2474 = vsub.f32 %v2472, %v2473
        %v2475 = vand.u32 %v2474, 4294901760
        %2476 = vmatpush.msra.mxu0 %v2475
        %v2477 = vand.u32 %v689, 4294901760
        %v2478 = vsub.f32 %v689, %v2477
        %v2479 = vand.u32 %v2478, 4294901760
        %v2480 = vsub.f32 %v2478, %v2479
        %v2481 = vand.u32 %v2480, 4294901760
        %2482 = vmatpush.msra.mxu0 %v2481
        %v2483 = vand.u32 %v681, 4294901760
        %v2484 = vsub.f32 %v681, %v2483
        %v2485 = vand.u32 %v2484, 4294901760
        %v2486 = vsub.f32 %v2484, %v2485
        %v2487 = vand.u32 %v2486, 4294901760
        %2488 = vmatpush.msra.mxu0 %v2487
        %v2489 = vand.u32 %v673, 4294901760
        %v2490 = vsub.f32 %v673, %v2489
        %v2491 = vand.u32 %v2490, 4294901760
        %v2492 = vsub.f32 %v2490, %v2491
        %v2493 = vand.u32 %v2492, 4294901760
        %2494 = vmatpush.msra.mxu0 %v2493
        %v2495 = vand.u32 %v665, 4294901760
        %v2496 = vsub.f32 %v665, %v2495
        %v2497 = vand.u32 %v2496, 4294901760
        %v2498 = vsub.f32 %v2496, %v2497
        %v2499 = vand.u32 %v2498, 4294901760
        %2500 = vmatpush.msra.mxu0 %v2499
        %v2501 = vand.u32 %v657, 4294901760
        %v2502 = vsub.f32 %v657, %v2501
        %v2503 = vand.u32 %v2502, 4294901760
        %v2504 = vsub.f32 %v2502, %v2503
        %v2505 = vand.u32 %v2504, 4294901760
        %2506 = vmatpush.msra.mxu0 %v2505
        %v2507 = vand.u32 %v649, 4294901760
        %v2508 = vsub.f32 %v649, %v2507
        %v2509 = vand.u32 %v2508, 4294901760
        %v2510 = vsub.f32 %v2508, %v2509
        %v2511 = vand.u32 %v2510, 4294901760
        %2512 = vmatpush.msra.mxu0 %v2511
        %v2513 = vand.u32 %v641, 4294901760
        %v2514 = vsub.f32 %v641, %v2513
        %v2515 = vand.u32 %v2514, 4294901760
        %v2516 = vsub.f32 %v2514, %v2515
        %v2517 = vand.u32 %v2516, 4294901760
        %2518 = vmatpush.msra.mxu0 %v2517
        %v2519 = vand.u32 %v770, 4294901760
        %2520 = vmatmul.f32.gmra.mxu0 %v2519
        %v2521 = vpop.f32.mrf.mxu0
        %v2522 = vadd.f32 %v2446, %v2521
        %2523 = vdwg.mxu0
        %2524 = vmatpush.msra.mxu0 0.0
        %2525 = vmatpush.msra.mxu0 0.0
        %2526 = vmatpush.msra.mxu0 0.0
        %2527 = vmatpush.msra.mxu0 0.0
        %2528 = vmatpush.msra.mxu0 0.0
        %v2529 = vand.u32 %v721, 4294901760
        %v2530 = vsub.f32 %v721, %v2529
        %2531 = vmatpush.msra.mxu0 %v2530
        %v2532 = vand.u32 %v713, 4294901760
        %v2533 = vsub.f32 %v713, %v2532
        %2534 = vmatpush.msra.mxu0 %v2533
        %v2535 = vand.u32 %v705, 4294901760
        %v2536 = vsub.f32 %v705, %v2535
        %2537 = vmatpush.msra.mxu0 %v2536
        %v2538 = vand.u32 %v697, 4294901760
        %v2539 = vsub.f32 %v697, %v2538
        %2540 = vmatpush.msra.mxu0 %v2539
        %v2541 = vand.u32 %v689, 4294901760
        %v2542 = vsub.f32 %v689, %v2541
        %2543 = vmatpush.msra.mxu0 %v2542
        %v2544 = vand.u32 %v681, 4294901760
        %v2545 = vsub.f32 %v681, %v2544
        %2546 = vmatpush.msra.mxu0 %v2545
        %v2547 = vand.u32 %v673, 4294901760
        %v2548 = vsub.f32 %v673, %v2547
        %2549 = vmatpush.msra.mxu0 %v2548
        %v2550 = vand.u32 %v665, 4294901760
        %v2551 = vsub.f32 %v665, %v2550
        %2552 = vmatpush.msra.mxu0 %v2551
        %v2553 = vand.u32 %v657, 4294901760
        %v2554 = vsub.f32 %v657, %v2553
        %2555 = vmatpush.msra.mxu0 %v2554
        %v2556 = vand.u32 %v649, 4294901760
        %v2557 = vsub.f32 %v649, %v2556
        %2558 = vmatpush.msra.mxu0 %v2557
        %v2559 = vand.u32 %v641, 4294901760
        %v2560 = vsub.f32 %v641, %v2559
        %2561 = vmatpush.msra.mxu0 %v2560
        %v2562 = vand.u32 %v770, 4294901760
        %v2563 = vsub.f32 %v770, %v2562
        %2564 = vmatmul.f32.gmra.mxu0 %v2563
        %v2565 = vpop.f32.mrf.mxu0
        %v2566 = vadd.f32 %v2522, %v2565
        %2567 = vdwg.mxu0
        %2568 = vmatpush.msra.mxu0 0.0
        %2569 = vmatpush.msra.mxu0 0.0
        %2570 = vmatpush.msra.mxu0 0.0
        %2571 = vmatpush.msra.mxu0 0.0
        %2572 = vmatpush.msra.mxu0 0.0
        %v2573 = vand.u32 %v721, 4294901760
        %2574 = vmatpush.msra.mxu0 %v2573
        %v2575 = vand.u32 %v713, 4294901760
        %2576 = vmatpush.msra.mxu0 %v2575
        %v2577 = vand.u32 %v705, 4294901760
        %2578 = vmatpush.msra.mxu0 %v2577
        %v2579 = vand.u32 %v697, 4294901760
        %2580 = vmatpush.msra.mxu0 %v2579
        %v2581 = vand.u32 %v689, 4294901760
        %2582 = vmatpush.msra.mxu0 %v2581
        %v2583 = vand.u32 %v681, 4294901760
        %2584 = vmatpush.msra.mxu0 %v2583
        %v2585 = vand.u32 %v673, 4294901760
        %2586 = vmatpush.msra.mxu0 %v2585
        %v2587 = vand.u32 %v665, 4294901760
        %2588 = vmatpush.msra.mxu0 %v2587
        %v2589 = vand.u32 %v657, 4294901760
        %2590 = vmatpush.msra.mxu0 %v2589
        %v2591 = vand.u32 %v649, 4294901760
        %2592 = vmatpush.msra.mxu0 %v2591
        %v2593 = vand.u32 %v641, 4294901760
        %2594 = vmatpush.msra.mxu0 %v2593
        %v2595 = vand.u32 %v770, 4294901760
        %v2596 = vsub.f32 %v770, %v2595
        %v2597 = vand.u32 %v2596, 4294901760
        %2598 = vmatmul.f32.gmra.mxu0 %v2597
        %v2599 = vpop.f32.mrf.mxu0
        %v2600 = vadd.f32 %v2566, %v2599
        %2601 = vdwg.mxu0
        %2602 = vmatpush.msra.mxu0 0.0
        %2603 = vmatpush.msra.mxu0 0.0
        %2604 = vmatpush.msra.mxu0 0.0
        %2605 = vmatpush.msra.mxu0 0.0
        %2606 = vmatpush.msra.mxu0 0.0
        %v2607 = vand.u32 %v721, 4294901760
        %v2608 = vsub.f32 %v721, %v2607
        %v2609 = vand.u32 %v2608, 4294901760
        %2610 = vmatpush.msra.mxu0 %v2609
        %v2611 = vand.u32 %v713, 4294901760
        %v2612 = vsub.f32 %v713, %v2611
        %v2613 = vand.u32 %v2612, 4294901760
        %2614 = vmatpush.msra.mxu0 %v2613
        %v2615 = vand.u32 %v705, 4294901760
        %v2616 = vsub.f32 %v705, %v2615
        %v2617 = vand.u32 %v2616, 4294901760
        %2618 = vmatpush.msra.mxu0 %v2617
        %v2619 = vand.u32 %v697, 4294901760
        %v2620 = vsub.f32 %v697, %v2619
        %v2621 = vand.u32 %v2620, 4294901760
        %2622 = vmatpush.msra.mxu0 %v2621
        %v2623 = vand.u32 %v689, 4294901760
        %v2624 = vsub.f32 %v689, %v2623
        %v2625 = vand.u32 %v2624, 4294901760
        %2626 = vmatpush.msra.mxu0 %v2625
        %v2627 = vand.u32 %v681, 4294901760
        %v2628 = vsub.f32 %v681, %v2627
        %v2629 = vand.u32 %v2628, 4294901760
        %2630 = vmatpush.msra.mxu0 %v2629
        %v2631 = vand.u32 %v673, 4294901760
        %v2632 = vsub.f32 %v673, %v2631
        %v2633 = vand.u32 %v2632, 4294901760
        %2634 = vmatpush.msra.mxu0 %v2633
        %v2635 = vand.u32 %v665, 4294901760
        %v2636 = vsub.f32 %v665, %v2635
        %v2637 = vand.u32 %v2636, 4294901760
        %2638 = vmatpush.msra.mxu0 %v2637
        %v2639 = vand.u32 %v657, 4294901760
        %v2640 = vsub.f32 %v657, %v2639
        %v2641 = vand.u32 %v2640, 4294901760
        %2642 = vmatpush.msra.mxu0 %v2641
        %v2643 = vand.u32 %v649, 4294901760
        %v2644 = vsub.f32 %v649, %v2643
        %v2645 = vand.u32 %v2644, 4294901760
        %2646 = vmatpush.msra.mxu0 %v2645
        %v2647 = vand.u32 %v641, 4294901760
        %v2648 = vsub.f32 %v641, %v2647
        %v2649 = vand.u32 %v2648, 4294901760
        %2650 = vmatpush.msra.mxu0 %v2649
        %v2651 = vand.u32 %v770, 4294901760
        %2652 = vmatmul.f32.gmra.mxu0 %v2651
        %v2653 = vpop.f32.mrf.mxu0
        %v2654 = vadd.f32 %v2600, %v2653
        %2655 = vdwg.mxu0
        %2656 = vmatpush.msra.mxu0 0.0
        %2657 = vmatpush.msra.mxu0 0.0
        %2658 = vmatpush.msra.mxu0 0.0
        %2659 = vmatpush.msra.mxu0 0.0
        %2660 = vmatpush.msra.mxu0 0.0
        %v2661 = vand.u32 %v721, 4294901760
        %2662 = vmatpush.msra.mxu0 %v2661
        %v2663 = vand.u32 %v713, 4294901760
        %2664 = vmatpush.msra.mxu0 %v2663
        %v2665 = vand.u32 %v705, 4294901760
        %2666 = vmatpush.msra.mxu0 %v2665
        %v2667 = vand.u32 %v697, 4294901760
        %2668 = vmatpush.msra.mxu0 %v2667
        %v2669 = vand.u32 %v689, 4294901760
        %2670 = vmatpush.msra.mxu0 %v2669
        %v2671 = vand.u32 %v681, 4294901760
        %2672 = vmatpush.msra.mxu0 %v2671
        %v2673 = vand.u32 %v673, 4294901760
        %2674 = vmatpush.msra.mxu0 %v2673
        %v2675 = vand.u32 %v665, 4294901760
        %2676 = vmatpush.msra.mxu0 %v2675
        %v2677 = vand.u32 %v657, 4294901760
        %2678 = vmatpush.msra.mxu0 %v2677
        %v2679 = vand.u32 %v649, 4294901760
        %2680 = vmatpush.msra.mxu0 %v2679
        %v2681 = vand.u32 %v641, 4294901760
        %2682 = vmatpush.msra.mxu0 %v2681
        %v2683 = vand.u32 %v770, 4294901760
        %2684 = vmatmul.f32.gmra.mxu0 %v2683
        %v2685 = vpop.f32.mrf.mxu0
        %v2686 = vadd.f32 %v2654, %v2685
        %2687 = vdwg.mxu0
        %v2688 = vand.u32 %v506, 4294901760
        %2689 = vmatpush.msra.mxu0 %v2688
        %v2690 = vand.u32 %v498, 4294901760
        %2691 = vmatpush.msra.mxu0 %v2690
        %v2692 = vand.u32 %v490, 4294901760
        %2693 = vmatpush.msra.mxu0 %v2692
        %v2694 = vand.u32 %v482, 4294901760
        %2695 = vmatpush.msra.mxu0 %v2694
        %v2696 = vand.u32 %v474, 4294901760
        %2697 = vmatpush.msra.mxu0 %v2696
        %v2698 = vand.u32 %v466, 4294901760
        %2699 = vmatpush.msra.mxu0 %v2698
        %v2700 = vand.u32 %v458, 4294901760
        %2701 = vmatpush.msra.mxu0 %v2700
        %v2702 = vand.u32 %v450, 4294901760
        %2703 = vmatpush.msra.mxu0 %v2702
        %v2704 = vand.u32 %v442, 4294901760
        %2705 = vmatpush.msra.mxu0 %v2704
        %v2706 = vand.u32 %v434, 4294901760
        %2707 = vmatpush.msra.mxu0 %v2706
        %v2708 = vand.u32 %v426, 4294901760
        %2709 = vmatpush.msra.mxu0 %v2708
        %v2710 = vand.u32 %v418, 4294901760
        %2711 = vmatpush.msra.mxu0 %v2710
        %v2712 = vand.u32 %v410, 4294901760
        %2713 = vmatpush.msra.mxu0 %v2712
        %v2714 = vand.u32 %v402, 4294901760
        %2715 = vmatpush.msra.mxu0 %v2714
        %v2716 = vand.u32 %v394, 4294901760
        %2717 = vmatpush.msra.mxu0 %v2716
        %v2718 = vand.u32 %v386, 4294901760
        %2719 = vmatpush.msra.mxu0 %v2718
        %v2720 = vand.u32 %v737, 4294901760
        %v2721 = vsub.f32 %v737, %v2720
        %v2722 = vand.u32 %v2721, 4294901760
        %v2723 = vsub.f32 %v2721, %v2722
        %v2724 = vand.u32 %v2723, 4294901760
        %2725 = vmatmul.f32.gmra.mxu0 %v2724
        %v2726 = vpop.f32.mrf.mxu0
        %v2727 = vadd.f32 %v755, %v2726
        %2728 = vdwg.mxu0
        %v2729 = vand.u32 %v506, 4294901760
        %v2730 = vsub.f32 %v506, %v2729
        %v2731 = vand.u32 %v2730, 4294901760
        %v2732 = vsub.f32 %v2730, %v2731
        %v2733 = vand.u32 %v2732, 4294901760
        %2734 = vmatpush.msra.mxu0 %v2733
        %v2735 = vand.u32 %v498, 4294901760
        %v2736 = vsub.f32 %v498, %v2735
        %v2737 = vand.u32 %v2736, 4294901760
        %v2738 = vsub.f32 %v2736, %v2737
        %v2739 = vand.u32 %v2738, 4294901760
        %2740 = vmatpush.msra.mxu0 %v2739
        %v2741 = vand.u32 %v490, 4294901760
        %v2742 = vsub.f32 %v490, %v2741
        %v2743 = vand.u32 %v2742, 4294901760
        %v2744 = vsub.f32 %v2742, %v2743
        %v2745 = vand.u32 %v2744, 4294901760
        %2746 = vmatpush.msra.mxu0 %v2745
        %v2747 = vand.u32 %v482, 4294901760
        %v2748 = vsub.f32 %v482, %v2747
        %v2749 = vand.u32 %v2748, 4294901760
        %v2750 = vsub.f32 %v2748, %v2749
        %v2751 = vand.u32 %v2750, 4294901760
        %2752 = vmatpush.msra.mxu0 %v2751
        %v2753 = vand.u32 %v474, 4294901760
        %v2754 = vsub.f32 %v474, %v2753
        %v2755 = vand.u32 %v2754, 4294901760
        %v2756 = vsub.f32 %v2754, %v2755
        %v2757 = vand.u32 %v2756, 4294901760
        %2758 = vmatpush.msra.mxu0 %v2757
        %v2759 = vand.u32 %v466, 4294901760
        %v2760 = vsub.f32 %v466, %v2759
        %v2761 = vand.u32 %v2760, 4294901760
        %v2762 = vsub.f32 %v2760, %v2761
        %v2763 = vand.u32 %v2762, 4294901760
        %2764 = vmatpush.msra.mxu0 %v2763
        %v2765 = vand.u32 %v458, 4294901760
        %v2766 = vsub.f32 %v458, %v2765
        %v2767 = vand.u32 %v2766, 4294901760
        %v2768 = vsub.f32 %v2766, %v2767
        %v2769 = vand.u32 %v2768, 4294901760
        %2770 = vmatpush.msra.mxu0 %v2769
        %v2771 = vand.u32 %v450, 4294901760
        %v2772 = vsub.f32 %v450, %v2771
        %v2773 = vand.u32 %v2772, 4294901760
        %v2774 = vsub.f32 %v2772, %v2773
        %v2775 = vand.u32 %v2774, 4294901760
        %2776 = vmatpush.msra.mxu0 %v2775
        %v2777 = vand.u32 %v442, 4294901760
        %v2778 = vsub.f32 %v442, %v2777
        %v2779 = vand.u32 %v2778, 4294901760
        %v2780 = vsub.f32 %v2778, %v2779
        %v2781 = vand.u32 %v2780, 4294901760
        %2782 = vmatpush.msra.mxu0 %v2781
        %v2783 = vand.u32 %v434, 4294901760
        %v2784 = vsub.f32 %v434, %v2783
        %v2785 = vand.u32 %v2784, 4294901760
        %v2786 = vsub.f32 %v2784, %v2785
        %v2787 = vand.u32 %v2786, 4294901760
        %2788 = vmatpush.msra.mxu0 %v2787
        %v2789 = vand.u32 %v426, 4294901760
        %v2790 = vsub.f32 %v426, %v2789
        %v2791 = vand.u32 %v2790, 4294901760
        %v2792 = vsub.f32 %v2790, %v2791
        %v2793 = vand.u32 %v2792, 4294901760
        %2794 = vmatpush.msra.mxu0 %v2793
        %v2795 = vand.u32 %v418, 4294901760
        %v2796 = vsub.f32 %v418, %v2795
        %v2797 = vand.u32 %v2796, 4294901760
        %v2798 = vsub.f32 %v2796, %v2797
        %v2799 = vand.u32 %v2798, 4294901760
        %2800 = vmatpush.msra.mxu0 %v2799
        %v2801 = vand.u32 %v410, 4294901760
        %v2802 = vsub.f32 %v410, %v2801
        %v2803 = vand.u32 %v2802, 4294901760
        %v2804 = vsub.f32 %v2802, %v2803
        %v2805 = vand.u32 %v2804, 4294901760
        %2806 = vmatpush.msra.mxu0 %v2805
        %v2807 = vand.u32 %v402, 4294901760
        %v2808 = vsub.f32 %v402, %v2807
        %v2809 = vand.u32 %v2808, 4294901760
        %v2810 = vsub.f32 %v2808, %v2809
        %v2811 = vand.u32 %v2810, 4294901760
        %2812 = vmatpush.msra.mxu0 %v2811
        %v2813 = vand.u32 %v394, 4294901760
        %v2814 = vsub.f32 %v394, %v2813
        %v2815 = vand.u32 %v2814, 4294901760
        %v2816 = vsub.f32 %v2814, %v2815
        %v2817 = vand.u32 %v2816, 4294901760
        %2818 = vmatpush.msra.mxu0 %v2817
        %v2819 = vand.u32 %v386, 4294901760
        %v2820 = vsub.f32 %v386, %v2819
        %v2821 = vand.u32 %v2820, 4294901760
        %v2822 = vsub.f32 %v2820, %v2821
        %v2823 = vand.u32 %v2822, 4294901760
        %2824 = vmatpush.msra.mxu0 %v2823
        %v2825 = vand.u32 %v737, 4294901760
        %2826 = vmatmul.f32.gmra.mxu0 %v2825
        %v2827 = vpop.f32.mrf.mxu0
        %v2828 = vadd.f32 %v2727, %v2827
        %2829 = vdwg.mxu0
        %v2830 = vand.u32 %v506, 4294901760
        %v2831 = vsub.f32 %v506, %v2830
        %2832 = vmatpush.msra.mxu0 %v2831
        %v2833 = vand.u32 %v498, 4294901760
        %v2834 = vsub.f32 %v498, %v2833
        %2835 = vmatpush.msra.mxu0 %v2834
        %v2836 = vand.u32 %v490, 4294901760
        %v2837 = vsub.f32 %v490, %v2836
        %2838 = vmatpush.msra.mxu0 %v2837
        %v2839 = vand.u32 %v482, 4294901760
        %v2840 = vsub.f32 %v482, %v2839
        %2841 = vmatpush.msra.mxu0 %v2840
        %v2842 = vand.u32 %v474, 4294901760
        %v2843 = vsub.f32 %v474, %v2842
        %2844 = vmatpush.msra.mxu0 %v2843
        %v2845 = vand.u32 %v466, 4294901760
        %v2846 = vsub.f32 %v466, %v2845
        %2847 = vmatpush.msra.mxu0 %v2846
        %v2848 = vand.u32 %v458, 4294901760
        %v2849 = vsub.f32 %v458, %v2848
        %2850 = vmatpush.msra.mxu0 %v2849
        %v2851 = vand.u32 %v450, 4294901760
        %v2852 = vsub.f32 %v450, %v2851
        %2853 = vmatpush.msra.mxu0 %v2852
        %v2854 = vand.u32 %v442, 4294901760
        %v2855 = vsub.f32 %v442, %v2854
        %2856 = vmatpush.msra.mxu0 %v2855
        %v2857 = vand.u32 %v434, 4294901760
        %v2858 = vsub.f32 %v434, %v2857
        %2859 = vmatpush.msra.mxu0 %v2858
        %v2860 = vand.u32 %v426, 4294901760
        %v2861 = vsub.f32 %v426, %v2860
        %2862 = vmatpush.msra.mxu0 %v2861
        %v2863 = vand.u32 %v418, 4294901760
        %v2864 = vsub.f32 %v418, %v2863
        %2865 = vmatpush.msra.mxu0 %v2864
        %v2866 = vand.u32 %v410, 4294901760
        %v2867 = vsub.f32 %v410, %v2866
        %2868 = vmatpush.msra.mxu0 %v2867
        %v2869 = vand.u32 %v402, 4294901760
        %v2870 = vsub.f32 %v402, %v2869
        %2871 = vmatpush.msra.mxu0 %v2870
        %v2872 = vand.u32 %v394, 4294901760
        %v2873 = vsub.f32 %v394, %v2872
        %2874 = vmatpush.msra.mxu0 %v2873
        %v2875 = vand.u32 %v386, 4294901760
        %v2876 = vsub.f32 %v386, %v2875
        %2877 = vmatpush.msra.mxu0 %v2876
        %v2878 = vand.u32 %v737, 4294901760
        %v2879 = vsub.f32 %v737, %v2878
        %2880 = vmatmul.f32.gmra.mxu0 %v2879
        %v2881 = vpop.f32.mrf.mxu0
        %v2882 = vadd.f32 %v2828, %v2881
        %2883 = vdwg.mxu0
        %v2884 = vand.u32 %v506, 4294901760
        %2885 = vmatpush.msra.mxu0 %v2884
        %v2886 = vand.u32 %v498, 4294901760
        %2887 = vmatpush.msra.mxu0 %v2886
        %v2888 = vand.u32 %v490, 4294901760
        %2889 = vmatpush.msra.mxu0 %v2888
        %v2890 = vand.u32 %v482, 4294901760
        %2891 = vmatpush.msra.mxu0 %v2890
        %v2892 = vand.u32 %v474, 4294901760
        %2893 = vmatpush.msra.mxu0 %v2892
        %v2894 = vand.u32 %v466, 4294901760
        %2895 = vmatpush.msra.mxu0 %v2894
        %v2896 = vand.u32 %v458, 4294901760
        %2897 = vmatpush.msra.mxu0 %v2896
        %v2898 = vand.u32 %v450, 4294901760
        %2899 = vmatpush.msra.mxu0 %v2898
        %v2900 = vand.u32 %v442, 4294901760
        %2901 = vmatpush.msra.mxu0 %v2900
        %v2902 = vand.u32 %v434, 4294901760
        %2903 = vmatpush.msra.mxu0 %v2902
        %v2904 = vand.u32 %v426, 4294901760
        %2905 = vmatpush.msra.mxu0 %v2904
        %v2906 = vand.u32 %v418, 4294901760
        %2907 = vmatpush.msra.mxu0 %v2906
        %v2908 = vand.u32 %v410, 4294901760
        %2909 = vmatpush.msra.mxu0 %v2908
        %v2910 = vand.u32 %v402, 4294901760
        %2911 = vmatpush.msra.mxu0 %v2910
        %v2912 = vand.u32 %v394, 4294901760
        %2913 = vmatpush.msra.mxu0 %v2912
        %v2914 = vand.u32 %v386, 4294901760
        %2915 = vmatpush.msra.mxu0 %v2914
        %v2916 = vand.u32 %v737, 4294901760
        %v2917 = vsub.f32 %v737, %v2916
        %v2918 = vand.u32 %v2917, 4294901760
        %2919 = vmatmul.f32.gmra.mxu0 %v2918
        %v2920 = vpop.f32.mrf.mxu0
        %v2921 = vadd.f32 %v2882, %v2920
        %2922 = vdwg.mxu0
        %v2923 = vand.u32 %v506, 4294901760
        %v2924 = vsub.f32 %v506, %v2923
        %v2925 = vand.u32 %v2924, 4294901760
        %2926 = vmatpush.msra.mxu0 %v2925
        %v2927 = vand.u32 %v498, 4294901760
        %v2928 = vsub.f32 %v498, %v2927
        %v2929 = vand.u32 %v2928, 4294901760
        %2930 = vmatpush.msra.mxu0 %v2929
        %v2931 = vand.u32 %v490, 4294901760
        %v2932 = vsub.f32 %v490, %v2931
        %v2933 = vand.u32 %v2932, 4294901760
        %2934 = vmatpush.msra.mxu0 %v2933
        %v2935 = vand.u32 %v482, 4294901760
        %v2936 = vsub.f32 %v482, %v2935
        %v2937 = vand.u32 %v2936, 4294901760
        %2938 = vmatpush.msra.mxu0 %v2937
        %v2939 = vand.u32 %v474, 4294901760
        %v2940 = vsub.f32 %v474, %v2939
        %v2941 = vand.u32 %v2940, 4294901760
        %2942 = vmatpush.msra.mxu0 %v2941
        %v2943 = vand.u32 %v466, 4294901760
        %v2944 = vsub.f32 %v466, %v2943
        %v2945 = vand.u32 %v2944, 4294901760
        %2946 = vmatpush.msra.mxu0 %v2945
        %v2947 = vand.u32 %v458, 4294901760
        %v2948 = vsub.f32 %v458, %v2947
        %v2949 = vand.u32 %v2948, 4294901760
        %2950 = vmatpush.msra.mxu0 %v2949
        %v2951 = vand.u32 %v450, 4294901760
        %v2952 = vsub.f32 %v450, %v2951
        %v2953 = vand.u32 %v2952, 4294901760
        %2954 = vmatpush.msra.mxu0 %v2953
        %v2955 = vand.u32 %v442, 4294901760
        %v2956 = vsub.f32 %v442, %v2955
        %v2957 = vand.u32 %v2956, 4294901760
        %2958 = vmatpush.msra.mxu0 %v2957
        %v2959 = vand.u32 %v434, 4294901760
        %v2960 = vsub.f32 %v434, %v2959
        %v2961 = vand.u32 %v2960, 4294901760
        %2962 = vmatpush.msra.mxu0 %v2961
        %v2963 = vand.u32 %v426, 4294901760
        %v2964 = vsub.f32 %v426, %v2963
        %v2965 = vand.u32 %v2964, 4294901760
        %2966 = vmatpush.msra.mxu0 %v2965
        %v2967 = vand.u32 %v418, 4294901760
        %v2968 = vsub.f32 %v418, %v2967
        %v2969 = vand.u32 %v2968, 4294901760
        %2970 = vmatpush.msra.mxu0 %v2969
        %v2971 = vand.u32 %v410, 4294901760
        %v2972 = vsub.f32 %v410, %v2971
        %v2973 = vand.u32 %v2972, 4294901760
        %2974 = vmatpush.msra.mxu0 %v2973
        %v2975 = vand.u32 %v402, 4294901760
        %v2976 = vsub.f32 %v402, %v2975
        %v2977 = vand.u32 %v2976, 4294901760
        %2978 = vmatpush.msra.mxu0 %v2977
        %v2979 = vand.u32 %v394, 4294901760
        %v2980 = vsub.f32 %v394, %v2979
        %v2981 = vand.u32 %v2980, 4294901760
        %2982 = vmatpush.msra.mxu0 %v2981
        %v2983 = vand.u32 %v386, 4294901760
        %v2984 = vsub.f32 %v386, %v2983
        %v2985 = vand.u32 %v2984, 4294901760
        %2986 = vmatpush.msra.mxu0 %v2985
        %v2987 = vand.u32 %v737, 4294901760
        %2988 = vmatmul.f32.gmra.mxu0 %v2987
        %v2989 = vpop.f32.mrf.mxu0
        %v2990 = vadd.f32 %v2921, %v2989
        %2991 = vdwg.mxu0
        %v2992 = vand.u32 %v506, 4294901760
        %2993 = vmatpush.msra.mxu0 %v2992
        %v2994 = vand.u32 %v498, 4294901760
        %2995 = vmatpush.msra.mxu0 %v2994
        %v2996 = vand.u32 %v490, 4294901760
        %2997 = vmatpush.msra.mxu0 %v2996
        %v2998 = vand.u32 %v482, 4294901760
        %2999 = vmatpush.msra.mxu0 %v2998
        %v3000 = vand.u32 %v474, 4294901760
        %3001 = vmatpush.msra.mxu0 %v3000
        %v3002 = vand.u32 %v466, 4294901760
        %3003 = vmatpush.msra.mxu0 %v3002
        %v3004 = vand.u32 %v458, 4294901760
        %3005 = vmatpush.msra.mxu0 %v3004
        %v3006 = vand.u32 %v450, 4294901760
        %3007 = vmatpush.msra.mxu0 %v3006
        %v3008 = vand.u32 %v442, 4294901760
        %3009 = vmatpush.msra.mxu0 %v3008
        %v3010 = vand.u32 %v434, 4294901760
        %3011 = vmatpush.msra.mxu0 %v3010
        %v3012 = vand.u32 %v426, 4294901760
        %3013 = vmatpush.msra.mxu0 %v3012
        %v3014 = vand.u32 %v418, 4294901760
        %3015 = vmatpush.msra.mxu0 %v3014
        %v3016 = vand.u32 %v410, 4294901760
        %3017 = vmatpush.msra.mxu0 %v3016
        %v3018 = vand.u32 %v402, 4294901760
        %3019 = vmatpush.msra.mxu0 %v3018
        %v3020 = vand.u32 %v394, 4294901760
        %3021 = vmatpush.msra.mxu0 %v3020
        %v3022 = vand.u32 %v386, 4294901760
        %3023 = vmatpush.msra.mxu0 %v3022
        %v3024 = vand.u32 %v737, 4294901760
        %3025 = vmatmul.f32.gmra.mxu0 %v3024
        %v3026 = vpop.f32.mrf.mxu0
        %v3027 = vadd.f32 %v2990, %v3026
        %3028 = vdwg.mxu0
        %v3029 = vand.u32 %v634, 4294901760
        %3030 = vmatpush.msra.mxu0 %v3029
        %v3031 = vand.u32 %v626, 4294901760
        %3032 = vmatpush.msra.mxu0 %v3031
        %v3033 = vand.u32 %v618, 4294901760
        %3034 = vmatpush.msra.mxu0 %v3033
        %v3035 = vand.u32 %v610, 4294901760
        %3036 = vmatpush.msra.mxu0 %v3035
        %v3037 = vand.u32 %v602, 4294901760
        %3038 = vmatpush.msra.mxu0 %v3037
        %v3039 = vand.u32 %v594, 4294901760
        %3040 = vmatpush.msra.mxu0 %v3039
        %v3041 = vand.u32 %v586, 4294901760
        %3042 = vmatpush.msra.mxu0 %v3041
        %v3043 = vand.u32 %v578, 4294901760
        %3044 = vmatpush.msra.mxu0 %v3043
        %v3045 = vand.u32 %v570, 4294901760
        %3046 = vmatpush.msra.mxu0 %v3045
        %v3047 = vand.u32 %v562, 4294901760
        %3048 = vmatpush.msra.mxu0 %v3047
        %v3049 = vand.u32 %v554, 4294901760
        %3050 = vmatpush.msra.mxu0 %v3049
        %v3051 = vand.u32 %v546, 4294901760
        %3052 = vmatpush.msra.mxu0 %v3051
        %v3053 = vand.u32 %v538, 4294901760
        %3054 = vmatpush.msra.mxu0 %v3053
        %v3055 = vand.u32 %v530, 4294901760
        %3056 = vmatpush.msra.mxu0 %v3055
        %v3057 = vand.u32 %v522, 4294901760
        %3058 = vmatpush.msra.mxu0 %v3057
        %v3059 = vand.u32 %v514, 4294901760
        %3060 = vmatpush.msra.mxu0 %v3059
        %v3061 = vand.u32 %v738, 4294901760
        %v3062 = vsub.f32 %v738, %v3061
        %v3063 = vand.u32 %v3062, 4294901760
        %v3064 = vsub.f32 %v3062, %v3063
        %v3065 = vand.u32 %v3064, 4294901760
        %3066 = vmatmul.f32.gmra.mxu0 %v3065
        %v3067 = vpop.f32.mrf.mxu0
        %v3068 = vadd.f32 %v3027, %v3067
        %3069 = vdwg.mxu0
        %v3070 = vand.u32 %v634, 4294901760
        %v3071 = vsub.f32 %v634, %v3070
        %v3072 = vand.u32 %v3071, 4294901760
        %v3073 = vsub.f32 %v3071, %v3072
        %v3074 = vand.u32 %v3073, 4294901760
        %3075 = vmatpush.msra.mxu0 %v3074
        %v3076 = vand.u32 %v626, 4294901760
        %v3077 = vsub.f32 %v626, %v3076
        %v3078 = vand.u32 %v3077, 4294901760
        %v3079 = vsub.f32 %v3077, %v3078
        %v3080 = vand.u32 %v3079, 4294901760
        %3081 = vmatpush.msra.mxu0 %v3080
        %v3082 = vand.u32 %v618, 4294901760
        %v3083 = vsub.f32 %v618, %v3082
        %v3084 = vand.u32 %v3083, 4294901760
        %v3085 = vsub.f32 %v3083, %v3084
        %v3086 = vand.u32 %v3085, 4294901760
        %3087 = vmatpush.msra.mxu0 %v3086
        %v3088 = vand.u32 %v610, 4294901760
        %v3089 = vsub.f32 %v610, %v3088
        %v3090 = vand.u32 %v3089, 4294901760
        %v3091 = vsub.f32 %v3089, %v3090
        %v3092 = vand.u32 %v3091, 4294901760
        %3093 = vmatpush.msra.mxu0 %v3092
        %v3094 = vand.u32 %v602, 4294901760
        %v3095 = vsub.f32 %v602, %v3094
        %v3096 = vand.u32 %v3095, 4294901760
        %v3097 = vsub.f32 %v3095, %v3096
        %v3098 = vand.u32 %v3097, 4294901760
        %3099 = vmatpush.msra.mxu0 %v3098
        %v3100 = vand.u32 %v594, 4294901760
        %v3101 = vsub.f32 %v594, %v3100
        %v3102 = vand.u32 %v3101, 4294901760
        %v3103 = vsub.f32 %v3101, %v3102
        %v3104 = vand.u32 %v3103, 4294901760
        %3105 = vmatpush.msra.mxu0 %v3104
        %v3106 = vand.u32 %v586, 4294901760
        %v3107 = vsub.f32 %v586, %v3106
        %v3108 = vand.u32 %v3107, 4294901760
        %v3109 = vsub.f32 %v3107, %v3108
        %v3110 = vand.u32 %v3109, 4294901760
        %3111 = vmatpush.msra.mxu0 %v3110
        %v3112 = vand.u32 %v578, 4294901760
        %v3113 = vsub.f32 %v578, %v3112
        %v3114 = vand.u32 %v3113, 4294901760
        %v3115 = vsub.f32 %v3113, %v3114
        %v3116 = vand.u32 %v3115, 4294901760
        %3117 = vmatpush.msra.mxu0 %v3116
        %v3118 = vand.u32 %v570, 4294901760
        %v3119 = vsub.f32 %v570, %v3118
        %v3120 = vand.u32 %v3119, 4294901760
        %v3121 = vsub.f32 %v3119, %v3120
        %v3122 = vand.u32 %v3121, 4294901760
        %3123 = vmatpush.msra.mxu0 %v3122
        %v3124 = vand.u32 %v562, 4294901760
        %v3125 = vsub.f32 %v562, %v3124
        %v3126 = vand.u32 %v3125, 4294901760
        %v3127 = vsub.f32 %v3125, %v3126
        %v3128 = vand.u32 %v3127, 4294901760
        %3129 = vmatpush.msra.mxu0 %v3128
        %v3130 = vand.u32 %v554, 4294901760
        %v3131 = vsub.f32 %v554, %v3130
        %v3132 = vand.u32 %v3131, 4294901760
        %v3133 = vsub.f32 %v3131, %v3132
        %v3134 = vand.u32 %v3133, 4294901760
        %3135 = vmatpush.msra.mxu0 %v3134
        %v3136 = vand.u32 %v546, 4294901760
        %v3137 = vsub.f32 %v546, %v3136
        %v3138 = vand.u32 %v3137, 4294901760
        %v3139 = vsub.f32 %v3137, %v3138
        %v3140 = vand.u32 %v3139, 4294901760
        %3141 = vmatpush.msra.mxu0 %v3140
        %v3142 = vand.u32 %v538, 4294901760
        %v3143 = vsub.f32 %v538, %v3142
        %v3144 = vand.u32 %v3143, 4294901760
        %v3145 = vsub.f32 %v3143, %v3144
        %v3146 = vand.u32 %v3145, 4294901760
        %3147 = vmatpush.msra.mxu0 %v3146
        %v3148 = vand.u32 %v530, 4294901760
        %v3149 = vsub.f32 %v530, %v3148
        %v3150 = vand.u32 %v3149, 4294901760
        %v3151 = vsub.f32 %v3149, %v3150
        %v3152 = vand.u32 %v3151, 4294901760
        %3153 = vmatpush.msra.mxu0 %v3152
        %v3154 = vand.u32 %v522, 4294901760
        %v3155 = vsub.f32 %v522, %v3154
        %v3156 = vand.u32 %v3155, 4294901760
        %v3157 = vsub.f32 %v3155, %v3156
        %v3158 = vand.u32 %v3157, 4294901760
        %3159 = vmatpush.msra.mxu0 %v3158
        %v3160 = vand.u32 %v514, 4294901760
        %v3161 = vsub.f32 %v514, %v3160
        %v3162 = vand.u32 %v3161, 4294901760
        %v3163 = vsub.f32 %v3161, %v3162
        %v3164 = vand.u32 %v3163, 4294901760
        %3165 = vmatpush.msra.mxu0 %v3164
        %v3166 = vand.u32 %v738, 4294901760
        %3167 = vmatmul.f32.gmra.mxu0 %v3166
        %v3168 = vpop.f32.mrf.mxu0
        %v3169 = vadd.f32 %v3068, %v3168
        %3170 = vdwg.mxu0
        %v3171 = vand.u32 %v634, 4294901760
        %v3172 = vsub.f32 %v634, %v3171
        %3173 = vmatpush.msra.mxu0 %v3172
        %v3174 = vand.u32 %v626, 4294901760
        %v3175 = vsub.f32 %v626, %v3174
        %3176 = vmatpush.msra.mxu0 %v3175
        %v3177 = vand.u32 %v618, 4294901760
        %v3178 = vsub.f32 %v618, %v3177
        %3179 = vmatpush.msra.mxu0 %v3178
        %v3180 = vand.u32 %v610, 4294901760
        %v3181 = vsub.f32 %v610, %v3180
        %3182 = vmatpush.msra.mxu0 %v3181
        %v3183 = vand.u32 %v602, 4294901760
        %v3184 = vsub.f32 %v602, %v3183
        %3185 = vmatpush.msra.mxu0 %v3184
        %v3186 = vand.u32 %v594, 4294901760
        %v3187 = vsub.f32 %v594, %v3186
        %3188 = vmatpush.msra.mxu0 %v3187
        %v3189 = vand.u32 %v586, 4294901760
        %v3190 = vsub.f32 %v586, %v3189
        %3191 = vmatpush.msra.mxu0 %v3190
        %v3192 = vand.u32 %v578, 4294901760
        %v3193 = vsub.f32 %v578, %v3192
        %3194 = vmatpush.msra.mxu0 %v3193
        %v3195 = vand.u32 %v570, 4294901760
        %v3196 = vsub.f32 %v570, %v3195
        %3197 = vmatpush.msra.mxu0 %v3196
        %v3198 = vand.u32 %v562, 4294901760
        %v3199 = vsub.f32 %v562, %v3198
        %3200 = vmatpush.msra.mxu0 %v3199
        %v3201 = vand.u32 %v554, 4294901760
        %v3202 = vsub.f32 %v554, %v3201
        %3203 = vmatpush.msra.mxu0 %v3202
        %v3204 = vand.u32 %v546, 4294901760
        %v3205 = vsub.f32 %v546, %v3204
        %3206 = vmatpush.msra.mxu0 %v3205
        %v3207 = vand.u32 %v538, 4294901760
        %v3208 = vsub.f32 %v538, %v3207
        %3209 = vmatpush.msra.mxu0 %v3208
        %v3210 = vand.u32 %v530, 4294901760
        %v3211 = vsub.f32 %v530, %v3210
        %3212 = vmatpush.msra.mxu0 %v3211
        %v3213 = vand.u32 %v522, 4294901760
        %v3214 = vsub.f32 %v522, %v3213
        %3215 = vmatpush.msra.mxu0 %v3214
        %v3216 = vand.u32 %v514, 4294901760
        %v3217 = vsub.f32 %v514, %v3216
        %3218 = vmatpush.msra.mxu0 %v3217
        %v3219 = vand.u32 %v738, 4294901760
        %v3220 = vsub.f32 %v738, %v3219
        %3221 = vmatmul.f32.gmra.mxu0 %v3220
        %v3222 = vpop.f32.mrf.mxu0
        %v3223 = vadd.f32 %v3169, %v3222
        %3224 = vdwg.mxu0
        %v3225 = vand.u32 %v634, 4294901760
        %3226 = vmatpush.msra.mxu0 %v3225
        %v3227 = vand.u32 %v626, 4294901760
        %3228 = vmatpush.msra.mxu0 %v3227
        %v3229 = vand.u32 %v618, 4294901760
        %3230 = vmatpush.msra.mxu0 %v3229
        %v3231 = vand.u32 %v610, 4294901760
        %3232 = vmatpush.msra.mxu0 %v3231
        %v3233 = vand.u32 %v602, 4294901760
        %3234 = vmatpush.msra.mxu0 %v3233
        %v3235 = vand.u32 %v594, 4294901760
        %3236 = vmatpush.msra.mxu0 %v3235
        %v3237 = vand.u32 %v586, 4294901760
        %3238 = vmatpush.msra.mxu0 %v3237
        %v3239 = vand.u32 %v578, 4294901760
        %3240 = vmatpush.msra.mxu0 %v3239
        %v3241 = vand.u32 %v570, 4294901760
        %3242 = vmatpush.msra.mxu0 %v3241
        %v3243 = vand.u32 %v562, 4294901760
        %3244 = vmatpush.msra.mxu0 %v3243
        %v3245 = vand.u32 %v554, 4294901760
        %3246 = vmatpush.msra.mxu0 %v3245
        %v3247 = vand.u32 %v546, 4294901760
        %3248 = vmatpush.msra.mxu0 %v3247
        %v3249 = vand.u32 %v538, 4294901760
        %3250 = vmatpush.msra.mxu0 %v3249
        %v3251 = vand.u32 %v530, 4294901760
        %3252 = vmatpush.msra.mxu0 %v3251
        %v3253 = vand.u32 %v522, 4294901760
        %3254 = vmatpush.msra.mxu0 %v3253
        %v3255 = vand.u32 %v514, 4294901760
        %3256 = vmatpush.msra.mxu0 %v3255
        %v3257 = vand.u32 %v738, 4294901760
        %v3258 = vsub.f32 %v738, %v3257
        %v3259 = vand.u32 %v3258, 4294901760
        %3260 = vmatmul.f32.gmra.mxu0 %v3259
        %v3261 = vpop.f32.mrf.mxu0
        %v3262 = vadd.f32 %v3223, %v3261
        %3263 = vdwg.mxu0
        %v3264 = vand.u32 %v634, 4294901760
        %v3265 = vsub.f32 %v634, %v3264
        %v3266 = vand.u32 %v3265, 4294901760
        %3267 = vmatpush.msra.mxu0 %v3266
        %v3268 = vand.u32 %v626, 4294901760
        %v3269 = vsub.f32 %v626, %v3268
        %v3270 = vand.u32 %v3269, 4294901760
        %3271 = vmatpush.msra.mxu0 %v3270
        %v3272 = vand.u32 %v618, 4294901760
        %v3273 = vsub.f32 %v618, %v3272
        %v3274 = vand.u32 %v3273, 4294901760
        %3275 = vmatpush.msra.mxu0 %v3274
        %v3276 = vand.u32 %v610, 4294901760
        %v3277 = vsub.f32 %v610, %v3276
        %v3278 = vand.u32 %v3277, 4294901760
        %3279 = vmatpush.msra.mxu0 %v3278
        %v3280 = vand.u32 %v602, 4294901760
        %v3281 = vsub.f32 %v602, %v3280
        %v3282 = vand.u32 %v3281, 4294901760
        %3283 = vmatpush.msra.mxu0 %v3282
        %v3284 = vand.u32 %v594, 4294901760
        %v3285 = vsub.f32 %v594, %v3284
        %v3286 = vand.u32 %v3285, 4294901760
        %3287 = vmatpush.msra.mxu0 %v3286
        %v3288 = vand.u32 %v586, 4294901760
        %v3289 = vsub.f32 %v586, %v3288
        %v3290 = vand.u32 %v3289, 4294901760
        %3291 = vmatpush.msra.mxu0 %v3290
        %v3292 = vand.u32 %v578, 4294901760
        %v3293 = vsub.f32 %v578, %v3292
        %v3294 = vand.u32 %v3293, 4294901760
        %3295 = vmatpush.msra.mxu0 %v3294
        %v3296 = vand.u32 %v570, 4294901760
        %v3297 = vsub.f32 %v570, %v3296
        %v3298 = vand.u32 %v3297, 4294901760
        %3299 = vmatpush.msra.mxu0 %v3298
        %v3300 = vand.u32 %v562, 4294901760
        %v3301 = vsub.f32 %v562, %v3300
        %v3302 = vand.u32 %v3301, 4294901760
        %3303 = vmatpush.msra.mxu0 %v3302
        %v3304 = vand.u32 %v554, 4294901760
        %v3305 = vsub.f32 %v554, %v3304
        %v3306 = vand.u32 %v3305, 4294901760
        %3307 = vmatpush.msra.mxu0 %v3306
        %v3308 = vand.u32 %v546, 4294901760
        %v3309 = vsub.f32 %v546, %v3308
        %v3310 = vand.u32 %v3309, 4294901760
        %3311 = vmatpush.msra.mxu0 %v3310
        %v3312 = vand.u32 %v538, 4294901760
        %v3313 = vsub.f32 %v538, %v3312
        %v3314 = vand.u32 %v3313, 4294901760
        %3315 = vmatpush.msra.mxu0 %v3314
        %v3316 = vand.u32 %v530, 4294901760
        %v3317 = vsub.f32 %v530, %v3316
        %v3318 = vand.u32 %v3317, 4294901760
        %3319 = vmatpush.msra.mxu0 %v3318
        %v3320 = vand.u32 %v522, 4294901760
        %v3321 = vsub.f32 %v522, %v3320
        %v3322 = vand.u32 %v3321, 4294901760
        %3323 = vmatpush.msra.mxu0 %v3322
        %v3324 = vand.u32 %v514, 4294901760
        %v3325 = vsub.f32 %v514, %v3324
        %v3326 = vand.u32 %v3325, 4294901760
        %3327 = vmatpush.msra.mxu0 %v3326
        %v3328 = vand.u32 %v738, 4294901760
        %3329 = vmatmul.f32.gmra.mxu0 %v3328
        %v3330 = vpop.f32.mrf.mxu0
        %v3331 = vadd.f32 %v3262, %v3330
        %3332 = vdwg.mxu0
        %v3333 = vand.u32 %v634, 4294901760
        %3334 = vmatpush.msra.mxu0 %v3333
        %v3335 = vand.u32 %v626, 4294901760
        %3336 = vmatpush.msra.mxu0 %v3335
        %v3337 = vand.u32 %v618, 4294901760
        %3338 = vmatpush.msra.mxu0 %v3337
        %v3339 = vand.u32 %v610, 4294901760
        %3340 = vmatpush.msra.mxu0 %v3339
        %v3341 = vand.u32 %v602, 4294901760
        %3342 = vmatpush.msra.mxu0 %v3341
        %v3343 = vand.u32 %v594, 4294901760
        %3344 = vmatpush.msra.mxu0 %v3343
        %v3345 = vand.u32 %v586, 4294901760
        %3346 = vmatpush.msra.mxu0 %v3345
        %v3347 = vand.u32 %v578, 4294901760
        %3348 = vmatpush.msra.mxu0 %v3347
        %v3349 = vand.u32 %v570, 4294901760
        %3350 = vmatpush.msra.mxu0 %v3349
        %v3351 = vand.u32 %v562, 4294901760
        %3352 = vmatpush.msra.mxu0 %v3351
        %v3353 = vand.u32 %v554, 4294901760
        %3354 = vmatpush.msra.mxu0 %v3353
        %v3355 = vand.u32 %v546, 4294901760
        %3356 = vmatpush.msra.mxu0 %v3355
        %v3357 = vand.u32 %v538, 4294901760
        %3358 = vmatpush.msra.mxu0 %v3357
        %v3359 = vand.u32 %v530, 4294901760
        %3360 = vmatpush.msra.mxu0 %v3359
        %v3361 = vand.u32 %v522, 4294901760
        %3362 = vmatpush.msra.mxu0 %v3361
        %v3363 = vand.u32 %v514, 4294901760
        %3364 = vmatpush.msra.mxu0 %v3363
        %v3365 = vand.u32 %v738, 4294901760
        %3366 = vmatmul.f32.gmra.mxu0 %v3365
        %v3367 = vpop.f32.mrf.mxu0
        %v3368 = vadd.f32 %v3331, %v3367
        %3369 = vdwg.mxu0
        %3370 = vmatpush.msra.mxu0 0.0
        %3371 = vmatpush.msra.mxu0 0.0
        %3372 = vmatpush.msra.mxu0 0.0
        %3373 = vmatpush.msra.mxu0 0.0
        %3374 = vmatpush.msra.mxu0 0.0
        %v3375 = vand.u32 %v722, 4294901760
        %3376 = vmatpush.msra.mxu0 %v3375
        %v3377 = vand.u32 %v714, 4294901760
        %3378 = vmatpush.msra.mxu0 %v3377
        %v3379 = vand.u32 %v706, 4294901760
        %3380 = vmatpush.msra.mxu0 %v3379
        %v3381 = vand.u32 %v698, 4294901760
        %3382 = vmatpush.msra.mxu0 %v3381
        %v3383 = vand.u32 %v690, 4294901760
        %3384 = vmatpush.msra.mxu0 %v3383
        %v3385 = vand.u32 %v682, 4294901760
        %3386 = vmatpush.msra.mxu0 %v3385
        %v3387 = vand.u32 %v674, 4294901760
        %3388 = vmatpush.msra.mxu0 %v3387
        %v3389 = vand.u32 %v666, 4294901760
        %3390 = vmatpush.msra.mxu0 %v3389
        %v3391 = vand.u32 %v658, 4294901760
        %3392 = vmatpush.msra.mxu0 %v3391
        %v3393 = vand.u32 %v650, 4294901760
        %3394 = vmatpush.msra.mxu0 %v3393
        %v3395 = vand.u32 %v642, 4294901760
        %3396 = vmatpush.msra.mxu0 %v3395
        %v3397 = vand.u32 %v770, 4294901760
        %v3398 = vsub.f32 %v770, %v3397
        %v3399 = vand.u32 %v3398, 4294901760
        %v3400 = vsub.f32 %v3398, %v3399
        %v3401 = vand.u32 %v3400, 4294901760
        %3402 = vmatmul.f32.gmra.mxu0 %v3401
        %v3403 = vpop.f32.mrf.mxu0
        %v3404 = vadd.f32 %v3368, %v3403
        %3405 = vdwg.mxu0
        %3406 = vmatpush.msra.mxu0 0.0
        %3407 = vmatpush.msra.mxu0 0.0
        %3408 = vmatpush.msra.mxu0 0.0
        %3409 = vmatpush.msra.mxu0 0.0
        %3410 = vmatpush.msra.mxu0 0.0
        %v3411 = vand.u32 %v722, 4294901760
        %v3412 = vsub.f32 %v722, %v3411
        %v3413 = vand.u32 %v3412, 4294901760
        %v3414 = vsub.f32 %v3412, %v3413
        %v3415 = vand.u32 %v3414, 4294901760
        %3416 = vmatpush.msra.mxu0 %v3415
        %v3417 = vand.u32 %v714, 4294901760
        %v3418 = vsub.f32 %v714, %v3417
        %v3419 = vand.u32 %v3418, 4294901760
        %v3420 = vsub.f32 %v3418, %v3419
        %v3421 = vand.u32 %v3420, 4294901760
        %3422 = vmatpush.msra.mxu0 %v3421
        %v3423 = vand.u32 %v706, 4294901760
        %v3424 = vsub.f32 %v706, %v3423
        %v3425 = vand.u32 %v3424, 4294901760
        %v3426 = vsub.f32 %v3424, %v3425
        %v3427 = vand.u32 %v3426, 4294901760
        %3428 = vmatpush.msra.mxu0 %v3427
        %v3429 = vand.u32 %v698, 4294901760
        %v3430 = vsub.f32 %v698, %v3429
        %v3431 = vand.u32 %v3430, 4294901760
        %v3432 = vsub.f32 %v3430, %v3431
        %v3433 = vand.u32 %v3432, 4294901760
        %3434 = vmatpush.msra.mxu0 %v3433
        %v3435 = vand.u32 %v690, 4294901760
        %v3436 = vsub.f32 %v690, %v3435
        %v3437 = vand.u32 %v3436, 4294901760
        %v3438 = vsub.f32 %v3436, %v3437
        %v3439 = vand.u32 %v3438, 4294901760
        %3440 = vmatpush.msra.mxu0 %v3439
        %v3441 = vand.u32 %v682, 4294901760
        %v3442 = vsub.f32 %v682, %v3441
        %v3443 = vand.u32 %v3442, 4294901760
        %v3444 = vsub.f32 %v3442, %v3443
        %v3445 = vand.u32 %v3444, 4294901760
        %3446 = vmatpush.msra.mxu0 %v3445
        %v3447 = vand.u32 %v674, 4294901760
        %v3448 = vsub.f32 %v674, %v3447
        %v3449 = vand.u32 %v3448, 4294901760
        %v3450 = vsub.f32 %v3448, %v3449
        %v3451 = vand.u32 %v3450, 4294901760
        %3452 = vmatpush.msra.mxu0 %v3451
        %v3453 = vand.u32 %v666, 4294901760
        %v3454 = vsub.f32 %v666, %v3453
        %v3455 = vand.u32 %v3454, 4294901760
        %v3456 = vsub.f32 %v3454, %v3455
        %v3457 = vand.u32 %v3456, 4294901760
        %3458 = vmatpush.msra.mxu0 %v3457
        %v3459 = vand.u32 %v658, 4294901760
        %v3460 = vsub.f32 %v658, %v3459
        %v3461 = vand.u32 %v3460, 4294901760
        %v3462 = vsub.f32 %v3460, %v3461
        %v3463 = vand.u32 %v3462, 4294901760
        %3464 = vmatpush.msra.mxu0 %v3463
        %v3465 = vand.u32 %v650, 4294901760
        %v3466 = vsub.f32 %v650, %v3465
        %v3467 = vand.u32 %v3466, 4294901760
        %v3468 = vsub.f32 %v3466, %v3467
        %v3469 = vand.u32 %v3468, 4294901760
        %3470 = vmatpush.msra.mxu0 %v3469
        %v3471 = vand.u32 %v642, 4294901760
        %v3472 = vsub.f32 %v642, %v3471
        %v3473 = vand.u32 %v3472, 4294901760
        %v3474 = vsub.f32 %v3472, %v3473
        %v3475 = vand.u32 %v3474, 4294901760
        %3476 = vmatpush.msra.mxu0 %v3475
        %v3477 = vand.u32 %v770, 4294901760
        %3478 = vmatmul.f32.gmra.mxu0 %v3477
        %v3479 = vpop.f32.mrf.mxu0
        %v3480 = vadd.f32 %v3404, %v3479
        %3481 = vdwg.mxu0
        %3482 = vmatpush.msra.mxu0 0.0
        %3483 = vmatpush.msra.mxu0 0.0
        %3484 = vmatpush.msra.mxu0 0.0
        %3485 = vmatpush.msra.mxu0 0.0
        %3486 = vmatpush.msra.mxu0 0.0
        %v3487 = vand.u32 %v722, 4294901760
        %v3488 = vsub.f32 %v722, %v3487
        %3489 = vmatpush.msra.mxu0 %v3488
        %v3490 = vand.u32 %v714, 4294901760
        %v3491 = vsub.f32 %v714, %v3490
        %3492 = vmatpush.msra.mxu0 %v3491
        %v3493 = vand.u32 %v706, 4294901760
        %v3494 = vsub.f32 %v706, %v3493
        %3495 = vmatpush.msra.mxu0 %v3494
        %v3496 = vand.u32 %v698, 4294901760
        %v3497 = vsub.f32 %v698, %v3496
        %3498 = vmatpush.msra.mxu0 %v3497
        %v3499 = vand.u32 %v690, 4294901760
        %v3500 = vsub.f32 %v690, %v3499
        %3501 = vmatpush.msra.mxu0 %v3500
        %v3502 = vand.u32 %v682, 4294901760
        %v3503 = vsub.f32 %v682, %v3502
        %3504 = vmatpush.msra.mxu0 %v3503
        %v3505 = vand.u32 %v674, 4294901760
        %v3506 = vsub.f32 %v674, %v3505
        %3507 = vmatpush.msra.mxu0 %v3506
        %v3508 = vand.u32 %v666, 4294901760
        %v3509 = vsub.f32 %v666, %v3508
        %3510 = vmatpush.msra.mxu0 %v3509
        %v3511 = vand.u32 %v658, 4294901760
        %v3512 = vsub.f32 %v658, %v3511
        %3513 = vmatpush.msra.mxu0 %v3512
        %v3514 = vand.u32 %v650, 4294901760
        %v3515 = vsub.f32 %v650, %v3514
        %3516 = vmatpush.msra.mxu0 %v3515
        %v3517 = vand.u32 %v642, 4294901760
        %v3518 = vsub.f32 %v642, %v3517
        %3519 = vmatpush.msra.mxu0 %v3518
        %v3520 = vand.u32 %v770, 4294901760
        %v3521 = vsub.f32 %v770, %v3520
        %3522 = vmatmul.f32.gmra.mxu0 %v3521
        %v3523 = vpop.f32.mrf.mxu0
        %v3524 = vadd.f32 %v3480, %v3523
        %3525 = vdwg.mxu0
        %3526 = vmatpush.msra.mxu0 0.0
        %3527 = vmatpush.msra.mxu0 0.0
        %3528 = vmatpush.msra.mxu0 0.0
        %3529 = vmatpush.msra.mxu0 0.0
        %3530 = vmatpush.msra.mxu0 0.0
        %v3531 = vand.u32 %v722, 4294901760
        %3532 = vmatpush.msra.mxu0 %v3531
        %v3533 = vand.u32 %v714, 4294901760
        %3534 = vmatpush.msra.mxu0 %v3533
        %v3535 = vand.u32 %v706, 4294901760
        %3536 = vmatpush.msra.mxu0 %v3535
        %v3537 = vand.u32 %v698, 4294901760
        %3538 = vmatpush.msra.mxu0 %v3537
        %v3539 = vand.u32 %v690, 4294901760
        %3540 = vmatpush.msra.mxu0 %v3539
        %v3541 = vand.u32 %v682, 4294901760
        %3542 = vmatpush.msra.mxu0 %v3541
        %v3543 = vand.u32 %v674, 4294901760
        %3544 = vmatpush.msra.mxu0 %v3543
        %v3545 = vand.u32 %v666, 4294901760
        %3546 = vmatpush.msra.mxu0 %v3545
        %v3547 = vand.u32 %v658, 4294901760
        %3548 = vmatpush.msra.mxu0 %v3547
        %v3549 = vand.u32 %v650, 4294901760
        %3550 = vmatpush.msra.mxu0 %v3549
        %v3551 = vand.u32 %v642, 4294901760
        %3552 = vmatpush.msra.mxu0 %v3551
        %v3553 = vand.u32 %v770, 4294901760
        %v3554 = vsub.f32 %v770, %v3553
        %v3555 = vand.u32 %v3554, 4294901760
        %3556 = vmatmul.f32.gmra.mxu0 %v3555
        %v3557 = vpop.f32.mrf.mxu0
        %v3558 = vadd.f32 %v3524, %v3557
        %3559 = vdwg.mxu0
        %3560 = vmatpush.msra.mxu0 0.0
        %3561 = vmatpush.msra.mxu0 0.0
        %3562 = vmatpush.msra.mxu0 0.0
        %3563 = vmatpush.msra.mxu0 0.0
        %3564 = vmatpush.msra.mxu0 0.0
        %v3565 = vand.u32 %v722, 4294901760
        %v3566 = vsub.f32 %v722, %v3565
        %v3567 = vand.u32 %v3566, 4294901760
        %3568 = vmatpush.msra.mxu0 %v3567
        %v3569 = vand.u32 %v714, 4294901760
        %v3570 = vsub.f32 %v714, %v3569
        %v3571 = vand.u32 %v3570, 4294901760
        %3572 = vmatpush.msra.mxu0 %v3571
        %v3573 = vand.u32 %v706, 4294901760
        %v3574 = vsub.f32 %v706, %v3573
        %v3575 = vand.u32 %v3574, 4294901760
        %3576 = vmatpush.msra.mxu0 %v3575
        %v3577 = vand.u32 %v698, 4294901760
        %v3578 = vsub.f32 %v698, %v3577
        %v3579 = vand.u32 %v3578, 4294901760
        %3580 = vmatpush.msra.mxu0 %v3579
        %v3581 = vand.u32 %v690, 4294901760
        %v3582 = vsub.f32 %v690, %v3581
        %v3583 = vand.u32 %v3582, 4294901760
        %3584 = vmatpush.msra.mxu0 %v3583
        %v3585 = vand.u32 %v682, 4294901760
        %v3586 = vsub.f32 %v682, %v3585
        %v3587 = vand.u32 %v3586, 4294901760
        %3588 = vmatpush.msra.mxu0 %v3587
        %v3589 = vand.u32 %v674, 4294901760
        %v3590 = vsub.f32 %v674, %v3589
        %v3591 = vand.u32 %v3590, 4294901760
        %3592 = vmatpush.msra.mxu0 %v3591
        %v3593 = vand.u32 %v666, 4294901760
        %v3594 = vsub.f32 %v666, %v3593
        %v3595 = vand.u32 %v3594, 4294901760
        %3596 = vmatpush.msra.mxu0 %v3595
        %v3597 = vand.u32 %v658, 4294901760
        %v3598 = vsub.f32 %v658, %v3597
        %v3599 = vand.u32 %v3598, 4294901760
        %3600 = vmatpush.msra.mxu0 %v3599
        %v3601 = vand.u32 %v650, 4294901760
        %v3602 = vsub.f32 %v650, %v3601
        %v3603 = vand.u32 %v3602, 4294901760
        %3604 = vmatpush.msra.mxu0 %v3603
        %v3605 = vand.u32 %v642, 4294901760
        %v3606 = vsub.f32 %v642, %v3605
        %v3607 = vand.u32 %v3606, 4294901760
        %3608 = vmatpush.msra.mxu0 %v3607
        %v3609 = vand.u32 %v770, 4294901760
        %3610 = vmatmul.f32.gmra.mxu0 %v3609
        %v3611 = vpop.f32.mrf.mxu0
        %v3612 = vadd.f32 %v3558, %v3611
        %3613 = vdwg.mxu0
        %3614 = vmatpush.msra.mxu0 0.0
        %3615 = vmatpush.msra.mxu0 0.0
        %3616 = vmatpush.msra.mxu0 0.0
        %3617 = vmatpush.msra.mxu0 0.0
        %3618 = vmatpush.msra.mxu0 0.0
        %v3619 = vand.u32 %v722, 4294901760
        %3620 = vmatpush.msra.mxu0 %v3619
        %v3621 = vand.u32 %v714, 4294901760
        %3622 = vmatpush.msra.mxu0 %v3621
        %v3623 = vand.u32 %v706, 4294901760
        %3624 = vmatpush.msra.mxu0 %v3623
        %v3625 = vand.u32 %v698, 4294901760
        %3626 = vmatpush.msra.mxu0 %v3625
        %v3627 = vand.u32 %v690, 4294901760
        %3628 = vmatpush.msra.mxu0 %v3627
        %v3629 = vand.u32 %v682, 4294901760
        %3630 = vmatpush.msra.mxu0 %v3629
        %v3631 = vand.u32 %v674, 4294901760
        %3632 = vmatpush.msra.mxu0 %v3631
        %v3633 = vand.u32 %v666, 4294901760
        %3634 = vmatpush.msra.mxu0 %v3633
        %v3635 = vand.u32 %v658, 4294901760
        %3636 = vmatpush.msra.mxu0 %v3635
        %v3637 = vand.u32 %v650, 4294901760
        %3638 = vmatpush.msra.mxu0 %v3637
        %v3639 = vand.u32 %v642, 4294901760
        %3640 = vmatpush.msra.mxu0 %v3639
        %v3641 = vand.u32 %v770, 4294901760
        %3642 = vmatmul.f32.gmra.mxu0 %v3641
        %v3643 = vpop.f32.mrf.mxu0
        %v3644 = vadd.f32 %v3612, %v3643
        %3645 = vdwg.mxu0
        %v3646 = vand.u32 %v507, 4294901760
        %3647 = vmatpush.msra.mxu0 %v3646
        %v3648 = vand.u32 %v499, 4294901760
        %3649 = vmatpush.msra.mxu0 %v3648
        %v3650 = vand.u32 %v491, 4294901760
        %3651 = vmatpush.msra.mxu0 %v3650
        %v3652 = vand.u32 %v483, 4294901760
        %3653 = vmatpush.msra.mxu0 %v3652
        %v3654 = vand.u32 %v475, 4294901760
        %3655 = vmatpush.msra.mxu0 %v3654
        %v3656 = vand.u32 %v467, 4294901760
        %3657 = vmatpush.msra.mxu0 %v3656
        %v3658 = vand.u32 %v459, 4294901760
        %3659 = vmatpush.msra.mxu0 %v3658
        %v3660 = vand.u32 %v451, 4294901760
        %3661 = vmatpush.msra.mxu0 %v3660
        %v3662 = vand.u32 %v443, 4294901760
        %3663 = vmatpush.msra.mxu0 %v3662
        %v3664 = vand.u32 %v435, 4294901760
        %3665 = vmatpush.msra.mxu0 %v3664
        %v3666 = vand.u32 %v427, 4294901760
        %3667 = vmatpush.msra.mxu0 %v3666
        %v3668 = vand.u32 %v419, 4294901760
        %3669 = vmatpush.msra.mxu0 %v3668
        %v3670 = vand.u32 %v411, 4294901760
        %3671 = vmatpush.msra.mxu0 %v3670
        %v3672 = vand.u32 %v403, 4294901760
        %3673 = vmatpush.msra.mxu0 %v3672
        %v3674 = vand.u32 %v395, 4294901760
        %3675 = vmatpush.msra.mxu0 %v3674
        %v3676 = vand.u32 %v387, 4294901760
        %3677 = vmatpush.msra.mxu0 %v3676
        %v3678 = vand.u32 %v737, 4294901760
        %v3679 = vsub.f32 %v737, %v3678
        %v3680 = vand.u32 %v3679, 4294901760
        %v3681 = vsub.f32 %v3679, %v3680
        %v3682 = vand.u32 %v3681, 4294901760
        %3683 = vmatmul.f32.gmra.mxu0 %v3682
        %v3684 = vpop.f32.mrf.mxu0
        %v3685 = vadd.f32 %v756, %v3684
        %3686 = vdwg.mxu0
        %v3687 = vand.u32 %v507, 4294901760
        %v3688 = vsub.f32 %v507, %v3687
        %v3689 = vand.u32 %v3688, 4294901760
        %v3690 = vsub.f32 %v3688, %v3689
        %v3691 = vand.u32 %v3690, 4294901760
        %3692 = vmatpush.msra.mxu0 %v3691
        %v3693 = vand.u32 %v499, 4294901760
        %v3694 = vsub.f32 %v499, %v3693
        %v3695 = vand.u32 %v3694, 4294901760
        %v3696 = vsub.f32 %v3694, %v3695
        %v3697 = vand.u32 %v3696, 4294901760
        %3698 = vmatpush.msra.mxu0 %v3697
        %v3699 = vand.u32 %v491, 4294901760
        %v3700 = vsub.f32 %v491, %v3699
        %v3701 = vand.u32 %v3700, 4294901760
        %v3702 = vsub.f32 %v3700, %v3701
        %v3703 = vand.u32 %v3702, 4294901760
        %3704 = vmatpush.msra.mxu0 %v3703
        %v3705 = vand.u32 %v483, 4294901760
        %v3706 = vsub.f32 %v483, %v3705
        %v3707 = vand.u32 %v3706, 4294901760
        %v3708 = vsub.f32 %v3706, %v3707
        %v3709 = vand.u32 %v3708, 4294901760
        %3710 = vmatpush.msra.mxu0 %v3709
        %v3711 = vand.u32 %v475, 4294901760
        %v3712 = vsub.f32 %v475, %v3711
        %v3713 = vand.u32 %v3712, 4294901760
        %v3714 = vsub.f32 %v3712, %v3713
        %v3715 = vand.u32 %v3714, 4294901760
        %3716 = vmatpush.msra.mxu0 %v3715
        %v3717 = vand.u32 %v467, 4294901760
        %v3718 = vsub.f32 %v467, %v3717
        %v3719 = vand.u32 %v3718, 4294901760
        %v3720 = vsub.f32 %v3718, %v3719
        %v3721 = vand.u32 %v3720, 4294901760
        %3722 = vmatpush.msra.mxu0 %v3721
        %v3723 = vand.u32 %v459, 4294901760
        %v3724 = vsub.f32 %v459, %v3723
        %v3725 = vand.u32 %v3724, 4294901760
        %v3726 = vsub.f32 %v3724, %v3725
        %v3727 = vand.u32 %v3726, 4294901760
        %3728 = vmatpush.msra.mxu0 %v3727
        %v3729 = vand.u32 %v451, 4294901760
        %v3730 = vsub.f32 %v451, %v3729
        %v3731 = vand.u32 %v3730, 4294901760
        %v3732 = vsub.f32 %v3730, %v3731
        %v3733 = vand.u32 %v3732, 4294901760
        %3734 = vmatpush.msra.mxu0 %v3733
        %v3735 = vand.u32 %v443, 4294901760
        %v3736 = vsub.f32 %v443, %v3735
        %v3737 = vand.u32 %v3736, 4294901760
        %v3738 = vsub.f32 %v3736, %v3737
        %v3739 = vand.u32 %v3738, 4294901760
        %3740 = vmatpush.msra.mxu0 %v3739
        %v3741 = vand.u32 %v435, 4294901760
        %v3742 = vsub.f32 %v435, %v3741
        %v3743 = vand.u32 %v3742, 4294901760
        %v3744 = vsub.f32 %v3742, %v3743
        %v3745 = vand.u32 %v3744, 4294901760
        %3746 = vmatpush.msra.mxu0 %v3745
        %v3747 = vand.u32 %v427, 4294901760
        %v3748 = vsub.f32 %v427, %v3747
        %v3749 = vand.u32 %v3748, 4294901760
        %v3750 = vsub.f32 %v3748, %v3749
        %v3751 = vand.u32 %v3750, 4294901760
        %3752 = vmatpush.msra.mxu0 %v3751
        %v3753 = vand.u32 %v419, 4294901760
        %v3754 = vsub.f32 %v419, %v3753
        %v3755 = vand.u32 %v3754, 4294901760
        %v3756 = vsub.f32 %v3754, %v3755
        %v3757 = vand.u32 %v3756, 4294901760
        %3758 = vmatpush.msra.mxu0 %v3757
        %v3759 = vand.u32 %v411, 4294901760
        %v3760 = vsub.f32 %v411, %v3759
        %v3761 = vand.u32 %v3760, 4294901760
        %v3762 = vsub.f32 %v3760, %v3761
        %v3763 = vand.u32 %v3762, 4294901760
        %3764 = vmatpush.msra.mxu0 %v3763
        %v3765 = vand.u32 %v403, 4294901760
        %v3766 = vsub.f32 %v403, %v3765
        %v3767 = vand.u32 %v3766, 4294901760
        %v3768 = vsub.f32 %v3766, %v3767
        %v3769 = vand.u32 %v3768, 4294901760
        %3770 = vmatpush.msra.mxu0 %v3769
        %v3771 = vand.u32 %v395, 4294901760
        %v3772 = vsub.f32 %v395, %v3771
        %v3773 = vand.u32 %v3772, 4294901760
        %v3774 = vsub.f32 %v3772, %v3773
        %v3775 = vand.u32 %v3774, 4294901760
        %3776 = vmatpush.msra.mxu0 %v3775
        %v3777 = vand.u32 %v387, 4294901760
        %v3778 = vsub.f32 %v387, %v3777
        %v3779 = vand.u32 %v3778, 4294901760
        %v3780 = vsub.f32 %v3778, %v3779
        %v3781 = vand.u32 %v3780, 4294901760
        %3782 = vmatpush.msra.mxu0 %v3781
        %v3783 = vand.u32 %v737, 4294901760
        %3784 = vmatmul.f32.gmra.mxu0 %v3783
        %v3785 = vpop.f32.mrf.mxu0
        %v3786 = vadd.f32 %v3685, %v3785
        %3787 = vdwg.mxu0
        %v3788 = vand.u32 %v507, 4294901760
        %v3789 = vsub.f32 %v507, %v3788
        %3790 = vmatpush.msra.mxu0 %v3789
        %v3791 = vand.u32 %v499, 4294901760
        %v3792 = vsub.f32 %v499, %v3791
        %3793 = vmatpush.msra.mxu0 %v3792
        %v3794 = vand.u32 %v491, 4294901760
        %v3795 = vsub.f32 %v491, %v3794
        %3796 = vmatpush.msra.mxu0 %v3795
        %v3797 = vand.u32 %v483, 4294901760
        %v3798 = vsub.f32 %v483, %v3797
        %3799 = vmatpush.msra.mxu0 %v3798
        %v3800 = vand.u32 %v475, 4294901760
        %v3801 = vsub.f32 %v475, %v3800
        %3802 = vmatpush.msra.mxu0 %v3801
        %v3803 = vand.u32 %v467, 4294901760
        %v3804 = vsub.f32 %v467, %v3803
        %3805 = vmatpush.msra.mxu0 %v3804
        %v3806 = vand.u32 %v459, 4294901760
        %v3807 = vsub.f32 %v459, %v3806
        %3808 = vmatpush.msra.mxu0 %v3807
        %v3809 = vand.u32 %v451, 4294901760
        %v3810 = vsub.f32 %v451, %v3809
        %3811 = vmatpush.msra.mxu0 %v3810
        %v3812 = vand.u32 %v443, 4294901760
        %v3813 = vsub.f32 %v443, %v3812
        %3814 = vmatpush.msra.mxu0 %v3813
        %v3815 = vand.u32 %v435, 4294901760
        %v3816 = vsub.f32 %v435, %v3815
        %3817 = vmatpush.msra.mxu0 %v3816
        %v3818 = vand.u32 %v427, 4294901760
        %v3819 = vsub.f32 %v427, %v3818
        %3820 = vmatpush.msra.mxu0 %v3819
        %v3821 = vand.u32 %v419, 4294901760
        %v3822 = vsub.f32 %v419, %v3821
        %3823 = vmatpush.msra.mxu0 %v3822
        %v3824 = vand.u32 %v411, 4294901760
        %v3825 = vsub.f32 %v411, %v3824
        %3826 = vmatpush.msra.mxu0 %v3825
        %v3827 = vand.u32 %v403, 4294901760
        %v3828 = vsub.f32 %v403, %v3827
        %3829 = vmatpush.msra.mxu0 %v3828
        %v3830 = vand.u32 %v395, 4294901760
        %v3831 = vsub.f32 %v395, %v3830
        %3832 = vmatpush.msra.mxu0 %v3831
        %v3833 = vand.u32 %v387, 4294901760
        %v3834 = vsub.f32 %v387, %v3833
        %3835 = vmatpush.msra.mxu0 %v3834
        %v3836 = vand.u32 %v737, 4294901760
        %v3837 = vsub.f32 %v737, %v3836
        %3838 = vmatmul.f32.gmra.mxu0 %v3837
        %v3839 = vpop.f32.mrf.mxu0
        %v3840 = vadd.f32 %v3786, %v3839
        %3841 = vdwg.mxu0
        %v3842 = vand.u32 %v507, 4294901760
        %3843 = vmatpush.msra.mxu0 %v3842
        %v3844 = vand.u32 %v499, 4294901760
        %3845 = vmatpush.msra.mxu0 %v3844
        %v3846 = vand.u32 %v491, 4294901760
        %3847 = vmatpush.msra.mxu0 %v3846
        %v3848 = vand.u32 %v483, 4294901760
        %3849 = vmatpush.msra.mxu0 %v3848
        %v3850 = vand.u32 %v475, 4294901760
        %3851 = vmatpush.msra.mxu0 %v3850
        %v3852 = vand.u32 %v467, 4294901760
        %3853 = vmatpush.msra.mxu0 %v3852
        %v3854 = vand.u32 %v459, 4294901760
        %3855 = vmatpush.msra.mxu0 %v3854
        %v3856 = vand.u32 %v451, 4294901760
        %3857 = vmatpush.msra.mxu0 %v3856
        %v3858 = vand.u32 %v443, 4294901760
        %3859 = vmatpush.msra.mxu0 %v3858
        %v3860 = vand.u32 %v435, 4294901760
        %3861 = vmatpush.msra.mxu0 %v3860
        %v3862 = vand.u32 %v427, 4294901760
        %3863 = vmatpush.msra.mxu0 %v3862
        %v3864 = vand.u32 %v419, 4294901760
        %3865 = vmatpush.msra.mxu0 %v3864
        %v3866 = vand.u32 %v411, 4294901760
        %3867 = vmatpush.msra.mxu0 %v3866
        %v3868 = vand.u32 %v403, 4294901760
        %3869 = vmatpush.msra.mxu0 %v3868
        %v3870 = vand.u32 %v395, 4294901760
        %3871 = vmatpush.msra.mxu0 %v3870
        %v3872 = vand.u32 %v387, 4294901760
        %3873 = vmatpush.msra.mxu0 %v3872
        %v3874 = vand.u32 %v737, 4294901760
        %v3875 = vsub.f32 %v737, %v3874
        %v3876 = vand.u32 %v3875, 4294901760
        %3877 = vmatmul.f32.gmra.mxu0 %v3876
        %v3878 = vpop.f32.mrf.mxu0
        %v3879 = vadd.f32 %v3840, %v3878
        %3880 = vdwg.mxu0
        %v3881 = vand.u32 %v507, 4294901760
        %v3882 = vsub.f32 %v507, %v3881
        %v3883 = vand.u32 %v3882, 4294901760
        %3884 = vmatpush.msra.mxu0 %v3883
        %v3885 = vand.u32 %v499, 4294901760
        %v3886 = vsub.f32 %v499, %v3885
        %v3887 = vand.u32 %v3886, 4294901760
        %3888 = vmatpush.msra.mxu0 %v3887
        %v3889 = vand.u32 %v491, 4294901760
        %v3890 = vsub.f32 %v491, %v3889
        %v3891 = vand.u32 %v3890, 4294901760
        %3892 = vmatpush.msra.mxu0 %v3891
        %v3893 = vand.u32 %v483, 4294901760
        %v3894 = vsub.f32 %v483, %v3893
        %v3895 = vand.u32 %v3894, 4294901760
        %3896 = vmatpush.msra.mxu0 %v3895
        %v3897 = vand.u32 %v475, 4294901760
        %v3898 = vsub.f32 %v475, %v3897
        %v3899 = vand.u32 %v3898, 4294901760
        %3900 = vmatpush.msra.mxu0 %v3899
        %v3901 = vand.u32 %v467, 4294901760
        %v3902 = vsub.f32 %v467, %v3901
        %v3903 = vand.u32 %v3902, 4294901760
        %3904 = vmatpush.msra.mxu0 %v3903
        %v3905 = vand.u32 %v459, 4294901760
        %v3906 = vsub.f32 %v459, %v3905
        %v3907 = vand.u32 %v3906, 4294901760
        %3908 = vmatpush.msra.mxu0 %v3907
        %v3909 = vand.u32 %v451, 4294901760
        %v3910 = vsub.f32 %v451, %v3909
        %v3911 = vand.u32 %v3910, 4294901760
        %3912 = vmatpush.msra.mxu0 %v3911
        %v3913 = vand.u32 %v443, 4294901760
        %v3914 = vsub.f32 %v443, %v3913
        %v3915 = vand.u32 %v3914, 4294901760
        %3916 = vmatpush.msra.mxu0 %v3915
        %v3917 = vand.u32 %v435, 4294901760
        %v3918 = vsub.f32 %v435, %v3917
        %v3919 = vand.u32 %v3918, 4294901760
        %3920 = vmatpush.msra.mxu0 %v3919
        %v3921 = vand.u32 %v427, 4294901760
        %v3922 = vsub.f32 %v427, %v3921
        %v3923 = vand.u32 %v3922, 4294901760
        %3924 = vmatpush.msra.mxu0 %v3923
        %v3925 = vand.u32 %v419, 4294901760
        %v3926 = vsub.f32 %v419, %v3925
        %v3927 = vand.u32 %v3926, 4294901760
        %3928 = vmatpush.msra.mxu0 %v3927
        %v3929 = vand.u32 %v411, 4294901760
        %v3930 = vsub.f32 %v411, %v3929
        %v3931 = vand.u32 %v3930, 4294901760
        %3932 = vmatpush.msra.mxu0 %v3931
        %v3933 = vand.u32 %v403, 4294901760
        %v3934 = vsub.f32 %v403, %v3933
        %v3935 = vand.u32 %v3934, 4294901760
        %3936 = vmatpush.msra.mxu0 %v3935
        %v3937 = vand.u32 %v395, 4294901760
        %v3938 = vsub.f32 %v395, %v3937
        %v3939 = vand.u32 %v3938, 4294901760
        %3940 = vmatpush.msra.mxu0 %v3939
        %v3941 = vand.u32 %v387, 4294901760
        %v3942 = vsub.f32 %v387, %v3941
        %v3943 = vand.u32 %v3942, 4294901760
        %3944 = vmatpush.msra.mxu0 %v3943
        %v3945 = vand.u32 %v737, 4294901760
        %3946 = vmatmul.f32.gmra.mxu0 %v3945
        %v3947 = vpop.f32.mrf.mxu0
        %v3948 = vadd.f32 %v3879, %v3947
        %3949 = vdwg.mxu0
        %v3950 = vand.u32 %v507, 4294901760
        %3951 = vmatpush.msra.mxu0 %v3950
        %v3952 = vand.u32 %v499, 4294901760
        %3953 = vmatpush.msra.mxu0 %v3952
        %v3954 = vand.u32 %v491, 4294901760
        %3955 = vmatpush.msra.mxu0 %v3954
        %v3956 = vand.u32 %v483, 4294901760
        %3957 = vmatpush.msra.mxu0 %v3956
        %v3958 = vand.u32 %v475, 4294901760
        %3959 = vmatpush.msra.mxu0 %v3958
        %v3960 = vand.u32 %v467, 4294901760
        %3961 = vmatpush.msra.mxu0 %v3960
        %v3962 = vand.u32 %v459, 4294901760
        %3963 = vmatpush.msra.mxu0 %v3962
        %v3964 = vand.u32 %v451, 4294901760
        %3965 = vmatpush.msra.mxu0 %v3964
        %v3966 = vand.u32 %v443, 4294901760
        %3967 = vmatpush.msra.mxu0 %v3966
        %v3968 = vand.u32 %v435, 4294901760
        %3969 = vmatpush.msra.mxu0 %v3968
        %v3970 = vand.u32 %v427, 4294901760
        %3971 = vmatpush.msra.mxu0 %v3970
        %v3972 = vand.u32 %v419, 4294901760
        %3973 = vmatpush.msra.mxu0 %v3972
        %v3974 = vand.u32 %v411, 4294901760
        %3975 = vmatpush.msra.mxu0 %v3974
        %v3976 = vand.u32 %v403, 4294901760
        %3977 = vmatpush.msra.mxu0 %v3976
        %v3978 = vand.u32 %v395, 4294901760
        %3979 = vmatpush.msra.mxu0 %v3978
        %v3980 = vand.u32 %v387, 4294901760
        %3981 = vmatpush.msra.mxu0 %v3980
        %v3982 = vand.u32 %v737, 4294901760
        %3983 = vmatmul.f32.gmra.mxu0 %v3982
        %v3984 = vpop.f32.mrf.mxu0
        %v3985 = vadd.f32 %v3948, %v3984
        %3986 = vdwg.mxu0
        %v3987 = vand.u32 %v635, 4294901760
        %3988 = vmatpush.msra.mxu0 %v3987
        %v3989 = vand.u32 %v627, 4294901760
        %3990 = vmatpush.msra.mxu0 %v3989
        %v3991 = vand.u32 %v619, 4294901760
        %3992 = vmatpush.msra.mxu0 %v3991
        %v3993 = vand.u32 %v611, 4294901760
        %3994 = vmatpush.msra.mxu0 %v3993
        %v3995 = vand.u32 %v603, 4294901760
        %3996 = vmatpush.msra.mxu0 %v3995
        %v3997 = vand.u32 %v595, 4294901760
        %3998 = vmatpush.msra.mxu0 %v3997
        %v3999 = vand.u32 %v587, 4294901760
        %4000 = vmatpush.msra.mxu0 %v3999
        %v4001 = vand.u32 %v579, 4294901760
        %4002 = vmatpush.msra.mxu0 %v4001
        %v4003 = vand.u32 %v571, 4294901760
        %4004 = vmatpush.msra.mxu0 %v4003
        %v4005 = vand.u32 %v563, 4294901760
        %4006 = vmatpush.msra.mxu0 %v4005
        %v4007 = vand.u32 %v555, 4294901760
        %4008 = vmatpush.msra.mxu0 %v4007
        %v4009 = vand.u32 %v547, 4294901760
        %4010 = vmatpush.msra.mxu0 %v4009
        %v4011 = vand.u32 %v539, 4294901760
        %4012 = vmatpush.msra.mxu0 %v4011
        %v4013 = vand.u32 %v531, 4294901760
        %4014 = vmatpush.msra.mxu0 %v4013
        %v4015 = vand.u32 %v523, 4294901760
        %4016 = vmatpush.msra.mxu0 %v4015
        %v4017 = vand.u32 %v515, 4294901760
        %4018 = vmatpush.msra.mxu0 %v4017
        %v4019 = vand.u32 %v738, 4294901760
        %v4020 = vsub.f32 %v738, %v4019
        %v4021 = vand.u32 %v4020, 4294901760
        %v4022 = vsub.f32 %v4020, %v4021
        %v4023 = vand.u32 %v4022, 4294901760
        %4024 = vmatmul.f32.gmra.mxu0 %v4023
        %v4025 = vpop.f32.mrf.mxu0
        %v4026 = vadd.f32 %v3985, %v4025
        %4027 = vdwg.mxu0
        %v4028 = vand.u32 %v635, 4294901760
        %v4029 = vsub.f32 %v635, %v4028
        %v4030 = vand.u32 %v4029, 4294901760
        %v4031 = vsub.f32 %v4029, %v4030
        %v4032 = vand.u32 %v4031, 4294901760
        %4033 = vmatpush.msra.mxu0 %v4032
        %v4034 = vand.u32 %v627, 4294901760
        %v4035 = vsub.f32 %v627, %v4034
        %v4036 = vand.u32 %v4035, 4294901760
        %v4037 = vsub.f32 %v4035, %v4036
        %v4038 = vand.u32 %v4037, 4294901760
        %4039 = vmatpush.msra.mxu0 %v4038
        %v4040 = vand.u32 %v619, 4294901760
        %v4041 = vsub.f32 %v619, %v4040
        %v4042 = vand.u32 %v4041, 4294901760
        %v4043 = vsub.f32 %v4041, %v4042
        %v4044 = vand.u32 %v4043, 4294901760
        %4045 = vmatpush.msra.mxu0 %v4044
        %v4046 = vand.u32 %v611, 4294901760
        %v4047 = vsub.f32 %v611, %v4046
        %v4048 = vand.u32 %v4047, 4294901760
        %v4049 = vsub.f32 %v4047, %v4048
        %v4050 = vand.u32 %v4049, 4294901760
        %4051 = vmatpush.msra.mxu0 %v4050
        %v4052 = vand.u32 %v603, 4294901760
        %v4053 = vsub.f32 %v603, %v4052
        %v4054 = vand.u32 %v4053, 4294901760
        %v4055 = vsub.f32 %v4053, %v4054
        %v4056 = vand.u32 %v4055, 4294901760
        %4057 = vmatpush.msra.mxu0 %v4056
        %v4058 = vand.u32 %v595, 4294901760
        %v4059 = vsub.f32 %v595, %v4058
        %v4060 = vand.u32 %v4059, 4294901760
        %v4061 = vsub.f32 %v4059, %v4060
        %v4062 = vand.u32 %v4061, 4294901760
        %4063 = vmatpush.msra.mxu0 %v4062
        %v4064 = vand.u32 %v587, 4294901760
        %v4065 = vsub.f32 %v587, %v4064
        %v4066 = vand.u32 %v4065, 4294901760
        %v4067 = vsub.f32 %v4065, %v4066
        %v4068 = vand.u32 %v4067, 4294901760
        %4069 = vmatpush.msra.mxu0 %v4068
        %v4070 = vand.u32 %v579, 4294901760
        %v4071 = vsub.f32 %v579, %v4070
        %v4072 = vand.u32 %v4071, 4294901760
        %v4073 = vsub.f32 %v4071, %v4072
        %v4074 = vand.u32 %v4073, 4294901760
        %4075 = vmatpush.msra.mxu0 %v4074
        %v4076 = vand.u32 %v571, 4294901760
        %v4077 = vsub.f32 %v571, %v4076
        %v4078 = vand.u32 %v4077, 4294901760
        %v4079 = vsub.f32 %v4077, %v4078
        %v4080 = vand.u32 %v4079, 4294901760
        %4081 = vmatpush.msra.mxu0 %v4080
        %v4082 = vand.u32 %v563, 4294901760
        %v4083 = vsub.f32 %v563, %v4082
        %v4084 = vand.u32 %v4083, 4294901760
        %v4085 = vsub.f32 %v4083, %v4084
        %v4086 = vand.u32 %v4085, 4294901760
        %4087 = vmatpush.msra.mxu0 %v4086
        %v4088 = vand.u32 %v555, 4294901760
        %v4089 = vsub.f32 %v555, %v4088
        %v4090 = vand.u32 %v4089, 4294901760
        %v4091 = vsub.f32 %v4089, %v4090
        %v4092 = vand.u32 %v4091, 4294901760
        %4093 = vmatpush.msra.mxu0 %v4092
        %v4094 = vand.u32 %v547, 4294901760
        %v4095 = vsub.f32 %v547, %v4094
        %v4096 = vand.u32 %v4095, 4294901760
        %v4097 = vsub.f32 %v4095, %v4096
        %v4098 = vand.u32 %v4097, 4294901760
        %4099 = vmatpush.msra.mxu0 %v4098
        %v4100 = vand.u32 %v539, 4294901760
        %v4101 = vsub.f32 %v539, %v4100
        %v4102 = vand.u32 %v4101, 4294901760
        %v4103 = vsub.f32 %v4101, %v4102
        %v4104 = vand.u32 %v4103, 4294901760
        %4105 = vmatpush.msra.mxu0 %v4104
        %v4106 = vand.u32 %v531, 4294901760
        %v4107 = vsub.f32 %v531, %v4106
        %v4108 = vand.u32 %v4107, 4294901760
        %v4109 = vsub.f32 %v4107, %v4108
        %v4110 = vand.u32 %v4109, 4294901760
        %4111 = vmatpush.msra.mxu0 %v4110
        %v4112 = vand.u32 %v523, 4294901760
        %v4113 = vsub.f32 %v523, %v4112
        %v4114 = vand.u32 %v4113, 4294901760
        %v4115 = vsub.f32 %v4113, %v4114
        %v4116 = vand.u32 %v4115, 4294901760
        %4117 = vmatpush.msra.mxu0 %v4116
        %v4118 = vand.u32 %v515, 4294901760
        %v4119 = vsub.f32 %v515, %v4118
        %v4120 = vand.u32 %v4119, 4294901760
        %v4121 = vsub.f32 %v4119, %v4120
        %v4122 = vand.u32 %v4121, 4294901760
        %4123 = vmatpush.msra.mxu0 %v4122
        %v4124 = vand.u32 %v738, 4294901760
        %4125 = vmatmul.f32.gmra.mxu0 %v4124
        %v4126 = vpop.f32.mrf.mxu0
        %v4127 = vadd.f32 %v4026, %v4126
        %4128 = vdwg.mxu0
        %v4129 = vand.u32 %v635, 4294901760
        %v4130 = vsub.f32 %v635, %v4129
        %4131 = vmatpush.msra.mxu0 %v4130
        %v4132 = vand.u32 %v627, 4294901760
        %v4133 = vsub.f32 %v627, %v4132
        %4134 = vmatpush.msra.mxu0 %v4133
        %v4135 = vand.u32 %v619, 4294901760
        %v4136 = vsub.f32 %v619, %v4135
        %4137 = vmatpush.msra.mxu0 %v4136
        %v4138 = vand.u32 %v611, 4294901760
        %v4139 = vsub.f32 %v611, %v4138
        %4140 = vmatpush.msra.mxu0 %v4139
        %v4141 = vand.u32 %v603, 4294901760
        %v4142 = vsub.f32 %v603, %v4141
        %4143 = vmatpush.msra.mxu0 %v4142
        %v4144 = vand.u32 %v595, 4294901760
        %v4145 = vsub.f32 %v595, %v4144
        %4146 = vmatpush.msra.mxu0 %v4145
        %v4147 = vand.u32 %v587, 4294901760
        %v4148 = vsub.f32 %v587, %v4147
        %4149 = vmatpush.msra.mxu0 %v4148
        %v4150 = vand.u32 %v579, 4294901760
        %v4151 = vsub.f32 %v579, %v4150
        %4152 = vmatpush.msra.mxu0 %v4151
        %v4153 = vand.u32 %v571, 4294901760
        %v4154 = vsub.f32 %v571, %v4153
        %4155 = vmatpush.msra.mxu0 %v4154
        %v4156 = vand.u32 %v563, 4294901760
        %v4157 = vsub.f32 %v563, %v4156
        %4158 = vmatpush.msra.mxu0 %v4157
        %v4159 = vand.u32 %v555, 4294901760
        %v4160 = vsub.f32 %v555, %v4159
        %4161 = vmatpush.msra.mxu0 %v4160
        %v4162 = vand.u32 %v547, 4294901760
        %v4163 = vsub.f32 %v547, %v4162
        %4164 = vmatpush.msra.mxu0 %v4163
        %v4165 = vand.u32 %v539, 4294901760
        %v4166 = vsub.f32 %v539, %v4165
        %4167 = vmatpush.msra.mxu0 %v4166
        %v4168 = vand.u32 %v531, 4294901760
        %v4169 = vsub.f32 %v531, %v4168
        %4170 = vmatpush.msra.mxu0 %v4169
        %v4171 = vand.u32 %v523, 4294901760
        %v4172 = vsub.f32 %v523, %v4171
        %4173 = vmatpush.msra.mxu0 %v4172
        %v4174 = vand.u32 %v515, 4294901760
        %v4175 = vsub.f32 %v515, %v4174
        %4176 = vmatpush.msra.mxu0 %v4175
        %v4177 = vand.u32 %v738, 4294901760
        %v4178 = vsub.f32 %v738, %v4177
        %4179 = vmatmul.f32.gmra.mxu0 %v4178
        %v4180 = vpop.f32.mrf.mxu0
        %v4181 = vadd.f32 %v4127, %v4180
        %4182 = vdwg.mxu0
        %v4183 = vand.u32 %v635, 4294901760
        %4184 = vmatpush.msra.mxu0 %v4183
        %v4185 = vand.u32 %v627, 4294901760
        %4186 = vmatpush.msra.mxu0 %v4185
        %v4187 = vand.u32 %v619, 4294901760
        %4188 = vmatpush.msra.mxu0 %v4187
        %v4189 = vand.u32 %v611, 4294901760
        %4190 = vmatpush.msra.mxu0 %v4189
        %v4191 = vand.u32 %v603, 4294901760
        %4192 = vmatpush.msra.mxu0 %v4191
        %v4193 = vand.u32 %v595, 4294901760
        %4194 = vmatpush.msra.mxu0 %v4193
        %v4195 = vand.u32 %v587, 4294901760
        %4196 = vmatpush.msra.mxu0 %v4195
        %v4197 = vand.u32 %v579, 4294901760
        %4198 = vmatpush.msra.mxu0 %v4197
        %v4199 = vand.u32 %v571, 4294901760
        %4200 = vmatpush.msra.mxu0 %v4199
        %v4201 = vand.u32 %v563, 4294901760
        %4202 = vmatpush.msra.mxu0 %v4201
        %v4203 = vand.u32 %v555, 4294901760
        %4204 = vmatpush.msra.mxu0 %v4203
        %v4205 = vand.u32 %v547, 4294901760
        %4206 = vmatpush.msra.mxu0 %v4205
        %v4207 = vand.u32 %v539, 4294901760
        %4208 = vmatpush.msra.mxu0 %v4207
        %v4209 = vand.u32 %v531, 4294901760
        %4210 = vmatpush.msra.mxu0 %v4209
        %v4211 = vand.u32 %v523, 4294901760
        %4212 = vmatpush.msra.mxu0 %v4211
        %v4213 = vand.u32 %v515, 4294901760
        %4214 = vmatpush.msra.mxu0 %v4213
        %v4215 = vand.u32 %v738, 4294901760
        %v4216 = vsub.f32 %v738, %v4215
        %v4217 = vand.u32 %v4216, 4294901760
        %4218 = vmatmul.f32.gmra.mxu0 %v4217
        %v4219 = vpop.f32.mrf.mxu0
        %v4220 = vadd.f32 %v4181, %v4219
        %4221 = vdwg.mxu0
        %v4222 = vand.u32 %v635, 4294901760
        %v4223 = vsub.f32 %v635, %v4222
        %v4224 = vand.u32 %v4223, 4294901760
        %4225 = vmatpush.msra.mxu0 %v4224
        %v4226 = vand.u32 %v627, 4294901760
        %v4227 = vsub.f32 %v627, %v4226
        %v4228 = vand.u32 %v4227, 4294901760
        %4229 = vmatpush.msra.mxu0 %v4228
        %v4230 = vand.u32 %v619, 4294901760
        %v4231 = vsub.f32 %v619, %v4230
        %v4232 = vand.u32 %v4231, 4294901760
        %4233 = vmatpush.msra.mxu0 %v4232
        %v4234 = vand.u32 %v611, 4294901760
        %v4235 = vsub.f32 %v611, %v4234
        %v4236 = vand.u32 %v4235, 4294901760
        %4237 = vmatpush.msra.mxu0 %v4236
        %v4238 = vand.u32 %v603, 4294901760
        %v4239 = vsub.f32 %v603, %v4238
        %v4240 = vand.u32 %v4239, 4294901760
        %4241 = vmatpush.msra.mxu0 %v4240
        %v4242 = vand.u32 %v595, 4294901760
        %v4243 = vsub.f32 %v595, %v4242
        %v4244 = vand.u32 %v4243, 4294901760
        %4245 = vmatpush.msra.mxu0 %v4244
        %v4246 = vand.u32 %v587, 4294901760
        %v4247 = vsub.f32 %v587, %v4246
        %v4248 = vand.u32 %v4247, 4294901760
        %4249 = vmatpush.msra.mxu0 %v4248
        %v4250 = vand.u32 %v579, 4294901760
        %v4251 = vsub.f32 %v579, %v4250
        %v4252 = vand.u32 %v4251, 4294901760
        %4253 = vmatpush.msra.mxu0 %v4252
        %v4254 = vand.u32 %v571, 4294901760
        %v4255 = vsub.f32 %v571, %v4254
        %v4256 = vand.u32 %v4255, 4294901760
        %4257 = vmatpush.msra.mxu0 %v4256
        %v4258 = vand.u32 %v563, 4294901760
        %v4259 = vsub.f32 %v563, %v4258
        %v4260 = vand.u32 %v4259, 4294901760
        %4261 = vmatpush.msra.mxu0 %v4260
        %v4262 = vand.u32 %v555, 4294901760
        %v4263 = vsub.f32 %v555, %v4262
        %v4264 = vand.u32 %v4263, 4294901760
        %4265 = vmatpush.msra.mxu0 %v4264
        %v4266 = vand.u32 %v547, 4294901760
        %v4267 = vsub.f32 %v547, %v4266
        %v4268 = vand.u32 %v4267, 4294901760
        %4269 = vmatpush.msra.mxu0 %v4268
        %v4270 = vand.u32 %v539, 4294901760
        %v4271 = vsub.f32 %v539, %v4270
        %v4272 = vand.u32 %v4271, 4294901760
        %4273 = vmatpush.msra.mxu0 %v4272
        %v4274 = vand.u32 %v531, 4294901760
        %v4275 = vsub.f32 %v531, %v4274
        %v4276 = vand.u32 %v4275, 4294901760
        %4277 = vmatpush.msra.mxu0 %v4276
        %v4278 = vand.u32 %v523, 4294901760
        %v4279 = vsub.f32 %v523, %v4278
        %v4280 = vand.u32 %v4279, 4294901760
        %4281 = vmatpush.msra.mxu0 %v4280
        %v4282 = vand.u32 %v515, 4294901760
        %v4283 = vsub.f32 %v515, %v4282
        %v4284 = vand.u32 %v4283, 4294901760
        %4285 = vmatpush.msra.mxu0 %v4284
        %v4286 = vand.u32 %v738, 4294901760
        %4287 = vmatmul.f32.gmra.mxu0 %v4286
        %v4288 = vpop.f32.mrf.mxu0
        %v4289 = vadd.f32 %v4220, %v4288
        %4290 = vdwg.mxu0
        %v4291 = vand.u32 %v635, 4294901760
        %4292 = vmatpush.msra.mxu0 %v4291
        %v4293 = vand.u32 %v627, 4294901760
        %4294 = vmatpush.msra.mxu0 %v4293
        %v4295 = vand.u32 %v619, 4294901760
        %4296 = vmatpush.msra.mxu0 %v4295
        %v4297 = vand.u32 %v611, 4294901760
        %4298 = vmatpush.msra.mxu0 %v4297
        %v4299 = vand.u32 %v603, 4294901760
        %4300 = vmatpush.msra.mxu0 %v4299
        %v4301 = vand.u32 %v595, 4294901760
        %4302 = vmatpush.msra.mxu0 %v4301
        %v4303 = vand.u32 %v587, 4294901760
        %4304 = vmatpush.msra.mxu0 %v4303
        %v4305 = vand.u32 %v579, 4294901760
        %4306 = vmatpush.msra.mxu0 %v4305
        %v4307 = vand.u32 %v571, 4294901760
        %4308 = vmatpush.msra.mxu0 %v4307
        %v4309 = vand.u32 %v563, 4294901760
        %4310 = vmatpush.msra.mxu0 %v4309
        %v4311 = vand.u32 %v555, 4294901760
        %4312 = vmatpush.msra.mxu0 %v4311
        %v4313 = vand.u32 %v547, 4294901760
        %4314 = vmatpush.msra.mxu0 %v4313
        %v4315 = vand.u32 %v539, 4294901760
        %4316 = vmatpush.msra.mxu0 %v4315
        %v4317 = vand.u32 %v531, 4294901760
        %4318 = vmatpush.msra.mxu0 %v4317
        %v4319 = vand.u32 %v523, 4294901760
        %4320 = vmatpush.msra.mxu0 %v4319
        %v4321 = vand.u32 %v515, 4294901760
        %4322 = vmatpush.msra.mxu0 %v4321
        %v4323 = vand.u32 %v738, 4294901760
        %4324 = vmatmul.f32.gmra.mxu0 %v4323
        %v4325 = vpop.f32.mrf.mxu0
        %v4326 = vadd.f32 %v4289, %v4325
        %4327 = vdwg.mxu0
        %4328 = vmatpush.msra.mxu0 0.0
        %4329 = vmatpush.msra.mxu0 0.0
        %4330 = vmatpush.msra.mxu0 0.0
        %4331 = vmatpush.msra.mxu0 0.0
        %4332 = vmatpush.msra.mxu0 0.0
        %v4333 = vand.u32 %v723, 4294901760
        %4334 = vmatpush.msra.mxu0 %v4333
        %v4335 = vand.u32 %v715, 4294901760
        %4336 = vmatpush.msra.mxu0 %v4335
        %v4337 = vand.u32 %v707, 4294901760
        %4338 = vmatpush.msra.mxu0 %v4337
        %v4339 = vand.u32 %v699, 4294901760
        %4340 = vmatpush.msra.mxu0 %v4339
        %v4341 = vand.u32 %v691, 4294901760
        %4342 = vmatpush.msra.mxu0 %v4341
        %v4343 = vand.u32 %v683, 4294901760
        %4344 = vmatpush.msra.mxu0 %v4343
        %v4345 = vand.u32 %v675, 4294901760
        %4346 = vmatpush.msra.mxu0 %v4345
        %v4347 = vand.u32 %v667, 4294901760
        %4348 = vmatpush.msra.mxu0 %v4347
        %v4349 = vand.u32 %v659, 4294901760
        %4350 = vmatpush.msra.mxu0 %v4349
        %v4351 = vand.u32 %v651, 4294901760
        %4352 = vmatpush.msra.mxu0 %v4351
        %v4353 = vand.u32 %v643, 4294901760
        %4354 = vmatpush.msra.mxu0 %v4353
        %v4355 = vand.u32 %v770, 4294901760
        %v4356 = vsub.f32 %v770, %v4355
        %v4357 = vand.u32 %v4356, 4294901760
        %v4358 = vsub.f32 %v4356, %v4357
        %v4359 = vand.u32 %v4358, 4294901760
        %4360 = vmatmul.f32.gmra.mxu0 %v4359
        %v4361 = vpop.f32.mrf.mxu0
        %v4362 = vadd.f32 %v4326, %v4361
        %4363 = vdwg.mxu0
        %4364 = vmatpush.msra.mxu0 0.0
        %4365 = vmatpush.msra.mxu0 0.0
        %4366 = vmatpush.msra.mxu0 0.0
        %4367 = vmatpush.msra.mxu0 0.0
        %4368 = vmatpush.msra.mxu0 0.0
        %v4369 = vand.u32 %v723, 4294901760
        %v4370 = vsub.f32 %v723, %v4369
        %v4371 = vand.u32 %v4370, 4294901760
        %v4372 = vsub.f32 %v4370, %v4371
        %v4373 = vand.u32 %v4372, 4294901760
        %4374 = vmatpush.msra.mxu0 %v4373
        %v4375 = vand.u32 %v715, 4294901760
        %v4376 = vsub.f32 %v715, %v4375
        %v4377 = vand.u32 %v4376, 4294901760
        %v4378 = vsub.f32 %v4376, %v4377
        %v4379 = vand.u32 %v4378, 4294901760
        %4380 = vmatpush.msra.mxu0 %v4379
        %v4381 = vand.u32 %v707, 4294901760
        %v4382 = vsub.f32 %v707, %v4381
        %v4383 = vand.u32 %v4382, 4294901760
        %v4384 = vsub.f32 %v4382, %v4383
        %v4385 = vand.u32 %v4384, 4294901760
        %4386 = vmatpush.msra.mxu0 %v4385
        %v4387 = vand.u32 %v699, 4294901760
        %v4388 = vsub.f32 %v699, %v4387
        %v4389 = vand.u32 %v4388, 4294901760
        %v4390 = vsub.f32 %v4388, %v4389
        %v4391 = vand.u32 %v4390, 4294901760
        %4392 = vmatpush.msra.mxu0 %v4391
        %v4393 = vand.u32 %v691, 4294901760
        %v4394 = vsub.f32 %v691, %v4393
        %v4395 = vand.u32 %v4394, 4294901760
        %v4396 = vsub.f32 %v4394, %v4395
        %v4397 = vand.u32 %v4396, 4294901760
        %4398 = vmatpush.msra.mxu0 %v4397
        %v4399 = vand.u32 %v683, 4294901760
        %v4400 = vsub.f32 %v683, %v4399
        %v4401 = vand.u32 %v4400, 4294901760
        %v4402 = vsub.f32 %v4400, %v4401
        %v4403 = vand.u32 %v4402, 4294901760
        %4404 = vmatpush.msra.mxu0 %v4403
        %v4405 = vand.u32 %v675, 4294901760
        %v4406 = vsub.f32 %v675, %v4405
        %v4407 = vand.u32 %v4406, 4294901760
        %v4408 = vsub.f32 %v4406, %v4407
        %v4409 = vand.u32 %v4408, 4294901760
        %4410 = vmatpush.msra.mxu0 %v4409
        %v4411 = vand.u32 %v667, 4294901760
        %v4412 = vsub.f32 %v667, %v4411
        %v4413 = vand.u32 %v4412, 4294901760
        %v4414 = vsub.f32 %v4412, %v4413
        %v4415 = vand.u32 %v4414, 4294901760
        %4416 = vmatpush.msra.mxu0 %v4415
        %v4417 = vand.u32 %v659, 4294901760
        %v4418 = vsub.f32 %v659, %v4417
        %v4419 = vand.u32 %v4418, 4294901760
        %v4420 = vsub.f32 %v4418, %v4419
        %v4421 = vand.u32 %v4420, 4294901760
        %4422 = vmatpush.msra.mxu0 %v4421
        %v4423 = vand.u32 %v651, 4294901760
        %v4424 = vsub.f32 %v651, %v4423
        %v4425 = vand.u32 %v4424, 4294901760
        %v4426 = vsub.f32 %v4424, %v4425
        %v4427 = vand.u32 %v4426, 4294901760
        %4428 = vmatpush.msra.mxu0 %v4427
        %v4429 = vand.u32 %v643, 4294901760
        %v4430 = vsub.f32 %v643, %v4429
        %v4431 = vand.u32 %v4430, 4294901760
        %v4432 = vsub.f32 %v4430, %v4431
        %v4433 = vand.u32 %v4432, 4294901760
        %4434 = vmatpush.msra.mxu0 %v4433
        %v4435 = vand.u32 %v770, 4294901760
        %4436 = vmatmul.f32.gmra.mxu0 %v4435
        %v4437 = vpop.f32.mrf.mxu0
        %v4438 = vadd.f32 %v4362, %v4437
        %4439 = vdwg.mxu0
        %4440 = vmatpush.msra.mxu0 0.0
        %4441 = vmatpush.msra.mxu0 0.0
        %4442 = vmatpush.msra.mxu0 0.0
        %4443 = vmatpush.msra.mxu0 0.0
        %4444 = vmatpush.msra.mxu0 0.0
        %v4445 = vand.u32 %v723, 4294901760
        %v4446 = vsub.f32 %v723, %v4445
        %4447 = vmatpush.msra.mxu0 %v4446
        %v4448 = vand.u32 %v715, 4294901760
        %v4449 = vsub.f32 %v715, %v4448
        %4450 = vmatpush.msra.mxu0 %v4449
        %v4451 = vand.u32 %v707, 4294901760
        %v4452 = vsub.f32 %v707, %v4451
        %4453 = vmatpush.msra.mxu0 %v4452
        %v4454 = vand.u32 %v699, 4294901760
        %v4455 = vsub.f32 %v699, %v4454
        %4456 = vmatpush.msra.mxu0 %v4455
        %v4457 = vand.u32 %v691, 4294901760
        %v4458 = vsub.f32 %v691, %v4457
        %4459 = vmatpush.msra.mxu0 %v4458
        %v4460 = vand.u32 %v683, 4294901760
        %v4461 = vsub.f32 %v683, %v4460
        %4462 = vmatpush.msra.mxu0 %v4461
        %v4463 = vand.u32 %v675, 4294901760
        %v4464 = vsub.f32 %v675, %v4463
        %4465 = vmatpush.msra.mxu0 %v4464
        %v4466 = vand.u32 %v667, 4294901760
        %v4467 = vsub.f32 %v667, %v4466
        %4468 = vmatpush.msra.mxu0 %v4467
        %v4469 = vand.u32 %v659, 4294901760
        %v4470 = vsub.f32 %v659, %v4469
        %4471 = vmatpush.msra.mxu0 %v4470
        %v4472 = vand.u32 %v651, 4294901760
        %v4473 = vsub.f32 %v651, %v4472
        %4474 = vmatpush.msra.mxu0 %v4473
        %v4475 = vand.u32 %v643, 4294901760
        %v4476 = vsub.f32 %v643, %v4475
        %4477 = vmatpush.msra.mxu0 %v4476
        %v4478 = vand.u32 %v770, 4294901760
        %v4479 = vsub.f32 %v770, %v4478
        %4480 = vmatmul.f32.gmra.mxu0 %v4479
        %v4481 = vpop.f32.mrf.mxu0
        %v4482 = vadd.f32 %v4438, %v4481
        %4483 = vdwg.mxu0
        %4484 = vmatpush.msra.mxu0 0.0
        %4485 = vmatpush.msra.mxu0 0.0
        %4486 = vmatpush.msra.mxu0 0.0
        %4487 = vmatpush.msra.mxu0 0.0
        %4488 = vmatpush.msra.mxu0 0.0
        %v4489 = vand.u32 %v723, 4294901760
        %4490 = vmatpush.msra.mxu0 %v4489
        %v4491 = vand.u32 %v715, 4294901760
        %4492 = vmatpush.msra.mxu0 %v4491
        %v4493 = vand.u32 %v707, 4294901760
        %4494 = vmatpush.msra.mxu0 %v4493
        %v4495 = vand.u32 %v699, 4294901760
        %4496 = vmatpush.msra.mxu0 %v4495
        %v4497 = vand.u32 %v691, 4294901760
        %4498 = vmatpush.msra.mxu0 %v4497
        %v4499 = vand.u32 %v683, 4294901760
        %4500 = vmatpush.msra.mxu0 %v4499
        %v4501 = vand.u32 %v675, 4294901760
        %4502 = vmatpush.msra.mxu0 %v4501
        %v4503 = vand.u32 %v667, 4294901760
        %4504 = vmatpush.msra.mxu0 %v4503
        %v4505 = vand.u32 %v659, 4294901760
        %4506 = vmatpush.msra.mxu0 %v4505
        %v4507 = vand.u32 %v651, 4294901760
        %4508 = vmatpush.msra.mxu0 %v4507
        %v4509 = vand.u32 %v643, 4294901760
        %4510 = vmatpush.msra.mxu0 %v4509
        %v4511 = vand.u32 %v770, 4294901760
        %v4512 = vsub.f32 %v770, %v4511
        %v4513 = vand.u32 %v4512, 4294901760
        %4514 = vmatmul.f32.gmra.mxu0 %v4513
        %v4515 = vpop.f32.mrf.mxu0
        %v4516 = vadd.f32 %v4482, %v4515
        %4517 = vdwg.mxu0
        %4518 = vmatpush.msra.mxu0 0.0
        %4519 = vmatpush.msra.mxu0 0.0
        %4520 = vmatpush.msra.mxu0 0.0
        %4521 = vmatpush.msra.mxu0 0.0
        %4522 = vmatpush.msra.mxu0 0.0
        %v4523 = vand.u32 %v723, 4294901760
        %v4524 = vsub.f32 %v723, %v4523
        %v4525 = vand.u32 %v4524, 4294901760
        %4526 = vmatpush.msra.mxu0 %v4525
        %v4527 = vand.u32 %v715, 4294901760
        %v4528 = vsub.f32 %v715, %v4527
        %v4529 = vand.u32 %v4528, 4294901760
        %4530 = vmatpush.msra.mxu0 %v4529
        %v4531 = vand.u32 %v707, 4294901760
        %v4532 = vsub.f32 %v707, %v4531
        %v4533 = vand.u32 %v4532, 4294901760
        %4534 = vmatpush.msra.mxu0 %v4533
        %v4535 = vand.u32 %v699, 4294901760
        %v4536 = vsub.f32 %v699, %v4535
        %v4537 = vand.u32 %v4536, 4294901760
        %4538 = vmatpush.msra.mxu0 %v4537
        %v4539 = vand.u32 %v691, 4294901760
        %v4540 = vsub.f32 %v691, %v4539
        %v4541 = vand.u32 %v4540, 4294901760
        %4542 = vmatpush.msra.mxu0 %v4541
        %v4543 = vand.u32 %v683, 4294901760
        %v4544 = vsub.f32 %v683, %v4543
        %v4545 = vand.u32 %v4544, 4294901760
        %4546 = vmatpush.msra.mxu0 %v4545
        %v4547 = vand.u32 %v675, 4294901760
        %v4548 = vsub.f32 %v675, %v4547
        %v4549 = vand.u32 %v4548, 4294901760
        %4550 = vmatpush.msra.mxu0 %v4549
        %v4551 = vand.u32 %v667, 4294901760
        %v4552 = vsub.f32 %v667, %v4551
        %v4553 = vand.u32 %v4552, 4294901760
        %4554 = vmatpush.msra.mxu0 %v4553
        %v4555 = vand.u32 %v659, 4294901760
        %v4556 = vsub.f32 %v659, %v4555
        %v4557 = vand.u32 %v4556, 4294901760
        %4558 = vmatpush.msra.mxu0 %v4557
        %v4559 = vand.u32 %v651, 4294901760
        %v4560 = vsub.f32 %v651, %v4559
        %v4561 = vand.u32 %v4560, 4294901760
        %4562 = vmatpush.msra.mxu0 %v4561
        %v4563 = vand.u32 %v643, 4294901760
        %v4564 = vsub.f32 %v643, %v4563
        %v4565 = vand.u32 %v4564, 4294901760
        %4566 = vmatpush.msra.mxu0 %v4565
        %v4567 = vand.u32 %v770, 4294901760
        %4568 = vmatmul.f32.gmra.mxu0 %v4567
        %v4569 = vpop.f32.mrf.mxu0
        %v4570 = vadd.f32 %v4516, %v4569
        %4571 = vdwg.mxu0
        %4572 = vmatpush.msra.mxu0 0.0
        %4573 = vmatpush.msra.mxu0 0.0
        %4574 = vmatpush.msra.mxu0 0.0
        %4575 = vmatpush.msra.mxu0 0.0
        %4576 = vmatpush.msra.mxu0 0.0
        %v4577 = vand.u32 %v723, 4294901760
        %4578 = vmatpush.msra.mxu0 %v4577
        %v4579 = vand.u32 %v715, 4294901760
        %4580 = vmatpush.msra.mxu0 %v4579
        %v4581 = vand.u32 %v707, 4294901760
        %4582 = vmatpush.msra.mxu0 %v4581
        %v4583 = vand.u32 %v699, 4294901760
        %4584 = vmatpush.msra.mxu0 %v4583
        %v4585 = vand.u32 %v691, 4294901760
        %4586 = vmatpush.msra.mxu0 %v4585
        %v4587 = vand.u32 %v683, 4294901760
        %4588 = vmatpush.msra.mxu0 %v4587
        %v4589 = vand.u32 %v675, 4294901760
        %4590 = vmatpush.msra.mxu0 %v4589
        %v4591 = vand.u32 %v667, 4294901760
        %4592 = vmatpush.msra.mxu0 %v4591
        %v4593 = vand.u32 %v659, 4294901760
        %4594 = vmatpush.msra.mxu0 %v4593
        %v4595 = vand.u32 %v651, 4294901760
        %4596 = vmatpush.msra.mxu0 %v4595
        %v4597 = vand.u32 %v643, 4294901760
        %4598 = vmatpush.msra.mxu0 %v4597
        %v4599 = vand.u32 %v770, 4294901760
        %4600 = vmatmul.f32.gmra.mxu0 %v4599
        %v4601 = vpop.f32.mrf.mxu0
        %v4602 = vadd.f32 %v4570, %v4601
        %4603 = vdwg.mxu0
        %v4604 = vand.u32 %v508, 4294901760
        %4605 = vmatpush.msra.mxu0 %v4604
        %v4606 = vand.u32 %v500, 4294901760
        %4607 = vmatpush.msra.mxu0 %v4606
        %v4608 = vand.u32 %v492, 4294901760
        %4609 = vmatpush.msra.mxu0 %v4608
        %v4610 = vand.u32 %v484, 4294901760
        %4611 = vmatpush.msra.mxu0 %v4610
        %v4612 = vand.u32 %v476, 4294901760
        %4613 = vmatpush.msra.mxu0 %v4612
        %v4614 = vand.u32 %v468, 4294901760
        %4615 = vmatpush.msra.mxu0 %v4614
        %v4616 = vand.u32 %v460, 4294901760
        %4617 = vmatpush.msra.mxu0 %v4616
        %v4618 = vand.u32 %v452, 4294901760
        %4619 = vmatpush.msra.mxu0 %v4618
        %v4620 = vand.u32 %v444, 4294901760
        %4621 = vmatpush.msra.mxu0 %v4620
        %v4622 = vand.u32 %v436, 4294901760
        %4623 = vmatpush.msra.mxu0 %v4622
        %v4624 = vand.u32 %v428, 4294901760
        %4625 = vmatpush.msra.mxu0 %v4624
        %v4626 = vand.u32 %v420, 4294901760
        %4627 = vmatpush.msra.mxu0 %v4626
        %v4628 = vand.u32 %v412, 4294901760
        %4629 = vmatpush.msra.mxu0 %v4628
        %v4630 = vand.u32 %v404, 4294901760
        %4631 = vmatpush.msra.mxu0 %v4630
        %v4632 = vand.u32 %v396, 4294901760
        %4633 = vmatpush.msra.mxu0 %v4632
        %v4634 = vand.u32 %v388, 4294901760
        %4635 = vmatpush.msra.mxu0 %v4634
        %v4636 = vand.u32 %v737, 4294901760
        %v4637 = vsub.f32 %v737, %v4636
        %v4638 = vand.u32 %v4637, 4294901760
        %v4639 = vsub.f32 %v4637, %v4638
        %v4640 = vand.u32 %v4639, 4294901760
        %4641 = vmatmul.f32.gmra.mxu0 %v4640
        %v4642 = vpop.f32.mrf.mxu0
        %v4643 = vadd.f32 %v757, %v4642
        %4644 = vdwg.mxu0
        %v4645 = vand.u32 %v508, 4294901760
        %v4646 = vsub.f32 %v508, %v4645
        %v4647 = vand.u32 %v4646, 4294901760
        %v4648 = vsub.f32 %v4646, %v4647
        %v4649 = vand.u32 %v4648, 4294901760
        %4650 = vmatpush.msra.mxu0 %v4649
        %v4651 = vand.u32 %v500, 4294901760
        %v4652 = vsub.f32 %v500, %v4651
        %v4653 = vand.u32 %v4652, 4294901760
        %v4654 = vsub.f32 %v4652, %v4653
        %v4655 = vand.u32 %v4654, 4294901760
        %4656 = vmatpush.msra.mxu0 %v4655
        %v4657 = vand.u32 %v492, 4294901760
        %v4658 = vsub.f32 %v492, %v4657
        %v4659 = vand.u32 %v4658, 4294901760
        %v4660 = vsub.f32 %v4658, %v4659
        %v4661 = vand.u32 %v4660, 4294901760
        %4662 = vmatpush.msra.mxu0 %v4661
        %v4663 = vand.u32 %v484, 4294901760
        %v4664 = vsub.f32 %v484, %v4663
        %v4665 = vand.u32 %v4664, 4294901760
        %v4666 = vsub.f32 %v4664, %v4665
        %v4667 = vand.u32 %v4666, 4294901760
        %4668 = vmatpush.msra.mxu0 %v4667
        %v4669 = vand.u32 %v476, 4294901760
        %v4670 = vsub.f32 %v476, %v4669
        %v4671 = vand.u32 %v4670, 4294901760
        %v4672 = vsub.f32 %v4670, %v4671
        %v4673 = vand.u32 %v4672, 4294901760
        %4674 = vmatpush.msra.mxu0 %v4673
        %v4675 = vand.u32 %v468, 4294901760
        %v4676 = vsub.f32 %v468, %v4675
        %v4677 = vand.u32 %v4676, 4294901760
        %v4678 = vsub.f32 %v4676, %v4677
        %v4679 = vand.u32 %v4678, 4294901760
        %4680 = vmatpush.msra.mxu0 %v4679
        %v4681 = vand.u32 %v460, 4294901760
        %v4682 = vsub.f32 %v460, %v4681
        %v4683 = vand.u32 %v4682, 4294901760
        %v4684 = vsub.f32 %v4682, %v4683
        %v4685 = vand.u32 %v4684, 4294901760
        %4686 = vmatpush.msra.mxu0 %v4685
        %v4687 = vand.u32 %v452, 4294901760
        %v4688 = vsub.f32 %v452, %v4687
        %v4689 = vand.u32 %v4688, 4294901760
        %v4690 = vsub.f32 %v4688, %v4689
        %v4691 = vand.u32 %v4690, 4294901760
        %4692 = vmatpush.msra.mxu0 %v4691
        %v4693 = vand.u32 %v444, 4294901760
        %v4694 = vsub.f32 %v444, %v4693
        %v4695 = vand.u32 %v4694, 4294901760
        %v4696 = vsub.f32 %v4694, %v4695
        %v4697 = vand.u32 %v4696, 4294901760
        %4698 = vmatpush.msra.mxu0 %v4697
        %v4699 = vand.u32 %v436, 4294901760
        %v4700 = vsub.f32 %v436, %v4699
        %v4701 = vand.u32 %v4700, 4294901760
        %v4702 = vsub.f32 %v4700, %v4701
        %v4703 = vand.u32 %v4702, 4294901760
        %4704 = vmatpush.msra.mxu0 %v4703
        %v4705 = vand.u32 %v428, 4294901760
        %v4706 = vsub.f32 %v428, %v4705
        %v4707 = vand.u32 %v4706, 4294901760
        %v4708 = vsub.f32 %v4706, %v4707
        %v4709 = vand.u32 %v4708, 4294901760
        %4710 = vmatpush.msra.mxu0 %v4709
        %v4711 = vand.u32 %v420, 4294901760
        %v4712 = vsub.f32 %v420, %v4711
        %v4713 = vand.u32 %v4712, 4294901760
        %v4714 = vsub.f32 %v4712, %v4713
        %v4715 = vand.u32 %v4714, 4294901760
        %4716 = vmatpush.msra.mxu0 %v4715
        %v4717 = vand.u32 %v412, 4294901760
        %v4718 = vsub.f32 %v412, %v4717
        %v4719 = vand.u32 %v4718, 4294901760
        %v4720 = vsub.f32 %v4718, %v4719
        %v4721 = vand.u32 %v4720, 4294901760
        %4722 = vmatpush.msra.mxu0 %v4721
        %v4723 = vand.u32 %v404, 4294901760
        %v4724 = vsub.f32 %v404, %v4723
        %v4725 = vand.u32 %v4724, 4294901760
        %v4726 = vsub.f32 %v4724, %v4725
        %v4727 = vand.u32 %v4726, 4294901760
        %4728 = vmatpush.msra.mxu0 %v4727
        %v4729 = vand.u32 %v396, 4294901760
        %v4730 = vsub.f32 %v396, %v4729
        %v4731 = vand.u32 %v4730, 4294901760
        %v4732 = vsub.f32 %v4730, %v4731
        %v4733 = vand.u32 %v4732, 4294901760
        %4734 = vmatpush.msra.mxu0 %v4733
        %v4735 = vand.u32 %v388, 4294901760
        %v4736 = vsub.f32 %v388, %v4735
        %v4737 = vand.u32 %v4736, 4294901760
        %v4738 = vsub.f32 %v4736, %v4737
        %v4739 = vand.u32 %v4738, 4294901760
        %4740 = vmatpush.msra.mxu0 %v4739
        %v4741 = vand.u32 %v737, 4294901760
        %4742 = vmatmul.f32.gmra.mxu0 %v4741
        %v4743 = vpop.f32.mrf.mxu0
        %v4744 = vadd.f32 %v4643, %v4743
        %4745 = vdwg.mxu0
        %v4746 = vand.u32 %v508, 4294901760
        %v4747 = vsub.f32 %v508, %v4746
        %4748 = vmatpush.msra.mxu0 %v4747
        %v4749 = vand.u32 %v500, 4294901760
        %v4750 = vsub.f32 %v500, %v4749
        %4751 = vmatpush.msra.mxu0 %v4750
        %v4752 = vand.u32 %v492, 4294901760
        %v4753 = vsub.f32 %v492, %v4752
        %4754 = vmatpush.msra.mxu0 %v4753
        %v4755 = vand.u32 %v484, 4294901760
        %v4756 = vsub.f32 %v484, %v4755
        %4757 = vmatpush.msra.mxu0 %v4756
        %v4758 = vand.u32 %v476, 4294901760
        %v4759 = vsub.f32 %v476, %v4758
        %4760 = vmatpush.msra.mxu0 %v4759
        %v4761 = vand.u32 %v468, 4294901760
        %v4762 = vsub.f32 %v468, %v4761
        %4763 = vmatpush.msra.mxu0 %v4762
        %v4764 = vand.u32 %v460, 4294901760
        %v4765 = vsub.f32 %v460, %v4764
        %4766 = vmatpush.msra.mxu0 %v4765
        %v4767 = vand.u32 %v452, 4294901760
        %v4768 = vsub.f32 %v452, %v4767
        %4769 = vmatpush.msra.mxu0 %v4768
        %v4770 = vand.u32 %v444, 4294901760
        %v4771 = vsub.f32 %v444, %v4770
        %4772 = vmatpush.msra.mxu0 %v4771
        %v4773 = vand.u32 %v436, 4294901760
        %v4774 = vsub.f32 %v436, %v4773
        %4775 = vmatpush.msra.mxu0 %v4774
        %v4776 = vand.u32 %v428, 4294901760
        %v4777 = vsub.f32 %v428, %v4776
        %4778 = vmatpush.msra.mxu0 %v4777
        %v4779 = vand.u32 %v420, 4294901760
        %v4780 = vsub.f32 %v420, %v4779
        %4781 = vmatpush.msra.mxu0 %v4780
        %v4782 = vand.u32 %v412, 4294901760
        %v4783 = vsub.f32 %v412, %v4782
        %4784 = vmatpush.msra.mxu0 %v4783
        %v4785 = vand.u32 %v404, 4294901760
        %v4786 = vsub.f32 %v404, %v4785
        %4787 = vmatpush.msra.mxu0 %v4786
        %v4788 = vand.u32 %v396, 4294901760
        %v4789 = vsub.f32 %v396, %v4788
        %4790 = vmatpush.msra.mxu0 %v4789
        %v4791 = vand.u32 %v388, 4294901760
        %v4792 = vsub.f32 %v388, %v4791
        %4793 = vmatpush.msra.mxu0 %v4792
        %v4794 = vand.u32 %v737, 4294901760
        %v4795 = vsub.f32 %v737, %v4794
        %4796 = vmatmul.f32.gmra.mxu0 %v4795
        %v4797 = vpop.f32.mrf.mxu0
        %v4798 = vadd.f32 %v4744, %v4797
        %4799 = vdwg.mxu0
        %v4800 = vand.u32 %v508, 4294901760
        %4801 = vmatpush.msra.mxu0 %v4800
        %v4802 = vand.u32 %v500, 4294901760
        %4803 = vmatpush.msra.mxu0 %v4802
        %v4804 = vand.u32 %v492, 4294901760
        %4805 = vmatpush.msra.mxu0 %v4804
        %v4806 = vand.u32 %v484, 4294901760
        %4807 = vmatpush.msra.mxu0 %v4806
        %v4808 = vand.u32 %v476, 4294901760
        %4809 = vmatpush.msra.mxu0 %v4808
        %v4810 = vand.u32 %v468, 4294901760
        %4811 = vmatpush.msra.mxu0 %v4810
        %v4812 = vand.u32 %v460, 4294901760
        %4813 = vmatpush.msra.mxu0 %v4812
        %v4814 = vand.u32 %v452, 4294901760
        %4815 = vmatpush.msra.mxu0 %v4814
        %v4816 = vand.u32 %v444, 4294901760
        %4817 = vmatpush.msra.mxu0 %v4816
        %v4818 = vand.u32 %v436, 4294901760
        %4819 = vmatpush.msra.mxu0 %v4818
        %v4820 = vand.u32 %v428, 4294901760
        %4821 = vmatpush.msra.mxu0 %v4820
        %v4822 = vand.u32 %v420, 4294901760
        %4823 = vmatpush.msra.mxu0 %v4822
        %v4824 = vand.u32 %v412, 4294901760
        %4825 = vmatpush.msra.mxu0 %v4824
        %v4826 = vand.u32 %v404, 4294901760
        %4827 = vmatpush.msra.mxu0 %v4826
        %v4828 = vand.u32 %v396, 4294901760
        %4829 = vmatpush.msra.mxu0 %v4828
        %v4830 = vand.u32 %v388, 4294901760
        %4831 = vmatpush.msra.mxu0 %v4830
        %v4832 = vand.u32 %v737, 4294901760
        %v4833 = vsub.f32 %v737, %v4832
        %v4834 = vand.u32 %v4833, 4294901760
        %4835 = vmatmul.f32.gmra.mxu0 %v4834
        %v4836 = vpop.f32.mrf.mxu0
        %v4837 = vadd.f32 %v4798, %v4836
        %4838 = vdwg.mxu0
        %v4839 = vand.u32 %v508, 4294901760
        %v4840 = vsub.f32 %v508, %v4839
        %v4841 = vand.u32 %v4840, 4294901760
        %4842 = vmatpush.msra.mxu0 %v4841
        %v4843 = vand.u32 %v500, 4294901760
        %v4844 = vsub.f32 %v500, %v4843
        %v4845 = vand.u32 %v4844, 4294901760
        %4846 = vmatpush.msra.mxu0 %v4845
        %v4847 = vand.u32 %v492, 4294901760
        %v4848 = vsub.f32 %v492, %v4847
        %v4849 = vand.u32 %v4848, 4294901760
        %4850 = vmatpush.msra.mxu0 %v4849
        %v4851 = vand.u32 %v484, 4294901760
        %v4852 = vsub.f32 %v484, %v4851
        %v4853 = vand.u32 %v4852, 4294901760
        %4854 = vmatpush.msra.mxu0 %v4853
        %v4855 = vand.u32 %v476, 4294901760
        %v4856 = vsub.f32 %v476, %v4855
        %v4857 = vand.u32 %v4856, 4294901760
        %4858 = vmatpush.msra.mxu0 %v4857
        %v4859 = vand.u32 %v468, 4294901760
        %v4860 = vsub.f32 %v468, %v4859
        %v4861 = vand.u32 %v4860, 4294901760
        %4862 = vmatpush.msra.mxu0 %v4861
        %v4863 = vand.u32 %v460, 4294901760
        %v4864 = vsub.f32 %v460, %v4863
        %v4865 = vand.u32 %v4864, 4294901760
        %4866 = vmatpush.msra.mxu0 %v4865
        %v4867 = vand.u32 %v452, 4294901760
        %v4868 = vsub.f32 %v452, %v4867
        %v4869 = vand.u32 %v4868, 4294901760
        %4870 = vmatpush.msra.mxu0 %v4869
        %v4871 = vand.u32 %v444, 4294901760
        %v4872 = vsub.f32 %v444, %v4871
        %v4873 = vand.u32 %v4872, 4294901760
        %4874 = vmatpush.msra.mxu0 %v4873
        %v4875 = vand.u32 %v436, 4294901760
        %v4876 = vsub.f32 %v436, %v4875
        %v4877 = vand.u32 %v4876, 4294901760
        %4878 = vmatpush.msra.mxu0 %v4877
        %v4879 = vand.u32 %v428, 4294901760
        %v4880 = vsub.f32 %v428, %v4879
        %v4881 = vand.u32 %v4880, 4294901760
        %4882 = vmatpush.msra.mxu0 %v4881
        %v4883 = vand.u32 %v420, 4294901760
        %v4884 = vsub.f32 %v420, %v4883
        %v4885 = vand.u32 %v4884, 4294901760
        %4886 = vmatpush.msra.mxu0 %v4885
        %v4887 = vand.u32 %v412, 4294901760
        %v4888 = vsub.f32 %v412, %v4887
        %v4889 = vand.u32 %v4888, 4294901760
        %4890 = vmatpush.msra.mxu0 %v4889
        %v4891 = vand.u32 %v404, 4294901760
        %v4892 = vsub.f32 %v404, %v4891
        %v4893 = vand.u32 %v4892, 4294901760
        %4894 = vmatpush.msra.mxu0 %v4893
        %v4895 = vand.u32 %v396, 4294901760
        %v4896 = vsub.f32 %v396, %v4895
        %v4897 = vand.u32 %v4896, 4294901760
        %4898 = vmatpush.msra.mxu0 %v4897
        %v4899 = vand.u32 %v388, 4294901760
        %v4900 = vsub.f32 %v388, %v4899
        %v4901 = vand.u32 %v4900, 4294901760
        %4902 = vmatpush.msra.mxu0 %v4901
        %v4903 = vand.u32 %v737, 4294901760
        %4904 = vmatmul.f32.gmra.mxu0 %v4903
        %v4905 = vpop.f32.mrf.mxu0
        %v4906 = vadd.f32 %v4837, %v4905
        %4907 = vdwg.mxu0
        %v4908 = vand.u32 %v508, 4294901760
        %4909 = vmatpush.msra.mxu0 %v4908
        %v4910 = vand.u32 %v500, 4294901760
        %4911 = vmatpush.msra.mxu0 %v4910
        %v4912 = vand.u32 %v492, 4294901760
        %4913 = vmatpush.msra.mxu0 %v4912
        %v4914 = vand.u32 %v484, 4294901760
        %4915 = vmatpush.msra.mxu0 %v4914
        %v4916 = vand.u32 %v476, 4294901760
        %4917 = vmatpush.msra.mxu0 %v4916
        %v4918 = vand.u32 %v468, 4294901760
        %4919 = vmatpush.msra.mxu0 %v4918
        %v4920 = vand.u32 %v460, 4294901760
        %4921 = vmatpush.msra.mxu0 %v4920
        %v4922 = vand.u32 %v452, 4294901760
        %4923 = vmatpush.msra.mxu0 %v4922
        %v4924 = vand.u32 %v444, 4294901760
        %4925 = vmatpush.msra.mxu0 %v4924
        %v4926 = vand.u32 %v436, 4294901760
        %4927 = vmatpush.msra.mxu0 %v4926
        %v4928 = vand.u32 %v428, 4294901760
        %4929 = vmatpush.msra.mxu0 %v4928
        %v4930 = vand.u32 %v420, 4294901760
        %4931 = vmatpush.msra.mxu0 %v4930
        %v4932 = vand.u32 %v412, 4294901760
        %4933 = vmatpush.msra.mxu0 %v4932
        %v4934 = vand.u32 %v404, 4294901760
        %4935 = vmatpush.msra.mxu0 %v4934
        %v4936 = vand.u32 %v396, 4294901760
        %4937 = vmatpush.msra.mxu0 %v4936
        %v4938 = vand.u32 %v388, 4294901760
        %4939 = vmatpush.msra.mxu0 %v4938
        %v4940 = vand.u32 %v737, 4294901760
        %4941 = vmatmul.f32.gmra.mxu0 %v4940
        %v4942 = vpop.f32.mrf.mxu0
        %v4943 = vadd.f32 %v4906, %v4942
        %4944 = vdwg.mxu0
        %v4945 = vand.u32 %v636, 4294901760
        %4946 = vmatpush.msra.mxu0 %v4945
        %v4947 = vand.u32 %v628, 4294901760
        %4948 = vmatpush.msra.mxu0 %v4947
        %v4949 = vand.u32 %v620, 4294901760
        %4950 = vmatpush.msra.mxu0 %v4949
        %v4951 = vand.u32 %v612, 4294901760
        %4952 = vmatpush.msra.mxu0 %v4951
        %v4953 = vand.u32 %v604, 4294901760
        %4954 = vmatpush.msra.mxu0 %v4953
        %v4955 = vand.u32 %v596, 4294901760
        %4956 = vmatpush.msra.mxu0 %v4955
        %v4957 = vand.u32 %v588, 4294901760
        %4958 = vmatpush.msra.mxu0 %v4957
        %v4959 = vand.u32 %v580, 4294901760
        %4960 = vmatpush.msra.mxu0 %v4959
        %v4961 = vand.u32 %v572, 4294901760
        %4962 = vmatpush.msra.mxu0 %v4961
        %v4963 = vand.u32 %v564, 4294901760
        %4964 = vmatpush.msra.mxu0 %v4963
        %v4965 = vand.u32 %v556, 4294901760
        %4966 = vmatpush.msra.mxu0 %v4965
        %v4967 = vand.u32 %v548, 4294901760
        %4968 = vmatpush.msra.mxu0 %v4967
        %v4969 = vand.u32 %v540, 4294901760
        %4970 = vmatpush.msra.mxu0 %v4969
        %v4971 = vand.u32 %v532, 4294901760
        %4972 = vmatpush.msra.mxu0 %v4971
        %v4973 = vand.u32 %v524, 4294901760
        %4974 = vmatpush.msra.mxu0 %v4973
        %v4975 = vand.u32 %v516, 4294901760
        %4976 = vmatpush.msra.mxu0 %v4975
        %v4977 = vand.u32 %v738, 4294901760
        %v4978 = vsub.f32 %v738, %v4977
        %v4979 = vand.u32 %v4978, 4294901760
        %v4980 = vsub.f32 %v4978, %v4979
        %v4981 = vand.u32 %v4980, 4294901760
        %4982 = vmatmul.f32.gmra.mxu0 %v4981
        %v4983 = vpop.f32.mrf.mxu0
        %v4984 = vadd.f32 %v4943, %v4983
        %4985 = vdwg.mxu0
        %v4986 = vand.u32 %v636, 4294901760
        %v4987 = vsub.f32 %v636, %v4986
        %v4988 = vand.u32 %v4987, 4294901760
        %v4989 = vsub.f32 %v4987, %v4988
        %v4990 = vand.u32 %v4989, 4294901760
        %4991 = vmatpush.msra.mxu0 %v4990
        %v4992 = vand.u32 %v628, 4294901760
        %v4993 = vsub.f32 %v628, %v4992
        %v4994 = vand.u32 %v4993, 4294901760
        %v4995 = vsub.f32 %v4993, %v4994
        %v4996 = vand.u32 %v4995, 4294901760
        %4997 = vmatpush.msra.mxu0 %v4996
        %v4998 = vand.u32 %v620, 4294901760
        %v4999 = vsub.f32 %v620, %v4998
        %v5000 = vand.u32 %v4999, 4294901760
        %v5001 = vsub.f32 %v4999, %v5000
        %v5002 = vand.u32 %v5001, 4294901760
        %5003 = vmatpush.msra.mxu0 %v5002
        %v5004 = vand.u32 %v612, 4294901760
        %v5005 = vsub.f32 %v612, %v5004
        %v5006 = vand.u32 %v5005, 4294901760
        %v5007 = vsub.f32 %v5005, %v5006
        %v5008 = vand.u32 %v5007, 4294901760
        %5009 = vmatpush.msra.mxu0 %v5008
        %v5010 = vand.u32 %v604, 4294901760
        %v5011 = vsub.f32 %v604, %v5010
        %v5012 = vand.u32 %v5011, 4294901760
        %v5013 = vsub.f32 %v5011, %v5012
        %v5014 = vand.u32 %v5013, 4294901760
        %5015 = vmatpush.msra.mxu0 %v5014
        %v5016 = vand.u32 %v596, 4294901760
        %v5017 = vsub.f32 %v596, %v5016
        %v5018 = vand.u32 %v5017, 4294901760
        %v5019 = vsub.f32 %v5017, %v5018
        %v5020 = vand.u32 %v5019, 4294901760
        %5021 = vmatpush.msra.mxu0 %v5020
        %v5022 = vand.u32 %v588, 4294901760
        %v5023 = vsub.f32 %v588, %v5022
        %v5024 = vand.u32 %v5023, 4294901760
        %v5025 = vsub.f32 %v5023, %v5024
        %v5026 = vand.u32 %v5025, 4294901760
        %5027 = vmatpush.msra.mxu0 %v5026
        %v5028 = vand.u32 %v580, 4294901760
        %v5029 = vsub.f32 %v580, %v5028
        %v5030 = vand.u32 %v5029, 4294901760
        %v5031 = vsub.f32 %v5029, %v5030
        %v5032 = vand.u32 %v5031, 4294901760
        %5033 = vmatpush.msra.mxu0 %v5032
        %v5034 = vand.u32 %v572, 4294901760
        %v5035 = vsub.f32 %v572, %v5034
        %v5036 = vand.u32 %v5035, 4294901760
        %v5037 = vsub.f32 %v5035, %v5036
        %v5038 = vand.u32 %v5037, 4294901760
        %5039 = vmatpush.msra.mxu0 %v5038
        %v5040 = vand.u32 %v564, 4294901760
        %v5041 = vsub.f32 %v564, %v5040
        %v5042 = vand.u32 %v5041, 4294901760
        %v5043 = vsub.f32 %v5041, %v5042
        %v5044 = vand.u32 %v5043, 4294901760
        %5045 = vmatpush.msra.mxu0 %v5044
        %v5046 = vand.u32 %v556, 4294901760
        %v5047 = vsub.f32 %v556, %v5046
        %v5048 = vand.u32 %v5047, 4294901760
        %v5049 = vsub.f32 %v5047, %v5048
        %v5050 = vand.u32 %v5049, 4294901760
        %5051 = vmatpush.msra.mxu0 %v5050
        %v5052 = vand.u32 %v548, 4294901760
        %v5053 = vsub.f32 %v548, %v5052
        %v5054 = vand.u32 %v5053, 4294901760
        %v5055 = vsub.f32 %v5053, %v5054
        %v5056 = vand.u32 %v5055, 4294901760
        %5057 = vmatpush.msra.mxu0 %v5056
        %v5058 = vand.u32 %v540, 4294901760
        %v5059 = vsub.f32 %v540, %v5058
        %v5060 = vand.u32 %v5059, 4294901760
        %v5061 = vsub.f32 %v5059, %v5060
        %v5062 = vand.u32 %v5061, 4294901760
        %5063 = vmatpush.msra.mxu0 %v5062
        %v5064 = vand.u32 %v532, 4294901760
        %v5065 = vsub.f32 %v532, %v5064
        %v5066 = vand.u32 %v5065, 4294901760
        %v5067 = vsub.f32 %v5065, %v5066
        %v5068 = vand.u32 %v5067, 4294901760
        %5069 = vmatpush.msra.mxu0 %v5068
        %v5070 = vand.u32 %v524, 4294901760
        %v5071 = vsub.f32 %v524, %v5070
        %v5072 = vand.u32 %v5071, 4294901760
        %v5073 = vsub.f32 %v5071, %v5072
        %v5074 = vand.u32 %v5073, 4294901760
        %5075 = vmatpush.msra.mxu0 %v5074
        %v5076 = vand.u32 %v516, 4294901760
        %v5077 = vsub.f32 %v516, %v5076
        %v5078 = vand.u32 %v5077, 4294901760
        %v5079 = vsub.f32 %v5077, %v5078
        %v5080 = vand.u32 %v5079, 4294901760
        %5081 = vmatpush.msra.mxu0 %v5080
        %v5082 = vand.u32 %v738, 4294901760
        %5083 = vmatmul.f32.gmra.mxu0 %v5082
        %v5084 = vpop.f32.mrf.mxu0
        %v5085 = vadd.f32 %v4984, %v5084
        %5086 = vdwg.mxu0
        %v5087 = vand.u32 %v636, 4294901760
        %v5088 = vsub.f32 %v636, %v5087
        %5089 = vmatpush.msra.mxu0 %v5088
        %v5090 = vand.u32 %v628, 4294901760
        %v5091 = vsub.f32 %v628, %v5090
        %5092 = vmatpush.msra.mxu0 %v5091
        %v5093 = vand.u32 %v620, 4294901760
        %v5094 = vsub.f32 %v620, %v5093
        %5095 = vmatpush.msra.mxu0 %v5094
        %v5096 = vand.u32 %v612, 4294901760
        %v5097 = vsub.f32 %v612, %v5096
        %5098 = vmatpush.msra.mxu0 %v5097
        %v5099 = vand.u32 %v604, 4294901760
        %v5100 = vsub.f32 %v604, %v5099
        %5101 = vmatpush.msra.mxu0 %v5100
        %v5102 = vand.u32 %v596, 4294901760
        %v5103 = vsub.f32 %v596, %v5102
        %5104 = vmatpush.msra.mxu0 %v5103
        %v5105 = vand.u32 %v588, 4294901760
        %v5106 = vsub.f32 %v588, %v5105
        %5107 = vmatpush.msra.mxu0 %v5106
        %v5108 = vand.u32 %v580, 4294901760
        %v5109 = vsub.f32 %v580, %v5108
        %5110 = vmatpush.msra.mxu0 %v5109
        %v5111 = vand.u32 %v572, 4294901760
        %v5112 = vsub.f32 %v572, %v5111
        %5113 = vmatpush.msra.mxu0 %v5112
        %v5114 = vand.u32 %v564, 4294901760
        %v5115 = vsub.f32 %v564, %v5114
        %5116 = vmatpush.msra.mxu0 %v5115
        %v5117 = vand.u32 %v556, 4294901760
        %v5118 = vsub.f32 %v556, %v5117
        %5119 = vmatpush.msra.mxu0 %v5118
        %v5120 = vand.u32 %v548, 4294901760
        %v5121 = vsub.f32 %v548, %v5120
        %5122 = vmatpush.msra.mxu0 %v5121
        %v5123 = vand.u32 %v540, 4294901760
        %v5124 = vsub.f32 %v540, %v5123
        %5125 = vmatpush.msra.mxu0 %v5124
        %v5126 = vand.u32 %v532, 4294901760
        %v5127 = vsub.f32 %v532, %v5126
        %5128 = vmatpush.msra.mxu0 %v5127
        %v5129 = vand.u32 %v524, 4294901760
        %v5130 = vsub.f32 %v524, %v5129
        %5131 = vmatpush.msra.mxu0 %v5130
        %v5132 = vand.u32 %v516, 4294901760
        %v5133 = vsub.f32 %v516, %v5132
        %5134 = vmatpush.msra.mxu0 %v5133
        %v5135 = vand.u32 %v738, 4294901760
        %v5136 = vsub.f32 %v738, %v5135
        %5137 = vmatmul.f32.gmra.mxu0 %v5136
        %v5138 = vpop.f32.mrf.mxu0
        %v5139 = vadd.f32 %v5085, %v5138
        %5140 = vdwg.mxu0
        %v5141 = vand.u32 %v636, 4294901760
        %5142 = vmatpush.msra.mxu0 %v5141
        %v5143 = vand.u32 %v628, 4294901760
        %5144 = vmatpush.msra.mxu0 %v5143
        %v5145 = vand.u32 %v620, 4294901760
        %5146 = vmatpush.msra.mxu0 %v5145
        %v5147 = vand.u32 %v612, 4294901760
        %5148 = vmatpush.msra.mxu0 %v5147
        %v5149 = vand.u32 %v604, 4294901760
        %5150 = vmatpush.msra.mxu0 %v5149
        %v5151 = vand.u32 %v596, 4294901760
        %5152 = vmatpush.msra.mxu0 %v5151
        %v5153 = vand.u32 %v588, 4294901760
        %5154 = vmatpush.msra.mxu0 %v5153
        %v5155 = vand.u32 %v580, 4294901760
        %5156 = vmatpush.msra.mxu0 %v5155
        %v5157 = vand.u32 %v572, 4294901760
        %5158 = vmatpush.msra.mxu0 %v5157
        %v5159 = vand.u32 %v564, 4294901760
        %5160 = vmatpush.msra.mxu0 %v5159
        %v5161 = vand.u32 %v556, 4294901760
        %5162 = vmatpush.msra.mxu0 %v5161
        %v5163 = vand.u32 %v548, 4294901760
        %5164 = vmatpush.msra.mxu0 %v5163
        %v5165 = vand.u32 %v540, 4294901760
        %5166 = vmatpush.msra.mxu0 %v5165
        %v5167 = vand.u32 %v532, 4294901760
        %5168 = vmatpush.msra.mxu0 %v5167
        %v5169 = vand.u32 %v524, 4294901760
        %5170 = vmatpush.msra.mxu0 %v5169
        %v5171 = vand.u32 %v516, 4294901760
        %5172 = vmatpush.msra.mxu0 %v5171
        %v5173 = vand.u32 %v738, 4294901760
        %v5174 = vsub.f32 %v738, %v5173
        %v5175 = vand.u32 %v5174, 4294901760
        %5176 = vmatmul.f32.gmra.mxu0 %v5175
        %v5177 = vpop.f32.mrf.mxu0
        %v5178 = vadd.f32 %v5139, %v5177
        %5179 = vdwg.mxu0
        %v5180 = vand.u32 %v636, 4294901760
        %v5181 = vsub.f32 %v636, %v5180
        %v5182 = vand.u32 %v5181, 4294901760
        %5183 = vmatpush.msra.mxu0 %v5182
        %v5184 = vand.u32 %v628, 4294901760
        %v5185 = vsub.f32 %v628, %v5184
        %v5186 = vand.u32 %v5185, 4294901760
        %5187 = vmatpush.msra.mxu0 %v5186
        %v5188 = vand.u32 %v620, 4294901760
        %v5189 = vsub.f32 %v620, %v5188
        %v5190 = vand.u32 %v5189, 4294901760
        %5191 = vmatpush.msra.mxu0 %v5190
        %v5192 = vand.u32 %v612, 4294901760
        %v5193 = vsub.f32 %v612, %v5192
        %v5194 = vand.u32 %v5193, 4294901760
        %5195 = vmatpush.msra.mxu0 %v5194
        %v5196 = vand.u32 %v604, 4294901760
        %v5197 = vsub.f32 %v604, %v5196
        %v5198 = vand.u32 %v5197, 4294901760
        %5199 = vmatpush.msra.mxu0 %v5198
        %v5200 = vand.u32 %v596, 4294901760
        %v5201 = vsub.f32 %v596, %v5200
        %v5202 = vand.u32 %v5201, 4294901760
        %5203 = vmatpush.msra.mxu0 %v5202
        %v5204 = vand.u32 %v588, 4294901760
        %v5205 = vsub.f32 %v588, %v5204
        %v5206 = vand.u32 %v5205, 4294901760
        %5207 = vmatpush.msra.mxu0 %v5206
        %v5208 = vand.u32 %v580, 4294901760
        %v5209 = vsub.f32 %v580, %v5208
        %v5210 = vand.u32 %v5209, 4294901760
        %5211 = vmatpush.msra.mxu0 %v5210
        %v5212 = vand.u32 %v572, 4294901760
        %v5213 = vsub.f32 %v572, %v5212
        %v5214 = vand.u32 %v5213, 4294901760
        %5215 = vmatpush.msra.mxu0 %v5214
        %v5216 = vand.u32 %v564, 4294901760
        %v5217 = vsub.f32 %v564, %v5216
        %v5218 = vand.u32 %v5217, 4294901760
        %5219 = vmatpush.msra.mxu0 %v5218
        %v5220 = vand.u32 %v556, 4294901760
        %v5221 = vsub.f32 %v556, %v5220
        %v5222 = vand.u32 %v5221, 4294901760
        %5223 = vmatpush.msra.mxu0 %v5222
        %v5224 = vand.u32 %v548, 4294901760
        %v5225 = vsub.f32 %v548, %v5224
        %v5226 = vand.u32 %v5225, 4294901760
        %5227 = vmatpush.msra.mxu0 %v5226
        %v5228 = vand.u32 %v540, 4294901760
        %v5229 = vsub.f32 %v540, %v5228
        %v5230 = vand.u32 %v5229, 4294901760
        %5231 = vmatpush.msra.mxu0 %v5230
        %v5232 = vand.u32 %v532, 4294901760
        %v5233 = vsub.f32 %v532, %v5232
        %v5234 = vand.u32 %v5233, 4294901760
        %5235 = vmatpush.msra.mxu0 %v5234
        %v5236 = vand.u32 %v524, 4294901760
        %v5237 = vsub.f32 %v524, %v5236
        %v5238 = vand.u32 %v5237, 4294901760
        %5239 = vmatpush.msra.mxu0 %v5238
        %v5240 = vand.u32 %v516, 4294901760
        %v5241 = vsub.f32 %v516, %v5240
        %v5242 = vand.u32 %v5241, 4294901760
        %5243 = vmatpush.msra.mxu0 %v5242
        %v5244 = vand.u32 %v738, 4294901760
        %5245 = vmatmul.f32.gmra.mxu0 %v5244
        %v5246 = vpop.f32.mrf.mxu0
        %v5247 = vadd.f32 %v5178, %v5246
        %5248 = vdwg.mxu0
        %v5249 = vand.u32 %v636, 4294901760
        %5250 = vmatpush.msra.mxu0 %v5249
        %v5251 = vand.u32 %v628, 4294901760
        %5252 = vmatpush.msra.mxu0 %v5251
        %v5253 = vand.u32 %v620, 4294901760
        %5254 = vmatpush.msra.mxu0 %v5253
        %v5255 = vand.u32 %v612, 4294901760
        %5256 = vmatpush.msra.mxu0 %v5255
        %v5257 = vand.u32 %v604, 4294901760
        %5258 = vmatpush.msra.mxu0 %v5257
        %v5259 = vand.u32 %v596, 4294901760
        %5260 = vmatpush.msra.mxu0 %v5259
        %v5261 = vand.u32 %v588, 4294901760
        %5262 = vmatpush.msra.mxu0 %v5261
        %v5263 = vand.u32 %v580, 4294901760
        %5264 = vmatpush.msra.mxu0 %v5263
        %v5265 = vand.u32 %v572, 4294901760
        %5266 = vmatpush.msra.mxu0 %v5265
        %v5267 = vand.u32 %v564, 4294901760
        %5268 = vmatpush.msra.mxu0 %v5267
        %v5269 = vand.u32 %v556, 4294901760
        %5270 = vmatpush.msra.mxu0 %v5269
        %v5271 = vand.u32 %v548, 4294901760
        %5272 = vmatpush.msra.mxu0 %v5271
        %v5273 = vand.u32 %v540, 4294901760
        %5274 = vmatpush.msra.mxu0 %v5273
        %v5275 = vand.u32 %v532, 4294901760
        %5276 = vmatpush.msra.mxu0 %v5275
        %v5277 = vand.u32 %v524, 4294901760
        %5278 = vmatpush.msra.mxu0 %v5277
        %v5279 = vand.u32 %v516, 4294901760
        %5280 = vmatpush.msra.mxu0 %v5279
        %v5281 = vand.u32 %v738, 4294901760
        %5282 = vmatmul.f32.gmra.mxu0 %v5281
        %v5283 = vpop.f32.mrf.mxu0
        %v5284 = vadd.f32 %v5247, %v5283
        %5285 = vdwg.mxu0
        %5286 = vmatpush.msra.mxu0 0.0
        %5287 = vmatpush.msra.mxu0 0.0
        %5288 = vmatpush.msra.mxu0 0.0
        %5289 = vmatpush.msra.mxu0 0.0
        %5290 = vmatpush.msra.mxu0 0.0
        %v5291 = vand.u32 %v724, 4294901760
        %5292 = vmatpush.msra.mxu0 %v5291
        %v5293 = vand.u32 %v716, 4294901760
        %5294 = vmatpush.msra.mxu0 %v5293
        %v5295 = vand.u32 %v708, 4294901760
        %5296 = vmatpush.msra.mxu0 %v5295
        %v5297 = vand.u32 %v700, 4294901760
        %5298 = vmatpush.msra.mxu0 %v5297
        %v5299 = vand.u32 %v692, 4294901760
        %5300 = vmatpush.msra.mxu0 %v5299
        %v5301 = vand.u32 %v684, 4294901760
        %5302 = vmatpush.msra.mxu0 %v5301
        %v5303 = vand.u32 %v676, 4294901760
        %5304 = vmatpush.msra.mxu0 %v5303
        %v5305 = vand.u32 %v668, 4294901760
        %5306 = vmatpush.msra.mxu0 %v5305
        %v5307 = vand.u32 %v660, 4294901760
        %5308 = vmatpush.msra.mxu0 %v5307
        %v5309 = vand.u32 %v652, 4294901760
        %5310 = vmatpush.msra.mxu0 %v5309
        %v5311 = vand.u32 %v644, 4294901760
        %5312 = vmatpush.msra.mxu0 %v5311
        %v5313 = vand.u32 %v770, 4294901760
        %v5314 = vsub.f32 %v770, %v5313
        %v5315 = vand.u32 %v5314, 4294901760
        %v5316 = vsub.f32 %v5314, %v5315
        %v5317 = vand.u32 %v5316, 4294901760
        %5318 = vmatmul.f32.gmra.mxu0 %v5317
        %v5319 = vpop.f32.mrf.mxu0
        %v5320 = vadd.f32 %v5284, %v5319
        %5321 = vdwg.mxu0
        %5322 = vmatpush.msra.mxu0 0.0
        %5323 = vmatpush.msra.mxu0 0.0
        %5324 = vmatpush.msra.mxu0 0.0
        %5325 = vmatpush.msra.mxu0 0.0
        %5326 = vmatpush.msra.mxu0 0.0
        %v5327 = vand.u32 %v724, 4294901760
        %v5328 = vsub.f32 %v724, %v5327
        %v5329 = vand.u32 %v5328, 4294901760
        %v5330 = vsub.f32 %v5328, %v5329
        %v5331 = vand.u32 %v5330, 4294901760
        %5332 = vmatpush.msra.mxu0 %v5331
        %v5333 = vand.u32 %v716, 4294901760
        %v5334 = vsub.f32 %v716, %v5333
        %v5335 = vand.u32 %v5334, 4294901760
        %v5336 = vsub.f32 %v5334, %v5335
        %v5337 = vand.u32 %v5336, 4294901760
        %5338 = vmatpush.msra.mxu0 %v5337
        %v5339 = vand.u32 %v708, 4294901760
        %v5340 = vsub.f32 %v708, %v5339
        %v5341 = vand.u32 %v5340, 4294901760
        %v5342 = vsub.f32 %v5340, %v5341
        %v5343 = vand.u32 %v5342, 4294901760
        %5344 = vmatpush.msra.mxu0 %v5343
        %v5345 = vand.u32 %v700, 4294901760
        %v5346 = vsub.f32 %v700, %v5345
        %v5347 = vand.u32 %v5346, 4294901760
        %v5348 = vsub.f32 %v5346, %v5347
        %v5349 = vand.u32 %v5348, 4294901760
        %5350 = vmatpush.msra.mxu0 %v5349
        %v5351 = vand.u32 %v692, 4294901760
        %v5352 = vsub.f32 %v692, %v5351
        %v5353 = vand.u32 %v5352, 4294901760
        %v5354 = vsub.f32 %v5352, %v5353
        %v5355 = vand.u32 %v5354, 4294901760
        %5356 = vmatpush.msra.mxu0 %v5355
        %v5357 = vand.u32 %v684, 4294901760
        %v5358 = vsub.f32 %v684, %v5357
        %v5359 = vand.u32 %v5358, 4294901760
        %v5360 = vsub.f32 %v5358, %v5359
        %v5361 = vand.u32 %v5360, 4294901760
        %5362 = vmatpush.msra.mxu0 %v5361
        %v5363 = vand.u32 %v676, 4294901760
        %v5364 = vsub.f32 %v676, %v5363
        %v5365 = vand.u32 %v5364, 4294901760
        %v5366 = vsub.f32 %v5364, %v5365
        %v5367 = vand.u32 %v5366, 4294901760
        %5368 = vmatpush.msra.mxu0 %v5367
        %v5369 = vand.u32 %v668, 4294901760
        %v5370 = vsub.f32 %v668, %v5369
        %v5371 = vand.u32 %v5370, 4294901760
        %v5372 = vsub.f32 %v5370, %v5371
        %v5373 = vand.u32 %v5372, 4294901760
        %5374 = vmatpush.msra.mxu0 %v5373
        %v5375 = vand.u32 %v660, 4294901760
        %v5376 = vsub.f32 %v660, %v5375
        %v5377 = vand.u32 %v5376, 4294901760
        %v5378 = vsub.f32 %v5376, %v5377
        %v5379 = vand.u32 %v5378, 4294901760
        %5380 = vmatpush.msra.mxu0 %v5379
        %v5381 = vand.u32 %v652, 4294901760
        %v5382 = vsub.f32 %v652, %v5381
        %v5383 = vand.u32 %v5382, 4294901760
        %v5384 = vsub.f32 %v5382, %v5383
        %v5385 = vand.u32 %v5384, 4294901760
        %5386 = vmatpush.msra.mxu0 %v5385
        %v5387 = vand.u32 %v644, 4294901760
        %v5388 = vsub.f32 %v644, %v5387
        %v5389 = vand.u32 %v5388, 4294901760
        %v5390 = vsub.f32 %v5388, %v5389
        %v5391 = vand.u32 %v5390, 4294901760
        %5392 = vmatpush.msra.mxu0 %v5391
        %v5393 = vand.u32 %v770, 4294901760
        %5394 = vmatmul.f32.gmra.mxu0 %v5393
        %v5395 = vpop.f32.mrf.mxu0
        %v5396 = vadd.f32 %v5320, %v5395
        %5397 = vdwg.mxu0
        %5398 = vmatpush.msra.mxu0 0.0
        %5399 = vmatpush.msra.mxu0 0.0
        %5400 = vmatpush.msra.mxu0 0.0
        %5401 = vmatpush.msra.mxu0 0.0
        %5402 = vmatpush.msra.mxu0 0.0
        %v5403 = vand.u32 %v724, 4294901760
        %v5404 = vsub.f32 %v724, %v5403
        %5405 = vmatpush.msra.mxu0 %v5404
        %v5406 = vand.u32 %v716, 4294901760
        %v5407 = vsub.f32 %v716, %v5406
        %5408 = vmatpush.msra.mxu0 %v5407
        %v5409 = vand.u32 %v708, 4294901760
        %v5410 = vsub.f32 %v708, %v5409
        %5411 = vmatpush.msra.mxu0 %v5410
        %v5412 = vand.u32 %v700, 4294901760
        %v5413 = vsub.f32 %v700, %v5412
        %5414 = vmatpush.msra.mxu0 %v5413
        %v5415 = vand.u32 %v692, 4294901760
        %v5416 = vsub.f32 %v692, %v5415
        %5417 = vmatpush.msra.mxu0 %v5416
        %v5418 = vand.u32 %v684, 4294901760
        %v5419 = vsub.f32 %v684, %v5418
        %5420 = vmatpush.msra.mxu0 %v5419
        %v5421 = vand.u32 %v676, 4294901760
        %v5422 = vsub.f32 %v676, %v5421
        %5423 = vmatpush.msra.mxu0 %v5422
        %v5424 = vand.u32 %v668, 4294901760
        %v5425 = vsub.f32 %v668, %v5424
        %5426 = vmatpush.msra.mxu0 %v5425
        %v5427 = vand.u32 %v660, 4294901760
        %v5428 = vsub.f32 %v660, %v5427
        %5429 = vmatpush.msra.mxu0 %v5428
        %v5430 = vand.u32 %v652, 4294901760
        %v5431 = vsub.f32 %v652, %v5430
        %5432 = vmatpush.msra.mxu0 %v5431
        %v5433 = vand.u32 %v644, 4294901760
        %v5434 = vsub.f32 %v644, %v5433
        %5435 = vmatpush.msra.mxu0 %v5434
        %v5436 = vand.u32 %v770, 4294901760
        %v5437 = vsub.f32 %v770, %v5436
        %5438 = vmatmul.f32.gmra.mxu0 %v5437
        %v5439 = vpop.f32.mrf.mxu0
        %v5440 = vadd.f32 %v5396, %v5439
        %5441 = vdwg.mxu0
        %5442 = vmatpush.msra.mxu0 0.0
        %5443 = vmatpush.msra.mxu0 0.0
        %5444 = vmatpush.msra.mxu0 0.0
        %5445 = vmatpush.msra.mxu0 0.0
        %5446 = vmatpush.msra.mxu0 0.0
        %v5447 = vand.u32 %v724, 4294901760
        %5448 = vmatpush.msra.mxu0 %v5447
        %v5449 = vand.u32 %v716, 4294901760
        %5450 = vmatpush.msra.mxu0 %v5449
        %v5451 = vand.u32 %v708, 4294901760
        %5452 = vmatpush.msra.mxu0 %v5451
        %v5453 = vand.u32 %v700, 4294901760
        %5454 = vmatpush.msra.mxu0 %v5453
        %v5455 = vand.u32 %v692, 4294901760
        %5456 = vmatpush.msra.mxu0 %v5455
        %v5457 = vand.u32 %v684, 4294901760
        %5458 = vmatpush.msra.mxu0 %v5457
        %v5459 = vand.u32 %v676, 4294901760
        %5460 = vmatpush.msra.mxu0 %v5459
        %v5461 = vand.u32 %v668, 4294901760
        %5462 = vmatpush.msra.mxu0 %v5461
        %v5463 = vand.u32 %v660, 4294901760
        %5464 = vmatpush.msra.mxu0 %v5463
        %v5465 = vand.u32 %v652, 4294901760
        %5466 = vmatpush.msra.mxu0 %v5465
        %v5467 = vand.u32 %v644, 4294901760
        %5468 = vmatpush.msra.mxu0 %v5467
        %v5469 = vand.u32 %v770, 4294901760
        %v5470 = vsub.f32 %v770, %v5469
        %v5471 = vand.u32 %v5470, 4294901760
        %5472 = vmatmul.f32.gmra.mxu0 %v5471
        %v5473 = vpop.f32.mrf.mxu0
        %v5474 = vadd.f32 %v5440, %v5473
        %5475 = vdwg.mxu0
        %5476 = vmatpush.msra.mxu0 0.0
        %5477 = vmatpush.msra.mxu0 0.0
        %5478 = vmatpush.msra.mxu0 0.0
        %5479 = vmatpush.msra.mxu0 0.0
        %5480 = vmatpush.msra.mxu0 0.0
        %v5481 = vand.u32 %v724, 4294901760
        %v5482 = vsub.f32 %v724, %v5481
        %v5483 = vand.u32 %v5482, 4294901760
        %5484 = vmatpush.msra.mxu0 %v5483
        %v5485 = vand.u32 %v716, 4294901760
        %v5486 = vsub.f32 %v716, %v5485
        %v5487 = vand.u32 %v5486, 4294901760
        %5488 = vmatpush.msra.mxu0 %v5487
        %v5489 = vand.u32 %v708, 4294901760
        %v5490 = vsub.f32 %v708, %v5489
        %v5491 = vand.u32 %v5490, 4294901760
        %5492 = vmatpush.msra.mxu0 %v5491
        %v5493 = vand.u32 %v700, 4294901760
        %v5494 = vsub.f32 %v700, %v5493
        %v5495 = vand.u32 %v5494, 4294901760
        %5496 = vmatpush.msra.mxu0 %v5495
        %v5497 = vand.u32 %v692, 4294901760
        %v5498 = vsub.f32 %v692, %v5497
        %v5499 = vand.u32 %v5498, 4294901760
        %5500 = vmatpush.msra.mxu0 %v5499
        %v5501 = vand.u32 %v684, 4294901760
        %v5502 = vsub.f32 %v684, %v5501
        %v5503 = vand.u32 %v5502, 4294901760
        %5504 = vmatpush.msra.mxu0 %v5503
        %v5505 = vand.u32 %v676, 4294901760
        %v5506 = vsub.f32 %v676, %v5505
        %v5507 = vand.u32 %v5506, 4294901760
        %5508 = vmatpush.msra.mxu0 %v5507
        %v5509 = vand.u32 %v668, 4294901760
        %v5510 = vsub.f32 %v668, %v5509
        %v5511 = vand.u32 %v5510, 4294901760
        %5512 = vmatpush.msra.mxu0 %v5511
        %v5513 = vand.u32 %v660, 4294901760
        %v5514 = vsub.f32 %v660, %v5513
        %v5515 = vand.u32 %v5514, 4294901760
        %5516 = vmatpush.msra.mxu0 %v5515
        %v5517 = vand.u32 %v652, 4294901760
        %v5518 = vsub.f32 %v652, %v5517
        %v5519 = vand.u32 %v5518, 4294901760
        %5520 = vmatpush.msra.mxu0 %v5519
        %v5521 = vand.u32 %v644, 4294901760
        %v5522 = vsub.f32 %v644, %v5521
        %v5523 = vand.u32 %v5522, 4294901760
        %5524 = vmatpush.msra.mxu0 %v5523
        %v5525 = vand.u32 %v770, 4294901760
        %5526 = vmatmul.f32.gmra.mxu0 %v5525
        %v5527 = vpop.f32.mrf.mxu0
        %v5528 = vadd.f32 %v5474, %v5527
        %5529 = vdwg.mxu0
        %5530 = vmatpush.msra.mxu0 0.0
        %5531 = vmatpush.msra.mxu0 0.0
        %5532 = vmatpush.msra.mxu0 0.0
        %5533 = vmatpush.msra.mxu0 0.0
        %5534 = vmatpush.msra.mxu0 0.0
        %v5535 = vand.u32 %v724, 4294901760
        %5536 = vmatpush.msra.mxu0 %v5535
        %v5537 = vand.u32 %v716, 4294901760
        %5538 = vmatpush.msra.mxu0 %v5537
        %v5539 = vand.u32 %v708, 4294901760
        %5540 = vmatpush.msra.mxu0 %v5539
        %v5541 = vand.u32 %v700, 4294901760
        %5542 = vmatpush.msra.mxu0 %v5541
        %v5543 = vand.u32 %v692, 4294901760
        %5544 = vmatpush.msra.mxu0 %v5543
        %v5545 = vand.u32 %v684, 4294901760
        %5546 = vmatpush.msra.mxu0 %v5545
        %v5547 = vand.u32 %v676, 4294901760
        %5548 = vmatpush.msra.mxu0 %v5547
        %v5549 = vand.u32 %v668, 4294901760
        %5550 = vmatpush.msra.mxu0 %v5549
        %v5551 = vand.u32 %v660, 4294901760
        %5552 = vmatpush.msra.mxu0 %v5551
        %v5553 = vand.u32 %v652, 4294901760
        %5554 = vmatpush.msra.mxu0 %v5553
        %v5555 = vand.u32 %v644, 4294901760
        %5556 = vmatpush.msra.mxu0 %v5555
        %v5557 = vand.u32 %v770, 4294901760
        %5558 = vmatmul.f32.gmra.mxu0 %v5557
        %v5559 = vpop.f32.mrf.mxu0
        %v5560 = vadd.f32 %v5528, %v5559
        %5561 = vdwg.mxu0
        %v5562 = vand.u32 %v509, 4294901760
        %5563 = vmatpush.msra.mxu0 %v5562
        %v5564 = vand.u32 %v501, 4294901760
        %5565 = vmatpush.msra.mxu0 %v5564
        %v5566 = vand.u32 %v493, 4294901760
        %5567 = vmatpush.msra.mxu0 %v5566
        %v5568 = vand.u32 %v485, 4294901760
        %5569 = vmatpush.msra.mxu0 %v5568
        %v5570 = vand.u32 %v477, 4294901760
        %5571 = vmatpush.msra.mxu0 %v5570
        %v5572 = vand.u32 %v469, 4294901760
        %5573 = vmatpush.msra.mxu0 %v5572
        %v5574 = vand.u32 %v461, 4294901760
        %5575 = vmatpush.msra.mxu0 %v5574
        %v5576 = vand.u32 %v453, 4294901760
        %5577 = vmatpush.msra.mxu0 %v5576
        %v5578 = vand.u32 %v445, 4294901760
        %5579 = vmatpush.msra.mxu0 %v5578
        %v5580 = vand.u32 %v437, 4294901760
        %5581 = vmatpush.msra.mxu0 %v5580
        %v5582 = vand.u32 %v429, 4294901760
        %5583 = vmatpush.msra.mxu0 %v5582
        %v5584 = vand.u32 %v421, 4294901760
        %5585 = vmatpush.msra.mxu0 %v5584
        %v5586 = vand.u32 %v413, 4294901760
        %5587 = vmatpush.msra.mxu0 %v5586
        %v5588 = vand.u32 %v405, 4294901760
        %5589 = vmatpush.msra.mxu0 %v5588
        %v5590 = vand.u32 %v397, 4294901760
        %5591 = vmatpush.msra.mxu0 %v5590
        %v5592 = vand.u32 %v389, 4294901760
        %5593 = vmatpush.msra.mxu0 %v5592
        %v5594 = vand.u32 %v737, 4294901760
        %v5595 = vsub.f32 %v737, %v5594
        %v5596 = vand.u32 %v5595, 4294901760
        %v5597 = vsub.f32 %v5595, %v5596
        %v5598 = vand.u32 %v5597, 4294901760
        %5599 = vmatmul.f32.gmra.mxu0 %v5598
        %v5600 = vpop.f32.mrf.mxu0
        %v5601 = vadd.f32 %v758, %v5600
        %5602 = vdwg.mxu0
        %v5603 = vand.u32 %v509, 4294901760
        %v5604 = vsub.f32 %v509, %v5603
        %v5605 = vand.u32 %v5604, 4294901760
        %v5606 = vsub.f32 %v5604, %v5605
        %v5607 = vand.u32 %v5606, 4294901760
        %5608 = vmatpush.msra.mxu0 %v5607
        %v5609 = vand.u32 %v501, 4294901760
        %v5610 = vsub.f32 %v501, %v5609
        %v5611 = vand.u32 %v5610, 4294901760
        %v5612 = vsub.f32 %v5610, %v5611
        %v5613 = vand.u32 %v5612, 4294901760
        %5614 = vmatpush.msra.mxu0 %v5613
        %v5615 = vand.u32 %v493, 4294901760
        %v5616 = vsub.f32 %v493, %v5615
        %v5617 = vand.u32 %v5616, 4294901760
        %v5618 = vsub.f32 %v5616, %v5617
        %v5619 = vand.u32 %v5618, 4294901760
        %5620 = vmatpush.msra.mxu0 %v5619
        %v5621 = vand.u32 %v485, 4294901760
        %v5622 = vsub.f32 %v485, %v5621
        %v5623 = vand.u32 %v5622, 4294901760
        %v5624 = vsub.f32 %v5622, %v5623
        %v5625 = vand.u32 %v5624, 4294901760
        %5626 = vmatpush.msra.mxu0 %v5625
        %v5627 = vand.u32 %v477, 4294901760
        %v5628 = vsub.f32 %v477, %v5627
        %v5629 = vand.u32 %v5628, 4294901760
        %v5630 = vsub.f32 %v5628, %v5629
        %v5631 = vand.u32 %v5630, 4294901760
        %5632 = vmatpush.msra.mxu0 %v5631
        %v5633 = vand.u32 %v469, 4294901760
        %v5634 = vsub.f32 %v469, %v5633
        %v5635 = vand.u32 %v5634, 4294901760
        %v5636 = vsub.f32 %v5634, %v5635
        %v5637 = vand.u32 %v5636, 4294901760
        %5638 = vmatpush.msra.mxu0 %v5637
        %v5639 = vand.u32 %v461, 4294901760
        %v5640 = vsub.f32 %v461, %v5639
        %v5641 = vand.u32 %v5640, 4294901760
        %v5642 = vsub.f32 %v5640, %v5641
        %v5643 = vand.u32 %v5642, 4294901760
        %5644 = vmatpush.msra.mxu0 %v5643
        %v5645 = vand.u32 %v453, 4294901760
        %v5646 = vsub.f32 %v453, %v5645
        %v5647 = vand.u32 %v5646, 4294901760
        %v5648 = vsub.f32 %v5646, %v5647
        %v5649 = vand.u32 %v5648, 4294901760
        %5650 = vmatpush.msra.mxu0 %v5649
        %v5651 = vand.u32 %v445, 4294901760
        %v5652 = vsub.f32 %v445, %v5651
        %v5653 = vand.u32 %v5652, 4294901760
        %v5654 = vsub.f32 %v5652, %v5653
        %v5655 = vand.u32 %v5654, 4294901760
        %5656 = vmatpush.msra.mxu0 %v5655
        %v5657 = vand.u32 %v437, 4294901760
        %v5658 = vsub.f32 %v437, %v5657
        %v5659 = vand.u32 %v5658, 4294901760
        %v5660 = vsub.f32 %v5658, %v5659
        %v5661 = vand.u32 %v5660, 4294901760
        %5662 = vmatpush.msra.mxu0 %v5661
        %v5663 = vand.u32 %v429, 4294901760
        %v5664 = vsub.f32 %v429, %v5663
        %v5665 = vand.u32 %v5664, 4294901760
        %v5666 = vsub.f32 %v5664, %v5665
        %v5667 = vand.u32 %v5666, 4294901760
        %5668 = vmatpush.msra.mxu0 %v5667
        %v5669 = vand.u32 %v421, 4294901760
        %v5670 = vsub.f32 %v421, %v5669
        %v5671 = vand.u32 %v5670, 4294901760
        %v5672 = vsub.f32 %v5670, %v5671
        %v5673 = vand.u32 %v5672, 4294901760
        %5674 = vmatpush.msra.mxu0 %v5673
        %v5675 = vand.u32 %v413, 4294901760
        %v5676 = vsub.f32 %v413, %v5675
        %v5677 = vand.u32 %v5676, 4294901760
        %v5678 = vsub.f32 %v5676, %v5677
        %v5679 = vand.u32 %v5678, 4294901760
        %5680 = vmatpush.msra.mxu0 %v5679
        %v5681 = vand.u32 %v405, 4294901760
        %v5682 = vsub.f32 %v405, %v5681
        %v5683 = vand.u32 %v5682, 4294901760
        %v5684 = vsub.f32 %v5682, %v5683
        %v5685 = vand.u32 %v5684, 4294901760
        %5686 = vmatpush.msra.mxu0 %v5685
        %v5687 = vand.u32 %v397, 4294901760
        %v5688 = vsub.f32 %v397, %v5687
        %v5689 = vand.u32 %v5688, 4294901760
        %v5690 = vsub.f32 %v5688, %v5689
        %v5691 = vand.u32 %v5690, 4294901760
        %5692 = vmatpush.msra.mxu0 %v5691
        %v5693 = vand.u32 %v389, 4294901760
        %v5694 = vsub.f32 %v389, %v5693
        %v5695 = vand.u32 %v5694, 4294901760
        %v5696 = vsub.f32 %v5694, %v5695
        %v5697 = vand.u32 %v5696, 4294901760
        %5698 = vmatpush.msra.mxu0 %v5697
        %v5699 = vand.u32 %v737, 4294901760
        %5700 = vmatmul.f32.gmra.mxu0 %v5699
        %v5701 = vpop.f32.mrf.mxu0
        %v5702 = vadd.f32 %v5601, %v5701
        %5703 = vdwg.mxu0
        %v5704 = vand.u32 %v509, 4294901760
        %v5705 = vsub.f32 %v509, %v5704
        %5706 = vmatpush.msra.mxu0 %v5705
        %v5707 = vand.u32 %v501, 4294901760
        %v5708 = vsub.f32 %v501, %v5707
        %5709 = vmatpush.msra.mxu0 %v5708
        %v5710 = vand.u32 %v493, 4294901760
        %v5711 = vsub.f32 %v493, %v5710
        %5712 = vmatpush.msra.mxu0 %v5711
        %v5713 = vand.u32 %v485, 4294901760
        %v5714 = vsub.f32 %v485, %v5713
        %5715 = vmatpush.msra.mxu0 %v5714
        %v5716 = vand.u32 %v477, 4294901760
        %v5717 = vsub.f32 %v477, %v5716
        %5718 = vmatpush.msra.mxu0 %v5717
        %v5719 = vand.u32 %v469, 4294901760
        %v5720 = vsub.f32 %v469, %v5719
        %5721 = vmatpush.msra.mxu0 %v5720
        %v5722 = vand.u32 %v461, 4294901760
        %v5723 = vsub.f32 %v461, %v5722
        %5724 = vmatpush.msra.mxu0 %v5723
        %v5725 = vand.u32 %v453, 4294901760
        %v5726 = vsub.f32 %v453, %v5725
        %5727 = vmatpush.msra.mxu0 %v5726
        %v5728 = vand.u32 %v445, 4294901760
        %v5729 = vsub.f32 %v445, %v5728
        %5730 = vmatpush.msra.mxu0 %v5729
        %v5731 = vand.u32 %v437, 4294901760
        %v5732 = vsub.f32 %v437, %v5731
        %5733 = vmatpush.msra.mxu0 %v5732
        %v5734 = vand.u32 %v429, 4294901760
        %v5735 = vsub.f32 %v429, %v5734
        %5736 = vmatpush.msra.mxu0 %v5735
        %v5737 = vand.u32 %v421, 4294901760
        %v5738 = vsub.f32 %v421, %v5737
        %5739 = vmatpush.msra.mxu0 %v5738
        %v5740 = vand.u32 %v413, 4294901760
        %v5741 = vsub.f32 %v413, %v5740
        %5742 = vmatpush.msra.mxu0 %v5741
        %v5743 = vand.u32 %v405, 4294901760
        %v5744 = vsub.f32 %v405, %v5743
        %5745 = vmatpush.msra.mxu0 %v5744
        %v5746 = vand.u32 %v397, 4294901760
        %v5747 = vsub.f32 %v397, %v5746
        %5748 = vmatpush.msra.mxu0 %v5747
        %v5749 = vand.u32 %v389, 4294901760
        %v5750 = vsub.f32 %v389, %v5749
        %5751 = vmatpush.msra.mxu0 %v5750
        %v5752 = vand.u32 %v737, 4294901760
        %v5753 = vsub.f32 %v737, %v5752
        %5754 = vmatmul.f32.gmra.mxu0 %v5753
        %v5755 = vpop.f32.mrf.mxu0
        %v5756 = vadd.f32 %v5702, %v5755
        %5757 = vdwg.mxu0
        %v5758 = vand.u32 %v509, 4294901760
        %5759 = vmatpush.msra.mxu0 %v5758
        %v5760 = vand.u32 %v501, 4294901760
        %5761 = vmatpush.msra.mxu0 %v5760
        %v5762 = vand.u32 %v493, 4294901760
        %5763 = vmatpush.msra.mxu0 %v5762
        %v5764 = vand.u32 %v485, 4294901760
        %5765 = vmatpush.msra.mxu0 %v5764
        %v5766 = vand.u32 %v477, 4294901760
        %5767 = vmatpush.msra.mxu0 %v5766
        %v5768 = vand.u32 %v469, 4294901760
        %5769 = vmatpush.msra.mxu0 %v5768
        %v5770 = vand.u32 %v461, 4294901760
        %5771 = vmatpush.msra.mxu0 %v5770
        %v5772 = vand.u32 %v453, 4294901760
        %5773 = vmatpush.msra.mxu0 %v5772
        %v5774 = vand.u32 %v445, 4294901760
        %5775 = vmatpush.msra.mxu0 %v5774
        %v5776 = vand.u32 %v437, 4294901760
        %5777 = vmatpush.msra.mxu0 %v5776
        %v5778 = vand.u32 %v429, 4294901760
        %5779 = vmatpush.msra.mxu0 %v5778
        %v5780 = vand.u32 %v421, 4294901760
        %5781 = vmatpush.msra.mxu0 %v5780
        %v5782 = vand.u32 %v413, 4294901760
        %5783 = vmatpush.msra.mxu0 %v5782
        %v5784 = vand.u32 %v405, 4294901760
        %5785 = vmatpush.msra.mxu0 %v5784
        %v5786 = vand.u32 %v397, 4294901760
        %5787 = vmatpush.msra.mxu0 %v5786
        %v5788 = vand.u32 %v389, 4294901760
        %5789 = vmatpush.msra.mxu0 %v5788
        %v5790 = vand.u32 %v737, 4294901760
        %v5791 = vsub.f32 %v737, %v5790
        %v5792 = vand.u32 %v5791, 4294901760
        %5793 = vmatmul.f32.gmra.mxu0 %v5792
        %v5794 = vpop.f32.mrf.mxu0
        %v5795 = vadd.f32 %v5756, %v5794
        %5796 = vdwg.mxu0
        %v5797 = vand.u32 %v509, 4294901760
        %v5798 = vsub.f32 %v509, %v5797
        %v5799 = vand.u32 %v5798, 4294901760
        %5800 = vmatpush.msra.mxu0 %v5799
        %v5801 = vand.u32 %v501, 4294901760
        %v5802 = vsub.f32 %v501, %v5801
        %v5803 = vand.u32 %v5802, 4294901760
        %5804 = vmatpush.msra.mxu0 %v5803
        %v5805 = vand.u32 %v493, 4294901760
        %v5806 = vsub.f32 %v493, %v5805
        %v5807 = vand.u32 %v5806, 4294901760
        %5808 = vmatpush.msra.mxu0 %v5807
        %v5809 = vand.u32 %v485, 4294901760
        %v5810 = vsub.f32 %v485, %v5809
        %v5811 = vand.u32 %v5810, 4294901760
        %5812 = vmatpush.msra.mxu0 %v5811
        %v5813 = vand.u32 %v477, 4294901760
        %v5814 = vsub.f32 %v477, %v5813
        %v5815 = vand.u32 %v5814, 4294901760
        %5816 = vmatpush.msra.mxu0 %v5815
        %v5817 = vand.u32 %v469, 4294901760
        %v5818 = vsub.f32 %v469, %v5817
        %v5819 = vand.u32 %v5818, 4294901760
        %5820 = vmatpush.msra.mxu0 %v5819
        %v5821 = vand.u32 %v461, 4294901760
        %v5822 = vsub.f32 %v461, %v5821
        %v5823 = vand.u32 %v5822, 4294901760
        %5824 = vmatpush.msra.mxu0 %v5823
        %v5825 = vand.u32 %v453, 4294901760
        %v5826 = vsub.f32 %v453, %v5825
        %v5827 = vand.u32 %v5826, 4294901760
        %5828 = vmatpush.msra.mxu0 %v5827
        %v5829 = vand.u32 %v445, 4294901760
        %v5830 = vsub.f32 %v445, %v5829
        %v5831 = vand.u32 %v5830, 4294901760
        %5832 = vmatpush.msra.mxu0 %v5831
        %v5833 = vand.u32 %v437, 4294901760
        %v5834 = vsub.f32 %v437, %v5833
        %v5835 = vand.u32 %v5834, 4294901760
        %5836 = vmatpush.msra.mxu0 %v5835
        %v5837 = vand.u32 %v429, 4294901760
        %v5838 = vsub.f32 %v429, %v5837
        %v5839 = vand.u32 %v5838, 4294901760
        %5840 = vmatpush.msra.mxu0 %v5839
        %v5841 = vand.u32 %v421, 4294901760
        %v5842 = vsub.f32 %v421, %v5841
        %v5843 = vand.u32 %v5842, 4294901760
        %5844 = vmatpush.msra.mxu0 %v5843
        %v5845 = vand.u32 %v413, 4294901760
        %v5846 = vsub.f32 %v413, %v5845
        %v5847 = vand.u32 %v5846, 4294901760
        %5848 = vmatpush.msra.mxu0 %v5847
        %v5849 = vand.u32 %v405, 4294901760
        %v5850 = vsub.f32 %v405, %v5849
        %v5851 = vand.u32 %v5850, 4294901760
        %5852 = vmatpush.msra.mxu0 %v5851
        %v5853 = vand.u32 %v397, 4294901760
        %v5854 = vsub.f32 %v397, %v5853
        %v5855 = vand.u32 %v5854, 4294901760
        %5856 = vmatpush.msra.mxu0 %v5855
        %v5857 = vand.u32 %v389, 4294901760
        %v5858 = vsub.f32 %v389, %v5857
        %v5859 = vand.u32 %v5858, 4294901760
        %5860 = vmatpush.msra.mxu0 %v5859
        %v5861 = vand.u32 %v737, 4294901760
        %5862 = vmatmul.f32.gmra.mxu0 %v5861
        %v5863 = vpop.f32.mrf.mxu0
        %v5864 = vadd.f32 %v5795, %v5863
        %5865 = vdwg.mxu0
        %v5866 = vand.u32 %v509, 4294901760
        %5867 = vmatpush.msra.mxu0 %v5866
        %v5868 = vand.u32 %v501, 4294901760
        %5869 = vmatpush.msra.mxu0 %v5868
        %v5870 = vand.u32 %v493, 4294901760
        %5871 = vmatpush.msra.mxu0 %v5870
        %v5872 = vand.u32 %v485, 4294901760
        %5873 = vmatpush.msra.mxu0 %v5872
        %v5874 = vand.u32 %v477, 4294901760
        %5875 = vmatpush.msra.mxu0 %v5874
        %v5876 = vand.u32 %v469, 4294901760
        %5877 = vmatpush.msra.mxu0 %v5876
        %v5878 = vand.u32 %v461, 4294901760
        %5879 = vmatpush.msra.mxu0 %v5878
        %v5880 = vand.u32 %v453, 4294901760
        %5881 = vmatpush.msra.mxu0 %v5880
        %v5882 = vand.u32 %v445, 4294901760
        %5883 = vmatpush.msra.mxu0 %v5882
        %v5884 = vand.u32 %v437, 4294901760
        %5885 = vmatpush.msra.mxu0 %v5884
        %v5886 = vand.u32 %v429, 4294901760
        %5887 = vmatpush.msra.mxu0 %v5886
        %v5888 = vand.u32 %v421, 4294901760
        %5889 = vmatpush.msra.mxu0 %v5888
        %v5890 = vand.u32 %v413, 4294901760
        %5891 = vmatpush.msra.mxu0 %v5890
        %v5892 = vand.u32 %v405, 4294901760
        %5893 = vmatpush.msra.mxu0 %v5892
        %v5894 = vand.u32 %v397, 4294901760
        %5895 = vmatpush.msra.mxu0 %v5894
        %v5896 = vand.u32 %v389, 4294901760
        %5897 = vmatpush.msra.mxu0 %v5896
        %v5898 = vand.u32 %v737, 4294901760
        %5899 = vmatmul.f32.gmra.mxu0 %v5898
        %v5900 = vpop.f32.mrf.mxu0
        %v5901 = vadd.f32 %v5864, %v5900
        %5902 = vdwg.mxu0
        %v5903 = vand.u32 %v637, 4294901760
        %5904 = vmatpush.msra.mxu0 %v5903
        %v5905 = vand.u32 %v629, 4294901760
        %5906 = vmatpush.msra.mxu0 %v5905
        %v5907 = vand.u32 %v621, 4294901760
        %5908 = vmatpush.msra.mxu0 %v5907
        %v5909 = vand.u32 %v613, 4294901760
        %5910 = vmatpush.msra.mxu0 %v5909
        %v5911 = vand.u32 %v605, 4294901760
        %5912 = vmatpush.msra.mxu0 %v5911
        %v5913 = vand.u32 %v597, 4294901760
        %5914 = vmatpush.msra.mxu0 %v5913
        %v5915 = vand.u32 %v589, 4294901760
        %5916 = vmatpush.msra.mxu0 %v5915
        %v5917 = vand.u32 %v581, 4294901760
        %5918 = vmatpush.msra.mxu0 %v5917
        %v5919 = vand.u32 %v573, 4294901760
        %5920 = vmatpush.msra.mxu0 %v5919
        %v5921 = vand.u32 %v565, 4294901760
        %5922 = vmatpush.msra.mxu0 %v5921
        %v5923 = vand.u32 %v557, 4294901760
        %5924 = vmatpush.msra.mxu0 %v5923
        %v5925 = vand.u32 %v549, 4294901760
        %5926 = vmatpush.msra.mxu0 %v5925
        %v5927 = vand.u32 %v541, 4294901760
        %5928 = vmatpush.msra.mxu0 %v5927
        %v5929 = vand.u32 %v533, 4294901760
        %5930 = vmatpush.msra.mxu0 %v5929
        %v5931 = vand.u32 %v525, 4294901760
        %5932 = vmatpush.msra.mxu0 %v5931
        %v5933 = vand.u32 %v517, 4294901760
        %5934 = vmatpush.msra.mxu0 %v5933
        %v5935 = vand.u32 %v738, 4294901760
        %v5936 = vsub.f32 %v738, %v5935
        %v5937 = vand.u32 %v5936, 4294901760
        %v5938 = vsub.f32 %v5936, %v5937
        %v5939 = vand.u32 %v5938, 4294901760
        %5940 = vmatmul.f32.gmra.mxu0 %v5939
        %v5941 = vpop.f32.mrf.mxu0
        %v5942 = vadd.f32 %v5901, %v5941
        %5943 = vdwg.mxu0
        %v5944 = vand.u32 %v637, 4294901760
        %v5945 = vsub.f32 %v637, %v5944
        %v5946 = vand.u32 %v5945, 4294901760
        %v5947 = vsub.f32 %v5945, %v5946
        %v5948 = vand.u32 %v5947, 4294901760
        %5949 = vmatpush.msra.mxu0 %v5948
        %v5950 = vand.u32 %v629, 4294901760
        %v5951 = vsub.f32 %v629, %v5950
        %v5952 = vand.u32 %v5951, 4294901760
        %v5953 = vsub.f32 %v5951, %v5952
        %v5954 = vand.u32 %v5953, 4294901760
        %5955 = vmatpush.msra.mxu0 %v5954
        %v5956 = vand.u32 %v621, 4294901760
        %v5957 = vsub.f32 %v621, %v5956
        %v5958 = vand.u32 %v5957, 4294901760
        %v5959 = vsub.f32 %v5957, %v5958
        %v5960 = vand.u32 %v5959, 4294901760
        %5961 = vmatpush.msra.mxu0 %v5960
        %v5962 = vand.u32 %v613, 4294901760
        %v5963 = vsub.f32 %v613, %v5962
        %v5964 = vand.u32 %v5963, 4294901760
        %v5965 = vsub.f32 %v5963, %v5964
        %v5966 = vand.u32 %v5965, 4294901760
        %5967 = vmatpush.msra.mxu0 %v5966
        %v5968 = vand.u32 %v605, 4294901760
        %v5969 = vsub.f32 %v605, %v5968
        %v5970 = vand.u32 %v5969, 4294901760
        %v5971 = vsub.f32 %v5969, %v5970
        %v5972 = vand.u32 %v5971, 4294901760
        %5973 = vmatpush.msra.mxu0 %v5972
        %v5974 = vand.u32 %v597, 4294901760
        %v5975 = vsub.f32 %v597, %v5974
        %v5976 = vand.u32 %v5975, 4294901760
        %v5977 = vsub.f32 %v5975, %v5976
        %v5978 = vand.u32 %v5977, 4294901760
        %5979 = vmatpush.msra.mxu0 %v5978
        %v5980 = vand.u32 %v589, 4294901760
        %v5981 = vsub.f32 %v589, %v5980
        %v5982 = vand.u32 %v5981, 4294901760
        %v5983 = vsub.f32 %v5981, %v5982
        %v5984 = vand.u32 %v5983, 4294901760
        %5985 = vmatpush.msra.mxu0 %v5984
        %v5986 = vand.u32 %v581, 4294901760
        %v5987 = vsub.f32 %v581, %v5986
        %v5988 = vand.u32 %v5987, 4294901760
        %v5989 = vsub.f32 %v5987, %v5988
        %v5990 = vand.u32 %v5989, 4294901760
        %5991 = vmatpush.msra.mxu0 %v5990
        %v5992 = vand.u32 %v573, 4294901760
        %v5993 = vsub.f32 %v573, %v5992
        %v5994 = vand.u32 %v5993, 4294901760
        %v5995 = vsub.f32 %v5993, %v5994
        %v5996 = vand.u32 %v5995, 4294901760
        %5997 = vmatpush.msra.mxu0 %v5996
        %v5998 = vand.u32 %v565, 4294901760
        %v5999 = vsub.f32 %v565, %v5998
        %v6000 = vand.u32 %v5999, 4294901760
        %v6001 = vsub.f32 %v5999, %v6000
        %v6002 = vand.u32 %v6001, 4294901760
        %6003 = vmatpush.msra.mxu0 %v6002
        %v6004 = vand.u32 %v557, 4294901760
        %v6005 = vsub.f32 %v557, %v6004
        %v6006 = vand.u32 %v6005, 4294901760
        %v6007 = vsub.f32 %v6005, %v6006
        %v6008 = vand.u32 %v6007, 4294901760
        %6009 = vmatpush.msra.mxu0 %v6008
        %v6010 = vand.u32 %v549, 4294901760
        %v6011 = vsub.f32 %v549, %v6010
        %v6012 = vand.u32 %v6011, 4294901760
        %v6013 = vsub.f32 %v6011, %v6012
        %v6014 = vand.u32 %v6013, 4294901760
        %6015 = vmatpush.msra.mxu0 %v6014
        %v6016 = vand.u32 %v541, 4294901760
        %v6017 = vsub.f32 %v541, %v6016
        %v6018 = vand.u32 %v6017, 4294901760
        %v6019 = vsub.f32 %v6017, %v6018
        %v6020 = vand.u32 %v6019, 4294901760
        %6021 = vmatpush.msra.mxu0 %v6020
        %v6022 = vand.u32 %v533, 4294901760
        %v6023 = vsub.f32 %v533, %v6022
        %v6024 = vand.u32 %v6023, 4294901760
        %v6025 = vsub.f32 %v6023, %v6024
        %v6026 = vand.u32 %v6025, 4294901760
        %6027 = vmatpush.msra.mxu0 %v6026
        %v6028 = vand.u32 %v525, 4294901760
        %v6029 = vsub.f32 %v525, %v6028
        %v6030 = vand.u32 %v6029, 4294901760
        %v6031 = vsub.f32 %v6029, %v6030
        %v6032 = vand.u32 %v6031, 4294901760
        %6033 = vmatpush.msra.mxu0 %v6032
        %v6034 = vand.u32 %v517, 4294901760
        %v6035 = vsub.f32 %v517, %v6034
        %v6036 = vand.u32 %v6035, 4294901760
        %v6037 = vsub.f32 %v6035, %v6036
        %v6038 = vand.u32 %v6037, 4294901760
        %6039 = vmatpush.msra.mxu0 %v6038
        %v6040 = vand.u32 %v738, 4294901760
        %6041 = vmatmul.f32.gmra.mxu0 %v6040
        %v6042 = vpop.f32.mrf.mxu0
        %v6043 = vadd.f32 %v5942, %v6042
        %6044 = vdwg.mxu0
        %v6045 = vand.u32 %v637, 4294901760
        %v6046 = vsub.f32 %v637, %v6045
        %6047 = vmatpush.msra.mxu0 %v6046
        %v6048 = vand.u32 %v629, 4294901760
        %v6049 = vsub.f32 %v629, %v6048
        %6050 = vmatpush.msra.mxu0 %v6049
        %v6051 = vand.u32 %v621, 4294901760
        %v6052 = vsub.f32 %v621, %v6051
        %6053 = vmatpush.msra.mxu0 %v6052
        %v6054 = vand.u32 %v613, 4294901760
        %v6055 = vsub.f32 %v613, %v6054
        %6056 = vmatpush.msra.mxu0 %v6055
        %v6057 = vand.u32 %v605, 4294901760
        %v6058 = vsub.f32 %v605, %v6057
        %6059 = vmatpush.msra.mxu0 %v6058
        %v6060 = vand.u32 %v597, 4294901760
        %v6061 = vsub.f32 %v597, %v6060
        %6062 = vmatpush.msra.mxu0 %v6061
        %v6063 = vand.u32 %v589, 4294901760
        %v6064 = vsub.f32 %v589, %v6063
        %6065 = vmatpush.msra.mxu0 %v6064
        %v6066 = vand.u32 %v581, 4294901760
        %v6067 = vsub.f32 %v581, %v6066
        %6068 = vmatpush.msra.mxu0 %v6067
        %v6069 = vand.u32 %v573, 4294901760
        %v6070 = vsub.f32 %v573, %v6069
        %6071 = vmatpush.msra.mxu0 %v6070
        %v6072 = vand.u32 %v565, 4294901760
        %v6073 = vsub.f32 %v565, %v6072
        %6074 = vmatpush.msra.mxu0 %v6073
        %v6075 = vand.u32 %v557, 4294901760
        %v6076 = vsub.f32 %v557, %v6075
        %6077 = vmatpush.msra.mxu0 %v6076
        %v6078 = vand.u32 %v549, 4294901760
        %v6079 = vsub.f32 %v549, %v6078
        %6080 = vmatpush.msra.mxu0 %v6079
        %v6081 = vand.u32 %v541, 4294901760
        %v6082 = vsub.f32 %v541, %v6081
        %6083 = vmatpush.msra.mxu0 %v6082
        %v6084 = vand.u32 %v533, 4294901760
        %v6085 = vsub.f32 %v533, %v6084
        %6086 = vmatpush.msra.mxu0 %v6085
        %v6087 = vand.u32 %v525, 4294901760
        %v6088 = vsub.f32 %v525, %v6087
        %6089 = vmatpush.msra.mxu0 %v6088
        %v6090 = vand.u32 %v517, 4294901760
        %v6091 = vsub.f32 %v517, %v6090
        %6092 = vmatpush.msra.mxu0 %v6091
        %v6093 = vand.u32 %v738, 4294901760
        %v6094 = vsub.f32 %v738, %v6093
        %6095 = vmatmul.f32.gmra.mxu0 %v6094
        %v6096 = vpop.f32.mrf.mxu0
        %v6097 = vadd.f32 %v6043, %v6096
        %6098 = vdwg.mxu0
        %v6099 = vand.u32 %v637, 4294901760
        %6100 = vmatpush.msra.mxu0 %v6099
        %v6101 = vand.u32 %v629, 4294901760
        %6102 = vmatpush.msra.mxu0 %v6101
        %v6103 = vand.u32 %v621, 4294901760
        %6104 = vmatpush.msra.mxu0 %v6103
        %v6105 = vand.u32 %v613, 4294901760
        %6106 = vmatpush.msra.mxu0 %v6105
        %v6107 = vand.u32 %v605, 4294901760
        %6108 = vmatpush.msra.mxu0 %v6107
        %v6109 = vand.u32 %v597, 4294901760
        %6110 = vmatpush.msra.mxu0 %v6109
        %v6111 = vand.u32 %v589, 4294901760
        %6112 = vmatpush.msra.mxu0 %v6111
        %v6113 = vand.u32 %v581, 4294901760
        %6114 = vmatpush.msra.mxu0 %v6113
        %v6115 = vand.u32 %v573, 4294901760
        %6116 = vmatpush.msra.mxu0 %v6115
        %v6117 = vand.u32 %v565, 4294901760
        %6118 = vmatpush.msra.mxu0 %v6117
        %v6119 = vand.u32 %v557, 4294901760
        %6120 = vmatpush.msra.mxu0 %v6119
        %v6121 = vand.u32 %v549, 4294901760
        %6122 = vmatpush.msra.mxu0 %v6121
        %v6123 = vand.u32 %v541, 4294901760
        %6124 = vmatpush.msra.mxu0 %v6123
        %v6125 = vand.u32 %v533, 4294901760
        %6126 = vmatpush.msra.mxu0 %v6125
        %v6127 = vand.u32 %v525, 4294901760
        %6128 = vmatpush.msra.mxu0 %v6127
        %v6129 = vand.u32 %v517, 4294901760
        %6130 = vmatpush.msra.mxu0 %v6129
        %v6131 = vand.u32 %v738, 4294901760
        %v6132 = vsub.f32 %v738, %v6131
        %v6133 = vand.u32 %v6132, 4294901760
        %6134 = vmatmul.f32.gmra.mxu0 %v6133
        %v6135 = vpop.f32.mrf.mxu0
        %v6136 = vadd.f32 %v6097, %v6135
        %6137 = vdwg.mxu0
        %v6138 = vand.u32 %v637, 4294901760
        %v6139 = vsub.f32 %v637, %v6138
        %v6140 = vand.u32 %v6139, 4294901760
        %6141 = vmatpush.msra.mxu0 %v6140
        %v6142 = vand.u32 %v629, 4294901760
        %v6143 = vsub.f32 %v629, %v6142
        %v6144 = vand.u32 %v6143, 4294901760
        %6145 = vmatpush.msra.mxu0 %v6144
        %v6146 = vand.u32 %v621, 4294901760
        %v6147 = vsub.f32 %v621, %v6146
        %v6148 = vand.u32 %v6147, 4294901760
        %6149 = vmatpush.msra.mxu0 %v6148
        %v6150 = vand.u32 %v613, 4294901760
        %v6151 = vsub.f32 %v613, %v6150
        %v6152 = vand.u32 %v6151, 4294901760
        %6153 = vmatpush.msra.mxu0 %v6152
        %v6154 = vand.u32 %v605, 4294901760
        %v6155 = vsub.f32 %v605, %v6154
        %v6156 = vand.u32 %v6155, 4294901760
        %6157 = vmatpush.msra.mxu0 %v6156
        %v6158 = vand.u32 %v597, 4294901760
        %v6159 = vsub.f32 %v597, %v6158
        %v6160 = vand.u32 %v6159, 4294901760
        %6161 = vmatpush.msra.mxu0 %v6160
        %v6162 = vand.u32 %v589, 4294901760
        %v6163 = vsub.f32 %v589, %v6162
        %v6164 = vand.u32 %v6163, 4294901760
        %6165 = vmatpush.msra.mxu0 %v6164
        %v6166 = vand.u32 %v581, 4294901760
        %v6167 = vsub.f32 %v581, %v6166
        %v6168 = vand.u32 %v6167, 4294901760
        %6169 = vmatpush.msra.mxu0 %v6168
        %v6170 = vand.u32 %v573, 4294901760
        %v6171 = vsub.f32 %v573, %v6170
        %v6172 = vand.u32 %v6171, 4294901760
        %6173 = vmatpush.msra.mxu0 %v6172
        %v6174 = vand.u32 %v565, 4294901760
        %v6175 = vsub.f32 %v565, %v6174
        %v6176 = vand.u32 %v6175, 4294901760
        %6177 = vmatpush.msra.mxu0 %v6176
        %v6178 = vand.u32 %v557, 4294901760
        %v6179 = vsub.f32 %v557, %v6178
        %v6180 = vand.u32 %v6179, 4294901760
        %6181 = vmatpush.msra.mxu0 %v6180
        %v6182 = vand.u32 %v549, 4294901760
        %v6183 = vsub.f32 %v549, %v6182
        %v6184 = vand.u32 %v6183, 4294901760
        %6185 = vmatpush.msra.mxu0 %v6184
        %v6186 = vand.u32 %v541, 4294901760
        %v6187 = vsub.f32 %v541, %v6186
        %v6188 = vand.u32 %v6187, 4294901760
        %6189 = vmatpush.msra.mxu0 %v6188
        %v6190 = vand.u32 %v533, 4294901760
        %v6191 = vsub.f32 %v533, %v6190
        %v6192 = vand.u32 %v6191, 4294901760
        %6193 = vmatpush.msra.mxu0 %v6192
        %v6194 = vand.u32 %v525, 4294901760
        %v6195 = vsub.f32 %v525, %v6194
        %v6196 = vand.u32 %v6195, 4294901760
        %6197 = vmatpush.msra.mxu0 %v6196
        %v6198 = vand.u32 %v517, 4294901760
        %v6199 = vsub.f32 %v517, %v6198
        %v6200 = vand.u32 %v6199, 4294901760
        %6201 = vmatpush.msra.mxu0 %v6200
        %v6202 = vand.u32 %v738, 4294901760
        %6203 = vmatmul.f32.gmra.mxu0 %v6202
        %v6204 = vpop.f32.mrf.mxu0
        %v6205 = vadd.f32 %v6136, %v6204
        %6206 = vdwg.mxu0
        %v6207 = vand.u32 %v637, 4294901760
        %6208 = vmatpush.msra.mxu0 %v6207
        %v6209 = vand.u32 %v629, 4294901760
        %6210 = vmatpush.msra.mxu0 %v6209
        %v6211 = vand.u32 %v621, 4294901760
        %6212 = vmatpush.msra.mxu0 %v6211
        %v6213 = vand.u32 %v613, 4294901760
        %6214 = vmatpush.msra.mxu0 %v6213
        %v6215 = vand.u32 %v605, 4294901760
        %6216 = vmatpush.msra.mxu0 %v6215
        %v6217 = vand.u32 %v597, 4294901760
        %6218 = vmatpush.msra.mxu0 %v6217
        %v6219 = vand.u32 %v589, 4294901760
        %6220 = vmatpush.msra.mxu0 %v6219
        %v6221 = vand.u32 %v581, 4294901760
        %6222 = vmatpush.msra.mxu0 %v6221
        %v6223 = vand.u32 %v573, 4294901760
        %6224 = vmatpush.msra.mxu0 %v6223
        %v6225 = vand.u32 %v565, 4294901760
        %6226 = vmatpush.msra.mxu0 %v6225
        %v6227 = vand.u32 %v557, 4294901760
        %6228 = vmatpush.msra.mxu0 %v6227
        %v6229 = vand.u32 %v549, 4294901760
        %6230 = vmatpush.msra.mxu0 %v6229
        %v6231 = vand.u32 %v541, 4294901760
        %6232 = vmatpush.msra.mxu0 %v6231
        %v6233 = vand.u32 %v533, 4294901760
        %6234 = vmatpush.msra.mxu0 %v6233
        %v6235 = vand.u32 %v525, 4294901760
        %6236 = vmatpush.msra.mxu0 %v6235
        %v6237 = vand.u32 %v517, 4294901760
        %6238 = vmatpush.msra.mxu0 %v6237
        %v6239 = vand.u32 %v738, 4294901760
        %6240 = vmatmul.f32.gmra.mxu0 %v6239
        %v6241 = vpop.f32.mrf.mxu0
        %v6242 = vadd.f32 %v6205, %v6241
        %6243 = vdwg.mxu0
        %6244 = vmatpush.msra.mxu0 0.0
        %6245 = vmatpush.msra.mxu0 0.0
        %6246 = vmatpush.msra.mxu0 0.0
        %6247 = vmatpush.msra.mxu0 0.0
        %6248 = vmatpush.msra.mxu0 0.0
        %v6249 = vand.u32 %v725, 4294901760
        %6250 = vmatpush.msra.mxu0 %v6249
        %v6251 = vand.u32 %v717, 4294901760
        %6252 = vmatpush.msra.mxu0 %v6251
        %v6253 = vand.u32 %v709, 4294901760
        %6254 = vmatpush.msra.mxu0 %v6253
        %v6255 = vand.u32 %v701, 4294901760
        %6256 = vmatpush.msra.mxu0 %v6255
        %v6257 = vand.u32 %v693, 4294901760
        %6258 = vmatpush.msra.mxu0 %v6257
        %v6259 = vand.u32 %v685, 4294901760
        %6260 = vmatpush.msra.mxu0 %v6259
        %v6261 = vand.u32 %v677, 4294901760
        %6262 = vmatpush.msra.mxu0 %v6261
        %v6263 = vand.u32 %v669, 4294901760
        %6264 = vmatpush.msra.mxu0 %v6263
        %v6265 = vand.u32 %v661, 4294901760
        %6266 = vmatpush.msra.mxu0 %v6265
        %v6267 = vand.u32 %v653, 4294901760
        %6268 = vmatpush.msra.mxu0 %v6267
        %v6269 = vand.u32 %v645, 4294901760
        %6270 = vmatpush.msra.mxu0 %v6269
        %v6271 = vand.u32 %v770, 4294901760
        %v6272 = vsub.f32 %v770, %v6271
        %v6273 = vand.u32 %v6272, 4294901760
        %v6274 = vsub.f32 %v6272, %v6273
        %v6275 = vand.u32 %v6274, 4294901760
        %6276 = vmatmul.f32.gmra.mxu0 %v6275
        %v6277 = vpop.f32.mrf.mxu0
        %v6278 = vadd.f32 %v6242, %v6277
        %6279 = vdwg.mxu0
        %6280 = vmatpush.msra.mxu0 0.0
        %6281 = vmatpush.msra.mxu0 0.0
        %6282 = vmatpush.msra.mxu0 0.0
        %6283 = vmatpush.msra.mxu0 0.0
        %6284 = vmatpush.msra.mxu0 0.0
        %v6285 = vand.u32 %v725, 4294901760
        %v6286 = vsub.f32 %v725, %v6285
        %v6287 = vand.u32 %v6286, 4294901760
        %v6288 = vsub.f32 %v6286, %v6287
        %v6289 = vand.u32 %v6288, 4294901760
        %6290 = vmatpush.msra.mxu0 %v6289
        %v6291 = vand.u32 %v717, 4294901760
        %v6292 = vsub.f32 %v717, %v6291
        %v6293 = vand.u32 %v6292, 4294901760
        %v6294 = vsub.f32 %v6292, %v6293
        %v6295 = vand.u32 %v6294, 4294901760
        %6296 = vmatpush.msra.mxu0 %v6295
        %v6297 = vand.u32 %v709, 4294901760
        %v6298 = vsub.f32 %v709, %v6297
        %v6299 = vand.u32 %v6298, 4294901760
        %v6300 = vsub.f32 %v6298, %v6299
        %v6301 = vand.u32 %v6300, 4294901760
        %6302 = vmatpush.msra.mxu0 %v6301
        %v6303 = vand.u32 %v701, 4294901760
        %v6304 = vsub.f32 %v701, %v6303
        %v6305 = vand.u32 %v6304, 4294901760
        %v6306 = vsub.f32 %v6304, %v6305
        %v6307 = vand.u32 %v6306, 4294901760
        %6308 = vmatpush.msra.mxu0 %v6307
        %v6309 = vand.u32 %v693, 4294901760
        %v6310 = vsub.f32 %v693, %v6309
        %v6311 = vand.u32 %v6310, 4294901760
        %v6312 = vsub.f32 %v6310, %v6311
        %v6313 = vand.u32 %v6312, 4294901760
        %6314 = vmatpush.msra.mxu0 %v6313
        %v6315 = vand.u32 %v685, 4294901760
        %v6316 = vsub.f32 %v685, %v6315
        %v6317 = vand.u32 %v6316, 4294901760
        %v6318 = vsub.f32 %v6316, %v6317
        %v6319 = vand.u32 %v6318, 4294901760
        %6320 = vmatpush.msra.mxu0 %v6319
        %v6321 = vand.u32 %v677, 4294901760
        %v6322 = vsub.f32 %v677, %v6321
        %v6323 = vand.u32 %v6322, 4294901760
        %v6324 = vsub.f32 %v6322, %v6323
        %v6325 = vand.u32 %v6324, 4294901760
        %6326 = vmatpush.msra.mxu0 %v6325
        %v6327 = vand.u32 %v669, 4294901760
        %v6328 = vsub.f32 %v669, %v6327
        %v6329 = vand.u32 %v6328, 4294901760
        %v6330 = vsub.f32 %v6328, %v6329
        %v6331 = vand.u32 %v6330, 4294901760
        %6332 = vmatpush.msra.mxu0 %v6331
        %v6333 = vand.u32 %v661, 4294901760
        %v6334 = vsub.f32 %v661, %v6333
        %v6335 = vand.u32 %v6334, 4294901760
        %v6336 = vsub.f32 %v6334, %v6335
        %v6337 = vand.u32 %v6336, 4294901760
        %6338 = vmatpush.msra.mxu0 %v6337
        %v6339 = vand.u32 %v653, 4294901760
        %v6340 = vsub.f32 %v653, %v6339
        %v6341 = vand.u32 %v6340, 4294901760
        %v6342 = vsub.f32 %v6340, %v6341
        %v6343 = vand.u32 %v6342, 4294901760
        %6344 = vmatpush.msra.mxu0 %v6343
        %v6345 = vand.u32 %v645, 4294901760
        %v6346 = vsub.f32 %v645, %v6345
        %v6347 = vand.u32 %v6346, 4294901760
        %v6348 = vsub.f32 %v6346, %v6347
        %v6349 = vand.u32 %v6348, 4294901760
        %6350 = vmatpush.msra.mxu0 %v6349
        %v6351 = vand.u32 %v770, 4294901760
        %6352 = vmatmul.f32.gmra.mxu0 %v6351
        %v6353 = vpop.f32.mrf.mxu0
        %v6354 = vadd.f32 %v6278, %v6353
        %6355 = vdwg.mxu0
        %6356 = vmatpush.msra.mxu0 0.0
        %6357 = vmatpush.msra.mxu0 0.0
        %6358 = vmatpush.msra.mxu0 0.0
        %6359 = vmatpush.msra.mxu0 0.0
        %6360 = vmatpush.msra.mxu0 0.0
        %v6361 = vand.u32 %v725, 4294901760
        %v6362 = vsub.f32 %v725, %v6361
        %6363 = vmatpush.msra.mxu0 %v6362
        %v6364 = vand.u32 %v717, 4294901760
        %v6365 = vsub.f32 %v717, %v6364
        %6366 = vmatpush.msra.mxu0 %v6365
        %v6367 = vand.u32 %v709, 4294901760
        %v6368 = vsub.f32 %v709, %v6367
        %6369 = vmatpush.msra.mxu0 %v6368
        %v6370 = vand.u32 %v701, 4294901760
        %v6371 = vsub.f32 %v701, %v6370
        %6372 = vmatpush.msra.mxu0 %v6371
        %v6373 = vand.u32 %v693, 4294901760
        %v6374 = vsub.f32 %v693, %v6373
        %6375 = vmatpush.msra.mxu0 %v6374
        %v6376 = vand.u32 %v685, 4294901760
        %v6377 = vsub.f32 %v685, %v6376
        %6378 = vmatpush.msra.mxu0 %v6377
        %v6379 = vand.u32 %v677, 4294901760
        %v6380 = vsub.f32 %v677, %v6379
        %6381 = vmatpush.msra.mxu0 %v6380
        %v6382 = vand.u32 %v669, 4294901760
        %v6383 = vsub.f32 %v669, %v6382
        %6384 = vmatpush.msra.mxu0 %v6383
        %v6385 = vand.u32 %v661, 4294901760
        %v6386 = vsub.f32 %v661, %v6385
        %6387 = vmatpush.msra.mxu0 %v6386
        %v6388 = vand.u32 %v653, 4294901760
        %v6389 = vsub.f32 %v653, %v6388
        %6390 = vmatpush.msra.mxu0 %v6389
        %v6391 = vand.u32 %v645, 4294901760
        %v6392 = vsub.f32 %v645, %v6391
        %6393 = vmatpush.msra.mxu0 %v6392
        %v6394 = vand.u32 %v770, 4294901760
        %v6395 = vsub.f32 %v770, %v6394
        %6396 = vmatmul.f32.gmra.mxu0 %v6395
        %v6397 = vpop.f32.mrf.mxu0
        %v6398 = vadd.f32 %v6354, %v6397
        %6399 = vdwg.mxu0
        %6400 = vmatpush.msra.mxu0 0.0
        %6401 = vmatpush.msra.mxu0 0.0
        %6402 = vmatpush.msra.mxu0 0.0
        %6403 = vmatpush.msra.mxu0 0.0
        %6404 = vmatpush.msra.mxu0 0.0
        %v6405 = vand.u32 %v725, 4294901760
        %6406 = vmatpush.msra.mxu0 %v6405
        %v6407 = vand.u32 %v717, 4294901760
        %6408 = vmatpush.msra.mxu0 %v6407
        %v6409 = vand.u32 %v709, 4294901760
        %6410 = vmatpush.msra.mxu0 %v6409
        %v6411 = vand.u32 %v701, 4294901760
        %6412 = vmatpush.msra.mxu0 %v6411
        %v6413 = vand.u32 %v693, 4294901760
        %6414 = vmatpush.msra.mxu0 %v6413
        %v6415 = vand.u32 %v685, 4294901760
        %6416 = vmatpush.msra.mxu0 %v6415
        %v6417 = vand.u32 %v677, 4294901760
        %6418 = vmatpush.msra.mxu0 %v6417
        %v6419 = vand.u32 %v669, 4294901760
        %6420 = vmatpush.msra.mxu0 %v6419
        %v6421 = vand.u32 %v661, 4294901760
        %6422 = vmatpush.msra.mxu0 %v6421
        %v6423 = vand.u32 %v653, 4294901760
        %6424 = vmatpush.msra.mxu0 %v6423
        %v6425 = vand.u32 %v645, 4294901760
        %6426 = vmatpush.msra.mxu0 %v6425
        %v6427 = vand.u32 %v770, 4294901760
        %v6428 = vsub.f32 %v770, %v6427
        %v6429 = vand.u32 %v6428, 4294901760
        %6430 = vmatmul.f32.gmra.mxu0 %v6429
        %v6431 = vpop.f32.mrf.mxu0
        %v6432 = vadd.f32 %v6398, %v6431
        %6433 = vdwg.mxu0
        %6434 = vmatpush.msra.mxu0 0.0
        %6435 = vmatpush.msra.mxu0 0.0
        %6436 = vmatpush.msra.mxu0 0.0
        %6437 = vmatpush.msra.mxu0 0.0
        %6438 = vmatpush.msra.mxu0 0.0
        %v6439 = vand.u32 %v725, 4294901760
        %v6440 = vsub.f32 %v725, %v6439
        %v6441 = vand.u32 %v6440, 4294901760
        %6442 = vmatpush.msra.mxu0 %v6441
        %v6443 = vand.u32 %v717, 4294901760
        %v6444 = vsub.f32 %v717, %v6443
        %v6445 = vand.u32 %v6444, 4294901760
        %6446 = vmatpush.msra.mxu0 %v6445
        %v6447 = vand.u32 %v709, 4294901760
        %v6448 = vsub.f32 %v709, %v6447
        %v6449 = vand.u32 %v6448, 4294901760
        %6450 = vmatpush.msra.mxu0 %v6449
        %v6451 = vand.u32 %v701, 4294901760
        %v6452 = vsub.f32 %v701, %v6451
        %v6453 = vand.u32 %v6452, 4294901760
        %6454 = vmatpush.msra.mxu0 %v6453
        %v6455 = vand.u32 %v693, 4294901760
        %v6456 = vsub.f32 %v693, %v6455
        %v6457 = vand.u32 %v6456, 4294901760
        %6458 = vmatpush.msra.mxu0 %v6457
        %v6459 = vand.u32 %v685, 4294901760
        %v6460 = vsub.f32 %v685, %v6459
        %v6461 = vand.u32 %v6460, 4294901760
        %6462 = vmatpush.msra.mxu0 %v6461
        %v6463 = vand.u32 %v677, 4294901760
        %v6464 = vsub.f32 %v677, %v6463
        %v6465 = vand.u32 %v6464, 4294901760
        %6466 = vmatpush.msra.mxu0 %v6465
        %v6467 = vand.u32 %v669, 4294901760
        %v6468 = vsub.f32 %v669, %v6467
        %v6469 = vand.u32 %v6468, 4294901760
        %6470 = vmatpush.msra.mxu0 %v6469
        %v6471 = vand.u32 %v661, 4294901760
        %v6472 = vsub.f32 %v661, %v6471
        %v6473 = vand.u32 %v6472, 4294901760
        %6474 = vmatpush.msra.mxu0 %v6473
        %v6475 = vand.u32 %v653, 4294901760
        %v6476 = vsub.f32 %v653, %v6475
        %v6477 = vand.u32 %v6476, 4294901760
        %6478 = vmatpush.msra.mxu0 %v6477
        %v6479 = vand.u32 %v645, 4294901760
        %v6480 = vsub.f32 %v645, %v6479
        %v6481 = vand.u32 %v6480, 4294901760
        %6482 = vmatpush.msra.mxu0 %v6481
        %v6483 = vand.u32 %v770, 4294901760
        %6484 = vmatmul.f32.gmra.mxu0 %v6483
        %v6485 = vpop.f32.mrf.mxu0
        %v6486 = vadd.f32 %v6432, %v6485
        %6487 = vdwg.mxu0
        %6488 = vmatpush.msra.mxu0 0.0
        %6489 = vmatpush.msra.mxu0 0.0
        %6490 = vmatpush.msra.mxu0 0.0
        %6491 = vmatpush.msra.mxu0 0.0
        %6492 = vmatpush.msra.mxu0 0.0
        %v6493 = vand.u32 %v725, 4294901760
        %6494 = vmatpush.msra.mxu0 %v6493
        %v6495 = vand.u32 %v717, 4294901760
        %6496 = vmatpush.msra.mxu0 %v6495
        %v6497 = vand.u32 %v709, 4294901760
        %6498 = vmatpush.msra.mxu0 %v6497
        %v6499 = vand.u32 %v701, 4294901760
        %6500 = vmatpush.msra.mxu0 %v6499
        %v6501 = vand.u32 %v693, 4294901760
        %6502 = vmatpush.msra.mxu0 %v6501
        %v6503 = vand.u32 %v685, 4294901760
        %6504 = vmatpush.msra.mxu0 %v6503
        %v6505 = vand.u32 %v677, 4294901760
        %6506 = vmatpush.msra.mxu0 %v6505
        %v6507 = vand.u32 %v669, 4294901760
        %6508 = vmatpush.msra.mxu0 %v6507
        %v6509 = vand.u32 %v661, 4294901760
        %6510 = vmatpush.msra.mxu0 %v6509
        %v6511 = vand.u32 %v653, 4294901760
        %6512 = vmatpush.msra.mxu0 %v6511
        %v6513 = vand.u32 %v645, 4294901760
        %6514 = vmatpush.msra.mxu0 %v6513
        %v6515 = vand.u32 %v770, 4294901760
        %6516 = vmatmul.f32.gmra.mxu0 %v6515
        %v6517 = vpop.f32.mrf.mxu0
        %v6518 = vadd.f32 %v6486, %v6517
        %6519 = vdwg.mxu0
        %v6520 = vand.u32 %v510, 4294901760
        %6521 = vmatpush.msra.mxu0 %v6520
        %v6522 = vand.u32 %v502, 4294901760
        %6523 = vmatpush.msra.mxu0 %v6522
        %v6524 = vand.u32 %v494, 4294901760
        %6525 = vmatpush.msra.mxu0 %v6524
        %v6526 = vand.u32 %v486, 4294901760
        %6527 = vmatpush.msra.mxu0 %v6526
        %v6528 = vand.u32 %v478, 4294901760
        %6529 = vmatpush.msra.mxu0 %v6528
        %v6530 = vand.u32 %v470, 4294901760
        %6531 = vmatpush.msra.mxu0 %v6530
        %v6532 = vand.u32 %v462, 4294901760
        %6533 = vmatpush.msra.mxu0 %v6532
        %v6534 = vand.u32 %v454, 4294901760
        %6535 = vmatpush.msra.mxu0 %v6534
        %v6536 = vand.u32 %v446, 4294901760
        %6537 = vmatpush.msra.mxu0 %v6536
        %v6538 = vand.u32 %v438, 4294901760
        %6539 = vmatpush.msra.mxu0 %v6538
        %v6540 = vand.u32 %v430, 4294901760
        %6541 = vmatpush.msra.mxu0 %v6540
        %v6542 = vand.u32 %v422, 4294901760
        %6543 = vmatpush.msra.mxu0 %v6542
        %v6544 = vand.u32 %v414, 4294901760
        %6545 = vmatpush.msra.mxu0 %v6544
        %v6546 = vand.u32 %v406, 4294901760
        %6547 = vmatpush.msra.mxu0 %v6546
        %v6548 = vand.u32 %v398, 4294901760
        %6549 = vmatpush.msra.mxu0 %v6548
        %v6550 = vand.u32 %v390, 4294901760
        %6551 = vmatpush.msra.mxu0 %v6550
        %v6552 = vand.u32 %v737, 4294901760
        %v6553 = vsub.f32 %v737, %v6552
        %v6554 = vand.u32 %v6553, 4294901760
        %v6555 = vsub.f32 %v6553, %v6554
        %v6556 = vand.u32 %v6555, 4294901760
        %6557 = vmatmul.f32.gmra.mxu0 %v6556
        %v6558 = vpop.f32.mrf.mxu0
        %v6559 = vadd.f32 %v759, %v6558
        %6560 = vdwg.mxu0
        %v6561 = vand.u32 %v510, 4294901760
        %v6562 = vsub.f32 %v510, %v6561
        %v6563 = vand.u32 %v6562, 4294901760
        %v6564 = vsub.f32 %v6562, %v6563
        %v6565 = vand.u32 %v6564, 4294901760
        %6566 = vmatpush.msra.mxu0 %v6565
        %v6567 = vand.u32 %v502, 4294901760
        %v6568 = vsub.f32 %v502, %v6567
        %v6569 = vand.u32 %v6568, 4294901760
        %v6570 = vsub.f32 %v6568, %v6569
        %v6571 = vand.u32 %v6570, 4294901760
        %6572 = vmatpush.msra.mxu0 %v6571
        %v6573 = vand.u32 %v494, 4294901760
        %v6574 = vsub.f32 %v494, %v6573
        %v6575 = vand.u32 %v6574, 4294901760
        %v6576 = vsub.f32 %v6574, %v6575
        %v6577 = vand.u32 %v6576, 4294901760
        %6578 = vmatpush.msra.mxu0 %v6577
        %v6579 = vand.u32 %v486, 4294901760
        %v6580 = vsub.f32 %v486, %v6579
        %v6581 = vand.u32 %v6580, 4294901760
        %v6582 = vsub.f32 %v6580, %v6581
        %v6583 = vand.u32 %v6582, 4294901760
        %6584 = vmatpush.msra.mxu0 %v6583
        %v6585 = vand.u32 %v478, 4294901760
        %v6586 = vsub.f32 %v478, %v6585
        %v6587 = vand.u32 %v6586, 4294901760
        %v6588 = vsub.f32 %v6586, %v6587
        %v6589 = vand.u32 %v6588, 4294901760
        %6590 = vmatpush.msra.mxu0 %v6589
        %v6591 = vand.u32 %v470, 4294901760
        %v6592 = vsub.f32 %v470, %v6591
        %v6593 = vand.u32 %v6592, 4294901760
        %v6594 = vsub.f32 %v6592, %v6593
        %v6595 = vand.u32 %v6594, 4294901760
        %6596 = vmatpush.msra.mxu0 %v6595
        %v6597 = vand.u32 %v462, 4294901760
        %v6598 = vsub.f32 %v462, %v6597
        %v6599 = vand.u32 %v6598, 4294901760
        %v6600 = vsub.f32 %v6598, %v6599
        %v6601 = vand.u32 %v6600, 4294901760
        %6602 = vmatpush.msra.mxu0 %v6601
        %v6603 = vand.u32 %v454, 4294901760
        %v6604 = vsub.f32 %v454, %v6603
        %v6605 = vand.u32 %v6604, 4294901760
        %v6606 = vsub.f32 %v6604, %v6605
        %v6607 = vand.u32 %v6606, 4294901760
        %6608 = vmatpush.msra.mxu0 %v6607
        %v6609 = vand.u32 %v446, 4294901760
        %v6610 = vsub.f32 %v446, %v6609
        %v6611 = vand.u32 %v6610, 4294901760
        %v6612 = vsub.f32 %v6610, %v6611
        %v6613 = vand.u32 %v6612, 4294901760
        %6614 = vmatpush.msra.mxu0 %v6613
        %v6615 = vand.u32 %v438, 4294901760
        %v6616 = vsub.f32 %v438, %v6615
        %v6617 = vand.u32 %v6616, 4294901760
        %v6618 = vsub.f32 %v6616, %v6617
        %v6619 = vand.u32 %v6618, 4294901760
        %6620 = vmatpush.msra.mxu0 %v6619
        %v6621 = vand.u32 %v430, 4294901760
        %v6622 = vsub.f32 %v430, %v6621
        %v6623 = vand.u32 %v6622, 4294901760
        %v6624 = vsub.f32 %v6622, %v6623
        %v6625 = vand.u32 %v6624, 4294901760
        %6626 = vmatpush.msra.mxu0 %v6625
        %v6627 = vand.u32 %v422, 4294901760
        %v6628 = vsub.f32 %v422, %v6627
        %v6629 = vand.u32 %v6628, 4294901760
        %v6630 = vsub.f32 %v6628, %v6629
        %v6631 = vand.u32 %v6630, 4294901760
        %6632 = vmatpush.msra.mxu0 %v6631
        %v6633 = vand.u32 %v414, 4294901760
        %v6634 = vsub.f32 %v414, %v6633
        %v6635 = vand.u32 %v6634, 4294901760
        %v6636 = vsub.f32 %v6634, %v6635
        %v6637 = vand.u32 %v6636, 4294901760
        %6638 = vmatpush.msra.mxu0 %v6637
        %v6639 = vand.u32 %v406, 4294901760
        %v6640 = vsub.f32 %v406, %v6639
        %v6641 = vand.u32 %v6640, 4294901760
        %v6642 = vsub.f32 %v6640, %v6641
        %v6643 = vand.u32 %v6642, 4294901760
        %6644 = vmatpush.msra.mxu0 %v6643
        %v6645 = vand.u32 %v398, 4294901760
        %v6646 = vsub.f32 %v398, %v6645
        %v6647 = vand.u32 %v6646, 4294901760
        %v6648 = vsub.f32 %v6646, %v6647
        %v6649 = vand.u32 %v6648, 4294901760
        %6650 = vmatpush.msra.mxu0 %v6649
        %v6651 = vand.u32 %v390, 4294901760
        %v6652 = vsub.f32 %v390, %v6651
        %v6653 = vand.u32 %v6652, 4294901760
        %v6654 = vsub.f32 %v6652, %v6653
        %v6655 = vand.u32 %v6654, 4294901760
        %6656 = vmatpush.msra.mxu0 %v6655
        %v6657 = vand.u32 %v737, 4294901760
        %6658 = vmatmul.f32.gmra.mxu0 %v6657
        %v6659 = vpop.f32.mrf.mxu0
        %v6660 = vadd.f32 %v6559, %v6659
        %6661 = vdwg.mxu0
        %v6662 = vand.u32 %v510, 4294901760
        %v6663 = vsub.f32 %v510, %v6662
        %6664 = vmatpush.msra.mxu0 %v6663
        %v6665 = vand.u32 %v502, 4294901760
        %v6666 = vsub.f32 %v502, %v6665
        %6667 = vmatpush.msra.mxu0 %v6666
        %v6668 = vand.u32 %v494, 4294901760
        %v6669 = vsub.f32 %v494, %v6668
        %6670 = vmatpush.msra.mxu0 %v6669
        %v6671 = vand.u32 %v486, 4294901760
        %v6672 = vsub.f32 %v486, %v6671
        %6673 = vmatpush.msra.mxu0 %v6672
        %v6674 = vand.u32 %v478, 4294901760
        %v6675 = vsub.f32 %v478, %v6674
        %6676 = vmatpush.msra.mxu0 %v6675
        %v6677 = vand.u32 %v470, 4294901760
        %v6678 = vsub.f32 %v470, %v6677
        %6679 = vmatpush.msra.mxu0 %v6678
        %v6680 = vand.u32 %v462, 4294901760
        %v6681 = vsub.f32 %v462, %v6680
        %6682 = vmatpush.msra.mxu0 %v6681
        %v6683 = vand.u32 %v454, 4294901760
        %v6684 = vsub.f32 %v454, %v6683
        %6685 = vmatpush.msra.mxu0 %v6684
        %v6686 = vand.u32 %v446, 4294901760
        %v6687 = vsub.f32 %v446, %v6686
        %6688 = vmatpush.msra.mxu0 %v6687
        %v6689 = vand.u32 %v438, 4294901760
        %v6690 = vsub.f32 %v438, %v6689
        %6691 = vmatpush.msra.mxu0 %v6690
        %v6692 = vand.u32 %v430, 4294901760
        %v6693 = vsub.f32 %v430, %v6692
        %6694 = vmatpush.msra.mxu0 %v6693
        %v6695 = vand.u32 %v422, 4294901760
        %v6696 = vsub.f32 %v422, %v6695
        %6697 = vmatpush.msra.mxu0 %v6696
        %v6698 = vand.u32 %v414, 4294901760
        %v6699 = vsub.f32 %v414, %v6698
        %6700 = vmatpush.msra.mxu0 %v6699
        %v6701 = vand.u32 %v406, 4294901760
        %v6702 = vsub.f32 %v406, %v6701
        %6703 = vmatpush.msra.mxu0 %v6702
        %v6704 = vand.u32 %v398, 4294901760
        %v6705 = vsub.f32 %v398, %v6704
        %6706 = vmatpush.msra.mxu0 %v6705
        %v6707 = vand.u32 %v390, 4294901760
        %v6708 = vsub.f32 %v390, %v6707
        %6709 = vmatpush.msra.mxu0 %v6708
        %v6710 = vand.u32 %v737, 4294901760
        %v6711 = vsub.f32 %v737, %v6710
        %6712 = vmatmul.f32.gmra.mxu0 %v6711
        %v6713 = vpop.f32.mrf.mxu0
        %v6714 = vadd.f32 %v6660, %v6713
        %6715 = vdwg.mxu0
        %v6716 = vand.u32 %v510, 4294901760
        %6717 = vmatpush.msra.mxu0 %v6716
        %v6718 = vand.u32 %v502, 4294901760
        %6719 = vmatpush.msra.mxu0 %v6718
        %v6720 = vand.u32 %v494, 4294901760
        %6721 = vmatpush.msra.mxu0 %v6720
        %v6722 = vand.u32 %v486, 4294901760
        %6723 = vmatpush.msra.mxu0 %v6722
        %v6724 = vand.u32 %v478, 4294901760
        %6725 = vmatpush.msra.mxu0 %v6724
        %v6726 = vand.u32 %v470, 4294901760
        %6727 = vmatpush.msra.mxu0 %v6726
        %v6728 = vand.u32 %v462, 4294901760
        %6729 = vmatpush.msra.mxu0 %v6728
        %v6730 = vand.u32 %v454, 4294901760
        %6731 = vmatpush.msra.mxu0 %v6730
        %v6732 = vand.u32 %v446, 4294901760
        %6733 = vmatpush.msra.mxu0 %v6732
        %v6734 = vand.u32 %v438, 4294901760
        %6735 = vmatpush.msra.mxu0 %v6734
        %v6736 = vand.u32 %v430, 4294901760
        %6737 = vmatpush.msra.mxu0 %v6736
        %v6738 = vand.u32 %v422, 4294901760
        %6739 = vmatpush.msra.mxu0 %v6738
        %v6740 = vand.u32 %v414, 4294901760
        %6741 = vmatpush.msra.mxu0 %v6740
        %v6742 = vand.u32 %v406, 4294901760
        %6743 = vmatpush.msra.mxu0 %v6742
        %v6744 = vand.u32 %v398, 4294901760
        %6745 = vmatpush.msra.mxu0 %v6744
        %v6746 = vand.u32 %v390, 4294901760
        %6747 = vmatpush.msra.mxu0 %v6746
        %v6748 = vand.u32 %v737, 4294901760
        %v6749 = vsub.f32 %v737, %v6748
        %v6750 = vand.u32 %v6749, 4294901760
        %6751 = vmatmul.f32.gmra.mxu0 %v6750
        %v6752 = vpop.f32.mrf.mxu0
        %v6753 = vadd.f32 %v6714, %v6752
        %6754 = vdwg.mxu0
        %v6755 = vand.u32 %v510, 4294901760
        %v6756 = vsub.f32 %v510, %v6755
        %v6757 = vand.u32 %v6756, 4294901760
        %6758 = vmatpush.msra.mxu0 %v6757
        %v6759 = vand.u32 %v502, 4294901760
        %v6760 = vsub.f32 %v502, %v6759
        %v6761 = vand.u32 %v6760, 4294901760
        %6762 = vmatpush.msra.mxu0 %v6761
        %v6763 = vand.u32 %v494, 4294901760
        %v6764 = vsub.f32 %v494, %v6763
        %v6765 = vand.u32 %v6764, 4294901760
        %6766 = vmatpush.msra.mxu0 %v6765
        %v6767 = vand.u32 %v486, 4294901760
        %v6768 = vsub.f32 %v486, %v6767
        %v6769 = vand.u32 %v6768, 4294901760
        %6770 = vmatpush.msra.mxu0 %v6769
        %v6771 = vand.u32 %v478, 4294901760
        %v6772 = vsub.f32 %v478, %v6771
        %v6773 = vand.u32 %v6772, 4294901760
        %6774 = vmatpush.msra.mxu0 %v6773
        %v6775 = vand.u32 %v470, 4294901760
        %v6776 = vsub.f32 %v470, %v6775
        %v6777 = vand.u32 %v6776, 4294901760
        %6778 = vmatpush.msra.mxu0 %v6777
        %v6779 = vand.u32 %v462, 4294901760
        %v6780 = vsub.f32 %v462, %v6779
        %v6781 = vand.u32 %v6780, 4294901760
        %6782 = vmatpush.msra.mxu0 %v6781
        %v6783 = vand.u32 %v454, 4294901760
        %v6784 = vsub.f32 %v454, %v6783
        %v6785 = vand.u32 %v6784, 4294901760
        %6786 = vmatpush.msra.mxu0 %v6785
        %v6787 = vand.u32 %v446, 4294901760
        %v6788 = vsub.f32 %v446, %v6787
        %v6789 = vand.u32 %v6788, 4294901760
        %6790 = vmatpush.msra.mxu0 %v6789
        %v6791 = vand.u32 %v438, 4294901760
        %v6792 = vsub.f32 %v438, %v6791
        %v6793 = vand.u32 %v6792, 4294901760
        %6794 = vmatpush.msra.mxu0 %v6793
        %v6795 = vand.u32 %v430, 4294901760
        %v6796 = vsub.f32 %v430, %v6795
        %v6797 = vand.u32 %v6796, 4294901760
        %6798 = vmatpush.msra.mxu0 %v6797
        %v6799 = vand.u32 %v422, 4294901760
        %v6800 = vsub.f32 %v422, %v6799
        %v6801 = vand.u32 %v6800, 4294901760
        %6802 = vmatpush.msra.mxu0 %v6801
        %v6803 = vand.u32 %v414, 4294901760
        %v6804 = vsub.f32 %v414, %v6803
        %v6805 = vand.u32 %v6804, 4294901760
        %6806 = vmatpush.msra.mxu0 %v6805
        %v6807 = vand.u32 %v406, 4294901760
        %v6808 = vsub.f32 %v406, %v6807
        %v6809 = vand.u32 %v6808, 4294901760
        %6810 = vmatpush.msra.mxu0 %v6809
        %v6811 = vand.u32 %v398, 4294901760
        %v6812 = vsub.f32 %v398, %v6811
        %v6813 = vand.u32 %v6812, 4294901760
        %6814 = vmatpush.msra.mxu0 %v6813
        %v6815 = vand.u32 %v390, 4294901760
        %v6816 = vsub.f32 %v390, %v6815
        %v6817 = vand.u32 %v6816, 4294901760
        %6818 = vmatpush.msra.mxu0 %v6817
        %v6819 = vand.u32 %v737, 4294901760
        %6820 = vmatmul.f32.gmra.mxu0 %v6819
        %v6821 = vpop.f32.mrf.mxu0
        %v6822 = vadd.f32 %v6753, %v6821
        %6823 = vdwg.mxu0
        %v6824 = vand.u32 %v510, 4294901760
        %6825 = vmatpush.msra.mxu0 %v6824
        %v6826 = vand.u32 %v502, 4294901760
        %6827 = vmatpush.msra.mxu0 %v6826
        %v6828 = vand.u32 %v494, 4294901760
        %6829 = vmatpush.msra.mxu0 %v6828
        %v6830 = vand.u32 %v486, 4294901760
        %6831 = vmatpush.msra.mxu0 %v6830
        %v6832 = vand.u32 %v478, 4294901760
        %6833 = vmatpush.msra.mxu0 %v6832
        %v6834 = vand.u32 %v470, 4294901760
        %6835 = vmatpush.msra.mxu0 %v6834
        %v6836 = vand.u32 %v462, 4294901760
        %6837 = vmatpush.msra.mxu0 %v6836
        %v6838 = vand.u32 %v454, 4294901760
        %6839 = vmatpush.msra.mxu0 %v6838
        %v6840 = vand.u32 %v446, 4294901760
        %6841 = vmatpush.msra.mxu0 %v6840
        %v6842 = vand.u32 %v438, 4294901760
        %6843 = vmatpush.msra.mxu0 %v6842
        %v6844 = vand.u32 %v430, 4294901760
        %6845 = vmatpush.msra.mxu0 %v6844
        %v6846 = vand.u32 %v422, 4294901760
        %6847 = vmatpush.msra.mxu0 %v6846
        %v6848 = vand.u32 %v414, 4294901760
        %6849 = vmatpush.msra.mxu0 %v6848
        %v6850 = vand.u32 %v406, 4294901760
        %6851 = vmatpush.msra.mxu0 %v6850
        %v6852 = vand.u32 %v398, 4294901760
        %6853 = vmatpush.msra.mxu0 %v6852
        %v6854 = vand.u32 %v390, 4294901760
        %6855 = vmatpush.msra.mxu0 %v6854
        %v6856 = vand.u32 %v737, 4294901760
        %6857 = vmatmul.f32.gmra.mxu0 %v6856
        %v6858 = vpop.f32.mrf.mxu0
        %v6859 = vadd.f32 %v6822, %v6858
        %6860 = vdwg.mxu0
        %v6861 = vand.u32 %v638, 4294901760
        %6862 = vmatpush.msra.mxu0 %v6861
        %v6863 = vand.u32 %v630, 4294901760
        %6864 = vmatpush.msra.mxu0 %v6863
        %v6865 = vand.u32 %v622, 4294901760
        %6866 = vmatpush.msra.mxu0 %v6865
        %v6867 = vand.u32 %v614, 4294901760
        %6868 = vmatpush.msra.mxu0 %v6867
        %v6869 = vand.u32 %v606, 4294901760
        %6870 = vmatpush.msra.mxu0 %v6869
        %v6871 = vand.u32 %v598, 4294901760
        %6872 = vmatpush.msra.mxu0 %v6871
        %v6873 = vand.u32 %v590, 4294901760
        %6874 = vmatpush.msra.mxu0 %v6873
        %v6875 = vand.u32 %v582, 4294901760
        %6876 = vmatpush.msra.mxu0 %v6875
        %v6877 = vand.u32 %v574, 4294901760
        %6878 = vmatpush.msra.mxu0 %v6877
        %v6879 = vand.u32 %v566, 4294901760
        %6880 = vmatpush.msra.mxu0 %v6879
        %v6881 = vand.u32 %v558, 4294901760
        %6882 = vmatpush.msra.mxu0 %v6881
        %v6883 = vand.u32 %v550, 4294901760
        %6884 = vmatpush.msra.mxu0 %v6883
        %v6885 = vand.u32 %v542, 4294901760
        %6886 = vmatpush.msra.mxu0 %v6885
        %v6887 = vand.u32 %v534, 4294901760
        %6888 = vmatpush.msra.mxu0 %v6887
        %v6889 = vand.u32 %v526, 4294901760
        %6890 = vmatpush.msra.mxu0 %v6889
        %v6891 = vand.u32 %v518, 4294901760
        %6892 = vmatpush.msra.mxu0 %v6891
        %v6893 = vand.u32 %v738, 4294901760
        %v6894 = vsub.f32 %v738, %v6893
        %v6895 = vand.u32 %v6894, 4294901760
        %v6896 = vsub.f32 %v6894, %v6895
        %v6897 = vand.u32 %v6896, 4294901760
        %6898 = vmatmul.f32.gmra.mxu0 %v6897
        %v6899 = vpop.f32.mrf.mxu0
        %v6900 = vadd.f32 %v6859, %v6899
        %6901 = vdwg.mxu0
        %v6902 = vand.u32 %v638, 4294901760
        %v6903 = vsub.f32 %v638, %v6902
        %v6904 = vand.u32 %v6903, 4294901760
        %v6905 = vsub.f32 %v6903, %v6904
        %v6906 = vand.u32 %v6905, 4294901760
        %6907 = vmatpush.msra.mxu0 %v6906
        %v6908 = vand.u32 %v630, 4294901760
        %v6909 = vsub.f32 %v630, %v6908
        %v6910 = vand.u32 %v6909, 4294901760
        %v6911 = vsub.f32 %v6909, %v6910
        %v6912 = vand.u32 %v6911, 4294901760
        %6913 = vmatpush.msra.mxu0 %v6912
        %v6914 = vand.u32 %v622, 4294901760
        %v6915 = vsub.f32 %v622, %v6914
        %v6916 = vand.u32 %v6915, 4294901760
        %v6917 = vsub.f32 %v6915, %v6916
        %v6918 = vand.u32 %v6917, 4294901760
        %6919 = vmatpush.msra.mxu0 %v6918
        %v6920 = vand.u32 %v614, 4294901760
        %v6921 = vsub.f32 %v614, %v6920
        %v6922 = vand.u32 %v6921, 4294901760
        %v6923 = vsub.f32 %v6921, %v6922
        %v6924 = vand.u32 %v6923, 4294901760
        %6925 = vmatpush.msra.mxu0 %v6924
        %v6926 = vand.u32 %v606, 4294901760
        %v6927 = vsub.f32 %v606, %v6926
        %v6928 = vand.u32 %v6927, 4294901760
        %v6929 = vsub.f32 %v6927, %v6928
        %v6930 = vand.u32 %v6929, 4294901760
        %6931 = vmatpush.msra.mxu0 %v6930
        %v6932 = vand.u32 %v598, 4294901760
        %v6933 = vsub.f32 %v598, %v6932
        %v6934 = vand.u32 %v6933, 4294901760
        %v6935 = vsub.f32 %v6933, %v6934
        %v6936 = vand.u32 %v6935, 4294901760
        %6937 = vmatpush.msra.mxu0 %v6936
        %v6938 = vand.u32 %v590, 4294901760
        %v6939 = vsub.f32 %v590, %v6938
        %v6940 = vand.u32 %v6939, 4294901760
        %v6941 = vsub.f32 %v6939, %v6940
        %v6942 = vand.u32 %v6941, 4294901760
        %6943 = vmatpush.msra.mxu0 %v6942
        %v6944 = vand.u32 %v582, 4294901760
        %v6945 = vsub.f32 %v582, %v6944
        %v6946 = vand.u32 %v6945, 4294901760
        %v6947 = vsub.f32 %v6945, %v6946
        %v6948 = vand.u32 %v6947, 4294901760
        %6949 = vmatpush.msra.mxu0 %v6948
        %v6950 = vand.u32 %v574, 4294901760
        %v6951 = vsub.f32 %v574, %v6950
        %v6952 = vand.u32 %v6951, 4294901760
        %v6953 = vsub.f32 %v6951, %v6952
        %v6954 = vand.u32 %v6953, 4294901760
        %6955 = vmatpush.msra.mxu0 %v6954
        %v6956 = vand.u32 %v566, 4294901760
        %v6957 = vsub.f32 %v566, %v6956
        %v6958 = vand.u32 %v6957, 4294901760
        %v6959 = vsub.f32 %v6957, %v6958
        %v6960 = vand.u32 %v6959, 4294901760
        %6961 = vmatpush.msra.mxu0 %v6960
        %v6962 = vand.u32 %v558, 4294901760
        %v6963 = vsub.f32 %v558, %v6962
        %v6964 = vand.u32 %v6963, 4294901760
        %v6965 = vsub.f32 %v6963, %v6964
        %v6966 = vand.u32 %v6965, 4294901760
        %6967 = vmatpush.msra.mxu0 %v6966
        %v6968 = vand.u32 %v550, 4294901760
        %v6969 = vsub.f32 %v550, %v6968
        %v6970 = vand.u32 %v6969, 4294901760
        %v6971 = vsub.f32 %v6969, %v6970
        %v6972 = vand.u32 %v6971, 4294901760
        %6973 = vmatpush.msra.mxu0 %v6972
        %v6974 = vand.u32 %v542, 4294901760
        %v6975 = vsub.f32 %v542, %v6974
        %v6976 = vand.u32 %v6975, 4294901760
        %v6977 = vsub.f32 %v6975, %v6976
        %v6978 = vand.u32 %v6977, 4294901760
        %6979 = vmatpush.msra.mxu0 %v6978
        %v6980 = vand.u32 %v534, 4294901760
        %v6981 = vsub.f32 %v534, %v6980
        %v6982 = vand.u32 %v6981, 4294901760
        %v6983 = vsub.f32 %v6981, %v6982
        %v6984 = vand.u32 %v6983, 4294901760
        %6985 = vmatpush.msra.mxu0 %v6984
        %v6986 = vand.u32 %v526, 4294901760
        %v6987 = vsub.f32 %v526, %v6986
        %v6988 = vand.u32 %v6987, 4294901760
        %v6989 = vsub.f32 %v6987, %v6988
        %v6990 = vand.u32 %v6989, 4294901760
        %6991 = vmatpush.msra.mxu0 %v6990
        %v6992 = vand.u32 %v518, 4294901760
        %v6993 = vsub.f32 %v518, %v6992
        %v6994 = vand.u32 %v6993, 4294901760
        %v6995 = vsub.f32 %v6993, %v6994
        %v6996 = vand.u32 %v6995, 4294901760
        %6997 = vmatpush.msra.mxu0 %v6996
        %v6998 = vand.u32 %v738, 4294901760
        %6999 = vmatmul.f32.gmra.mxu0 %v6998
        %v7000 = vpop.f32.mrf.mxu0
        %v7001 = vadd.f32 %v6900, %v7000
        %7002 = vdwg.mxu0
        %v7003 = vand.u32 %v638, 4294901760
        %v7004 = vsub.f32 %v638, %v7003
        %7005 = vmatpush.msra.mxu0 %v7004
        %v7006 = vand.u32 %v630, 4294901760
        %v7007 = vsub.f32 %v630, %v7006
        %7008 = vmatpush.msra.mxu0 %v7007
        %v7009 = vand.u32 %v622, 4294901760
        %v7010 = vsub.f32 %v622, %v7009
        %7011 = vmatpush.msra.mxu0 %v7010
        %v7012 = vand.u32 %v614, 4294901760
        %v7013 = vsub.f32 %v614, %v7012
        %7014 = vmatpush.msra.mxu0 %v7013
        %v7015 = vand.u32 %v606, 4294901760
        %v7016 = vsub.f32 %v606, %v7015
        %7017 = vmatpush.msra.mxu0 %v7016
        %v7018 = vand.u32 %v598, 4294901760
        %v7019 = vsub.f32 %v598, %v7018
        %7020 = vmatpush.msra.mxu0 %v7019
        %v7021 = vand.u32 %v590, 4294901760
        %v7022 = vsub.f32 %v590, %v7021
        %7023 = vmatpush.msra.mxu0 %v7022
        %v7024 = vand.u32 %v582, 4294901760
        %v7025 = vsub.f32 %v582, %v7024
        %7026 = vmatpush.msra.mxu0 %v7025
        %v7027 = vand.u32 %v574, 4294901760
        %v7028 = vsub.f32 %v574, %v7027
        %7029 = vmatpush.msra.mxu0 %v7028
        %v7030 = vand.u32 %v566, 4294901760
        %v7031 = vsub.f32 %v566, %v7030
        %7032 = vmatpush.msra.mxu0 %v7031
        %v7033 = vand.u32 %v558, 4294901760
        %v7034 = vsub.f32 %v558, %v7033
        %7035 = vmatpush.msra.mxu0 %v7034
        %v7036 = vand.u32 %v550, 4294901760
        %v7037 = vsub.f32 %v550, %v7036
        %7038 = vmatpush.msra.mxu0 %v7037
        %v7039 = vand.u32 %v542, 4294901760
        %v7040 = vsub.f32 %v542, %v7039
        %7041 = vmatpush.msra.mxu0 %v7040
        %v7042 = vand.u32 %v534, 4294901760
        %v7043 = vsub.f32 %v534, %v7042
        %7044 = vmatpush.msra.mxu0 %v7043
        %v7045 = vand.u32 %v526, 4294901760
        %v7046 = vsub.f32 %v526, %v7045
        %7047 = vmatpush.msra.mxu0 %v7046
        %v7048 = vand.u32 %v518, 4294901760
        %v7049 = vsub.f32 %v518, %v7048
        %7050 = vmatpush.msra.mxu0 %v7049
        %v7051 = vand.u32 %v738, 4294901760
        %v7052 = vsub.f32 %v738, %v7051
        %7053 = vmatmul.f32.gmra.mxu0 %v7052
        %v7054 = vpop.f32.mrf.mxu0
        %v7055 = vadd.f32 %v7001, %v7054
        %7056 = vdwg.mxu0
        %v7057 = vand.u32 %v638, 4294901760
        %7058 = vmatpush.msra.mxu0 %v7057
        %v7059 = vand.u32 %v630, 4294901760
        %7060 = vmatpush.msra.mxu0 %v7059
        %v7061 = vand.u32 %v622, 4294901760
        %7062 = vmatpush.msra.mxu0 %v7061
        %v7063 = vand.u32 %v614, 4294901760
        %7064 = vmatpush.msra.mxu0 %v7063
        %v7065 = vand.u32 %v606, 4294901760
        %7066 = vmatpush.msra.mxu0 %v7065
        %v7067 = vand.u32 %v598, 4294901760
        %7068 = vmatpush.msra.mxu0 %v7067
        %v7069 = vand.u32 %v590, 4294901760
        %7070 = vmatpush.msra.mxu0 %v7069
        %v7071 = vand.u32 %v582, 4294901760
        %7072 = vmatpush.msra.mxu0 %v7071
        %v7073 = vand.u32 %v574, 4294901760
        %7074 = vmatpush.msra.mxu0 %v7073
        %v7075 = vand.u32 %v566, 4294901760
        %7076 = vmatpush.msra.mxu0 %v7075
        %v7077 = vand.u32 %v558, 4294901760
        %7078 = vmatpush.msra.mxu0 %v7077
        %v7079 = vand.u32 %v550, 4294901760
        %7080 = vmatpush.msra.mxu0 %v7079
        %v7081 = vand.u32 %v542, 4294901760
        %7082 = vmatpush.msra.mxu0 %v7081
        %v7083 = vand.u32 %v534, 4294901760
        %7084 = vmatpush.msra.mxu0 %v7083
        %v7085 = vand.u32 %v526, 4294901760
        %7086 = vmatpush.msra.mxu0 %v7085
        %v7087 = vand.u32 %v518, 4294901760
        %7088 = vmatpush.msra.mxu0 %v7087
        %v7089 = vand.u32 %v738, 4294901760
        %v7090 = vsub.f32 %v738, %v7089
        %v7091 = vand.u32 %v7090, 4294901760
        %7092 = vmatmul.f32.gmra.mxu0 %v7091
        %v7093 = vpop.f32.mrf.mxu0
        %v7094 = vadd.f32 %v7055, %v7093
        %7095 = vdwg.mxu0
        %v7096 = vand.u32 %v638, 4294901760
        %v7097 = vsub.f32 %v638, %v7096
        %v7098 = vand.u32 %v7097, 4294901760
        %7099 = vmatpush.msra.mxu0 %v7098
        %v7100 = vand.u32 %v630, 4294901760
        %v7101 = vsub.f32 %v630, %v7100
        %v7102 = vand.u32 %v7101, 4294901760
        %7103 = vmatpush.msra.mxu0 %v7102
        %v7104 = vand.u32 %v622, 4294901760
        %v7105 = vsub.f32 %v622, %v7104
        %v7106 = vand.u32 %v7105, 4294901760
        %7107 = vmatpush.msra.mxu0 %v7106
        %v7108 = vand.u32 %v614, 4294901760
        %v7109 = vsub.f32 %v614, %v7108
        %v7110 = vand.u32 %v7109, 4294901760
        %7111 = vmatpush.msra.mxu0 %v7110
        %v7112 = vand.u32 %v606, 4294901760
        %v7113 = vsub.f32 %v606, %v7112
        %v7114 = vand.u32 %v7113, 4294901760
        %7115 = vmatpush.msra.mxu0 %v7114
        %v7116 = vand.u32 %v598, 4294901760
        %v7117 = vsub.f32 %v598, %v7116
        %v7118 = vand.u32 %v7117, 4294901760
        %7119 = vmatpush.msra.mxu0 %v7118
        %v7120 = vand.u32 %v590, 4294901760
        %v7121 = vsub.f32 %v590, %v7120
        %v7122 = vand.u32 %v7121, 4294901760
        %7123 = vmatpush.msra.mxu0 %v7122
        %v7124 = vand.u32 %v582, 4294901760
        %v7125 = vsub.f32 %v582, %v7124
        %v7126 = vand.u32 %v7125, 4294901760
        %7127 = vmatpush.msra.mxu0 %v7126
        %v7128 = vand.u32 %v574, 4294901760
        %v7129 = vsub.f32 %v574, %v7128
        %v7130 = vand.u32 %v7129, 4294901760
        %7131 = vmatpush.msra.mxu0 %v7130
        %v7132 = vand.u32 %v566, 4294901760
        %v7133 = vsub.f32 %v566, %v7132
        %v7134 = vand.u32 %v7133, 4294901760
        %7135 = vmatpush.msra.mxu0 %v7134
        %v7136 = vand.u32 %v558, 4294901760
        %v7137 = vsub.f32 %v558, %v7136
        %v7138 = vand.u32 %v7137, 4294901760
        %7139 = vmatpush.msra.mxu0 %v7138
        %v7140 = vand.u32 %v550, 4294901760
        %v7141 = vsub.f32 %v550, %v7140
        %v7142 = vand.u32 %v7141, 4294901760
        %7143 = vmatpush.msra.mxu0 %v7142
        %v7144 = vand.u32 %v542, 4294901760
        %v7145 = vsub.f32 %v542, %v7144
        %v7146 = vand.u32 %v7145, 4294901760
        %7147 = vmatpush.msra.mxu0 %v7146
        %v7148 = vand.u32 %v534, 4294901760
        %v7149 = vsub.f32 %v534, %v7148
        %v7150 = vand.u32 %v7149, 4294901760
        %7151 = vmatpush.msra.mxu0 %v7150
        %v7152 = vand.u32 %v526, 4294901760
        %v7153 = vsub.f32 %v526, %v7152
        %v7154 = vand.u32 %v7153, 4294901760
        %7155 = vmatpush.msra.mxu0 %v7154
        %v7156 = vand.u32 %v518, 4294901760
        %v7157 = vsub.f32 %v518, %v7156
        %v7158 = vand.u32 %v7157, 4294901760
        %7159 = vmatpush.msra.mxu0 %v7158
        %v7160 = vand.u32 %v738, 4294901760
        %7161 = vmatmul.f32.gmra.mxu0 %v7160
        %v7162 = vpop.f32.mrf.mxu0
        %v7163 = vadd.f32 %v7094, %v7162
        %7164 = vdwg.mxu0
        %v7165 = vand.u32 %v638, 4294901760
        %7166 = vmatpush.msra.mxu0 %v7165
        %v7167 = vand.u32 %v630, 4294901760
        %7168 = vmatpush.msra.mxu0 %v7167
        %v7169 = vand.u32 %v622, 4294901760
        %7170 = vmatpush.msra.mxu0 %v7169
        %v7171 = vand.u32 %v614, 4294901760
        %7172 = vmatpush.msra.mxu0 %v7171
        %v7173 = vand.u32 %v606, 4294901760
        %7174 = vmatpush.msra.mxu0 %v7173
        %v7175 = vand.u32 %v598, 4294901760
        %7176 = vmatpush.msra.mxu0 %v7175
        %v7177 = vand.u32 %v590, 4294901760
        %7178 = vmatpush.msra.mxu0 %v7177
        %v7179 = vand.u32 %v582, 4294901760
        %7180 = vmatpush.msra.mxu0 %v7179
        %v7181 = vand.u32 %v574, 4294901760
        %7182 = vmatpush.msra.mxu0 %v7181
        %v7183 = vand.u32 %v566, 4294901760
        %7184 = vmatpush.msra.mxu0 %v7183
        %v7185 = vand.u32 %v558, 4294901760
        %7186 = vmatpush.msra.mxu0 %v7185
        %v7187 = vand.u32 %v550, 4294901760
        %7188 = vmatpush.msra.mxu0 %v7187
        %v7189 = vand.u32 %v542, 4294901760
        %7190 = vmatpush.msra.mxu0 %v7189
        %v7191 = vand.u32 %v534, 4294901760
        %7192 = vmatpush.msra.mxu0 %v7191
        %v7193 = vand.u32 %v526, 4294901760
        %7194 = vmatpush.msra.mxu0 %v7193
        %v7195 = vand.u32 %v518, 4294901760
        %7196 = vmatpush.msra.mxu0 %v7195
        %v7197 = vand.u32 %v738, 4294901760
        %7198 = vmatmul.f32.gmra.mxu0 %v7197
        %v7199 = vpop.f32.mrf.mxu0
        %v7200 = vadd.f32 %v7163, %v7199
        %7201 = vdwg.mxu0
        %7202 = vmatpush.msra.mxu0 0.0
        %7203 = vmatpush.msra.mxu0 0.0
        %7204 = vmatpush.msra.mxu0 0.0
        %7205 = vmatpush.msra.mxu0 0.0
        %7206 = vmatpush.msra.mxu0 0.0
        %v7207 = vand.u32 %v726, 4294901760
        %7208 = vmatpush.msra.mxu0 %v7207
        %v7209 = vand.u32 %v718, 4294901760
        %7210 = vmatpush.msra.mxu0 %v7209
        %v7211 = vand.u32 %v710, 4294901760
        %7212 = vmatpush.msra.mxu0 %v7211
        %v7213 = vand.u32 %v702, 4294901760
        %7214 = vmatpush.msra.mxu0 %v7213
        %v7215 = vand.u32 %v694, 4294901760
        %7216 = vmatpush.msra.mxu0 %v7215
        %v7217 = vand.u32 %v686, 4294901760
        %7218 = vmatpush.msra.mxu0 %v7217
        %v7219 = vand.u32 %v678, 4294901760
        %7220 = vmatpush.msra.mxu0 %v7219
        %v7221 = vand.u32 %v670, 4294901760
        %7222 = vmatpush.msra.mxu0 %v7221
        %v7223 = vand.u32 %v662, 4294901760
        %7224 = vmatpush.msra.mxu0 %v7223
        %v7225 = vand.u32 %v654, 4294901760
        %7226 = vmatpush.msra.mxu0 %v7225
        %v7227 = vand.u32 %v646, 4294901760
        %7228 = vmatpush.msra.mxu0 %v7227
        %v7229 = vand.u32 %v770, 4294901760
        %v7230 = vsub.f32 %v770, %v7229
        %v7231 = vand.u32 %v7230, 4294901760
        %v7232 = vsub.f32 %v7230, %v7231
        %v7233 = vand.u32 %v7232, 4294901760
        %7234 = vmatmul.f32.gmra.mxu0 %v7233
        %v7235 = vpop.f32.mrf.mxu0
        %v7236 = vadd.f32 %v7200, %v7235
        %7237 = vdwg.mxu0
        %7238 = vmatpush.msra.mxu0 0.0
        %7239 = vmatpush.msra.mxu0 0.0
        %7240 = vmatpush.msra.mxu0 0.0
        %7241 = vmatpush.msra.mxu0 0.0
        %7242 = vmatpush.msra.mxu0 0.0
        %v7243 = vand.u32 %v726, 4294901760
        %v7244 = vsub.f32 %v726, %v7243
        %v7245 = vand.u32 %v7244, 4294901760
        %v7246 = vsub.f32 %v7244, %v7245
        %v7247 = vand.u32 %v7246, 4294901760
        %7248 = vmatpush.msra.mxu0 %v7247
        %v7249 = vand.u32 %v718, 4294901760
        %v7250 = vsub.f32 %v718, %v7249
        %v7251 = vand.u32 %v7250, 4294901760
        %v7252 = vsub.f32 %v7250, %v7251
        %v7253 = vand.u32 %v7252, 4294901760
        %7254 = vmatpush.msra.mxu0 %v7253
        %v7255 = vand.u32 %v710, 4294901760
        %v7256 = vsub.f32 %v710, %v7255
        %v7257 = vand.u32 %v7256, 4294901760
        %v7258 = vsub.f32 %v7256, %v7257
        %v7259 = vand.u32 %v7258, 4294901760
        %7260 = vmatpush.msra.mxu0 %v7259
        %v7261 = vand.u32 %v702, 4294901760
        %v7262 = vsub.f32 %v702, %v7261
        %v7263 = vand.u32 %v7262, 4294901760
        %v7264 = vsub.f32 %v7262, %v7263
        %v7265 = vand.u32 %v7264, 4294901760
        %7266 = vmatpush.msra.mxu0 %v7265
        %v7267 = vand.u32 %v694, 4294901760
        %v7268 = vsub.f32 %v694, %v7267
        %v7269 = vand.u32 %v7268, 4294901760
        %v7270 = vsub.f32 %v7268, %v7269
        %v7271 = vand.u32 %v7270, 4294901760
        %7272 = vmatpush.msra.mxu0 %v7271
        %v7273 = vand.u32 %v686, 4294901760
        %v7274 = vsub.f32 %v686, %v7273
        %v7275 = vand.u32 %v7274, 4294901760
        %v7276 = vsub.f32 %v7274, %v7275
        %v7277 = vand.u32 %v7276, 4294901760
        %7278 = vmatpush.msra.mxu0 %v7277
        %v7279 = vand.u32 %v678, 4294901760
        %v7280 = vsub.f32 %v678, %v7279
        %v7281 = vand.u32 %v7280, 4294901760
        %v7282 = vsub.f32 %v7280, %v7281
        %v7283 = vand.u32 %v7282, 4294901760
        %7284 = vmatpush.msra.mxu0 %v7283
        %v7285 = vand.u32 %v670, 4294901760
        %v7286 = vsub.f32 %v670, %v7285
        %v7287 = vand.u32 %v7286, 4294901760
        %v7288 = vsub.f32 %v7286, %v7287
        %v7289 = vand.u32 %v7288, 4294901760
        %7290 = vmatpush.msra.mxu0 %v7289
        %v7291 = vand.u32 %v662, 4294901760
        %v7292 = vsub.f32 %v662, %v7291
        %v7293 = vand.u32 %v7292, 4294901760
        %v7294 = vsub.f32 %v7292, %v7293
        %v7295 = vand.u32 %v7294, 4294901760
        %7296 = vmatpush.msra.mxu0 %v7295
        %v7297 = vand.u32 %v654, 4294901760
        %v7298 = vsub.f32 %v654, %v7297
        %v7299 = vand.u32 %v7298, 4294901760
        %v7300 = vsub.f32 %v7298, %v7299
        %v7301 = vand.u32 %v7300, 4294901760
        %7302 = vmatpush.msra.mxu0 %v7301
        %v7303 = vand.u32 %v646, 4294901760
        %v7304 = vsub.f32 %v646, %v7303
        %v7305 = vand.u32 %v7304, 4294901760
        %v7306 = vsub.f32 %v7304, %v7305
        %v7307 = vand.u32 %v7306, 4294901760
        %7308 = vmatpush.msra.mxu0 %v7307
        %v7309 = vand.u32 %v770, 4294901760
        %7310 = vmatmul.f32.gmra.mxu0 %v7309
        %v7311 = vpop.f32.mrf.mxu0
        %v7312 = vadd.f32 %v7236, %v7311
        %7313 = vdwg.mxu0
        %7314 = vmatpush.msra.mxu0 0.0
        %7315 = vmatpush.msra.mxu0 0.0
        %7316 = vmatpush.msra.mxu0 0.0
        %7317 = vmatpush.msra.mxu0 0.0
        %7318 = vmatpush.msra.mxu0 0.0
        %v7319 = vand.u32 %v726, 4294901760
        %v7320 = vsub.f32 %v726, %v7319
        %7321 = vmatpush.msra.mxu0 %v7320
        %v7322 = vand.u32 %v718, 4294901760
        %v7323 = vsub.f32 %v718, %v7322
        %7324 = vmatpush.msra.mxu0 %v7323
        %v7325 = vand.u32 %v710, 4294901760
        %v7326 = vsub.f32 %v710, %v7325
        %7327 = vmatpush.msra.mxu0 %v7326
        %v7328 = vand.u32 %v702, 4294901760
        %v7329 = vsub.f32 %v702, %v7328
        %7330 = vmatpush.msra.mxu0 %v7329
        %v7331 = vand.u32 %v694, 4294901760
        %v7332 = vsub.f32 %v694, %v7331
        %7333 = vmatpush.msra.mxu0 %v7332
        %v7334 = vand.u32 %v686, 4294901760
        %v7335 = vsub.f32 %v686, %v7334
        %7336 = vmatpush.msra.mxu0 %v7335
        %v7337 = vand.u32 %v678, 4294901760
        %v7338 = vsub.f32 %v678, %v7337
        %7339 = vmatpush.msra.mxu0 %v7338
        %v7340 = vand.u32 %v670, 4294901760
        %v7341 = vsub.f32 %v670, %v7340
        %7342 = vmatpush.msra.mxu0 %v7341
        %v7343 = vand.u32 %v662, 4294901760
        %v7344 = vsub.f32 %v662, %v7343
        %7345 = vmatpush.msra.mxu0 %v7344
        %v7346 = vand.u32 %v654, 4294901760
        %v7347 = vsub.f32 %v654, %v7346
        %7348 = vmatpush.msra.mxu0 %v7347
        %v7349 = vand.u32 %v646, 4294901760
        %v7350 = vsub.f32 %v646, %v7349
        %7351 = vmatpush.msra.mxu0 %v7350
        %v7352 = vand.u32 %v770, 4294901760
        %v7353 = vsub.f32 %v770, %v7352
        %7354 = vmatmul.f32.gmra.mxu0 %v7353
        %v7355 = vpop.f32.mrf.mxu0
        %v7356 = vadd.f32 %v7312, %v7355
        %7357 = vdwg.mxu0
        %7358 = vmatpush.msra.mxu0 0.0
        %7359 = vmatpush.msra.mxu0 0.0
        %7360 = vmatpush.msra.mxu0 0.0
        %7361 = vmatpush.msra.mxu0 0.0
        %7362 = vmatpush.msra.mxu0 0.0
        %v7363 = vand.u32 %v726, 4294901760
        %7364 = vmatpush.msra.mxu0 %v7363
        %v7365 = vand.u32 %v718, 4294901760
        %7366 = vmatpush.msra.mxu0 %v7365
        %v7367 = vand.u32 %v710, 4294901760
        %7368 = vmatpush.msra.mxu0 %v7367
        %v7369 = vand.u32 %v702, 4294901760
        %7370 = vmatpush.msra.mxu0 %v7369
        %v7371 = vand.u32 %v694, 4294901760
        %7372 = vmatpush.msra.mxu0 %v7371
        %v7373 = vand.u32 %v686, 4294901760
        %7374 = vmatpush.msra.mxu0 %v7373
        %v7375 = vand.u32 %v678, 4294901760
        %7376 = vmatpush.msra.mxu0 %v7375
        %v7377 = vand.u32 %v670, 4294901760
        %7378 = vmatpush.msra.mxu0 %v7377
        %v7379 = vand.u32 %v662, 4294901760
        %7380 = vmatpush.msra.mxu0 %v7379
        %v7381 = vand.u32 %v654, 4294901760
        %7382 = vmatpush.msra.mxu0 %v7381
        %v7383 = vand.u32 %v646, 4294901760
        %7384 = vmatpush.msra.mxu0 %v7383
        %v7385 = vand.u32 %v770, 4294901760
        %v7386 = vsub.f32 %v770, %v7385
        %v7387 = vand.u32 %v7386, 4294901760
        %7388 = vmatmul.f32.gmra.mxu0 %v7387
        %v7389 = vpop.f32.mrf.mxu0
        %v7390 = vadd.f32 %v7356, %v7389
        %7391 = vdwg.mxu0
        %7392 = vmatpush.msra.mxu0 0.0
        %7393 = vmatpush.msra.mxu0 0.0
        %7394 = vmatpush.msra.mxu0 0.0
        %7395 = vmatpush.msra.mxu0 0.0
        %7396 = vmatpush.msra.mxu0 0.0
        %v7397 = vand.u32 %v726, 4294901760
        %v7398 = vsub.f32 %v726, %v7397
        %v7399 = vand.u32 %v7398, 4294901760
        %7400 = vmatpush.msra.mxu0 %v7399
        %v7401 = vand.u32 %v718, 4294901760
        %v7402 = vsub.f32 %v718, %v7401
        %v7403 = vand.u32 %v7402, 4294901760
        %7404 = vmatpush.msra.mxu0 %v7403
        %v7405 = vand.u32 %v710, 4294901760
        %v7406 = vsub.f32 %v710, %v7405
        %v7407 = vand.u32 %v7406, 4294901760
        %7408 = vmatpush.msra.mxu0 %v7407
        %v7409 = vand.u32 %v702, 4294901760
        %v7410 = vsub.f32 %v702, %v7409
        %v7411 = vand.u32 %v7410, 4294901760
        %7412 = vmatpush.msra.mxu0 %v7411
        %v7413 = vand.u32 %v694, 4294901760
        %v7414 = vsub.f32 %v694, %v7413
        %v7415 = vand.u32 %v7414, 4294901760
        %7416 = vmatpush.msra.mxu0 %v7415
        %v7417 = vand.u32 %v686, 4294901760
        %v7418 = vsub.f32 %v686, %v7417
        %v7419 = vand.u32 %v7418, 4294901760
        %7420 = vmatpush.msra.mxu0 %v7419
        %v7421 = vand.u32 %v678, 4294901760
        %v7422 = vsub.f32 %v678, %v7421
        %v7423 = vand.u32 %v7422, 4294901760
        %7424 = vmatpush.msra.mxu0 %v7423
        %v7425 = vand.u32 %v670, 4294901760
        %v7426 = vsub.f32 %v670, %v7425
        %v7427 = vand.u32 %v7426, 4294901760
        %7428 = vmatpush.msra.mxu0 %v7427
        %v7429 = vand.u32 %v662, 4294901760
        %v7430 = vsub.f32 %v662, %v7429
        %v7431 = vand.u32 %v7430, 4294901760
        %7432 = vmatpush.msra.mxu0 %v7431
        %v7433 = vand.u32 %v654, 4294901760
        %v7434 = vsub.f32 %v654, %v7433
        %v7435 = vand.u32 %v7434, 4294901760
        %7436 = vmatpush.msra.mxu0 %v7435
        %v7437 = vand.u32 %v646, 4294901760
        %v7438 = vsub.f32 %v646, %v7437
        %v7439 = vand.u32 %v7438, 4294901760
        %7440 = vmatpush.msra.mxu0 %v7439
        %v7441 = vand.u32 %v770, 4294901760
        %7442 = vmatmul.f32.gmra.mxu0 %v7441
        %v7443 = vpop.f32.mrf.mxu0
        %v7444 = vadd.f32 %v7390, %v7443
        %7445 = vdwg.mxu0
        %7446 = vmatpush.msra.mxu0 0.0
        %7447 = vmatpush.msra.mxu0 0.0
        %7448 = vmatpush.msra.mxu0 0.0
        %7449 = vmatpush.msra.mxu0 0.0
        %7450 = vmatpush.msra.mxu0 0.0
        %v7451 = vand.u32 %v726, 4294901760
        %7452 = vmatpush.msra.mxu0 %v7451
        %v7453 = vand.u32 %v718, 4294901760
        %7454 = vmatpush.msra.mxu0 %v7453
        %v7455 = vand.u32 %v710, 4294901760
        %7456 = vmatpush.msra.mxu0 %v7455
        %v7457 = vand.u32 %v702, 4294901760
        %7458 = vmatpush.msra.mxu0 %v7457
        %v7459 = vand.u32 %v694, 4294901760
        %7460 = vmatpush.msra.mxu0 %v7459
        %v7461 = vand.u32 %v686, 4294901760
        %7462 = vmatpush.msra.mxu0 %v7461
        %v7463 = vand.u32 %v678, 4294901760
        %7464 = vmatpush.msra.mxu0 %v7463
        %v7465 = vand.u32 %v670, 4294901760
        %7466 = vmatpush.msra.mxu0 %v7465
        %v7467 = vand.u32 %v662, 4294901760
        %7468 = vmatpush.msra.mxu0 %v7467
        %v7469 = vand.u32 %v654, 4294901760
        %7470 = vmatpush.msra.mxu0 %v7469
        %v7471 = vand.u32 %v646, 4294901760
        %7472 = vmatpush.msra.mxu0 %v7471
        %v7473 = vand.u32 %v770, 4294901760
        %7474 = vmatmul.f32.gmra.mxu0 %v7473
        %v7475 = vpop.f32.mrf.mxu0
        %v7476 = vadd.f32 %v7444, %v7475
        %7477 = vdwg.mxu0
        %v7478 = vand.u32 %v511, 4294901760
        %7479 = vmatpush.msra.mxu0 %v7478
        %v7480 = vand.u32 %v503, 4294901760
        %7481 = vmatpush.msra.mxu0 %v7480
        %v7482 = vand.u32 %v495, 4294901760
        %7483 = vmatpush.msra.mxu0 %v7482
        %v7484 = vand.u32 %v487, 4294901760
        %7485 = vmatpush.msra.mxu0 %v7484
        %v7486 = vand.u32 %v479, 4294901760
        %7487 = vmatpush.msra.mxu0 %v7486
        %v7488 = vand.u32 %v471, 4294901760
        %7489 = vmatpush.msra.mxu0 %v7488
        %v7490 = vand.u32 %v463, 4294901760
        %7491 = vmatpush.msra.mxu0 %v7490
        %v7492 = vand.u32 %v455, 4294901760
        %7493 = vmatpush.msra.mxu0 %v7492
        %v7494 = vand.u32 %v447, 4294901760
        %7495 = vmatpush.msra.mxu0 %v7494
        %v7496 = vand.u32 %v439, 4294901760
        %7497 = vmatpush.msra.mxu0 %v7496
        %v7498 = vand.u32 %v431, 4294901760
        %7499 = vmatpush.msra.mxu0 %v7498
        %v7500 = vand.u32 %v423, 4294901760
        %7501 = vmatpush.msra.mxu0 %v7500
        %v7502 = vand.u32 %v415, 4294901760
        %7503 = vmatpush.msra.mxu0 %v7502
        %v7504 = vand.u32 %v407, 4294901760
        %7505 = vmatpush.msra.mxu0 %v7504
        %v7506 = vand.u32 %v399, 4294901760
        %7507 = vmatpush.msra.mxu0 %v7506
        %v7508 = vand.u32 %v391, 4294901760
        %7509 = vmatpush.msra.mxu0 %v7508
        %v7510 = vand.u32 %v737, 4294901760
        %v7511 = vsub.f32 %v737, %v7510
        %v7512 = vand.u32 %v7511, 4294901760
        %v7513 = vsub.f32 %v7511, %v7512
        %v7514 = vand.u32 %v7513, 4294901760
        %7515 = vmatmul.f32.gmra.mxu0 %v7514
        %v7516 = vpop.f32.mrf.mxu0
        %v7517 = vadd.f32 %v760, %v7516
        %7518 = vdwg.mxu0
        %v7519 = vand.u32 %v511, 4294901760
        %v7520 = vsub.f32 %v511, %v7519
        %v7521 = vand.u32 %v7520, 4294901760
        %v7522 = vsub.f32 %v7520, %v7521
        %v7523 = vand.u32 %v7522, 4294901760
        %7524 = vmatpush.msra.mxu0 %v7523
        %v7525 = vand.u32 %v503, 4294901760
        %v7526 = vsub.f32 %v503, %v7525
        %v7527 = vand.u32 %v7526, 4294901760
        %v7528 = vsub.f32 %v7526, %v7527
        %v7529 = vand.u32 %v7528, 4294901760
        %7530 = vmatpush.msra.mxu0 %v7529
        %v7531 = vand.u32 %v495, 4294901760
        %v7532 = vsub.f32 %v495, %v7531
        %v7533 = vand.u32 %v7532, 4294901760
        %v7534 = vsub.f32 %v7532, %v7533
        %v7535 = vand.u32 %v7534, 4294901760
        %7536 = vmatpush.msra.mxu0 %v7535
        %v7537 = vand.u32 %v487, 4294901760
        %v7538 = vsub.f32 %v487, %v7537
        %v7539 = vand.u32 %v7538, 4294901760
        %v7540 = vsub.f32 %v7538, %v7539
        %v7541 = vand.u32 %v7540, 4294901760
        %7542 = vmatpush.msra.mxu0 %v7541
        %v7543 = vand.u32 %v479, 4294901760
        %v7544 = vsub.f32 %v479, %v7543
        %v7545 = vand.u32 %v7544, 4294901760
        %v7546 = vsub.f32 %v7544, %v7545
        %v7547 = vand.u32 %v7546, 4294901760
        %7548 = vmatpush.msra.mxu0 %v7547
        %v7549 = vand.u32 %v471, 4294901760
        %v7550 = vsub.f32 %v471, %v7549
        %v7551 = vand.u32 %v7550, 4294901760
        %v7552 = vsub.f32 %v7550, %v7551
        %v7553 = vand.u32 %v7552, 4294901760
        %7554 = vmatpush.msra.mxu0 %v7553
        %v7555 = vand.u32 %v463, 4294901760
        %v7556 = vsub.f32 %v463, %v7555
        %v7557 = vand.u32 %v7556, 4294901760
        %v7558 = vsub.f32 %v7556, %v7557
        %v7559 = vand.u32 %v7558, 4294901760
        %7560 = vmatpush.msra.mxu0 %v7559
        %v7561 = vand.u32 %v455, 4294901760
        %v7562 = vsub.f32 %v455, %v7561
        %v7563 = vand.u32 %v7562, 4294901760
        %v7564 = vsub.f32 %v7562, %v7563
        %v7565 = vand.u32 %v7564, 4294901760
        %7566 = vmatpush.msra.mxu0 %v7565
        %v7567 = vand.u32 %v447, 4294901760
        %v7568 = vsub.f32 %v447, %v7567
        %v7569 = vand.u32 %v7568, 4294901760
        %v7570 = vsub.f32 %v7568, %v7569
        %v7571 = vand.u32 %v7570, 4294901760
        %7572 = vmatpush.msra.mxu0 %v7571
        %v7573 = vand.u32 %v439, 4294901760
        %v7574 = vsub.f32 %v439, %v7573
        %v7575 = vand.u32 %v7574, 4294901760
        %v7576 = vsub.f32 %v7574, %v7575
        %v7577 = vand.u32 %v7576, 4294901760
        %7578 = vmatpush.msra.mxu0 %v7577
        %v7579 = vand.u32 %v431, 4294901760
        %v7580 = vsub.f32 %v431, %v7579
        %v7581 = vand.u32 %v7580, 4294901760
        %v7582 = vsub.f32 %v7580, %v7581
        %v7583 = vand.u32 %v7582, 4294901760
        %7584 = vmatpush.msra.mxu0 %v7583
        %v7585 = vand.u32 %v423, 4294901760
        %v7586 = vsub.f32 %v423, %v7585
        %v7587 = vand.u32 %v7586, 4294901760
        %v7588 = vsub.f32 %v7586, %v7587
        %v7589 = vand.u32 %v7588, 4294901760
        %7590 = vmatpush.msra.mxu0 %v7589
        %v7591 = vand.u32 %v415, 4294901760
        %v7592 = vsub.f32 %v415, %v7591
        %v7593 = vand.u32 %v7592, 4294901760
        %v7594 = vsub.f32 %v7592, %v7593
        %v7595 = vand.u32 %v7594, 4294901760
        %7596 = vmatpush.msra.mxu0 %v7595
        %v7597 = vand.u32 %v407, 4294901760
        %v7598 = vsub.f32 %v407, %v7597
        %v7599 = vand.u32 %v7598, 4294901760
        %v7600 = vsub.f32 %v7598, %v7599
        %v7601 = vand.u32 %v7600, 4294901760
        %7602 = vmatpush.msra.mxu0 %v7601
        %v7603 = vand.u32 %v399, 4294901760
        %v7604 = vsub.f32 %v399, %v7603
        %v7605 = vand.u32 %v7604, 4294901760
        %v7606 = vsub.f32 %v7604, %v7605
        %v7607 = vand.u32 %v7606, 4294901760
        %7608 = vmatpush.msra.mxu0 %v7607
        %v7609 = vand.u32 %v391, 4294901760
        %v7610 = vsub.f32 %v391, %v7609
        %v7611 = vand.u32 %v7610, 4294901760
        %v7612 = vsub.f32 %v7610, %v7611
        %v7613 = vand.u32 %v7612, 4294901760
        %7614 = vmatpush.msra.mxu0 %v7613
        %v7615 = vand.u32 %v737, 4294901760
        %7616 = vmatmul.f32.gmra.mxu0 %v7615
        %v7617 = vpop.f32.mrf.mxu0
        %v7618 = vadd.f32 %v7517, %v7617
        %7619 = vdwg.mxu0
        %v7620 = vand.u32 %v511, 4294901760
        %v7621 = vsub.f32 %v511, %v7620
        %7622 = vmatpush.msra.mxu0 %v7621
        %v7623 = vand.u32 %v503, 4294901760
        %v7624 = vsub.f32 %v503, %v7623
        %7625 = vmatpush.msra.mxu0 %v7624
        %v7626 = vand.u32 %v495, 4294901760
        %v7627 = vsub.f32 %v495, %v7626
        %7628 = vmatpush.msra.mxu0 %v7627
        %v7629 = vand.u32 %v487, 4294901760
        %v7630 = vsub.f32 %v487, %v7629
        %7631 = vmatpush.msra.mxu0 %v7630
        %v7632 = vand.u32 %v479, 4294901760
        %v7633 = vsub.f32 %v479, %v7632
        %7634 = vmatpush.msra.mxu0 %v7633
        %v7635 = vand.u32 %v471, 4294901760
        %v7636 = vsub.f32 %v471, %v7635
        %7637 = vmatpush.msra.mxu0 %v7636
        %v7638 = vand.u32 %v463, 4294901760
        %v7639 = vsub.f32 %v463, %v7638
        %7640 = vmatpush.msra.mxu0 %v7639
        %v7641 = vand.u32 %v455, 4294901760
        %v7642 = vsub.f32 %v455, %v7641
        %7643 = vmatpush.msra.mxu0 %v7642
        %v7644 = vand.u32 %v447, 4294901760
        %v7645 = vsub.f32 %v447, %v7644
        %7646 = vmatpush.msra.mxu0 %v7645
        %v7647 = vand.u32 %v439, 4294901760
        %v7648 = vsub.f32 %v439, %v7647
        %7649 = vmatpush.msra.mxu0 %v7648
        %v7650 = vand.u32 %v431, 4294901760
        %v7651 = vsub.f32 %v431, %v7650
        %7652 = vmatpush.msra.mxu0 %v7651
        %v7653 = vand.u32 %v423, 4294901760
        %v7654 = vsub.f32 %v423, %v7653
        %7655 = vmatpush.msra.mxu0 %v7654
        %v7656 = vand.u32 %v415, 4294901760
        %v7657 = vsub.f32 %v415, %v7656
        %7658 = vmatpush.msra.mxu0 %v7657
        %v7659 = vand.u32 %v407, 4294901760
        %v7660 = vsub.f32 %v407, %v7659
        %7661 = vmatpush.msra.mxu0 %v7660
        %v7662 = vand.u32 %v399, 4294901760
        %v7663 = vsub.f32 %v399, %v7662
        %7664 = vmatpush.msra.mxu0 %v7663
        %v7665 = vand.u32 %v391, 4294901760
        %v7666 = vsub.f32 %v391, %v7665
        %7667 = vmatpush.msra.mxu0 %v7666
        %v7668 = vand.u32 %v737, 4294901760
        %v7669 = vsub.f32 %v737, %v7668
        %7670 = vmatmul.f32.gmra.mxu0 %v7669
        %v7671 = vpop.f32.mrf.mxu0
        %v7672 = vadd.f32 %v7618, %v7671
        %7673 = vdwg.mxu0
        %v7674 = vand.u32 %v511, 4294901760
        %7675 = vmatpush.msra.mxu0 %v7674
        %v7676 = vand.u32 %v503, 4294901760
        %7677 = vmatpush.msra.mxu0 %v7676
        %v7678 = vand.u32 %v495, 4294901760
        %7679 = vmatpush.msra.mxu0 %v7678
        %v7680 = vand.u32 %v487, 4294901760
        %7681 = vmatpush.msra.mxu0 %v7680
        %v7682 = vand.u32 %v479, 4294901760
        %7683 = vmatpush.msra.mxu0 %v7682
        %v7684 = vand.u32 %v471, 4294901760
        %7685 = vmatpush.msra.mxu0 %v7684
        %v7686 = vand.u32 %v463, 4294901760
        %7687 = vmatpush.msra.mxu0 %v7686
        %v7688 = vand.u32 %v455, 4294901760
        %7689 = vmatpush.msra.mxu0 %v7688
        %v7690 = vand.u32 %v447, 4294901760
        %7691 = vmatpush.msra.mxu0 %v7690
        %v7692 = vand.u32 %v439, 4294901760
        %7693 = vmatpush.msra.mxu0 %v7692
        %v7694 = vand.u32 %v431, 4294901760
        %7695 = vmatpush.msra.mxu0 %v7694
        %v7696 = vand.u32 %v423, 4294901760
        %7697 = vmatpush.msra.mxu0 %v7696
        %v7698 = vand.u32 %v415, 4294901760
        %7699 = vmatpush.msra.mxu0 %v7698
        %v7700 = vand.u32 %v407, 4294901760
        %7701 = vmatpush.msra.mxu0 %v7700
        %v7702 = vand.u32 %v399, 4294901760
        %7703 = vmatpush.msra.mxu0 %v7702
        %v7704 = vand.u32 %v391, 4294901760
        %7705 = vmatpush.msra.mxu0 %v7704
        %v7706 = vand.u32 %v737, 4294901760
        %v7707 = vsub.f32 %v737, %v7706
        %v7708 = vand.u32 %v7707, 4294901760
        %7709 = vmatmul.f32.gmra.mxu0 %v7708
        %v7710 = vpop.f32.mrf.mxu0
        %v7711 = vadd.f32 %v7672, %v7710
        %7712 = vdwg.mxu0
        %v7713 = vand.u32 %v511, 4294901760
        %v7714 = vsub.f32 %v511, %v7713
        %v7715 = vand.u32 %v7714, 4294901760
        %7716 = vmatpush.msra.mxu0 %v7715
        %v7717 = vand.u32 %v503, 4294901760
        %v7718 = vsub.f32 %v503, %v7717
        %v7719 = vand.u32 %v7718, 4294901760
        %7720 = vmatpush.msra.mxu0 %v7719
        %v7721 = vand.u32 %v495, 4294901760
        %v7722 = vsub.f32 %v495, %v7721
        %v7723 = vand.u32 %v7722, 4294901760
        %7724 = vmatpush.msra.mxu0 %v7723
        %v7725 = vand.u32 %v487, 4294901760
        %v7726 = vsub.f32 %v487, %v7725
        %v7727 = vand.u32 %v7726, 4294901760
        %7728 = vmatpush.msra.mxu0 %v7727
        %v7729 = vand.u32 %v479, 4294901760
        %v7730 = vsub.f32 %v479, %v7729
        %v7731 = vand.u32 %v7730, 4294901760
        %7732 = vmatpush.msra.mxu0 %v7731
        %v7733 = vand.u32 %v471, 4294901760
        %v7734 = vsub.f32 %v471, %v7733
        %v7735 = vand.u32 %v7734, 4294901760
        %7736 = vmatpush.msra.mxu0 %v7735
        %v7737 = vand.u32 %v463, 4294901760
        %v7738 = vsub.f32 %v463, %v7737
        %v7739 = vand.u32 %v7738, 4294901760
        %7740 = vmatpush.msra.mxu0 %v7739
        %v7741 = vand.u32 %v455, 4294901760
        %v7742 = vsub.f32 %v455, %v7741
        %v7743 = vand.u32 %v7742, 4294901760
        %7744 = vmatpush.msra.mxu0 %v7743
        %v7745 = vand.u32 %v447, 4294901760
        %v7746 = vsub.f32 %v447, %v7745
        %v7747 = vand.u32 %v7746, 4294901760
        %7748 = vmatpush.msra.mxu0 %v7747
        %v7749 = vand.u32 %v439, 4294901760
        %v7750 = vsub.f32 %v439, %v7749
        %v7751 = vand.u32 %v7750, 4294901760
        %7752 = vmatpush.msra.mxu0 %v7751
        %v7753 = vand.u32 %v431, 4294901760
        %v7754 = vsub.f32 %v431, %v7753
        %v7755 = vand.u32 %v7754, 4294901760
        %7756 = vmatpush.msra.mxu0 %v7755
        %v7757 = vand.u32 %v423, 4294901760
        %v7758 = vsub.f32 %v423, %v7757
        %v7759 = vand.u32 %v7758, 4294901760
        %7760 = vmatpush.msra.mxu0 %v7759
        %v7761 = vand.u32 %v415, 4294901760
        %v7762 = vsub.f32 %v415, %v7761
        %v7763 = vand.u32 %v7762, 4294901760
        %7764 = vmatpush.msra.mxu0 %v7763
        %v7765 = vand.u32 %v407, 4294901760
        %v7766 = vsub.f32 %v407, %v7765
        %v7767 = vand.u32 %v7766, 4294901760
        %7768 = vmatpush.msra.mxu0 %v7767
        %v7769 = vand.u32 %v399, 4294901760
        %v7770 = vsub.f32 %v399, %v7769
        %v7771 = vand.u32 %v7770, 4294901760
        %7772 = vmatpush.msra.mxu0 %v7771
        %v7773 = vand.u32 %v391, 4294901760
        %v7774 = vsub.f32 %v391, %v7773
        %v7775 = vand.u32 %v7774, 4294901760
        %7776 = vmatpush.msra.mxu0 %v7775
        %v7777 = vand.u32 %v737, 4294901760
        %7778 = vmatmul.f32.gmra.mxu0 %v7777
        %v7779 = vpop.f32.mrf.mxu0
        %v7780 = vadd.f32 %v7711, %v7779
        %7781 = vdwg.mxu0
        %v7782 = vand.u32 %v511, 4294901760
        %7783 = vmatpush.msra.mxu0 %v7782
        %v7784 = vand.u32 %v503, 4294901760
        %7785 = vmatpush.msra.mxu0 %v7784
        %v7786 = vand.u32 %v495, 4294901760
        %7787 = vmatpush.msra.mxu0 %v7786
        %v7788 = vand.u32 %v487, 4294901760
        %7789 = vmatpush.msra.mxu0 %v7788
        %v7790 = vand.u32 %v479, 4294901760
        %7791 = vmatpush.msra.mxu0 %v7790
        %v7792 = vand.u32 %v471, 4294901760
        %7793 = vmatpush.msra.mxu0 %v7792
        %v7794 = vand.u32 %v463, 4294901760
        %7795 = vmatpush.msra.mxu0 %v7794
        %v7796 = vand.u32 %v455, 4294901760
        %7797 = vmatpush.msra.mxu0 %v7796
        %v7798 = vand.u32 %v447, 4294901760
        %7799 = vmatpush.msra.mxu0 %v7798
        %v7800 = vand.u32 %v439, 4294901760
        %7801 = vmatpush.msra.mxu0 %v7800
        %v7802 = vand.u32 %v431, 4294901760
        %7803 = vmatpush.msra.mxu0 %v7802
        %v7804 = vand.u32 %v423, 4294901760
        %7805 = vmatpush.msra.mxu0 %v7804
        %v7806 = vand.u32 %v415, 4294901760
        %7807 = vmatpush.msra.mxu0 %v7806
        %v7808 = vand.u32 %v407, 4294901760
        %7809 = vmatpush.msra.mxu0 %v7808
        %v7810 = vand.u32 %v399, 4294901760
        %7811 = vmatpush.msra.mxu0 %v7810
        %v7812 = vand.u32 %v391, 4294901760
        %7813 = vmatpush.msra.mxu0 %v7812
        %v7814 = vand.u32 %v737, 4294901760
        %7815 = vmatmul.f32.gmra.mxu0 %v7814
        %v7816 = vpop.f32.mrf.mxu0
        %v7817 = vadd.f32 %v7780, %v7816
        %7818 = vdwg.mxu0
        %v7819 = vand.u32 %v639, 4294901760
        %7820 = vmatpush.msra.mxu0 %v7819
        %v7821 = vand.u32 %v631, 4294901760
        %7822 = vmatpush.msra.mxu0 %v7821
        %v7823 = vand.u32 %v623, 4294901760
        %7824 = vmatpush.msra.mxu0 %v7823
        %v7825 = vand.u32 %v615, 4294901760
        %7826 = vmatpush.msra.mxu0 %v7825
        %v7827 = vand.u32 %v607, 4294901760
        %7828 = vmatpush.msra.mxu0 %v7827
        %v7829 = vand.u32 %v599, 4294901760
        %7830 = vmatpush.msra.mxu0 %v7829
        %v7831 = vand.u32 %v591, 4294901760
        %7832 = vmatpush.msra.mxu0 %v7831
        %v7833 = vand.u32 %v583, 4294901760
        %7834 = vmatpush.msra.mxu0 %v7833
        %v7835 = vand.u32 %v575, 4294901760
        %7836 = vmatpush.msra.mxu0 %v7835
        %v7837 = vand.u32 %v567, 4294901760
        %7838 = vmatpush.msra.mxu0 %v7837
        %v7839 = vand.u32 %v559, 4294901760
        %7840 = vmatpush.msra.mxu0 %v7839
        %v7841 = vand.u32 %v551, 4294901760
        %7842 = vmatpush.msra.mxu0 %v7841
        %v7843 = vand.u32 %v543, 4294901760
        %7844 = vmatpush.msra.mxu0 %v7843
        %v7845 = vand.u32 %v535, 4294901760
        %7846 = vmatpush.msra.mxu0 %v7845
        %v7847 = vand.u32 %v527, 4294901760
        %7848 = vmatpush.msra.mxu0 %v7847
        %v7849 = vand.u32 %v519, 4294901760
        %7850 = vmatpush.msra.mxu0 %v7849
        %v7851 = vand.u32 %v738, 4294901760
        %v7852 = vsub.f32 %v738, %v7851
        %v7853 = vand.u32 %v7852, 4294901760
        %v7854 = vsub.f32 %v7852, %v7853
        %v7855 = vand.u32 %v7854, 4294901760
        %7856 = vmatmul.f32.gmra.mxu0 %v7855
        %v7857 = vpop.f32.mrf.mxu0
        %v7858 = vadd.f32 %v7817, %v7857
        %7859 = vdwg.mxu0
        %v7860 = vand.u32 %v639, 4294901760
        %v7861 = vsub.f32 %v639, %v7860
        %v7862 = vand.u32 %v7861, 4294901760
        %v7863 = vsub.f32 %v7861, %v7862
        %v7864 = vand.u32 %v7863, 4294901760
        %7865 = vmatpush.msra.mxu0 %v7864
        %v7866 = vand.u32 %v631, 4294901760
        %v7867 = vsub.f32 %v631, %v7866
        %v7868 = vand.u32 %v7867, 4294901760
        %v7869 = vsub.f32 %v7867, %v7868
        %v7870 = vand.u32 %v7869, 4294901760
        %7871 = vmatpush.msra.mxu0 %v7870
        %v7872 = vand.u32 %v623, 4294901760
        %v7873 = vsub.f32 %v623, %v7872
        %v7874 = vand.u32 %v7873, 4294901760
        %v7875 = vsub.f32 %v7873, %v7874
        %v7876 = vand.u32 %v7875, 4294901760
        %7877 = vmatpush.msra.mxu0 %v7876
        %v7878 = vand.u32 %v615, 4294901760
        %v7879 = vsub.f32 %v615, %v7878
        %v7880 = vand.u32 %v7879, 4294901760
        %v7881 = vsub.f32 %v7879, %v7880
        %v7882 = vand.u32 %v7881, 4294901760
        %7883 = vmatpush.msra.mxu0 %v7882
        %v7884 = vand.u32 %v607, 4294901760
        %v7885 = vsub.f32 %v607, %v7884
        %v7886 = vand.u32 %v7885, 4294901760
        %v7887 = vsub.f32 %v7885, %v7886
        %v7888 = vand.u32 %v7887, 4294901760
        %7889 = vmatpush.msra.mxu0 %v7888
        %v7890 = vand.u32 %v599, 4294901760
        %v7891 = vsub.f32 %v599, %v7890
        %v7892 = vand.u32 %v7891, 4294901760
        %v7893 = vsub.f32 %v7891, %v7892
        %v7894 = vand.u32 %v7893, 4294901760
        %7895 = vmatpush.msra.mxu0 %v7894
        %v7896 = vand.u32 %v591, 4294901760
        %v7897 = vsub.f32 %v591, %v7896
        %v7898 = vand.u32 %v7897, 4294901760
        %v7899 = vsub.f32 %v7897, %v7898
        %v7900 = vand.u32 %v7899, 4294901760
        %7901 = vmatpush.msra.mxu0 %v7900
        %v7902 = vand.u32 %v583, 4294901760
        %v7903 = vsub.f32 %v583, %v7902
        %v7904 = vand.u32 %v7903, 4294901760
        %v7905 = vsub.f32 %v7903, %v7904
        %v7906 = vand.u32 %v7905, 4294901760
        %7907 = vmatpush.msra.mxu0 %v7906
        %v7908 = vand.u32 %v575, 4294901760
        %v7909 = vsub.f32 %v575, %v7908
        %v7910 = vand.u32 %v7909, 4294901760
        %v7911 = vsub.f32 %v7909, %v7910
        %v7912 = vand.u32 %v7911, 4294901760
        %7913 = vmatpush.msra.mxu0 %v7912
        %v7914 = vand.u32 %v567, 4294901760
        %v7915 = vsub.f32 %v567, %v7914
        %v7916 = vand.u32 %v7915, 4294901760
        %v7917 = vsub.f32 %v7915, %v7916
        %v7918 = vand.u32 %v7917, 4294901760
        %7919 = vmatpush.msra.mxu0 %v7918
        %v7920 = vand.u32 %v559, 4294901760
        %v7921 = vsub.f32 %v559, %v7920
        %v7922 = vand.u32 %v7921, 4294901760
        %v7923 = vsub.f32 %v7921, %v7922
        %v7924 = vand.u32 %v7923, 4294901760
        %7925 = vmatpush.msra.mxu0 %v7924
        %v7926 = vand.u32 %v551, 4294901760
        %v7927 = vsub.f32 %v551, %v7926
        %v7928 = vand.u32 %v7927, 4294901760
        %v7929 = vsub.f32 %v7927, %v7928
        %v7930 = vand.u32 %v7929, 4294901760
        %7931 = vmatpush.msra.mxu0 %v7930
        %v7932 = vand.u32 %v543, 4294901760
        %v7933 = vsub.f32 %v543, %v7932
        %v7934 = vand.u32 %v7933, 4294901760
        %v7935 = vsub.f32 %v7933, %v7934
        %v7936 = vand.u32 %v7935, 4294901760
        %7937 = vmatpush.msra.mxu0 %v7936
        %v7938 = vand.u32 %v535, 4294901760
        %v7939 = vsub.f32 %v535, %v7938
        %v7940 = vand.u32 %v7939, 4294901760
        %v7941 = vsub.f32 %v7939, %v7940
        %v7942 = vand.u32 %v7941, 4294901760
        %7943 = vmatpush.msra.mxu0 %v7942
        %v7944 = vand.u32 %v527, 4294901760
        %v7945 = vsub.f32 %v527, %v7944
        %v7946 = vand.u32 %v7945, 4294901760
        %v7947 = vsub.f32 %v7945, %v7946
        %v7948 = vand.u32 %v7947, 4294901760
        %7949 = vmatpush.msra.mxu0 %v7948
        %v7950 = vand.u32 %v519, 4294901760
        %v7951 = vsub.f32 %v519, %v7950
        %v7952 = vand.u32 %v7951, 4294901760
        %v7953 = vsub.f32 %v7951, %v7952
        %v7954 = vand.u32 %v7953, 4294901760
        %7955 = vmatpush.msra.mxu0 %v7954
        %v7956 = vand.u32 %v738, 4294901760
        %7957 = vmatmul.f32.gmra.mxu0 %v7956
        %v7958 = vpop.f32.mrf.mxu0
        %v7959 = vadd.f32 %v7858, %v7958
        %7960 = vdwg.mxu0
        %v7961 = vand.u32 %v639, 4294901760
        %v7962 = vsub.f32 %v639, %v7961
        %7963 = vmatpush.msra.mxu0 %v7962
        %v7964 = vand.u32 %v631, 4294901760
        %v7965 = vsub.f32 %v631, %v7964
        %7966 = vmatpush.msra.mxu0 %v7965
        %v7967 = vand.u32 %v623, 4294901760
        %v7968 = vsub.f32 %v623, %v7967
        %7969 = vmatpush.msra.mxu0 %v7968
        %v7970 = vand.u32 %v615, 4294901760
        %v7971 = vsub.f32 %v615, %v7970
        %7972 = vmatpush.msra.mxu0 %v7971
        %v7973 = vand.u32 %v607, 4294901760
        %v7974 = vsub.f32 %v607, %v7973
        %7975 = vmatpush.msra.mxu0 %v7974
        %v7976 = vand.u32 %v599, 4294901760
        %v7977 = vsub.f32 %v599, %v7976
        %7978 = vmatpush.msra.mxu0 %v7977
        %v7979 = vand.u32 %v591, 4294901760
        %v7980 = vsub.f32 %v591, %v7979
        %7981 = vmatpush.msra.mxu0 %v7980
        %v7982 = vand.u32 %v583, 4294901760
        %v7983 = vsub.f32 %v583, %v7982
        %7984 = vmatpush.msra.mxu0 %v7983
        %v7985 = vand.u32 %v575, 4294901760
        %v7986 = vsub.f32 %v575, %v7985
        %7987 = vmatpush.msra.mxu0 %v7986
        %v7988 = vand.u32 %v567, 4294901760
        %v7989 = vsub.f32 %v567, %v7988
        %7990 = vmatpush.msra.mxu0 %v7989
        %v7991 = vand.u32 %v559, 4294901760
        %v7992 = vsub.f32 %v559, %v7991
        %7993 = vmatpush.msra.mxu0 %v7992
        %v7994 = vand.u32 %v551, 4294901760
        %v7995 = vsub.f32 %v551, %v7994
        %7996 = vmatpush.msra.mxu0 %v7995
        %v7997 = vand.u32 %v543, 4294901760
        %v7998 = vsub.f32 %v543, %v7997
        %7999 = vmatpush.msra.mxu0 %v7998
        %v8000 = vand.u32 %v535, 4294901760
        %v8001 = vsub.f32 %v535, %v8000
        %8002 = vmatpush.msra.mxu0 %v8001
        %v8003 = vand.u32 %v527, 4294901760
        %v8004 = vsub.f32 %v527, %v8003
        %8005 = vmatpush.msra.mxu0 %v8004
        %v8006 = vand.u32 %v519, 4294901760
        %v8007 = vsub.f32 %v519, %v8006
        %8008 = vmatpush.msra.mxu0 %v8007
        %v8009 = vand.u32 %v738, 4294901760
        %v8010 = vsub.f32 %v738, %v8009
        %8011 = vmatmul.f32.gmra.mxu0 %v8010
        %v8012 = vpop.f32.mrf.mxu0
        %v8013 = vadd.f32 %v7959, %v8012
        %8014 = vdwg.mxu0
        %v8015 = vand.u32 %v639, 4294901760
        %8016 = vmatpush.msra.mxu0 %v8015
        %v8017 = vand.u32 %v631, 4294901760
        %8018 = vmatpush.msra.mxu0 %v8017
        %v8019 = vand.u32 %v623, 4294901760
        %8020 = vmatpush.msra.mxu0 %v8019
        %v8021 = vand.u32 %v615, 4294901760
        %8022 = vmatpush.msra.mxu0 %v8021
        %v8023 = vand.u32 %v607, 4294901760
        %8024 = vmatpush.msra.mxu0 %v8023
        %v8025 = vand.u32 %v599, 4294901760
        %8026 = vmatpush.msra.mxu0 %v8025
        %v8027 = vand.u32 %v591, 4294901760
        %8028 = vmatpush.msra.mxu0 %v8027
        %v8029 = vand.u32 %v583, 4294901760
        %8030 = vmatpush.msra.mxu0 %v8029
        %v8031 = vand.u32 %v575, 4294901760
        %8032 = vmatpush.msra.mxu0 %v8031
        %v8033 = vand.u32 %v567, 4294901760
        %8034 = vmatpush.msra.mxu0 %v8033
        %v8035 = vand.u32 %v559, 4294901760
        %8036 = vmatpush.msra.mxu0 %v8035
        %v8037 = vand.u32 %v551, 4294901760
        %8038 = vmatpush.msra.mxu0 %v8037
        %v8039 = vand.u32 %v543, 4294901760
        %8040 = vmatpush.msra.mxu0 %v8039
        %v8041 = vand.u32 %v535, 4294901760
        %8042 = vmatpush.msra.mxu0 %v8041
        %v8043 = vand.u32 %v527, 4294901760
        %8044 = vmatpush.msra.mxu0 %v8043
        %v8045 = vand.u32 %v519, 4294901760
        %8046 = vmatpush.msra.mxu0 %v8045
        %v8047 = vand.u32 %v738, 4294901760
        %v8048 = vsub.f32 %v738, %v8047
        %v8049 = vand.u32 %v8048, 4294901760
        %8050 = vmatmul.f32.gmra.mxu0 %v8049
        %v8051 = vpop.f32.mrf.mxu0
        %v8052 = vadd.f32 %v8013, %v8051
        %8053 = vdwg.mxu0
        %v8054 = vand.u32 %v639, 4294901760
        %v8055 = vsub.f32 %v639, %v8054
        %v8056 = vand.u32 %v8055, 4294901760
        %8057 = vmatpush.msra.mxu0 %v8056
        %v8058 = vand.u32 %v631, 4294901760
        %v8059 = vsub.f32 %v631, %v8058
        %v8060 = vand.u32 %v8059, 4294901760
        %8061 = vmatpush.msra.mxu0 %v8060
        %v8062 = vand.u32 %v623, 4294901760
        %v8063 = vsub.f32 %v623, %v8062
        %v8064 = vand.u32 %v8063, 4294901760
        %8065 = vmatpush.msra.mxu0 %v8064
        %v8066 = vand.u32 %v615, 4294901760
        %v8067 = vsub.f32 %v615, %v8066
        %v8068 = vand.u32 %v8067, 4294901760
        %8069 = vmatpush.msra.mxu0 %v8068
        %v8070 = vand.u32 %v607, 4294901760
        %v8071 = vsub.f32 %v607, %v8070
        %v8072 = vand.u32 %v8071, 4294901760
        %8073 = vmatpush.msra.mxu0 %v8072
        %v8074 = vand.u32 %v599, 4294901760
        %v8075 = vsub.f32 %v599, %v8074
        %v8076 = vand.u32 %v8075, 4294901760
        %8077 = vmatpush.msra.mxu0 %v8076
        %v8078 = vand.u32 %v591, 4294901760
        %v8079 = vsub.f32 %v591, %v8078
        %v8080 = vand.u32 %v8079, 4294901760
        %8081 = vmatpush.msra.mxu0 %v8080
        %v8082 = vand.u32 %v583, 4294901760
        %v8083 = vsub.f32 %v583, %v8082
        %v8084 = vand.u32 %v8083, 4294901760
        %8085 = vmatpush.msra.mxu0 %v8084
        %v8086 = vand.u32 %v575, 4294901760
        %v8087 = vsub.f32 %v575, %v8086
        %v8088 = vand.u32 %v8087, 4294901760
        %8089 = vmatpush.msra.mxu0 %v8088
        %v8090 = vand.u32 %v567, 4294901760
        %v8091 = vsub.f32 %v567, %v8090
        %v8092 = vand.u32 %v8091, 4294901760
        %8093 = vmatpush.msra.mxu0 %v8092
        %v8094 = vand.u32 %v559, 4294901760
        %v8095 = vsub.f32 %v559, %v8094
        %v8096 = vand.u32 %v8095, 4294901760
        %8097 = vmatpush.msra.mxu0 %v8096
        %v8098 = vand.u32 %v551, 4294901760
        %v8099 = vsub.f32 %v551, %v8098
        %v8100 = vand.u32 %v8099, 4294901760
        %8101 = vmatpush.msra.mxu0 %v8100
        %v8102 = vand.u32 %v543, 4294901760
        %v8103 = vsub.f32 %v543, %v8102
        %v8104 = vand.u32 %v8103, 4294901760
        %8105 = vmatpush.msra.mxu0 %v8104
        %v8106 = vand.u32 %v535, 4294901760
        %v8107 = vsub.f32 %v535, %v8106
        %v8108 = vand.u32 %v8107, 4294901760
        %8109 = vmatpush.msra.mxu0 %v8108
        %v8110 = vand.u32 %v527, 4294901760
        %v8111 = vsub.f32 %v527, %v8110
        %v8112 = vand.u32 %v8111, 4294901760
        %8113 = vmatpush.msra.mxu0 %v8112
        %v8114 = vand.u32 %v519, 4294901760
        %v8115 = vsub.f32 %v519, %v8114
        %v8116 = vand.u32 %v8115, 4294901760
        %8117 = vmatpush.msra.mxu0 %v8116
        %v8118 = vand.u32 %v738, 4294901760
        %8119 = vmatmul.f32.gmra.mxu0 %v8118
        %v8120 = vpop.f32.mrf.mxu0
        %v8121 = vadd.f32 %v8052, %v8120
        %8122 = vdwg.mxu0
        %v8123 = vand.u32 %v639, 4294901760
        %8124 = vmatpush.msra.mxu0 %v8123
        %v8125 = vand.u32 %v631, 4294901760
        %8126 = vmatpush.msra.mxu0 %v8125
        %v8127 = vand.u32 %v623, 4294901760
        %8128 = vmatpush.msra.mxu0 %v8127
        %v8129 = vand.u32 %v615, 4294901760
        %8130 = vmatpush.msra.mxu0 %v8129
        %v8131 = vand.u32 %v607, 4294901760
        %8132 = vmatpush.msra.mxu0 %v8131
        %v8133 = vand.u32 %v599, 4294901760
        %8134 = vmatpush.msra.mxu0 %v8133
        %v8135 = vand.u32 %v591, 4294901760
        %8136 = vmatpush.msra.mxu0 %v8135
        %v8137 = vand.u32 %v583, 4294901760
        %8138 = vmatpush.msra.mxu0 %v8137
        %v8139 = vand.u32 %v575, 4294901760
        %8140 = vmatpush.msra.mxu0 %v8139
        %v8141 = vand.u32 %v567, 4294901760
        %8142 = vmatpush.msra.mxu0 %v8141
        %v8143 = vand.u32 %v559, 4294901760
        %8144 = vmatpush.msra.mxu0 %v8143
        %v8145 = vand.u32 %v551, 4294901760
        %8146 = vmatpush.msra.mxu0 %v8145
        %v8147 = vand.u32 %v543, 4294901760
        %8148 = vmatpush.msra.mxu0 %v8147
        %v8149 = vand.u32 %v535, 4294901760
        %8150 = vmatpush.msra.mxu0 %v8149
        %v8151 = vand.u32 %v527, 4294901760
        %8152 = vmatpush.msra.mxu0 %v8151
        %v8153 = vand.u32 %v519, 4294901760
        %8154 = vmatpush.msra.mxu0 %v8153
        %v8155 = vand.u32 %v738, 4294901760
        %8156 = vmatmul.f32.gmra.mxu0 %v8155
        %v8157 = vpop.f32.mrf.mxu0
        %v8158 = vadd.f32 %v8121, %v8157
        %8159 = vdwg.mxu0
        %8160 = vmatpush.msra.mxu0 0.0
        %8161 = vmatpush.msra.mxu0 0.0
        %8162 = vmatpush.msra.mxu0 0.0
        %8163 = vmatpush.msra.mxu0 0.0
        %8164 = vmatpush.msra.mxu0 0.0
        %v8165 = vand.u32 %v727, 4294901760
        %8166 = vmatpush.msra.mxu0 %v8165
        %v8167 = vand.u32 %v719, 4294901760
        %8168 = vmatpush.msra.mxu0 %v8167
        %v8169 = vand.u32 %v711, 4294901760
        %8170 = vmatpush.msra.mxu0 %v8169
        %v8171 = vand.u32 %v703, 4294901760
        %8172 = vmatpush.msra.mxu0 %v8171
        %v8173 = vand.u32 %v695, 4294901760
        %8174 = vmatpush.msra.mxu0 %v8173
        %v8175 = vand.u32 %v687, 4294901760
        %8176 = vmatpush.msra.mxu0 %v8175
        %v8177 = vand.u32 %v679, 4294901760
        %8178 = vmatpush.msra.mxu0 %v8177
        %v8179 = vand.u32 %v671, 4294901760
        %8180 = vmatpush.msra.mxu0 %v8179
        %v8181 = vand.u32 %v663, 4294901760
        %8182 = vmatpush.msra.mxu0 %v8181
        %v8183 = vand.u32 %v655, 4294901760
        %8184 = vmatpush.msra.mxu0 %v8183
        %v8185 = vand.u32 %v647, 4294901760
        %8186 = vmatpush.msra.mxu0 %v8185
        %v8187 = vand.u32 %v770, 4294901760
        %v8188 = vsub.f32 %v770, %v8187
        %v8189 = vand.u32 %v8188, 4294901760
        %v8190 = vsub.f32 %v8188, %v8189
        %v8191 = vand.u32 %v8190, 4294901760
        %8192 = vmatmul.f32.gmra.mxu0 %v8191
        %v8193 = vpop.f32.mrf.mxu0
        %v8194 = vadd.f32 %v8158, %v8193
        %8195 = vdwg.mxu0
        %8196 = vmatpush.msra.mxu0 0.0
        %8197 = vmatpush.msra.mxu0 0.0
        %8198 = vmatpush.msra.mxu0 0.0
        %8199 = vmatpush.msra.mxu0 0.0
        %8200 = vmatpush.msra.mxu0 0.0
        %v8201 = vand.u32 %v727, 4294901760
        %v8202 = vsub.f32 %v727, %v8201
        %v8203 = vand.u32 %v8202, 4294901760
        %v8204 = vsub.f32 %v8202, %v8203
        %v8205 = vand.u32 %v8204, 4294901760
        %8206 = vmatpush.msra.mxu0 %v8205
        %v8207 = vand.u32 %v719, 4294901760
        %v8208 = vsub.f32 %v719, %v8207
        %v8209 = vand.u32 %v8208, 4294901760
        %v8210 = vsub.f32 %v8208, %v8209
        %v8211 = vand.u32 %v8210, 4294901760
        %8212 = vmatpush.msra.mxu0 %v8211
        %v8213 = vand.u32 %v711, 4294901760
        %v8214 = vsub.f32 %v711, %v8213
        %v8215 = vand.u32 %v8214, 4294901760
        %v8216 = vsub.f32 %v8214, %v8215
        %v8217 = vand.u32 %v8216, 4294901760
        %8218 = vmatpush.msra.mxu0 %v8217
        %v8219 = vand.u32 %v703, 4294901760
        %v8220 = vsub.f32 %v703, %v8219
        %v8221 = vand.u32 %v8220, 4294901760
        %v8222 = vsub.f32 %v8220, %v8221
        %v8223 = vand.u32 %v8222, 4294901760
        %8224 = vmatpush.msra.mxu0 %v8223
        %v8225 = vand.u32 %v695, 4294901760
        %v8226 = vsub.f32 %v695, %v8225
        %v8227 = vand.u32 %v8226, 4294901760
        %v8228 = vsub.f32 %v8226, %v8227
        %v8229 = vand.u32 %v8228, 4294901760
        %8230 = vmatpush.msra.mxu0 %v8229
        %v8231 = vand.u32 %v687, 4294901760
        %v8232 = vsub.f32 %v687, %v8231
        %v8233 = vand.u32 %v8232, 4294901760
        %v8234 = vsub.f32 %v8232, %v8233
        %v8235 = vand.u32 %v8234, 4294901760
        %8236 = vmatpush.msra.mxu0 %v8235
        %v8237 = vand.u32 %v679, 4294901760
        %v8238 = vsub.f32 %v679, %v8237
        %v8239 = vand.u32 %v8238, 4294901760
        %v8240 = vsub.f32 %v8238, %v8239
        %v8241 = vand.u32 %v8240, 4294901760
        %8242 = vmatpush.msra.mxu0 %v8241
        %v8243 = vand.u32 %v671, 4294901760
        %v8244 = vsub.f32 %v671, %v8243
        %v8245 = vand.u32 %v8244, 4294901760
        %v8246 = vsub.f32 %v8244, %v8245
        %v8247 = vand.u32 %v8246, 4294901760
        %8248 = vmatpush.msra.mxu0 %v8247
        %v8249 = vand.u32 %v663, 4294901760
        %v8250 = vsub.f32 %v663, %v8249
        %v8251 = vand.u32 %v8250, 4294901760
        %v8252 = vsub.f32 %v8250, %v8251
        %v8253 = vand.u32 %v8252, 4294901760
        %8254 = vmatpush.msra.mxu0 %v8253
        %v8255 = vand.u32 %v655, 4294901760
        %v8256 = vsub.f32 %v655, %v8255
        %v8257 = vand.u32 %v8256, 4294901760
        %v8258 = vsub.f32 %v8256, %v8257
        %v8259 = vand.u32 %v8258, 4294901760
        %8260 = vmatpush.msra.mxu0 %v8259
        %v8261 = vand.u32 %v647, 4294901760
        %v8262 = vsub.f32 %v647, %v8261
        %v8263 = vand.u32 %v8262, 4294901760
        %v8264 = vsub.f32 %v8262, %v8263
        %v8265 = vand.u32 %v8264, 4294901760
        %8266 = vmatpush.msra.mxu0 %v8265
        %v8267 = vand.u32 %v770, 4294901760
        %8268 = vmatmul.f32.gmra.mxu0 %v8267
        %v8269 = vpop.f32.mrf.mxu0
        %v8270 = vadd.f32 %v8194, %v8269
        %8271 = vdwg.mxu0
        %8272 = vmatpush.msra.mxu0 0.0
        %8273 = vmatpush.msra.mxu0 0.0
        %8274 = vmatpush.msra.mxu0 0.0
        %8275 = vmatpush.msra.mxu0 0.0
        %8276 = vmatpush.msra.mxu0 0.0
        %v8277 = vand.u32 %v727, 4294901760
        %v8278 = vsub.f32 %v727, %v8277
        %8279 = vmatpush.msra.mxu0 %v8278
        %v8280 = vand.u32 %v719, 4294901760
        %v8281 = vsub.f32 %v719, %v8280
        %8282 = vmatpush.msra.mxu0 %v8281
        %v8283 = vand.u32 %v711, 4294901760
        %v8284 = vsub.f32 %v711, %v8283
        %8285 = vmatpush.msra.mxu0 %v8284
        %v8286 = vand.u32 %v703, 4294901760
        %v8287 = vsub.f32 %v703, %v8286
        %8288 = vmatpush.msra.mxu0 %v8287
        %v8289 = vand.u32 %v695, 4294901760
        %v8290 = vsub.f32 %v695, %v8289
        %8291 = vmatpush.msra.mxu0 %v8290
        %v8292 = vand.u32 %v687, 4294901760
        %v8293 = vsub.f32 %v687, %v8292
        %8294 = vmatpush.msra.mxu0 %v8293
        %v8295 = vand.u32 %v679, 4294901760
        %v8296 = vsub.f32 %v679, %v8295
        %8297 = vmatpush.msra.mxu0 %v8296
        %v8298 = vand.u32 %v671, 4294901760
        %v8299 = vsub.f32 %v671, %v8298
        %8300 = vmatpush.msra.mxu0 %v8299
        %v8301 = vand.u32 %v663, 4294901760
        %v8302 = vsub.f32 %v663, %v8301
        %8303 = vmatpush.msra.mxu0 %v8302
        %v8304 = vand.u32 %v655, 4294901760
        %v8305 = vsub.f32 %v655, %v8304
        %8306 = vmatpush.msra.mxu0 %v8305
        %v8307 = vand.u32 %v647, 4294901760
        %v8308 = vsub.f32 %v647, %v8307
        %8309 = vmatpush.msra.mxu0 %v8308
        %v8310 = vand.u32 %v770, 4294901760
        %v8311 = vsub.f32 %v770, %v8310
        %8312 = vmatmul.f32.gmra.mxu0 %v8311
        %v8313 = vpop.f32.mrf.mxu0
        %v8314 = vadd.f32 %v8270, %v8313
        %8315 = vdwg.mxu0
        %8316 = vmatpush.msra.mxu0 0.0
        %8317 = vmatpush.msra.mxu0 0.0
        %8318 = vmatpush.msra.mxu0 0.0
        %8319 = vmatpush.msra.mxu0 0.0
        %8320 = vmatpush.msra.mxu0 0.0
        %v8321 = vand.u32 %v727, 4294901760
        %8322 = vmatpush.msra.mxu0 %v8321
        %v8323 = vand.u32 %v719, 4294901760
        %8324 = vmatpush.msra.mxu0 %v8323
        %v8325 = vand.u32 %v711, 4294901760
        %8326 = vmatpush.msra.mxu0 %v8325
        %v8327 = vand.u32 %v703, 4294901760
        %8328 = vmatpush.msra.mxu0 %v8327
        %v8329 = vand.u32 %v695, 4294901760
        %8330 = vmatpush.msra.mxu0 %v8329
        %v8331 = vand.u32 %v687, 4294901760
        %8332 = vmatpush.msra.mxu0 %v8331
        %v8333 = vand.u32 %v679, 4294901760
        %8334 = vmatpush.msra.mxu0 %v8333
        %v8335 = vand.u32 %v671, 4294901760
        %8336 = vmatpush.msra.mxu0 %v8335
        %v8337 = vand.u32 %v663, 4294901760
        %8338 = vmatpush.msra.mxu0 %v8337
        %v8339 = vand.u32 %v655, 4294901760
        %8340 = vmatpush.msra.mxu0 %v8339
        %v8341 = vand.u32 %v647, 4294901760
        %8342 = vmatpush.msra.mxu0 %v8341
        %v8343 = vand.u32 %v770, 4294901760
        %v8344 = vsub.f32 %v770, %v8343
        %v8345 = vand.u32 %v8344, 4294901760
        %8346 = vmatmul.f32.gmra.mxu0 %v8345
        %v8347 = vpop.f32.mrf.mxu0
        %v8348 = vadd.f32 %v8314, %v8347
        %8349 = vdwg.mxu0
        %8350 = vmatpush.msra.mxu0 0.0
        %8351 = vmatpush.msra.mxu0 0.0
        %8352 = vmatpush.msra.mxu0 0.0
        %8353 = vmatpush.msra.mxu0 0.0
        %8354 = vmatpush.msra.mxu0 0.0
        %v8355 = vand.u32 %v727, 4294901760
        %v8356 = vsub.f32 %v727, %v8355
        %v8357 = vand.u32 %v8356, 4294901760
        %8358 = vmatpush.msra.mxu0 %v8357
        %v8359 = vand.u32 %v719, 4294901760
        %v8360 = vsub.f32 %v719, %v8359
        %v8361 = vand.u32 %v8360, 4294901760
        %8362 = vmatpush.msra.mxu0 %v8361
        %v8363 = vand.u32 %v711, 4294901760
        %v8364 = vsub.f32 %v711, %v8363
        %v8365 = vand.u32 %v8364, 4294901760
        %8366 = vmatpush.msra.mxu0 %v8365
        %v8367 = vand.u32 %v703, 4294901760
        %v8368 = vsub.f32 %v703, %v8367
        %v8369 = vand.u32 %v8368, 4294901760
        %8370 = vmatpush.msra.mxu0 %v8369
        %v8371 = vand.u32 %v695, 4294901760
        %v8372 = vsub.f32 %v695, %v8371
        %v8373 = vand.u32 %v8372, 4294901760
        %8374 = vmatpush.msra.mxu0 %v8373
        %v8375 = vand.u32 %v687, 4294901760
        %v8376 = vsub.f32 %v687, %v8375
        %v8377 = vand.u32 %v8376, 4294901760
        %8378 = vmatpush.msra.mxu0 %v8377
        %v8379 = vand.u32 %v679, 4294901760
        %v8380 = vsub.f32 %v679, %v8379
        %v8381 = vand.u32 %v8380, 4294901760
        %8382 = vmatpush.msra.mxu0 %v8381
        %v8383 = vand.u32 %v671, 4294901760
        %v8384 = vsub.f32 %v671, %v8383
        %v8385 = vand.u32 %v8384, 4294901760
        %8386 = vmatpush.msra.mxu0 %v8385
        %v8387 = vand.u32 %v663, 4294901760
        %v8388 = vsub.f32 %v663, %v8387
        %v8389 = vand.u32 %v8388, 4294901760
        %8390 = vmatpush.msra.mxu0 %v8389
        %v8391 = vand.u32 %v655, 4294901760
        %v8392 = vsub.f32 %v655, %v8391
        %v8393 = vand.u32 %v8392, 4294901760
        %8394 = vmatpush.msra.mxu0 %v8393
        %v8395 = vand.u32 %v647, 4294901760
        %v8396 = vsub.f32 %v647, %v8395
        %v8397 = vand.u32 %v8396, 4294901760
        %8398 = vmatpush.msra.mxu0 %v8397
        %v8399 = vand.u32 %v770, 4294901760
        %8400 = vmatmul.f32.gmra.mxu0 %v8399
        %v8401 = vpop.f32.mrf.mxu0
        %v8402 = vadd.f32 %v8348, %v8401
        %8403 = vdwg.mxu0
        %8404 = vmatpush.msra.mxu0 0.0
        %8405 = vmatpush.msra.mxu0 0.0
        %8406 = vmatpush.msra.mxu0 0.0
        %8407 = vmatpush.msra.mxu0 0.0
        %8408 = vmatpush.msra.mxu0 0.0
        %v8409 = vand.u32 %v727, 4294901760
        %8410 = vmatpush.msra.mxu0 %v8409
        %v8411 = vand.u32 %v719, 4294901760
        %8412 = vmatpush.msra.mxu0 %v8411
        %v8413 = vand.u32 %v711, 4294901760
        %8414 = vmatpush.msra.mxu0 %v8413
        %v8415 = vand.u32 %v703, 4294901760
        %8416 = vmatpush.msra.mxu0 %v8415
        %v8417 = vand.u32 %v695, 4294901760
        %8418 = vmatpush.msra.mxu0 %v8417
        %v8419 = vand.u32 %v687, 4294901760
        %8420 = vmatpush.msra.mxu0 %v8419
        %v8421 = vand.u32 %v679, 4294901760
        %8422 = vmatpush.msra.mxu0 %v8421
        %v8423 = vand.u32 %v671, 4294901760
        %8424 = vmatpush.msra.mxu0 %v8423
        %v8425 = vand.u32 %v663, 4294901760
        %8426 = vmatpush.msra.mxu0 %v8425
        %v8427 = vand.u32 %v655, 4294901760
        %8428 = vmatpush.msra.mxu0 %v8427
        %v8429 = vand.u32 %v647, 4294901760
        %8430 = vmatpush.msra.mxu0 %v8429
        %v8431 = vand.u32 %v770, 4294901760
        %8432 = vmatmul.f32.gmra.mxu0 %v8431
        %v8433 = vpop.f32.mrf.mxu0
        %v8434 = vadd.f32 %v8402, %v8433
        %8435 = vdwg.mxu0
        %vm8436 = vcmask 1043456
        %v8437 = vsel %vm8436, %v1728, 0.0
        %v8438 = vsel %vm8436, %v2686, 0.0
        %v8439 = vadd.f32 %v8437, %v8438
        %v8440 = vsel %vm8436, %v3644, 0.0
        %v8441 = vadd.f32 %v8439, %v8440
        %v8442 = vsel %vm8436, %v4602, 0.0
        %v8443 = vadd.f32 %v8441, %v8442
        %v8444 = vsel %vm8436, %v5560, 0.0
        %v8445 = vadd.f32 %v8443, %v8444
        %v8446 = vsel %vm8436, %v6518, 0.0
        %v8447 = vadd.f32 %v8445, %v8446
        %v8448 = vsel %vm8436, %v7476, 0.0
        %v8449 = vadd.f32 %v8447, %v8448
        %v8450 = vsel %vm8436, %v8434, 0.0
        %v8451 = vadd.f32 %v8449, %v8450
        %8452 = vadd.xlane.f32.xlu0 %v8451
        %v8453 = vpop.xlane.xlu0 %8452
        %v8454 = vmul.f32 %v8453, 0.0009765625
        %v8455 = vsub.f32 %v1728, %v8454
        %v8456 = vsub.f32 %v2686, %v8454
        %v8457 = vsub.f32 %v3644, %v8454
        %v8458 = vsub.f32 %v4602, %v8454
        %v8459 = vsub.f32 %v5560, %v8454
        %v8460 = vsub.f32 %v6518, %v8454
        %v8461 = vsub.f32 %v7476, %v8454
        %v8462 = vsub.f32 %v8434, %v8454
        %v8463 = vmul.f32 %v8455, %v8455
        %v8464 = vmul.f32 %v8456, %v8456
        %v8465 = vmul.f32 %v8457, %v8457
        %v8466 = vmul.f32 %v8458, %v8458
        %v8467 = vmul.f32 %v8459, %v8459
        %v8468 = vmul.f32 %v8460, %v8460
        %v8469 = vmul.f32 %v8461, %v8461
        %v8470 = vmul.f32 %v8462, %v8462
        %v8471 = vsel %vm8436, %v8463, 0.0
        %v8472 = vsel %vm8436, %v8464, 0.0
        %v8473 = vadd.f32 %v8471, %v8472
        %v8474 = vsel %vm8436, %v8465, 0.0
        %v8475 = vadd.f32 %v8473, %v8474
        %v8476 = vsel %vm8436, %v8466, 0.0
        %v8477 = vadd.f32 %v8475, %v8476
        %v8478 = vsel %vm8436, %v8467, 0.0
        %v8479 = vadd.f32 %v8477, %v8478
        %v8480 = vsel %vm8436, %v8468, 0.0
        %v8481 = vadd.f32 %v8479, %v8480
        %v8482 = vsel %vm8436, %v8469, 0.0
        %v8483 = vadd.f32 %v8481, %v8482
        %v8484 = vsel %vm8436, %v8470, 0.0
        %v8485 = vadd.f32 %v8483, %v8484
        %8486 = vadd.xlane.f32.xlu0 %v8485
        %v8487 = vpop.xlane.xlu0 %8486
        %v8488 = vmul.f32 %v8487, 0.0009765625
        %v8489 = vadd.f32 %v8488, 1e-05
        %v8490 = vrsqrt.pop %v8489
        %v8491 = vmul.f32 %v8490, %v8489
        %v8492 = vmul.f32 %v8491, %v8490
        %v8493 = vmul.f32 0.5, %v8492
        %v8494 = vsub.f32 1.5, %v8493
        %v8495 = vmul.f32 %v8490, %v8494
        %vm8496 = vweird.f32 %v8489
        %vm8497 = vweird.f32 %v8490
        %vm8498 = vmor %vm8496, %vm8497
        %v8499 = vsel %vm8498, %v8490, %v8495
        %v8500 = vld [vmem:[%s369] sm:$0xf]
        %v8501 = vmul.f32 %v8499, %v8500
        %8503 = vset.pattern.permute.xlu0 0
        %8504 = vperm.xlu0 %8503, %v8501
        %v8505 = vpop.permute.xlu0 %8504
        %v8507 = vmul.f32 %v8455, %v8505
        %v8508 = vmul.f32 %v8456, %v8505
        %v8509 = vmul.f32 %v8457, %v8505
        %v8510 = vmul.f32 %v8458, %v8505
        %v8511 = vmul.f32 %v8459, %v8505
        %v8512 = vmul.f32 %v8460, %v8505
        %v8513 = vmul.f32 %v8461, %v8505
        %v8514 = vmul.f32 %v8462, %v8505
        %v8515 = vld [vmem:[%s373] sm:$0xf]
        %8517 = vset.pattern.permute.xlu0 0
        %8518 = vperm.xlu0 %8517, %v8515
        %v8519 = vpop.permute.xlu0 %8518
        %v8521 = vadd.f32 %v8507, %v8519
        %v8522 = vadd.f32 %v8508, %v8519
        %v8523 = vadd.f32 %v8509, %v8519
        %v8524 = vadd.f32 %v8510, %v8519
        %v8525 = vadd.f32 %v8511, %v8519
        %v8526 = vadd.f32 %v8512, %v8519
        %v8527 = vadd.f32 %v8513, %v8519
        %v8528 = vadd.f32 %v8514, %v8519
        %vm8529 = vcmp.gt.f32.partialorder %v8521, 0.0
        %vm8530 = vcmp.gt.f32.partialorder %v8522, 0.0
        %vm8531 = vcmp.gt.f32.partialorder %v8523, 0.0
        %vm8532 = vcmp.gt.f32.partialorder %v8524, 0.0
        %vm8533 = vcmp.gt.f32.partialorder %v8525, 0.0
        %vm8534 = vcmp.gt.f32.partialorder %v8526, 0.0
        %vm8535 = vcmp.gt.f32.partialorder %v8527, 0.0
        %vm8536 = vcmp.gt.f32.partialorder %v8528, 0.0
        %v8537 = vmul.f32 %v8521, 0.01
        %v8538 = vmul.f32 %v8522, 0.01
        %v8539 = vmul.f32 %v8523, 0.01
        %v8540 = vmul.f32 %v8524, 0.01
        %v8541 = vmul.f32 %v8525, 0.01
        %v8542 = vmul.f32 %v8526, 0.01
        %v8543 = vmul.f32 %v8527, 0.01
        %v8544 = vmul.f32 %v8528, 0.01
        %v8545 = vsel %vm8529, %v8521, %v8537
        %v8546 = vsel %vm8530, %v8522, %v8538
        %v8547 = vsel %vm8531, %v8523, %v8539
        %v8548 = vsel %vm8532, %v8524, %v8540
        %v8549 = vsel %vm8533, %v8525, %v8541
        %v8550 = vsel %vm8534, %v8526, %v8542
        %v8551 = vsel %vm8535, %v8527, %v8543
        %v8552 = vsel %vm8536, %v8528, %v8544
        %v8553 = vld [vmem:[%s377] sm:$0xf]
        %8555 = vset.pattern.permute.xlu0 0
        %8556 = vperm.xlu0 %8555, %v8553
        %v8557 = vpop.permute.xlu0 %8556
        %v8559 = vmul.f32 %v8545, %v8557
        %v8560 = vmul.f32 %v8546, %v8557
        %v8561 = vmul.f32 %v8547, %v8557
        %v8562 = vmul.f32 %v8548, %v8557
        %v8563 = vmul.f32 %v8549, %v8557
        %v8564 = vmul.f32 %v8550, %v8557
        %v8565 = vmul.f32 %v8551, %v8557
        %v8566 = vmul.f32 %v8552, %v8557
        %v8567 = vsel %vm8436, %v8559, 0.0
        %v8568 = vrot.slane %v8567, 4
        %v8569 = vadd.f32 %v8567, %v8568
        %v8570 = vrot.slane %v8569, 2
        %v8571 = vadd.f32 %v8569, %v8570
        %v8572 = vrot.slane %v8571, 1
        %v8573 = vadd.f32 %v8571, %v8572
        %v8574 = vsel %vm8436, %v8560, 0.0
        %v8575 = vrot.slane %v8574, 4
        %v8576 = vadd.f32 %v8574, %v8575
        %v8577 = vrot.slane %v8576, 2
        %v8578 = vadd.f32 %v8576, %v8577
        %v8579 = vrot.slane %v8578, 1
        %v8580 = vadd.f32 %v8578, %v8579
        %v8581 = vsel %vm8436, %v8561, 0.0
        %v8582 = vrot.slane %v8581, 4
        %v8583 = vadd.f32 %v8581, %v8582
        %v8584 = vrot.slane %v8583, 2
        %v8585 = vadd.f32 %v8583, %v8584
        %v8586 = vrot.slane %v8585, 1
        %v8587 = vadd.f32 %v8585, %v8586
        %v8588 = vsel %vm8436, %v8562, 0.0
        %v8589 = vrot.slane %v8588, 4
        %v8590 = vadd.f32 %v8588, %v8589
        %v8591 = vrot.slane %v8590, 2
        %v8592 = vadd.f32 %v8590, %v8591
        %v8593 = vrot.slane %v8592, 1
        %v8594 = vadd.f32 %v8592, %v8593
        %v8595 = vsel %vm8436, %v8563, 0.0
        %v8596 = vrot.slane %v8595, 4
        %v8597 = vadd.f32 %v8595, %v8596
        %v8598 = vrot.slane %v8597, 2
        %v8599 = vadd.f32 %v8597, %v8598
        %v8600 = vrot.slane %v8599, 1
        %v8601 = vadd.f32 %v8599, %v8600
        %v8602 = vsel %vm8436, %v8564, 0.0
        %v8603 = vrot.slane %v8602, 4
        %v8604 = vadd.f32 %v8602, %v8603
        %v8605 = vrot.slane %v8604, 2
        %v8606 = vadd.f32 %v8604, %v8605
        %v8607 = vrot.slane %v8606, 1
        %v8608 = vadd.f32 %v8606, %v8607
        %v8609 = vsel %vm8436, %v8565, 0.0
        %v8610 = vrot.slane %v8609, 4
        %v8611 = vadd.f32 %v8609, %v8610
        %v8612 = vrot.slane %v8611, 2
        %v8613 = vadd.f32 %v8611, %v8612
        %v8614 = vrot.slane %v8613, 1
        %v8615 = vadd.f32 %v8613, %v8614
        %v8616 = vsel %vm8436, %v8566, 0.0
        %v8617 = vrot.slane %v8616, 4
        %v8618 = vadd.f32 %v8616, %v8617
        %v8619 = vrot.slane %v8618, 2
        %v8620 = vadd.f32 %v8618, %v8619
        %v8621 = vrot.slane %v8620, 1
        %v8622 = vadd.f32 %v8620, %v8621
        %s8623 = sld [smem:[#allocation2 + %s19]]
        %v8624 = vstv %s8623
        %v8625 = vadd.f32 %v8573, %v8624
        %v8626 = vadd.f32 %v8580, %v8624
        %v8627 = vadd.f32 %v8587, %v8624
        %v8628 = vadd.f32 %v8594, %v8624
        %v8629 = vadd.f32 %v8601, %v8624
        %v8630 = vadd.f32 %v8608, %v8624
        %v8631 = vadd.f32 %v8615, %v8624
        %v8632 = vadd.f32 %v8622, %v8624
        %s8633 = scalar_lea.vmem %s355, 1347
        %v8634 = vld [vmem:[%s8633] ss:$8 sm:$0xf]
        %v8635 = vld [vmem:[%s8633] ss:$8 sm:$0xf0]
        %v8636 = vor.u32 %v8634, %v8635
        %v8638 = vperm.slane %v8636, 0
        %v8639 = vperm.slane %v8636, 1
        %v8640 = vperm.slane %v8636, 2
        %v8641 = vperm.slane %v8636, 3
        %v8642 = vperm.slane %v8636, 4
        %v8643 = vperm.slane %v8636, 5
        %v8644 = vperm.slane %v8636, 6
        %v8645 = vperm.slane %v8636, 7
        %v8654 = vadd.f32 %v8625, %v8638
        %v8655 = vadd.f32 %v8626, %v8639
        %v8656 = vadd.f32 %v8627, %v8640
        %v8657 = vadd.f32 %v8628, %v8641
        %v8658 = vadd.f32 %v8629, %v8642
        %v8659 = vadd.f32 %v8630, %v8643
        %v8660 = vadd.f32 %v8631, %v8644
        %v8661 = vadd.f32 %v8632, %v8645
        %v8670 = vrot.slane %v8655, 7
        %v8671 = vrot.slane %v8656, 6
        %v8672 = vrot.slane %v8657, 5
        %v8673 = vrot.slane %v8658, 4
        %v8674 = vrot.slane %v8659, 3
        %v8675 = vrot.slane %v8660, 2
        %v8676 = vrot.slane %v8661, 1
        %vm8677 = vcmask 1040384
        %v8678 = vsel %vm8677, %v8654, %v8670
        %vm8679 = vcmask 1042434
        %v8680 = vsel %vm8679, %v8671, %v8672
        %vm8681 = vcmask 1041408
        %v8682 = vsel %vm8681, %v8678, %v8680
        %vm8683 = vcmask 1044484
        %v8684 = vsel %vm8683, %v8673, %v8674
        %vm8685 = vcmask 1046534
        %v8686 = vsel %vm8685, %v8675, %v8676
        %vm8687 = vcmask 1045508
        %v8688 = vsel %vm8687, %v8684, %v8686
        %v8689 = vsel %vm8436, %v8682, %v8688
        %8691 = vst [vmem:[%s381] sm:$0xff] %v8689
        %p8692 = scmp.lt.s32.totalorder %s19, 3
        %s8693 = scalar_select %p8692, %s19, 3
        %s8694 = smul.addr %s8693, 8
        %s8695 = scalar_lea.vmem %s7, %s8694
        // Predicated region
        $region53: #{lbrom_forward.1} parent=47 // pred_check
          %p8696 = pneg %p214
        $region54: #{lbrom_forward.1} parent=47 // pred_check_branch
          %8698 = sbr.rel (%p8696) target = $region56
        $region55: #{lbrom_forward.1} parent=47 // pred_region
          _
        $region56: #{lbrom_forward.1} parent=47 // pred_fallthru
          _
      $region48: #{lbrom_forward.1} parent=5 // pred_fallthru
        _
      %p8699 = scmp.le.s32.totalorder 2, %s14
      // Predicated region
      $region57: #{lbrom_forward.1} parent=5 // pred_check
        %p8700 = pneg %p8699
      $region58: #{lbrom_forward.1} parent=5 // pred_check_branch
        %8702 = sbr.rel (%p8700) target = $region60
      $region59: #{lbrom_forward.1} parent=5 // pred_region
        %s8703 = ssub.s32 %s14, 2
        // Predicated region
        $region61: #{lbrom_forward.1} parent=59 // pred_check
          %p8704 = pneg %p220
        $region62: #{lbrom_forward.1} parent=59 // pred_check_branch
          %8706 = sbr.rel (%p8704) target = $region64
        $region63: #{lbrom_forward.1} parent=59 // pred_region
          %p8707 = scmp.lt.s32.totalorder %s20, 3
          %s8708 = scalar_select %p8707, %s20, 3
          %s8709 = smul.addr %s8708, 8
          %s8710 = scalar_lea.vmem %s7, %s8709
        $region64: #{lbrom_forward.1} parent=59 // pred_fallthru
          _
      $region60: #{lbrom_forward.1} parent=5 // pred_fallthru
        _
    $region6: #{lbrom_forward.1} parent=1 // loop_footer
      %s18 = sadd.s32 1, %s14
    $region7: #{lbrom_forward.1} parent=1 // loop_footer_branch
      %13 = sbr.rel target = $region3
    $region8: #{lbrom_forward.1} parent=1 // loop_exit
      _
    %8711 = vsyncpa [#allocation3], 1
    %s8712 = scalar_lea.sflag [#allocation3], 1
    %8713 = vsyncpa %s8712, 1

</llo_original>
